<compile_context>
chip_gen: v6e
topology: v6e:2x2x1
jax: 0.10.0
libtpu: 0.0.40
codegen_flags: <defaults>
</compile_context>

<pallas_src>
import functools

import jax
import jax.numpy as jnp
from jax.experimental import pallas as pl
from jax.experimental.pallas import tpu as pltpu


def _round_up(a, m):
    return ((a + m - 1) // m) * m


def _transition_kernel(x_ref, w1_ref, b1_ref, w2_ref, b2_ref, sel_ref, wm_ref,
                       out_ref, *, ne, dpad):
    x_f32 = x_ref[...].astype(jnp.float32)        # (TB, dpad) residual, f32
    x_mm = x_ref[...].astype(w1_ref.dtype)        # matmul input dtype (bf16/f32)

    # ---- alpha = Softmax(Linear(ReLU(Linear(x, 1024)), ne), dim=1) ----
    h = jnp.dot(x_mm, w1_ref[...], preferred_element_type=jnp.float32) + b1_ref[...]
    h = jnp.maximum(h, 0.0)                       # (TB, hidden) f32
    logits = jnp.dot(h.astype(w2_ref.dtype), w2_ref[...],
                     preferred_element_type=jnp.float32) + b2_ref[...]
    m = jnp.max(logits, axis=-1, keepdims=True)
    e = jnp.exp(logits - m)
    denom = jnp.sum(e, axis=-1, keepdims=True)
    inv = pl.reciprocal(denom, approx=True)       # EUP slot
    inv = inv * (2.0 - denom * inv)               # one Newton step -> ~f32 exact
    alpha = e * inv                               # (TB, ne) f32

    # ---- expand alpha across the ne lane-blocks on the MXU ----
    # sel[j, j'*dpad + o] = (j == j'), so alpha_exp[b, j*dpad + o] = alpha[b, j].
    # This replaces 32 cross-lane (XLU) broadcasts with one tiny matmul.
    alpha_exp = jnp.dot(alpha.astype(sel_ref.dtype), sel_ref[...],
                        preferred_element_type=jnp.float32)          # (TB, ne*dpad)

    # ---- fused "matrix(cat)":  y[b, j*dpad + o] = sum_i x[b,i]*wm[i*ne+j, o] ----
    y = jnp.dot(x_mm, wm_ref[...], preferred_element_type=jnp.float32)  # (TB, ne*dpad)

    # out = x + sum_j alpha[:, j] * y[:, j*dpad:(j+1)*dpad]
    # Lane-aligned 128-wide blocks, reduced with a binary add tree (pure VPU).
    parts = [alpha_exp[:, j * dpad:(j + 1) * dpad] * y[:, j * dpad:(j + 1) * dpad]
             for j in range(ne)]
    while len(parts) > 1:
        nxt = [parts[i] + parts[i + 1] for i in range(0, len(parts) - 1, 2)]
        if len(parts) % 2 == 1:
            nxt[-1] = nxt[-1] + parts[-1]
        parts = nxt

    out_ref[...] = (x_f32 + parts[0]).astype(out_ref.dtype)


def transition_forward(x, w1, b1, w2, b2, wm, *, ne, block_b=128,
                       matmul_dtype=jnp.bfloat16):
    """x: (B, dim_x). w1: (dim_x, hidden). b1: (hidden,). w2: (hidden, ne).
    b2: (ne,). wm: (dim_x*ne, dim_x)  (already transposed vs PyTorch)."""
    B, dim_x = x.shape
    hidden = w1.shape[1]

    dpad = max(128, pl.cdiv(dim_x, 128) * 128)    # lane-dense feature dim

    # Batch tiling: fill the MXU M dimension, but keep >=2 grid programs when
    # the batch allows so the "parallel" axis can shard across v7x's 2 TCs.
    bb = block_b
    if B <= bb:
        bb = max(8, _round_up(pl.cdiv(B, 2), 8))
    b_pad = _round_up(B, bb)

    # ---- wrapper-side layout prep (plain JAX glue) ----
    x_p = jnp.pad(x, ((0, b_pad - B), (0, dpad - dim_x)))
    w1_p = jnp.pad(w1, ((0, dpad - dim_x), (0, 0))).astype(matmul_dtype)
    w2_c = w2.astype(matmul_dtype)
    # wm[i*ne + j, o]  ->  wm_flat[i, j*dpad + o]  (j-major column blocks)
    wm_rs = wm.reshape(dim_x, ne, dim_x)
    wm_flat = jnp.pad(wm_rs, ((0, dpad - dim_x), (0, 0), (0, dpad - dim_x)))
    wm_flat = wm_flat.reshape(dpad, ne * dpad).astype(matmul_dtype)
    # block-indicator matrix for the alpha expansion matmul
    sel = jnp.repeat(jnp.eye(ne, dtype=jnp.float32), dpad, axis=1).astype(matmul_dtype)
    b1_2d = b1.reshape(1, hidden).astype(jnp.float32)
    b2_2d = b2.reshape(1, ne).astype(jnp.float32)

    kernel = functools.partial(_transition_kernel, ne=ne, dpad=dpad)

    # Cost hint for XLA's scheduler around the custom call.
    flops = 2 * b_pad * (dpad * hidden + hidden * ne + ne * ne * dpad
                         + dpad * ne * dpad)
    bytes_accessed = (
        x_p.size * x_p.dtype.itemsize + b_pad * dpad * 4
        + w1_p.size * w1_p.dtype.itemsize + w2_c.size * w2_c.dtype.itemsize
        + sel.size * sel.dtype.itemsize + wm_flat.size * wm_flat.dtype.itemsize
        + b1_2d.size * 4 + b2_2d.size * 4)
    cost = pl.CostEstimate(flops=int(flops), transcendentals=int(b_pad * ne),
                           bytes_accessed=int(bytes_accessed))

    vmem_limit = 32 * 1024 * 1024 if bb <= 128 else 48 * 1024 * 1024

    out = pl.pallas_call(
        kernel,
        out_shape=jax.ShapeDtypeStruct((b_pad, dpad), x.dtype),
        grid_spec=pltpu.PrefetchScalarGridSpec(
            num_scalar_prefetch=0,
            grid=(b_pad // bb,),
            in_specs=[
                pl.BlockSpec((bb, dpad), lambda i: (i, 0)),          # x
                pl.BlockSpec((dpad, hidden), lambda i: (0, 0)),      # w1
                pl.BlockSpec((1, hidden), lambda i: (0, 0)),         # b1
                pl.BlockSpec((hidden, ne), lambda i: (0, 0)),        # w2
                pl.BlockSpec((1, ne), lambda i: (0, 0)),             # b2
                pl.BlockSpec((ne, ne * dpad), lambda i: (0, 0)),     # sel (indicator)
                pl.BlockSpec((dpad, ne * dpad), lambda i: (0, 0)),   # wm_flat
            ],
            out_specs=pl.BlockSpec((bb, dpad), lambda i: (i, 0)),
        ),
        compiler_params=pltpu.CompilerParams(
            dimension_semantics=("parallel",),    # batch tiles shard across TCs
            vmem_limit_bytes=vmem_limit,
        ),
        cost_estimate=cost,
    )(x_p, w1_p, b1_2d, w2_c, b2_2d, sel, wm_flat)

    return out[:B, :dim_x]


def reference_forward(x, w1, b1, w2, b2, wm, *, ne):
    """Pure-JAX mirror of the PyTorch forward (for correctness check)."""
    h = jnp.maximum(x @ w1 + b1, 0.0)
    alpha = jax.nn.softmax(h @ w2 + b2, axis=1)             # (B, ne)
    x_ = x[:, :, None] @ alpha[:, None, :]                  # (B, dim_x, ne)
    cat = x_.reshape(x.shape[0], -1)                        # (B, dim_x*ne)
    return x + cat @ wm


if __name__ == "__main__":
    DIM_X, NE, HIDDEN, B = 100, 32, 1024, 256   # B=256, block_b=128 -> 2 programs

    key = jax.random.PRNGKey(0)
    kx, k1, kb1, k2, kb2, km = jax.random.split(key, 6)

    x = jax.random.normal(kx, (B, DIM_X), dtype=jnp.float32)
    # deterministic synthetic parameters (shapes from the module __init__)
    w1 = 0.05 * jax.random.normal(k1, (DIM_X, HIDDEN), dtype=jnp.float32)
    b1 = 0.05 * jax.random.normal(kb1, (HIDDEN,), dtype=jnp.float32)
    w2 = 0.05 * jax.random.normal(k2, (HIDDEN, NE), dtype=jnp.float32)
    b2 = 0.05 * jax.random.normal(kb2, (NE,), dtype=jnp.float32)
    wm = 0.05 * jax.random.normal(km, (DIM_X * NE, DIM_X), dtype=jnp.float32)

    ref = reference_forward(x, w1, b1, w2, b2, wm, ne=NE)

    # default fast path: bf16 matmul inputs / f32 accumulation (native MXU path
    # on v5e, v6e and v7x)
    out = jax.block_until_ready(
        transition_forward(x, w1, b1, w2, b2, wm, ne=NE, block_b=128))
    assert out.shape == (B, DIM_X)
    assert jnp.allclose(out, ref, atol=5e-2, rtol=5e-2), "bf16 mismatch vs reference"

    # f32 matmul-input path (sanity check; MXU default precision may still use
    # bf16 passes internally, so tolerance is looser than exact f32)
    out_f32 = jax.block_until_ready(
        transition_forward(x, w1, b1, w2, b2, wm, ne=NE, block_b=128,
                           matmul_dtype=jnp.float32))
    assert jnp.allclose(out_f32, ref, atol=5e-3, rtol=5e-3), "f32 mismatch vs reference"

    print("KERNEL_OK")
</pallas_src>

<mosaic_0001>
module attributes {stable_mosaic.version = 11 : i64} {
  func.func @_transition_kernel(%arg0: i32, %arg1: memref<128x128xf32, #tpu.memory_space<vmem>>, %arg2: memref<128x1024xbf16, #tpu.memory_space<vmem>>, %arg3: memref<1x1024xf32, #tpu.memory_space<vmem>>, %arg4: memref<1024x32xbf16, #tpu.memory_space<vmem>>, %arg5: memref<1x32xf32, #tpu.memory_space<vmem>>, %arg6: memref<32x4096xbf16, #tpu.memory_space<vmem>>, %arg7: memref<128x4096xbf16, #tpu.memory_space<vmem>>, %arg8: memref<128x128xf32, #tpu.memory_space<vmem>>) attributes {dimension_semantics = [#tpu.dimension_semantics<parallel>], iteration_bounds = array<i64: 2>, scalar_prefetch = 0 : i64, scratch_operands = 0 : i64, tpu.core_type = #tpu.core_type<tc>, window_params = [{transform_indices = @transform_0, window_bounds = array<i64: 128, 128>}, {pipeline_mode = #tpu.pipeline_mode<synchronous>, transform_indices = @transform_1, window_bounds = array<i64: 128, 1024>}, {pipeline_mode = #tpu.pipeline_mode<synchronous>, transform_indices = @transform_2, window_bounds = array<i64: 1, 1024>}, {pipeline_mode = #tpu.pipeline_mode<synchronous>, transform_indices = @transform_3, window_bounds = array<i64: 1024, 32>}, {pipeline_mode = #tpu.pipeline_mode<synchronous>, transform_indices = @transform_4, window_bounds = array<i64: 1, 32>}, {pipeline_mode = #tpu.pipeline_mode<synchronous>, transform_indices = @transform_5, window_bounds = array<i64: 32, 4096>}, {pipeline_mode = #tpu.pipeline_mode<synchronous>, transform_indices = @transform_6, window_bounds = array<i64: 128, 4096>}, {transform_indices = @transform_7, window_bounds = array<i64: 128, 128>}]} {
    %c0 = arith.constant 0 : index
    %c0_0 = arith.constant 0 : index
    %0 = vector.load %arg1[%c0, %c0_0] : memref<128x128xf32, #tpu.memory_space<vmem>>, vector<128x128xf32>
    %c0_1 = arith.constant 0 : index
    %c0_2 = arith.constant 0 : index
    %1 = vector.load %arg1[%c0_1, %c0_2] : memref<128x128xf32, #tpu.memory_space<vmem>>, vector<128x128xf32>
    %2 = arith.truncf %1 : vector<128x128xf32> to vector<128x128xbf16>
    %c0_3 = arith.constant 0 : index
    %c0_4 = arith.constant 0 : index
    %3 = vector.load %arg2[%c0_3, %c0_4] : memref<128x1024xbf16, #tpu.memory_space<vmem>>, vector<128x1024xbf16>
    %cst = arith.constant dense<0.000000e+00> : vector<128x1024xf32>
    %4 = tpu.matmul %2, %3, %cst {dimension_numbers = #tpu.dot_dimension_numbers<[1], [0], [0], [1], [0, 0, 1, 1], [], []>} : vector<128x128xbf16>, vector<128x1024xbf16>, vector<128x1024xf32> -> vector<128x1024xf32>
    %c0_5 = arith.constant 0 : index
    %c0_6 = arith.constant 0 : index
    %5 = vector.load %arg3[%c0_5, %c0_6] : memref<1x1024xf32, #tpu.memory_space<vmem>>, vector<1x1024xf32>
    %6 = vector.broadcast %5 : vector<1x1024xf32> to vector<128x1024xf32>
    %7 = arith.addf %4, %6 : vector<128x1024xf32>
    %cst_7 = arith.constant 0.000000e+00 : f32
    %8 = vector.broadcast %cst_7 : f32 to vector<128x1024xf32>
    %9 = arith.maximumf %7, %8 : vector<128x1024xf32>
    %10 = arith.truncf %9 : vector<128x1024xf32> to vector<128x1024xbf16>
    %c0_8 = arith.constant 0 : index
    %c0_9 = arith.constant 0 : index
    %11 = vector.load %arg4[%c0_8, %c0_9] : memref<1024x32xbf16, #tpu.memory_space<vmem>>, vector<1024x32xbf16>
    %cst_10 = arith.constant dense<0.000000e+00> : vector<128x32xf32>
    %12 = tpu.matmul %10, %11, %cst_10 {dimension_numbers = #tpu.dot_dimension_numbers<[1], [0], [0], [1], [0, 0, 1, 1], [], []>} : vector<128x1024xbf16>, vector<1024x32xbf16>, vector<128x32xf32> -> vector<128x32xf32>
    %c0_11 = arith.constant 0 : index
    %c0_12 = arith.constant 0 : index
    %13 = vector.load %arg5[%c0_11, %c0_12] : memref<1x32xf32, #tpu.memory_space<vmem>>, vector<1x32xf32>
    %14 = vector.broadcast %13 : vector<1x32xf32> to vector<128x32xf32>
    %15 = arith.addf %12, %14 : vector<128x32xf32>
    %cst_13 = arith.constant dense<0xFF800000> : vector<128xf32>
    %16 = vector.multi_reduction <maximumf>, %15, %cst_13 [1] : vector<128x32xf32> to vector<128xf32>
    %17 = vector.shape_cast %16 : vector<128xf32> to vector<128x1xf32>
    %18 = vector.broadcast %17 : vector<128x1xf32> to vector<128x32xf32>
    %19 = arith.subf %15, %18 : vector<128x32xf32>
    %20 = math.exp %19 : vector<128x32xf32>
    %cst_14 = arith.constant dense<0.000000e+00> : vector<128xf32>
    %21 = vector.multi_reduction <add>, %20, %cst_14 [1] : vector<128x32xf32> to vector<128xf32>
    %22 = vector.shape_cast %21 : vector<128xf32> to vector<128x1xf32>
    %23 = tpu.reciprocal %22 {approx = true} : vector<128x1xf32> -> vector<128x1xf32>
    %24 = arith.mulf %22, %23 : vector<128x1xf32>
    %cst_15 = arith.constant 2.000000e+00 : f32
    %25 = vector.broadcast %cst_15 : f32 to vector<128x1xf32>
    %26 = arith.subf %25, %24 : vector<128x1xf32>
    %27 = arith.mulf %23, %26 : vector<128x1xf32>
    %28 = vector.broadcast %27 : vector<128x1xf32> to vector<128x32xf32>
    %29 = arith.mulf %20, %28 : vector<128x32xf32>
    %30 = arith.truncf %29 : vector<128x32xf32> to vector<128x32xbf16>
    %c0_16 = arith.constant 0 : index
    %c0_17 = arith.constant 0 : index
    %31 = vector.load %arg6[%c0_16, %c0_17] : memref<32x4096xbf16, #tpu.memory_space<vmem>>, vector<32x4096xbf16>
    %cst_18 = arith.constant dense<0.000000e+00> : vector<128x4096xf32>
    %32 = tpu.matmul %30, %31, %cst_18 {dimension_numbers = #tpu.dot_dimension_numbers<[1], [0], [0], [1], [0, 0, 1, 1], [], []>} : vector<128x32xbf16>, vector<32x4096xbf16>, vector<128x4096xf32> -> vector<128x4096xf32>
    %c0_19 = arith.constant 0 : index
    %c0_20 = arith.constant 0 : index
    %33 = vector.load %arg7[%c0_19, %c0_20] : memref<128x4096xbf16, #tpu.memory_space<vmem>>, vector<128x4096xbf16>
    %cst_21 = arith.constant dense<0.000000e+00> : vector<128x4096xf32>
    %34 = tpu.matmul %2, %33, %cst_21 {dimension_numbers = #tpu.dot_dimension_numbers<[1], [0], [0], [1], [0, 0, 1, 1], [], []>} : vector<128x128xbf16>, vector<128x4096xbf16>, vector<128x4096xf32> -> vector<128x4096xf32>
    %35 = vector.extract_strided_slice %32 {offsets = [0, 0], sizes = [128, 128], strides = [1, 1]} : vector<128x4096xf32> to vector<128x128xf32>
    %36 = vector.extract_strided_slice %34 {offsets = [0, 0], sizes = [128, 128], strides = [1, 1]} : vector<128x4096xf32> to vector<128x128xf32>
    %37 = arith.mulf %35, %36 : vector<128x128xf32>
    %38 = vector.extract_strided_slice %32 {offsets = [0, 128], sizes = [128, 128], strides = [1, 1]} : vector<128x4096xf32> to vector<128x128xf32>
    %39 = vector.extract_strided_slice %34 {offsets = [0, 128], sizes = [128, 128], strides = [1, 1]} : vector<128x4096xf32> to vector<128x128xf32>
    %40 = arith.mulf %38, %39 : vector<128x128xf32>
    %41 = vector.extract_strided_slice %32 {offsets = [0, 256], sizes = [128, 128], strides = [1, 1]} : vector<128x4096xf32> to vector<128x128xf32>
    %42 = vector.extract_strided_slice %34 {offsets = [0, 256], sizes = [128, 128], strides = [1, 1]} : vector<128x4096xf32> to vector<128x128xf32>
    %43 = arith.mulf %41, %42 : vector<128x128xf32>
    %44 = vector.extract_strided_slice %32 {offsets = [0, 384], sizes = [128, 128], strides = [1, 1]} : vector<128x4096xf32> to vector<128x128xf32>
    %45 = vector.extract_strided_slice %34 {offsets = [0, 384], sizes = [128, 128], strides = [1, 1]} : vector<128x4096xf32> to vector<128x128xf32>
    %46 = arith.mulf %44, %45 : vector<128x128xf32>
    %47 = vector.extract_strided_slice %32 {offsets = [0, 512], sizes = [128, 128], strides = [1, 1]} : vector<128x4096xf32> to vector<128x128xf32>
    %48 = vector.extract_strided_slice %34 {offsets = [0, 512], sizes = [128, 128], strides = [1, 1]} : vector<128x4096xf32> to vector<128x128xf32>
    %49 = arith.mulf %47, %48 : vector<128x128xf32>
    %50 = vector.extract_strided_slice %32 {offsets = [0, 640], sizes = [128, 128], strides = [1, 1]} : vector<128x4096xf32> to vector<128x128xf32>
    %51 = vector.extract_strided_slice %34 {offsets = [0, 640], sizes = [128, 128], strides = [1, 1]} : vector<128x4096xf32> to vector<128x128xf32>
    %52 = arith.mulf %50, %51 : vector<128x128xf32>
    %53 = vector.extract_strided_slice %32 {offsets = [0, 768], sizes = [128, 128], strides = [1, 1]} : vector<128x4096xf32> to vector<128x128xf32>
    %54 = vector.extract_strided_slice %34 {offsets = [0, 768], sizes = [128, 128], strides = [1, 1]} : vector<128x4096xf32> to vector<128x128xf32>
    %55 = arith.mulf %53, %54 : vector<128x128xf32>
    %56 = vector.extract_strided_slice %32 {offsets = [0, 896], sizes = [128, 128], strides = [1, 1]} : vector<128x4096xf32> to vector<128x128xf32>
    %57 = vector.extract_strided_slice %34 {offsets = [0, 896], sizes = [128, 128], strides = [1, 1]} : vector<128x4096xf32> to vector<128x128xf32>
    %58 = arith.mulf %56, %57 : vector<128x128xf32>
    %59 = vector.extract_strided_slice %32 {offsets = [0, 1024], sizes = [128, 128], strides = [1, 1]} : vector<128x4096xf32> to vector<128x128xf32>
    %60 = vector.extract_strided_slice %34 {offsets = [0, 1024], sizes = [128, 128], strides = [1, 1]} : vector<128x4096xf32> to vector<128x128xf32>
    %61 = arith.mulf %59, %60 : vector<128x128xf32>
    %62 = vector.extract_strided_slice %32 {offsets = [0, 1152], sizes = [128, 128], strides = [1, 1]} : vector<128x4096xf32> to vector<128x128xf32>
    %63 = vector.extract_strided_slice %34 {offsets = [0, 1152], sizes = [128, 128], strides = [1, 1]} : vector<128x4096xf32> to vector<128x128xf32>
    %64 = arith.mulf %62, %63 : vector<128x128xf32>
    %65 = vector.extract_strided_slice %32 {offsets = [0, 1280], sizes = [128, 128], strides = [1, 1]} : vector<128x4096xf32> to vector<128x128xf32>
    %66 = vector.extract_strided_slice %34 {offsets = [0, 1280], sizes = [128, 128], strides = [1, 1]} : vector<128x4096xf32> to vector<128x128xf32>
    %67 = arith.mulf %65, %66 : vector<128x128xf32>
    %68 = vector.extract_strided_slice %32 {offsets = [0, 1408], sizes = [128, 128], strides = [1, 1]} : vector<128x4096xf32> to vector<128x128xf32>
    %69 = vector.extract_strided_slice %34 {offsets = [0, 1408], sizes = [128, 128], strides = [1, 1]} : vector<128x4096xf32> to vector<128x128xf32>
    %70 = arith.mulf %68, %69 : vector<128x128xf32>
    %71 = vector.extract_strided_slice %32 {offsets = [0, 1536], sizes = [128, 128], strides = [1, 1]} : vector<128x4096xf32> to vector<128x128xf32>
    %72 = vector.extract_strided_slice %34 {offsets = [0, 1536], sizes = [128, 128], strides = [1, 1]} : vector<128x4096xf32> to vector<128x128xf32>
    %73 = arith.mulf %71, %72 : vector<128x128xf32>
    %74 = vector.extract_strided_slice %32 {offsets = [0, 1664], sizes = [128, 128], strides = [1, 1]} : vector<128x4096xf32> to vector<128x128xf32>
    %75 = vector.extract_strided_slice %34 {offsets = [0, 1664], sizes = [128, 128], strides = [1, 1]} : vector<128x4096xf32> to vector<128x128xf32>
    %76 = arith.mulf %74, %75 : vector<128x128xf32>
    %77 = vector.extract_strided_slice %32 {offsets = [0, 1792], sizes = [128, 128], strides = [1, 1]} : vector<128x4096xf32> to vector<128x128xf32>
    %78 = vector.extract_strided_slice %34 {offsets = [0, 1792], sizes = [128, 128], strides = [1, 1]} : vector<128x4096xf32> to vector<128x128xf32>
    %79 = arith.mulf %77, %78 : vector<128x128xf32>
    %80 = vector.extract_strided_slice %32 {offsets = [0, 1920], sizes = [128, 128], strides = [1, 1]} : vector<128x4096xf32> to vector<128x128xf32>
    %81 = vector.extract_strided_slice %34 {offsets = [0, 1920], sizes = [128, 128], strides = [1, 1]} : vector<128x4096xf32> to vector<128x128xf32>
    %82 = arith.mulf %80, %81 : vector<128x128xf32>
    %83 = vector.extract_strided_slice %32 {offsets = [0, 2048], sizes = [128, 128], strides = [1, 1]} : vector<128x4096xf32> to vector<128x128xf32>
    %84 = vector.extract_strided_slice %34 {offsets = [0, 2048], sizes = [128, 128], strides = [1, 1]} : vector<128x4096xf32> to vector<128x128xf32>
    %85 = arith.mulf %83, %84 : vector<128x128xf32>
    %86 = vector.extract_strided_slice %32 {offsets = [0, 2176], sizes = [128, 128], strides = [1, 1]} : vector<128x4096xf32> to vector<128x128xf32>
    %87 = vector.extract_strided_slice %34 {offsets = [0, 2176], sizes = [128, 128], strides = [1, 1]} : vector<128x4096xf32> to vector<128x128xf32>
    %88 = arith.mulf %86, %87 : vector<128x128xf32>
    %89 = vector.extract_strided_slice %32 {offsets = [0, 2304], sizes = [128, 128], strides = [1, 1]} : vector<128x4096xf32> to vector<128x128xf32>
    %90 = vector.extract_strided_slice %34 {offsets = [0, 2304], sizes = [128, 128], strides = [1, 1]} : vector<128x4096xf32> to vector<128x128xf32>
    %91 = arith.mulf %89, %90 : vector<128x128xf32>
    %92 = vector.extract_strided_slice %32 {offsets = [0, 2432], sizes = [128, 128], strides = [1, 1]} : vector<128x4096xf32> to vector<128x128xf32>
    %93 = vector.extract_strided_slice %34 {offsets = [0, 2432], sizes = [128, 128], strides = [1, 1]} : vector<128x4096xf32> to vector<128x128xf32>
    %94 = arith.mulf %92, %93 : vector<128x128xf32>
    %95 = vector.extract_strided_slice %32 {offsets = [0, 2560], sizes = [128, 128], strides = [1, 1]} : vector<128x4096xf32> to vector<128x128xf32>
    %96 = vector.extract_strided_slice %34 {offsets = [0, 2560], sizes = [128, 128], strides = [1, 1]} : vector<128x4096xf32> to vector<128x128xf32>
    %97 = arith.mulf %95, %96 : vector<128x128xf32>
    %98 = vector.extract_strided_slice %32 {offsets = [0, 2688], sizes = [128, 128], strides = [1, 1]} : vector<128x4096xf32> to vector<128x128xf32>
    %99 = vector.extract_strided_slice %34 {offsets = [0, 2688], sizes = [128, 128], strides = [1, 1]} : vector<128x4096xf32> to vector<128x128xf32>
    %100 = arith.mulf %98, %99 : vector<128x128xf32>
    %101 = vector.extract_strided_slice %32 {offsets = [0, 2816], sizes = [128, 128], strides = [1, 1]} : vector<128x4096xf32> to vector<128x128xf32>
    %102 = vector.extract_strided_slice %34 {offsets = [0, 2816], sizes = [128, 128], strides = [1, 1]} : vector<128x4096xf32> to vector<128x128xf32>
    %103 = arith.mulf %101, %102 : vector<128x128xf32>
    %104 = vector.extract_strided_slice %32 {offsets = [0, 2944], sizes = [128, 128], strides = [1, 1]} : vector<128x4096xf32> to vector<128x128xf32>
    %105 = vector.extract_strided_slice %34 {offsets = [0, 2944], sizes = [128, 128], strides = [1, 1]} : vector<128x4096xf32> to vector<128x128xf32>
    %106 = arith.mulf %104, %105 : vector<128x128xf32>
    %107 = vector.extract_strided_slice %32 {offsets = [0, 3072], sizes = [128, 128], strides = [1, 1]} : vector<128x4096xf32> to vector<128x128xf32>
    %108 = vector.extract_strided_slice %34 {offsets = [0, 3072], sizes = [128, 128], strides = [1, 1]} : vector<128x4096xf32> to vector<128x128xf32>
    %109 = arith.mulf %107, %108 : vector<128x128xf32>
    %110 = vector.extract_strided_slice %32 {offsets = [0, 3200], sizes = [128, 128], strides = [1, 1]} : vector<128x4096xf32> to vector<128x128xf32>
    %111 = vector.extract_strided_slice %34 {offsets = [0, 3200], sizes = [128, 128], strides = [1, 1]} : vector<128x4096xf32> to vector<128x128xf32>
    %112 = arith.mulf %110, %111 : vector<128x128xf32>
    %113 = vector.extract_strided_slice %32 {offsets = [0, 3328], sizes = [128, 128], strides = [1, 1]} : vector<128x4096xf32> to vector<128x128xf32>
    %114 = vector.extract_strided_slice %34 {offsets = [0, 3328], sizes = [128, 128], strides = [1, 1]} : vector<128x4096xf32> to vector<128x128xf32>
    %115 = arith.mulf %113, %114 : vector<128x128xf32>
    %116 = vector.extract_strided_slice %32 {offsets = [0, 3456], sizes = [128, 128], strides = [1, 1]} : vector<128x4096xf32> to vector<128x128xf32>
    %117 = vector.extract_strided_slice %34 {offsets = [0, 3456], sizes = [128, 128], strides = [1, 1]} : vector<128x4096xf32> to vector<128x128xf32>
    %118 = arith.mulf %116, %117 : vector<128x128xf32>
    %119 = vector.extract_strided_slice %32 {offsets = [0, 3584], sizes = [128, 128], strides = [1, 1]} : vector<128x4096xf32> to vector<128x128xf32>
    %120 = vector.extract_strided_slice %34 {offsets = [0, 3584], sizes = [128, 128], strides = [1, 1]} : vector<128x4096xf32> to vector<128x128xf32>
    %121 = arith.mulf %119, %120 : vector<128x128xf32>
    %122 = vector.extract_strided_slice %32 {offsets = [0, 3712], sizes = [128, 128], strides = [1, 1]} : vector<128x4096xf32> to vector<128x128xf32>
    %123 = vector.extract_strided_slice %34 {offsets = [0, 3712], sizes = [128, 128], strides = [1, 1]} : vector<128x4096xf32> to vector<128x128xf32>
    %124 = arith.mulf %122, %123 : vector<128x128xf32>
    %125 = vector.extract_strided_slice %32 {offsets = [0, 3840], sizes = [128, 128], strides = [1, 1]} : vector<128x4096xf32> to vector<128x128xf32>
    %126 = vector.extract_strided_slice %34 {offsets = [0, 3840], sizes = [128, 128], strides = [1, 1]} : vector<128x4096xf32> to vector<128x128xf32>
    %127 = arith.mulf %125, %126 : vector<128x128xf32>
    %128 = vector.extract_strided_slice %32 {offsets = [0, 3968], sizes = [128, 128], strides = [1, 1]} : vector<128x4096xf32> to vector<128x128xf32>
    %129 = vector.extract_strided_slice %34 {offsets = [0, 3968], sizes = [128, 128], strides = [1, 1]} : vector<128x4096xf32> to vector<128x128xf32>
    %130 = arith.mulf %128, %129 : vector<128x128xf32>
    %131 = arith.addf %37, %40 : vector<128x128xf32>
    %132 = arith.addf %43, %46 : vector<128x128xf32>
    %133 = arith.addf %49, %52 : vector<128x128xf32>
    %134 = arith.addf %55, %58 : vector<128x128xf32>
    %135 = arith.addf %61, %64 : vector<128x128xf32>
    %136 = arith.addf %67, %70 : vector<128x128xf32>
    %137 = arith.addf %73, %76 : vector<128x128xf32>
    %138 = arith.addf %79, %82 : vector<128x128xf32>
    %139 = arith.addf %85, %88 : vector<128x128xf32>
    %140 = arith.addf %91, %94 : vector<128x128xf32>
    %141 = arith.addf %97, %100 : vector<128x128xf32>
    %142 = arith.addf %103, %106 : vector<128x128xf32>
    %143 = arith.addf %109, %112 : vector<128x128xf32>
    %144 = arith.addf %115, %118 : vector<128x128xf32>
    %145 = arith.addf %121, %124 : vector<128x128xf32>
    %146 = arith.addf %127, %130 : vector<128x128xf32>
    %147 = arith.addf %131, %132 : vector<128x128xf32>
    %148 = arith.addf %133, %134 : vector<128x128xf32>
    %149 = arith.addf %135, %136 : vector<128x128xf32>
    %150 = arith.addf %137, %138 : vector<128x128xf32>
    %151 = arith.addf %139, %140 : vector<128x128xf32>
    %152 = arith.addf %141, %142 : vector<128x128xf32>
    %153 = arith.addf %143, %144 : vector<128x128xf32>
    %154 = arith.addf %145, %146 : vector<128x128xf32>
    %155 = arith.addf %147, %148 : vector<128x128xf32>
    %156 = arith.addf %149, %150 : vector<128x128xf32>
    %157 = arith.addf %151, %152 : vector<128x128xf32>
    %158 = arith.addf %153, %154 : vector<128x128xf32>
    %159 = arith.addf %155, %156 : vector<128x128xf32>
    %160 = arith.addf %157, %158 : vector<128x128xf32>
    %161 = arith.addf %159, %160 : vector<128x128xf32>
    %162 = arith.addf %0, %161 : vector<128x128xf32>
    %c0_22 = arith.constant 0 : index
    %c0_23 = arith.constant 0 : index
    %163 = vector.load %arg8[%c0_22, %c0_23] : memref<128x128xf32, #tpu.memory_space<vmem>>, vector<128x128xf32>
    tpu.vector_store %arg8[%c0_22, %c0_23], %162 {strides = array<i32>} : memref<128x128xf32, #tpu.memory_space<vmem>>, vector<128x128xf32>,
    return
  }
  func.func @transform_0(%arg0: i32) -> (i32, i32) {
    %c0_i32 = arith.constant 0 : i32
    %c0_i32_0 = arith.constant 0 : i32
    return %arg0, %c0_i32 : i32, i32
  }
  func.func @transform_1(%arg0: i32) -> (i32, i32) {
    %c0_i32 = arith.constant 0 : i32
    %c0_i32_0 = arith.constant 0 : i32
    %c0_i32_1 = arith.constant 0 : i32
    return %c0_i32, %c0_i32_0 : i32, i32
  }
  func.func @transform_2(%arg0: i32) -> (i32, i32) {
    %c0_i32 = arith.constant 0 : i32
    %c0_i32_0 = arith.constant 0 : i32
    %c0_i32_1 = arith.constant 0 : i32
    return %c0_i32, %c0_i32_0 : i32, i32
  }
  func.func @transform_3(%arg0: i32) -> (i32, i32) {
    %c0_i32 = arith.constant 0 : i32
    %c0_i32_0 = arith.constant 0 : i32
    %c0_i32_1 = arith.constant 0 : i32
    return %c0_i32, %c0_i32_0 : i32, i32
  }
  func.func @transform_4(%arg0: i32) -> (i32, i32) {
    %c0_i32 = arith.constant 0 : i32
    %c0_i32_0 = arith.constant 0 : i32
    %c0_i32_1 = arith.constant 0 : i32
    return %c0_i32, %c0_i32_0 : i32, i32
  }
  func.func @transform_5(%arg0: i32) -> (i32, i32) {
    %c0_i32 = arith.constant 0 : i32
    %c0_i32_0 = arith.constant 0 : i32
    %c0_i32_1 = arith.constant 0 : i32
    return %c0_i32, %c0_i32_0 : i32, i32
  }
  func.func @transform_6(%arg0: i32) -> (i32, i32) {
    %c0_i32 = arith.constant 0 : i32
    %c0_i32_0 = arith.constant 0 : i32
    %c0_i32_1 = arith.constant 0 : i32
    return %c0_i32, %c0_i32_0 : i32, i32
  }
  func.func @transform_7(%arg0: i32) -> (i32, i32) {
    %c0_i32 = arith.constant 0 : i32
    %c0_i32_0 = arith.constant 0 : i32
    return %arg0, %c0_i32 : i32, i32
  }
}

</mosaic_0001>

<llo_original>
// kernel: tpu_custom_call.1
$region0: #{tpu_custom_call.1}
  #allocation0 [shape = 'u32[]', space=smem, size = 0x4, offset = 0x4, fixed_abs, tag = 'smem constant byte address 0x4 - core index']
  #allocation1 [shape = 'u32[144,128]{1,0:T(1,128)}', space=vmem, size = 0x12000, scoped, tag = 'internal scratch']
  %s0 = inlined_call_operand.hbm [shape: f32[256,128], index: 0, kind: input, shape index: {}]
  %s1 = inlined_call_operand.vmem [shape: bf16[128,1024], index: 1, kind: input, shape index: {}]
  %s2 = inlined_call_operand.vmem [shape: f32[1,1024], index: 2, kind: input, shape index: {}]
  %s3 = inlined_call_operand.vmem [shape: bf16[1024,32], index: 3, kind: input, shape index: {}]
  %s4 = inlined_call_operand.vmem [shape: f32[1,32], index: 4, kind: input, shape index: {}]
  %s5 = inlined_call_operand.hbm [shape: bf16[32,4096], index: 5, kind: input, shape index: {}]
  %s6 = inlined_call_operand.hbm [shape: bf16[128,4096], index: 6, kind: input, shape index: {}]
  %s7 = inlined_call_operand.hbm [shape: f32[256,128], index: 7, kind: output, shape index: {}]
  %s8 = sld [smem:[#allocation0]]
  $region73: #{tpu_custom_call.1} parent=0
    _
  %s10 = ssub.s32 1, %s8
  %s11 = scalar_select 0, %s10, %s8
  $region1: #{tpu_custom_call.1} parent=0
    #allocation2 [shape = 'u8[131072]{0}', space=vmem, size = 0x20000, scoped, tag = 'input window, operand 0']
    #allocation3 [shape = 's32[2]{0}', space=sflag, size = 0x8, scoped, tag = 'scoped memory for tpu_custom_call.1']
    #allocation4 [shape = 's32[2]{0}', space=sflag, size = 0x8, scoped, tag = 'scoped memory for tpu_custom_call.1']
    #allocation5 [shape = 'u8[262144]{0}', space=vmem, size = 0x40000, scoped, tag = 'input window, operand 5, single buffered']
    #allocation6 [shape = 's32[1]{0}', space=sflag, size = 0x4, scoped, tag = 'scoped memory for tpu_custom_call.1']
    #allocation7 [shape = 'u8[1048576]{0}', space=vmem, size = 0x100000, scoped, tag = 'input window, operand 6, single buffered']
    #allocation8 [shape = 'u8[131072]{0}', space=vmem, size = 0x20000, scoped, tag = 'output window, operand 0']
    %12 = vsyncpa [#allocation3], 0
    %s13 = scalar_lea.sflag [#allocation3], 1
    %14 = vsyncpa %s13, 0
    %15 = vsyncpa [#allocation6], 0
    %16 = vsyncpa [#allocation4], 0
    %s17 = scalar_lea.sflag [#allocation4], 1
    %18 = vsyncpa %s17, 0
    loop: start=0, step=1, limit=4
    $region2: #{tpu_custom_call.1} parent=1 // loop_pre_header
      _
    $region3: #{tpu_custom_call.1} parent=1 // loop_header
      %s20 = sphi 0, %s24
      %p21 = scmp.ge.s32.totalorder %s20, 4
      %s30 = sphi 0, %s32
      %s33 = sphi 0, %s30
      %s34 = sphi 0, %s33
      %s50 = sphi 0, %s34
      %s54 = sphi 0, %s54
      %s56 = sphi 0, %s54
      %s57 = sphi 0, %s56
      %s71 = sphi 0, %s57
      %s75 = sphi 0, %s75
      %s77 = sphi 0, %s75
      %s78 = sphi 0, %s77
      %s92 = sphi 0, %s78
      %s96 = sphi 0, %s96
      %s98 = sphi 0, %s96
      %s99 = sphi 0, %s98
      %s113 = sphi 0, %s99
      %s117 = sphi 0, %s117
      %s119 = sphi 0, %s117
      %s120 = sphi 0, %s119
      %s134 = sphi 0, %s120
      %s138 = sphi 0, %s138
      %s140 = sphi 0, %s138
      %s141 = sphi 0, %s140
      %s155 = sphi 0, %s141
      %s159 = sphi 0, %s159
      %s161 = sphi 0, %s159
      %s162 = sphi 0, %s161
      %s176 = sphi 0, %s162
      %s182 = sphi 0, %s184
      %s185 = sphi 0, %s182
      %s186 = sphi 0, %s185
      %s202 = sphi 0, %s186
    $region4: #{tpu_custom_call.1} parent=1 // loop_header_branch
      %23 = sbr.rel (%p21) target = $region8
    $region5: #{tpu_custom_call.1} parent=1 // loop_body
      %s25 = ssub.s32 %s20, 1
      %s26 = ssub.s32 %s20, 2
      %s27 = sadd.s32 %s20, 1
      %s28 = ssub.s32 %s20, %s27
      %p29 = scmp.eq.s32.totalorder %s28, 0
      %s31 = sadd.s32 %s30, 1
      %s32 = scalar_select %p29, %s30, %s31
      %p35 = pneg %p29
      %p36 = scmp.eq.s32.totalorder %s20, 1
      %p37 = por %p35, %p36
      %p38 = scmp.ne.s32.totalorder %s30, %s33
      %p39 = scmp.eq.s32.totalorder %s20, 0
      %p40 = por %p38, %p39
      %p41 = scmp.ne.s32.totalorder %s30, %s33
      %p42 = scmp.eq.s32.totalorder %s25, 1
      %p43 = por %p41, %p42
      %p44 = scmp.ne.s32.totalorder %s33, %s34
      %p45 = scmp.eq.s32.totalorder %s25, 0
      %p46 = por %p44, %p45
      %p47 = scmp.ne.s32.totalorder %s33, %s34
      %p48 = scmp.eq.s32.totalorder %s26, 1
      %p49 = por %p47, %p48
      %p51 = scmp.ne.s32.totalorder %s34, %s50
      %p52 = scmp.eq.s32.totalorder %s26, 0
      %p53 = por %p51, %p52
      %s55 = sadd.s32 %s54, 1
      %p58 = scmp.eq.s32.totalorder %s20, 1
      %p59 = scmp.ne.s32.totalorder %s54, %s56
      %p60 = scmp.eq.s32.totalorder %s20, 0
      %p61 = por %p59, %p60
      %p62 = scmp.ne.s32.totalorder %s54, %s56
      %p63 = scmp.eq.s32.totalorder %s25, 1
      %p64 = por %p62, %p63
      %p65 = scmp.ne.s32.totalorder %s56, %s57
      %p66 = scmp.eq.s32.totalorder %s25, 0
      %p67 = por %p65, %p66
      %p68 = scmp.ne.s32.totalorder %s56, %s57
      %p69 = scmp.eq.s32.totalorder %s26, 1
      %p70 = por %p68, %p69
      %p72 = scmp.ne.s32.totalorder %s57, %s71
      %p73 = scmp.eq.s32.totalorder %s26, 0
      %p74 = por %p72, %p73
      %s76 = sadd.s32 %s75, 1
      %p79 = scmp.eq.s32.totalorder %s20, 1
      %p80 = scmp.ne.s32.totalorder %s75, %s77
      %p81 = scmp.eq.s32.totalorder %s20, 0
      %p82 = por %p80, %p81
      %p83 = scmp.ne.s32.totalorder %s75, %s77
      %p84 = scmp.eq.s32.totalorder %s25, 1
      %p85 = por %p83, %p84
      %p86 = scmp.ne.s32.totalorder %s77, %s78
      %p87 = scmp.eq.s32.totalorder %s25, 0
      %p88 = por %p86, %p87
      %p89 = scmp.ne.s32.totalorder %s77, %s78
      %p90 = scmp.eq.s32.totalorder %s26, 1
      %p91 = por %p89, %p90
      %p93 = scmp.ne.s32.totalorder %s78, %s92
      %p94 = scmp.eq.s32.totalorder %s26, 0
      %p95 = por %p93, %p94
      %s97 = sadd.s32 %s96, 1
      %p100 = scmp.eq.s32.totalorder %s20, 1
      %p101 = scmp.ne.s32.totalorder %s96, %s98
      %p102 = scmp.eq.s32.totalorder %s20, 0
      %p103 = por %p101, %p102
      %p104 = scmp.ne.s32.totalorder %s96, %s98
      %p105 = scmp.eq.s32.totalorder %s25, 1
      %p106 = por %p104, %p105
      %p107 = scmp.ne.s32.totalorder %s98, %s99
      %p108 = scmp.eq.s32.totalorder %s25, 0
      %p109 = por %p107, %p108
      %p110 = scmp.ne.s32.totalorder %s98, %s99
      %p111 = scmp.eq.s32.totalorder %s26, 1
      %p112 = por %p110, %p111
      %p114 = scmp.ne.s32.totalorder %s99, %s113
      %p115 = scmp.eq.s32.totalorder %s26, 0
      %p116 = por %p114, %p115
      %s118 = sadd.s32 %s117, 1
      %p121 = scmp.eq.s32.totalorder %s20, 1
      %p122 = scmp.ne.s32.totalorder %s117, %s119
      %p123 = scmp.eq.s32.totalorder %s20, 0
      %p124 = por %p122, %p123
      %p125 = scmp.ne.s32.totalorder %s117, %s119
      %p126 = scmp.eq.s32.totalorder %s25, 1
      %p127 = por %p125, %p126
      %p128 = scmp.ne.s32.totalorder %s119, %s120
      %p129 = scmp.eq.s32.totalorder %s25, 0
      %p130 = por %p128, %p129
      %p131 = scmp.ne.s32.totalorder %s119, %s120
      %p132 = scmp.eq.s32.totalorder %s26, 1
      %p133 = por %p131, %p132
      %p135 = scmp.ne.s32.totalorder %s120, %s134
      %p136 = scmp.eq.s32.totalorder %s26, 0
      %p137 = por %p135, %p136
      %s139 = sadd.s32 %s138, 1
      %p142 = scmp.eq.s32.totalorder %s20, 1
      %p143 = scmp.ne.s32.totalorder %s138, %s140
      %p144 = scmp.eq.s32.totalorder %s20, 0
      %p145 = por %p143, %p144
      %p146 = scmp.ne.s32.totalorder %s138, %s140
      %p147 = scmp.eq.s32.totalorder %s25, 1
      %p148 = por %p146, %p147
      %p149 = scmp.ne.s32.totalorder %s140, %s141
      %p150 = scmp.eq.s32.totalorder %s25, 0
      %p151 = por %p149, %p150
      %p152 = scmp.ne.s32.totalorder %s140, %s141
      %p153 = scmp.eq.s32.totalorder %s26, 1
      %p154 = por %p152, %p153
      %p156 = scmp.ne.s32.totalorder %s141, %s155
      %p157 = scmp.eq.s32.totalorder %s26, 0
      %p158 = por %p156, %p157
      %s160 = sadd.s32 %s159, 1
      %p163 = scmp.eq.s32.totalorder %s20, 1
      %p164 = scmp.ne.s32.totalorder %s159, %s161
      %p165 = scmp.eq.s32.totalorder %s20, 0
      %p166 = por %p164, %p165
      %p167 = scmp.ne.s32.totalorder %s159, %s161
      %p168 = scmp.eq.s32.totalorder %s25, 1
      %p169 = por %p167, %p168
      %p170 = scmp.ne.s32.totalorder %s161, %s162
      %p171 = scmp.eq.s32.totalorder %s25, 0
      %p172 = por %p170, %p171
      %p173 = scmp.ne.s32.totalorder %s161, %s162
      %p174 = scmp.eq.s32.totalorder %s26, 1
      %p175 = por %p173, %p174
      %p177 = scmp.ne.s32.totalorder %s162, %s176
      %p178 = scmp.eq.s32.totalorder %s26, 0
      %p179 = por %p177, %p178
      %s180 = ssub.s32 %s20, %s27
      %p181 = scmp.eq.s32.totalorder %s180, 0
      %s183 = sadd.s32 %s182, 1
      %s184 = scalar_select %p181, %s182, %s183
      %p187 = pneg %p181
      %p188 = scmp.eq.s32.totalorder %s20, 1
      %p189 = por %p187, %p188
      %p190 = scmp.ne.s32.totalorder %s182, %s185
      %p191 = scmp.eq.s32.totalorder %s20, 0
      %p192 = por %p190, %p191
      %p193 = scmp.ne.s32.totalorder %s182, %s185
      %p194 = scmp.eq.s32.totalorder %s25, 1
      %p195 = por %p193, %p194
      %p196 = scmp.ne.s32.totalorder %s185, %s186
      %p197 = scmp.eq.s32.totalorder %s25, 0
      %p198 = por %p196, %p197
      %p199 = scmp.ne.s32.totalorder %s185, %s186
      %p200 = scmp.eq.s32.totalorder %s26, 1
      %p201 = por %p199, %p200
      %p203 = scmp.ne.s32.totalorder %s186, %s202
      %p204 = scmp.eq.s32.totalorder %s26, 0
      %p205 = por %p203, %p204
      %p206 = scmp.le.s32.totalorder 1, %s20
      %p207 = scmp.lt.s32.totalorder %s20, 3
      %p208 = pnand %p206, %p207
      %p209 = pneg %p208
      // Predicated region
      $region9: #{tpu_custom_call.1} parent=5 // pred_check
        _
      $region10: #{tpu_custom_call.1} parent=5 // pred_check_branch
        %211 = sbr.rel (%p208) target = $region12
      $region11: #{tpu_custom_call.1} parent=5 // pred_region
        %s212 = ssub.s32 %s20, 1
        // Predicated region
        $region13: #{tpu_custom_call.1} parent=11 // pred_check
          %p213 = pneg %p67
        $region14: #{tpu_custom_call.1} parent=11 // pred_check_branch
          %215 = sbr.rel (%p213) target = $region16
        $region15: #{tpu_custom_call.1} parent=11 // pred_region
          _
        $region16: #{tpu_custom_call.1} parent=11 // pred_fallthru
          _
        // Predicated region
        $region17: #{tpu_custom_call.1} parent=11 // pred_check
          %p216 = pneg %p88
        $region18: #{tpu_custom_call.1} parent=11 // pred_check_branch
          %218 = sbr.rel (%p216) target = $region20
        $region19: #{tpu_custom_call.1} parent=11 // pred_region
          _
        $region20: #{tpu_custom_call.1} parent=11 // pred_fallthru
          _
        // Predicated region
        $region21: #{tpu_custom_call.1} parent=11 // pred_check
          %p219 = pneg %p109
        $region22: #{tpu_custom_call.1} parent=11 // pred_check_branch
          %221 = sbr.rel (%p219) target = $region24
        $region23: #{tpu_custom_call.1} parent=11 // pred_region
          _
        $region24: #{tpu_custom_call.1} parent=11 // pred_fallthru
          _
        // Predicated region
        $region25: #{tpu_custom_call.1} parent=11 // pred_check
          %p222 = pneg %p130
        $region26: #{tpu_custom_call.1} parent=11 // pred_check_branch
          %224 = sbr.rel (%p222) target = $region28
        $region27: #{tpu_custom_call.1} parent=11 // pred_region
          _
        $region28: #{tpu_custom_call.1} parent=11 // pred_fallthru
          _
        // Predicated region
        $region29: #{tpu_custom_call.1} parent=11 // pred_check
          %p225 = pneg %p151
        $region30: #{tpu_custom_call.1} parent=11 // pred_check_branch
          %227 = sbr.rel (%p225) target = $region32
        $region31: #{tpu_custom_call.1} parent=11 // pred_region
          %s229 = ssub.s32 8192, 8192
          %230 = vsyncadd [#allocation6], %s229
          %s231 = sshll.u32 [#allocation5], 4
          %s232 = int_to_ptr.vmem [resolvable:$true] %s231
          %237 = dma.hbm_to_vmem [thread:$0]  %s5, 8192, %s232, [#allocation6], 2048, 2048, 128
        $region32: #{tpu_custom_call.1} parent=11 // pred_fallthru
          _
        // Predicated region
        $region33: #{tpu_custom_call.1} parent=11 // pred_check
          %p238 = pneg %p172
        $region34: #{tpu_custom_call.1} parent=11 // pred_check_branch
          %240 = sbr.rel (%p238) target = $region36
        $region35: #{tpu_custom_call.1} parent=11 // pred_region
          %s242 = ssub.s32 32768, 32768
          %243 = vsyncadd [#allocation6], %s242
          %s244 = sshll.u32 [#allocation7], 4
          %s245 = int_to_ptr.vmem [resolvable:$true] %s244
          %250 = dma.hbm_to_vmem [thread:$0]  %s6, 32768, %s245, [#allocation6], 2048, 2048, 128
        $region36: #{tpu_custom_call.1} parent=11 // pred_fallthru
          _
      $region12: #{tpu_custom_call.1} parent=5 // pred_fallthru
        _
      %p251 = scmp.lt.s32.totalorder %s20, 2
      // Predicated region
      $region37: #{tpu_custom_call.1} parent=5 // pred_check
        %p252 = pneg %p251
      $region38: #{tpu_custom_call.1} parent=5 // pred_check_branch
        %254 = sbr.rel (%p252) target = $region40
      $region39: #{tpu_custom_call.1} parent=5 // pred_region
        // Predicated region
        $region41: #{tpu_custom_call.1} parent=39 // pred_check
          %p255 = pneg %p40
        $region42: #{tpu_custom_call.1} parent=39 // pred_check_branch
          %257 = sbr.rel (%p255) target = $region44
        $region43: #{tpu_custom_call.1} parent=39 // pred_region
          %s258 = sand.u32 %s30, 1
          %s259 = scalar_lea.sflag [#allocation3], %s258
          %s260 = sand.u32 %s30, 1
          %s261 = smul.addr %s260, 128
          %s262 = scalar_lea.vmem [#allocation2], %s261
          %s263 = smul.u32 16, %s20
          %s265 = ssub.s32 2048, 2048
          %266 = vsyncadd %s259, %s265
          %s267 = smul.addr %s263, 128
          %s268 = scalar_lea.hbm %s0, %s267
          %s269 = sshll.u32 %s262, 4
          %s270 = int_to_ptr.vmem [resolvable:$true] %s269
          %275 = dma.hbm_to_vmem [thread:$0]  %s268, 2048, %s270, %s259, 128, 128, 8
        $region44: #{tpu_custom_call.1} parent=39 // pred_fallthru
          _
      $region40: #{tpu_custom_call.1} parent=5 // pred_fallthru
        _
      %p276 = scmp.le.s32.totalorder 1, %s20
      %p277 = scmp.lt.s32.totalorder %s20, 3
      %p278 = pnand %p276, %p277
      %p279 = pneg %p278
      // Predicated region
      $region45: #{tpu_custom_call.1} parent=5 // pred_check
        _
      $region46: #{tpu_custom_call.1} parent=5 // pred_check_branch
        %281 = sbr.rel (%p278) target = $region48
      $region47: #{tpu_custom_call.1} parent=5 // pred_region
        %s282 = ssub.s32 %s20, 1
        %s283 = sand.u32 %s33, 1
        %s284 = scalar_lea.sflag [#allocation3], %s283
        %s285 = sand.u32 %s33, 1
        %s286 = smul.addr %s285, 128
        %s287 = scalar_lea.vmem [#allocation2], %s286
        // Predicated region
        $region49: #{tpu_custom_call.1} parent=47 // pred_check
          %p288 = pneg %p46
        $region50: #{tpu_custom_call.1} parent=47 // pred_check_branch
          %290 = sbr.rel (%p288) target = $region52
        $region51: #{tpu_custom_call.1} parent=47 // pred_region
          %291 = dma.done %s284, 2048
        $region52: #{tpu_custom_call.1} parent=47 // pred_fallthru
          _
        // Predicated region
        $region53: #{tpu_custom_call.1} parent=47 // pred_check
          %p292 = pneg %p151
        $region54: #{tpu_custom_call.1} parent=47 // pred_check_branch
          %294 = sbr.rel (%p292) target = $region56
        $region55: #{tpu_custom_call.1} parent=47 // pred_region
          %295 = dma.done [#allocation6], 8192
        $region56: #{tpu_custom_call.1} parent=47 // pred_fallthru
          _
        // Predicated region
        $region57: #{tpu_custom_call.1} parent=47 // pred_check
          %p296 = pneg %p172
        $region58: #{tpu_custom_call.1} parent=47 // pred_check_branch
          %298 = sbr.rel (%p296) target = $region60
        $region59: #{tpu_custom_call.1} parent=47 // pred_region
          %299 = dma.done [#allocation6], 32768
        $region60: #{tpu_custom_call.1} parent=47 // pred_fallthru
          _
        %s300 = sand.u32 %s33, 1
        %s301 = scalar_lea.sflag [#allocation3], %s300
        %s302 = sand.u32 %s33, 1
        %s303 = smul.addr %s302, 128
        %s304 = scalar_lea.vmem [#allocation2], %s303
        %p305 = pneg %p46
        %p306 = pneg %p43
        %p307 = pneg %p67
        %p308 = pneg %p64
        %p309 = pneg %p88
        %p310 = pneg %p85
        %p311 = pneg %p109
        %p312 = pneg %p106
        %p313 = pneg %p130
        %p314 = pneg %p127
        %p315 = pneg %p151
        %p316 = pneg %p148
        %p317 = pneg %p172
        %p318 = pneg %p169
        %p319 = pneg %p198
        %p320 = pneg %p195
        %s321 = sand.u32 %s185, 1
        %s322 = scalar_lea.sflag [#allocation4], %s321
        %s323 = sand.u32 %s185, 1
        %s324 = smul.addr %s323, 128
        %s325 = scalar_lea.vmem [#allocation8], %s324
        %s326 = smul.u32 16, %s25
        %s327 = smul.u32 16, %s25
        %v329 = vld [vmem:[%s287] sm:$0xff]
        %v330 = vld [vmem:[%s287 + $0x8] sm:$0xff]
        %v331 = vld [vmem:[%s287 + $0x10] sm:$0xff]
        %v332 = vld [vmem:[%s287 + $0x18] sm:$0xff]
        %v333 = vld [vmem:[%s287 + $0x20] sm:$0xff]
        %v334 = vld [vmem:[%s287 + $0x28] sm:$0xff]
        %v335 = vld [vmem:[%s287 + $0x30] sm:$0xff]
        %v336 = vld [vmem:[%s287 + $0x38] sm:$0xff]
        %v337 = vld [vmem:[%s287 + $0x40] sm:$0xff]
        %v338 = vld [vmem:[%s287 + $0x48] sm:$0xff]
        %v339 = vld [vmem:[%s287 + $0x50] sm:$0xff]
        %v340 = vld [vmem:[%s287 + $0x58] sm:$0xff]
        %v341 = vld [vmem:[%s287 + $0x60] sm:$0xff]
        %v342 = vld [vmem:[%s287 + $0x68] sm:$0xff]
        %v343 = vld [vmem:[%s287 + $0x70] sm:$0xff]
        %v344 = vld [vmem:[%s287 + $0x78] sm:$0xff]
        %v345 = vpack.c.bf16 %v330, %v329
        %v346 = vpack.c.bf16 %v332, %v331
        %v347 = vpack.c.bf16 %v334, %v333
        %v348 = vpack.c.bf16 %v336, %v335
        %v349 = vpack.c.bf16 %v338, %v337
        %v350 = vpack.c.bf16 %v340, %v339
        %v351 = vpack.c.bf16 %v342, %v341
        %v352 = vpack.c.bf16 %v344, %v343
        %v353 = vld [vmem:[%s1] sm:$0xff]
        %v354 = vld [vmem:[%s1 + $0x8] sm:$0xff]
        %v355 = vld [vmem:[%s1 + $0x10] sm:$0xff]
        %v356 = vld [vmem:[%s1 + $0x18] sm:$0xff]
        %v357 = vld [vmem:[%s1 + $0x20] sm:$0xff]
        %v358 = vld [vmem:[%s1 + $0x28] sm:$0xff]
        %v359 = vld [vmem:[%s1 + $0x30] sm:$0xff]
        %v360 = vld [vmem:[%s1 + $0x38] sm:$0xff]
        %v361 = vld [vmem:[%s1 + $0x40] sm:$0xff]
        %v362 = vld [vmem:[%s1 + $0x48] sm:$0xff]
        %v363 = vld [vmem:[%s1 + $0x50] sm:$0xff]
        %v364 = vld [vmem:[%s1 + $0x58] sm:$0xff]
        %v365 = vld [vmem:[%s1 + $0x60] sm:$0xff]
        %v366 = vld [vmem:[%s1 + $0x68] sm:$0xff]
        %v367 = vld [vmem:[%s1 + $0x70] sm:$0xff]
        %v368 = vld [vmem:[%s1 + $0x78] sm:$0xff]
        %v369 = vld [vmem:[%s1 + $0x80] sm:$0xff]
        %v370 = vld [vmem:[%s1 + $0x88] sm:$0xff]
        %v371 = vld [vmem:[%s1 + $0x90] sm:$0xff]
        %v372 = vld [vmem:[%s1 + $0x98] sm:$0xff]
        %v373 = vld [vmem:[%s1 + $0xa0] sm:$0xff]
        %v374 = vld [vmem:[%s1 + $0xa8] sm:$0xff]
        %v375 = vld [vmem:[%s1 + $0xb0] sm:$0xff]
        %v376 = vld [vmem:[%s1 + $0xb8] sm:$0xff]
        %v377 = vld [vmem:[%s1 + $0xc0] sm:$0xff]
        %v378 = vld [vmem:[%s1 + $0xc8] sm:$0xff]
        %v379 = vld [vmem:[%s1 + $0xd0] sm:$0xff]
        %v380 = vld [vmem:[%s1 + $0xd8] sm:$0xff]
        %v381 = vld [vmem:[%s1 + $0xe0] sm:$0xff]
        %v382 = vld [vmem:[%s1 + $0xe8] sm:$0xff]
        %v383 = vld [vmem:[%s1 + $0xf0] sm:$0xff]
        %v384 = vld [vmem:[%s1 + $0xf8] sm:$0xff]
        %v385 = vld [vmem:[%s1 + $0x100] sm:$0xff]
        %v386 = vld [vmem:[%s1 + $0x108] sm:$0xff]
        %v387 = vld [vmem:[%s1 + $0x110] sm:$0xff]
        %v388 = vld [vmem:[%s1 + $0x118] sm:$0xff]
        %v389 = vld [vmem:[%s1 + $0x120] sm:$0xff]
        %v390 = vld [vmem:[%s1 + $0x128] sm:$0xff]
        %v391 = vld [vmem:[%s1 + $0x130] sm:$0xff]
        %v392 = vld [vmem:[%s1 + $0x138] sm:$0xff]
        %v393 = vld [vmem:[%s1 + $0x140] sm:$0xff]
        %v394 = vld [vmem:[%s1 + $0x148] sm:$0xff]
        %v395 = vld [vmem:[%s1 + $0x150] sm:$0xff]
        %v396 = vld [vmem:[%s1 + $0x158] sm:$0xff]
        %v397 = vld [vmem:[%s1 + $0x160] sm:$0xff]
        %v398 = vld [vmem:[%s1 + $0x168] sm:$0xff]
        %v399 = vld [vmem:[%s1 + $0x170] sm:$0xff]
        %v400 = vld [vmem:[%s1 + $0x178] sm:$0xff]
        %v401 = vld [vmem:[%s1 + $0x180] sm:$0xff]
        %v402 = vld [vmem:[%s1 + $0x188] sm:$0xff]
        %v403 = vld [vmem:[%s1 + $0x190] sm:$0xff]
        %v404 = vld [vmem:[%s1 + $0x198] sm:$0xff]
        %v405 = vld [vmem:[%s1 + $0x1a0] sm:$0xff]
        %v406 = vld [vmem:[%s1 + $0x1a8] sm:$0xff]
        %v407 = vld [vmem:[%s1 + $0x1b0] sm:$0xff]
        %v408 = vld [vmem:[%s1 + $0x1b8] sm:$0xff]
        %v409 = vld [vmem:[%s1 + $0x1c0] sm:$0xff]
        %v410 = vld [vmem:[%s1 + $0x1c8] sm:$0xff]
        %v411 = vld [vmem:[%s1 + $0x1d0] sm:$0xff]
        %v412 = vld [vmem:[%s1 + $0x1d8] sm:$0xff]
        %v413 = vld [vmem:[%s1 + $0x1e0] sm:$0xff]
        %v414 = vld [vmem:[%s1 + $0x1e8] sm:$0xff]
        %v415 = vld [vmem:[%s1 + $0x1f0] sm:$0xff]
        %v416 = vld [vmem:[%s1 + $0x1f8] sm:$0xff]
        %v417 = vld [vmem:[%s2] sm:$0xff]
        %v419 = vlaneseq
        %v420 = vshrl.u32 %v419, 7
        %v421 = vsub.s32 0, %v420
        %v422 = vrot.slane %v417, %v421
        %v423 = vlaneseq
        %v424 = vshrl.u32 %v423, 7
        %v425 = vsub.s32 1, %v424
        %v426 = vrot.slane %v417, %v425
        %v427 = vlaneseq
        %v428 = vshrl.u32 %v427, 7
        %v429 = vsub.s32 2, %v428
        %v430 = vrot.slane %v417, %v429
        %v431 = vlaneseq
        %v432 = vshrl.u32 %v431, 7
        %v433 = vsub.s32 3, %v432
        %v434 = vrot.slane %v417, %v433
        %v435 = vlaneseq
        %v436 = vshrl.u32 %v435, 7
        %v437 = vsub.s32 4, %v436
        %v438 = vrot.slane %v417, %v437
        %v439 = vlaneseq
        %v440 = vshrl.u32 %v439, 7
        %v441 = vsub.s32 5, %v440
        %v442 = vrot.slane %v417, %v441
        %v443 = vlaneseq
        %v444 = vshrl.u32 %v443, 7
        %v445 = vsub.s32 6, %v444
        %v446 = vrot.slane %v417, %v445
        %v447 = vlaneseq
        %v448 = vshrl.u32 %v447, 7
        %v449 = vsub.s32 7, %v448
        %v450 = vrot.slane %v417, %v449
        %v523 = vunpack.c.l.b16 %v353
        %v524 = vunpack.c.h.b16 %v353
        %v525 = vunpack.c.l.b16 %v354
        %v526 = vunpack.c.h.b16 %v354
        %v527 = vunpack.c.l.b16 %v355
        %v528 = vunpack.c.h.b16 %v355
        %v529 = vunpack.c.l.b16 %v356
        %v530 = vunpack.c.h.b16 %v356
        %v531 = vunpack.c.l.b16 %v357
        %v532 = vunpack.c.h.b16 %v357
        %v533 = vunpack.c.l.b16 %v358
        %v534 = vunpack.c.h.b16 %v358
        %v535 = vunpack.c.l.b16 %v359
        %v536 = vunpack.c.h.b16 %v359
        %v537 = vunpack.c.l.b16 %v360
        %v538 = vunpack.c.h.b16 %v360
        %v539 = vunpack.c.l.b16 %v361
        %v540 = vunpack.c.h.b16 %v361
        %v541 = vunpack.c.l.b16 %v362
        %v542 = vunpack.c.h.b16 %v362
        %v543 = vunpack.c.l.b16 %v363
        %v544 = vunpack.c.h.b16 %v363
        %v545 = vunpack.c.l.b16 %v364
        %v546 = vunpack.c.h.b16 %v364
        %v547 = vunpack.c.l.b16 %v365
        %v548 = vunpack.c.h.b16 %v365
        %v549 = vunpack.c.l.b16 %v366
        %v550 = vunpack.c.h.b16 %v366
        %v551 = vunpack.c.l.b16 %v367
        %v552 = vunpack.c.h.b16 %v367
        %v553 = vunpack.c.l.b16 %v368
        %v554 = vunpack.c.h.b16 %v368
        %v555 = vunpack.c.l.b16 %v369
        %v556 = vunpack.c.h.b16 %v369
        %v557 = vunpack.c.l.b16 %v370
        %v558 = vunpack.c.h.b16 %v370
        %v559 = vunpack.c.l.b16 %v371
        %v560 = vunpack.c.h.b16 %v371
        %v561 = vunpack.c.l.b16 %v372
        %v562 = vunpack.c.h.b16 %v372
        %v563 = vunpack.c.l.b16 %v373
        %v564 = vunpack.c.h.b16 %v373
        %v565 = vunpack.c.l.b16 %v374
        %v566 = vunpack.c.h.b16 %v374
        %v567 = vunpack.c.l.b16 %v375
        %v568 = vunpack.c.h.b16 %v375
        %v569 = vunpack.c.l.b16 %v376
        %v570 = vunpack.c.h.b16 %v376
        %v571 = vunpack.c.l.b16 %v377
        %v572 = vunpack.c.h.b16 %v377
        %v573 = vunpack.c.l.b16 %v378
        %v574 = vunpack.c.h.b16 %v378
        %v575 = vunpack.c.l.b16 %v379
        %v576 = vunpack.c.h.b16 %v379
        %v577 = vunpack.c.l.b16 %v380
        %v578 = vunpack.c.h.b16 %v380
        %v579 = vunpack.c.l.b16 %v381
        %v580 = vunpack.c.h.b16 %v381
        %v581 = vunpack.c.l.b16 %v382
        %v582 = vunpack.c.h.b16 %v382
        %v583 = vunpack.c.l.b16 %v383
        %v584 = vunpack.c.h.b16 %v383
        %v585 = vunpack.c.l.b16 %v384
        %v586 = vunpack.c.h.b16 %v384
        %v587 = vunpack.c.l.b16 %v385
        %v588 = vunpack.c.h.b16 %v385
        %v589 = vunpack.c.l.b16 %v386
        %v590 = vunpack.c.h.b16 %v386
        %v591 = vunpack.c.l.b16 %v387
        %v592 = vunpack.c.h.b16 %v387
        %v593 = vunpack.c.l.b16 %v388
        %v594 = vunpack.c.h.b16 %v388
        %v595 = vunpack.c.l.b16 %v389
        %v596 = vunpack.c.h.b16 %v389
        %v597 = vunpack.c.l.b16 %v390
        %v598 = vunpack.c.h.b16 %v390
        %v599 = vunpack.c.l.b16 %v391
        %v600 = vunpack.c.h.b16 %v391
        %v601 = vunpack.c.l.b16 %v392
        %v602 = vunpack.c.h.b16 %v392
        %v603 = vunpack.c.l.b16 %v393
        %v604 = vunpack.c.h.b16 %v393
        %v605 = vunpack.c.l.b16 %v394
        %v606 = vunpack.c.h.b16 %v394
        %v607 = vunpack.c.l.b16 %v395
        %v608 = vunpack.c.h.b16 %v395
        %v609 = vunpack.c.l.b16 %v396
        %v610 = vunpack.c.h.b16 %v396
        %v611 = vunpack.c.l.b16 %v397
        %v612 = vunpack.c.h.b16 %v397
        %v613 = vunpack.c.l.b16 %v398
        %v614 = vunpack.c.h.b16 %v398
        %v615 = vunpack.c.l.b16 %v399
        %v616 = vunpack.c.h.b16 %v399
        %v617 = vunpack.c.l.b16 %v400
        %v618 = vunpack.c.h.b16 %v400
        %v619 = vunpack.c.l.b16 %v401
        %v620 = vunpack.c.h.b16 %v401
        %v621 = vunpack.c.l.b16 %v402
        %v622 = vunpack.c.h.b16 %v402
        %v623 = vunpack.c.l.b16 %v403
        %v624 = vunpack.c.h.b16 %v403
        %v625 = vunpack.c.l.b16 %v404
        %v626 = vunpack.c.h.b16 %v404
        %v627 = vunpack.c.l.b16 %v405
        %v628 = vunpack.c.h.b16 %v405
        %v629 = vunpack.c.l.b16 %v406
        %v630 = vunpack.c.h.b16 %v406
        %v631 = vunpack.c.l.b16 %v407
        %v632 = vunpack.c.h.b16 %v407
        %v633 = vunpack.c.l.b16 %v408
        %v634 = vunpack.c.h.b16 %v408
        %v635 = vunpack.c.l.b16 %v409
        %v636 = vunpack.c.h.b16 %v409
        %v637 = vunpack.c.l.b16 %v410
        %v638 = vunpack.c.h.b16 %v410
        %v639 = vunpack.c.l.b16 %v411
        %v640 = vunpack.c.h.b16 %v411
        %v641 = vunpack.c.l.b16 %v412
        %v642 = vunpack.c.h.b16 %v412
        %v643 = vunpack.c.l.b16 %v413
        %v644 = vunpack.c.h.b16 %v413
        %v645 = vunpack.c.l.b16 %v414
        %v646 = vunpack.c.h.b16 %v414
        %v647 = vunpack.c.l.b16 %v415
        %v648 = vunpack.c.h.b16 %v415
        %v649 = vunpack.c.l.b16 %v416
        %v650 = vunpack.c.h.b16 %v416
        %v651 = vpack.c.b16 %v531, %v523
        %v652 = vpack.c.b16 %v532, %v524
        %v653 = vpack.c.b16 %v533, %v525
        %v654 = vpack.c.b16 %v534, %v526
        %v655 = vpack.c.b16 %v535, %v527
        %v656 = vpack.c.b16 %v536, %v528
        %v657 = vpack.c.b16 %v537, %v529
        %v658 = vpack.c.b16 %v538, %v530
        %v659 = vpack.c.b16 %v547, %v539
        %v660 = vpack.c.b16 %v548, %v540
        %v661 = vpack.c.b16 %v549, %v541
        %v662 = vpack.c.b16 %v550, %v542
        %v663 = vpack.c.b16 %v551, %v543
        %v664 = vpack.c.b16 %v552, %v544
        %v665 = vpack.c.b16 %v553, %v545
        %v666 = vpack.c.b16 %v554, %v546
        %v667 = vpack.c.b16 %v563, %v555
        %v668 = vpack.c.b16 %v564, %v556
        %v669 = vpack.c.b16 %v565, %v557
        %v670 = vpack.c.b16 %v566, %v558
        %v671 = vpack.c.b16 %v567, %v559
        %v672 = vpack.c.b16 %v568, %v560
        %v673 = vpack.c.b16 %v569, %v561
        %v674 = vpack.c.b16 %v570, %v562
        %v675 = vpack.c.b16 %v579, %v571
        %v676 = vpack.c.b16 %v580, %v572
        %v677 = vpack.c.b16 %v581, %v573
        %v678 = vpack.c.b16 %v582, %v574
        %v679 = vpack.c.b16 %v583, %v575
        %v680 = vpack.c.b16 %v584, %v576
        %v681 = vpack.c.b16 %v585, %v577
        %v682 = vpack.c.b16 %v586, %v578
        %v683 = vpack.c.b16 %v595, %v587
        %v684 = vpack.c.b16 %v596, %v588
        %v685 = vpack.c.b16 %v597, %v589
        %v686 = vpack.c.b16 %v598, %v590
        %v687 = vpack.c.b16 %v599, %v591
        %v688 = vpack.c.b16 %v600, %v592
        %v689 = vpack.c.b16 %v601, %v593
        %v690 = vpack.c.b16 %v602, %v594
        %v691 = vpack.c.b16 %v611, %v603
        %v692 = vpack.c.b16 %v612, %v604
        %v693 = vpack.c.b16 %v613, %v605
        %v694 = vpack.c.b16 %v614, %v606
        %v695 = vpack.c.b16 %v615, %v607
        %v696 = vpack.c.b16 %v616, %v608
        %v697 = vpack.c.b16 %v617, %v609
        %v698 = vpack.c.b16 %v618, %v610
        %v699 = vpack.c.b16 %v627, %v619
        %v700 = vpack.c.b16 %v628, %v620
        %v701 = vpack.c.b16 %v629, %v621
        %v702 = vpack.c.b16 %v630, %v622
        %v703 = vpack.c.b16 %v631, %v623
        %v704 = vpack.c.b16 %v632, %v624
        %v705 = vpack.c.b16 %v633, %v625
        %v706 = vpack.c.b16 %v634, %v626
        %v707 = vpack.c.b16 %v643, %v635
        %v708 = vpack.c.b16 %v644, %v636
        %v709 = vpack.c.b16 %v645, %v637
        %v710 = vpack.c.b16 %v646, %v638
        %v711 = vpack.c.b16 %v647, %v639
        %v712 = vpack.c.b16 %v648, %v640
        %v713 = vpack.c.b16 %v649, %v641
        %v714 = vpack.c.b16 %v650, %v642
        %779 = vmatprep.subr.bf16.mxu0 %v708
        %780 = vmatpush1.bf16.msra.mxu0 %v707
        %781 = vmatprep.subr.bf16.mxu0 %v700
        %782 = vmatpush1.bf16.msra.mxu0 %v699
        %783 = vmatprep.subr.bf16.mxu0 %v692
        %784 = vmatpush1.bf16.msra.mxu0 %v691
        %785 = vmatprep.subr.bf16.mxu0 %v684
        %786 = vmatpush1.bf16.msra.mxu0 %v683
        %787 = vmatprep.subr.bf16.mxu0 %v676
        %788 = vmatpush1.bf16.msra.mxu0 %v675
        %789 = vmatprep.subr.bf16.mxu0 %v668
        %790 = vmatpush1.bf16.msra.mxu0 %v667
        %791 = vmatprep.subr.bf16.mxu0 %v660
        %792 = vmatpush1.bf16.msra.mxu0 %v659
        %793 = vmatprep.subr.bf16.mxu0 %v652
        %794 = vmatpush1.bf16.msra.mxu0 %v651
        %795 = vmatprep.subr.bf16.mxu0 0
        %796 = vmatpush2.bf16.msra.mxu0 0
        %797 = vmatprep.subr.bf16.mxu0 0
        %798 = vmatpush2.bf16.msra.mxu0 0
        %799 = vmatprep.subr.bf16.mxu0 0
        %800 = vmatpush2.bf16.msra.mxu0 0
        %801 = vmatprep.subr.bf16.mxu0 0
        %802 = vmatpush2.bf16.msra.mxu0 0
        %803 = vmatprep.subr.bf16.mxu0 0
        %804 = vmatpush2.bf16.msra.mxu0 0
        %805 = vmatprep.subr.bf16.mxu0 0
        %806 = vmatpush2.bf16.msra.mxu0 0
        %807 = vmatprep.subr.bf16.mxu0 0
        %808 = vmatpush2.bf16.msra.mxu0 0
        %809 = vmatprep.subr.bf16.mxu0 0
        %810 = vmatpush2.bf16.msra.mxu0 0
        %811 = vmatprep.mubr.bf16.mxu0 0
        %812 = vmatmul.mubr.bf16.gmra.mxu0 %v345
        %v813 = vpop.f32.mrf.mxu0
        %v814 = vadd.f32 %v422, %v813
        %v815 = vpop.f32.mrf.mxu0
        %v816 = vadd.f32 %v426, %v815
        %v817 = vpop.f32.mrf.mxu0
        %v818 = vadd.f32 %v422, %v817
        %v819 = vpop.f32.mrf.mxu0
        %v820 = vadd.f32 %v426, %v819
        %821 = vmatprep.mubr.bf16.mxu0 0
        %822 = vmatmul.mubr.bf16.gmra.mxu0 %v346
        %v823 = vpop.f32.mrf.mxu0
        %v824 = vadd.f32 %v422, %v823
        %v825 = vpop.f32.mrf.mxu0
        %v826 = vadd.f32 %v426, %v825
        %v827 = vpop.f32.mrf.mxu0
        %v828 = vadd.f32 %v422, %v827
        %v829 = vpop.f32.mrf.mxu0
        %v830 = vadd.f32 %v426, %v829
        %831 = vmatprep.mubr.bf16.mxu0 0
        %832 = vmatmul.mubr.bf16.gmra.mxu0 %v347
        %v833 = vpop.f32.mrf.mxu0
        %v834 = vadd.f32 %v422, %v833
        %v835 = vpop.f32.mrf.mxu0
        %v836 = vadd.f32 %v426, %v835
        %v837 = vpop.f32.mrf.mxu0
        %v838 = vadd.f32 %v422, %v837
        %v839 = vpop.f32.mrf.mxu0
        %v840 = vadd.f32 %v426, %v839
        %841 = vmatprep.mubr.bf16.mxu0 0
        %842 = vmatmul.mubr.bf16.gmra.mxu0 %v348
        %v843 = vpop.f32.mrf.mxu0
        %v844 = vadd.f32 %v422, %v843
        %v845 = vpop.f32.mrf.mxu0
        %v846 = vadd.f32 %v426, %v845
        %v847 = vpop.f32.mrf.mxu0
        %v848 = vadd.f32 %v422, %v847
        %v849 = vpop.f32.mrf.mxu0
        %v850 = vadd.f32 %v426, %v849
        %851 = vmatprep.mubr.bf16.mxu0 0
        %852 = vmatmul.mubr.bf16.gmra.mxu0 %v349
        %v853 = vpop.f32.mrf.mxu0
        %v854 = vadd.f32 %v422, %v853
        %v855 = vpop.f32.mrf.mxu0
        %v856 = vadd.f32 %v426, %v855
        %v857 = vpop.f32.mrf.mxu0
        %v858 = vadd.f32 %v422, %v857
        %v859 = vpop.f32.mrf.mxu0
        %v860 = vadd.f32 %v426, %v859
        %861 = vmatprep.mubr.bf16.mxu0 0
        %862 = vmatmul.mubr.bf16.gmra.mxu0 %v350
        %v863 = vpop.f32.mrf.mxu0
        %v864 = vadd.f32 %v422, %v863
        %v865 = vpop.f32.mrf.mxu0
        %v866 = vadd.f32 %v426, %v865
        %v867 = vpop.f32.mrf.mxu0
        %v868 = vadd.f32 %v422, %v867
        %v869 = vpop.f32.mrf.mxu0
        %v870 = vadd.f32 %v426, %v869
        %871 = vmatprep.mubr.bf16.mxu0 0
        %872 = vmatmul.mubr.bf16.gmra.mxu0 %v351
        %v873 = vpop.f32.mrf.mxu0
        %v874 = vadd.f32 %v422, %v873
        %v875 = vpop.f32.mrf.mxu0
        %v876 = vadd.f32 %v426, %v875
        %v877 = vpop.f32.mrf.mxu0
        %v878 = vadd.f32 %v422, %v877
        %v879 = vpop.f32.mrf.mxu0
        %v880 = vadd.f32 %v426, %v879
        %881 = vmatprep.mubr.bf16.mxu0 0
        %882 = vmatmul.mubr.bf16.gmra.mxu0 %v352
        %v883 = vpop.f32.mrf.mxu0
        %v884 = vadd.f32 %v422, %v883
        %v885 = vpop.f32.mrf.mxu0
        %v886 = vadd.f32 %v426, %v885
        %v887 = vpop.f32.mrf.mxu0
        %v888 = vadd.f32 %v422, %v887
        %v889 = vpop.f32.mrf.mxu0
        %v890 = vadd.f32 %v426, %v889
        %891 = vdwg.mxu0
        %892 = vmatprep.subr.bf16.mxu0 %v710
        %893 = vmatpush1.bf16.msra.mxu0 %v709
        %894 = vmatprep.subr.bf16.mxu0 %v702
        %895 = vmatpush1.bf16.msra.mxu0 %v701
        %896 = vmatprep.subr.bf16.mxu0 %v694
        %897 = vmatpush1.bf16.msra.mxu0 %v693
        %898 = vmatprep.subr.bf16.mxu0 %v686
        %899 = vmatpush1.bf16.msra.mxu0 %v685
        %900 = vmatprep.subr.bf16.mxu0 %v678
        %901 = vmatpush1.bf16.msra.mxu0 %v677
        %902 = vmatprep.subr.bf16.mxu0 %v670
        %903 = vmatpush1.bf16.msra.mxu0 %v669
        %904 = vmatprep.subr.bf16.mxu0 %v662
        %905 = vmatpush1.bf16.msra.mxu0 %v661
        %906 = vmatprep.subr.bf16.mxu0 %v654
        %907 = vmatpush1.bf16.msra.mxu0 %v653
        %908 = vmatprep.subr.bf16.mxu0 0
        %909 = vmatpush2.bf16.msra.mxu0 0
        %910 = vmatprep.subr.bf16.mxu0 0
        %911 = vmatpush2.bf16.msra.mxu0 0
        %912 = vmatprep.subr.bf16.mxu0 0
        %913 = vmatpush2.bf16.msra.mxu0 0
        %914 = vmatprep.subr.bf16.mxu0 0
        %915 = vmatpush2.bf16.msra.mxu0 0
        %916 = vmatprep.subr.bf16.mxu0 0
        %917 = vmatpush2.bf16.msra.mxu0 0
        %918 = vmatprep.subr.bf16.mxu0 0
        %919 = vmatpush2.bf16.msra.mxu0 0
        %920 = vmatprep.subr.bf16.mxu0 0
        %921 = vmatpush2.bf16.msra.mxu0 0
        %922 = vmatprep.subr.bf16.mxu0 0
        %923 = vmatpush2.bf16.msra.mxu0 0
        %924 = vmatprep.mubr.bf16.mxu0 0
        %925 = vmatmul.mubr.bf16.gmra.mxu0 %v345
        %v926 = vpop.f32.mrf.mxu0
        %v927 = vadd.f32 %v430, %v926
        %v928 = vpop.f32.mrf.mxu0
        %v929 = vadd.f32 %v434, %v928
        %v930 = vpop.f32.mrf.mxu0
        %v931 = vadd.f32 %v430, %v930
        %v932 = vpop.f32.mrf.mxu0
        %v933 = vadd.f32 %v434, %v932
        %934 = vmatprep.mubr.bf16.mxu0 0
        %935 = vmatmul.mubr.bf16.gmra.mxu0 %v346
        %v936 = vpop.f32.mrf.mxu0
        %v937 = vadd.f32 %v430, %v936
        %v938 = vpop.f32.mrf.mxu0
        %v939 = vadd.f32 %v434, %v938
        %v940 = vpop.f32.mrf.mxu0
        %v941 = vadd.f32 %v430, %v940
        %v942 = vpop.f32.mrf.mxu0
        %v943 = vadd.f32 %v434, %v942
        %944 = vmatprep.mubr.bf16.mxu0 0
        %945 = vmatmul.mubr.bf16.gmra.mxu0 %v347
        %v946 = vpop.f32.mrf.mxu0
        %v947 = vadd.f32 %v430, %v946
        %v948 = vpop.f32.mrf.mxu0
        %v949 = vadd.f32 %v434, %v948
        %v950 = vpop.f32.mrf.mxu0
        %v951 = vadd.f32 %v430, %v950
        %v952 = vpop.f32.mrf.mxu0
        %v953 = vadd.f32 %v434, %v952
        %954 = vmatprep.mubr.bf16.mxu0 0
        %955 = vmatmul.mubr.bf16.gmra.mxu0 %v348
        %v956 = vpop.f32.mrf.mxu0
        %v957 = vadd.f32 %v430, %v956
        %v958 = vpop.f32.mrf.mxu0
        %v959 = vadd.f32 %v434, %v958
        %v960 = vpop.f32.mrf.mxu0
        %v961 = vadd.f32 %v430, %v960
        %v962 = vpop.f32.mrf.mxu0
        %v963 = vadd.f32 %v434, %v962
        %964 = vmatprep.mubr.bf16.mxu0 0
        %965 = vmatmul.mubr.bf16.gmra.mxu0 %v349
        %v966 = vpop.f32.mrf.mxu0
        %v967 = vadd.f32 %v430, %v966
        %v968 = vpop.f32.mrf.mxu0
        %v969 = vadd.f32 %v434, %v968
        %v970 = vpop.f32.mrf.mxu0
        %v971 = vadd.f32 %v430, %v970
        %v972 = vpop.f32.mrf.mxu0
        %v973 = vadd.f32 %v434, %v972
        %974 = vmatprep.mubr.bf16.mxu0 0
        %975 = vmatmul.mubr.bf16.gmra.mxu0 %v350
        %v976 = vpop.f32.mrf.mxu0
        %v977 = vadd.f32 %v430, %v976
        %v978 = vpop.f32.mrf.mxu0
        %v979 = vadd.f32 %v434, %v978
        %v980 = vpop.f32.mrf.mxu0
        %v981 = vadd.f32 %v430, %v980
        %v982 = vpop.f32.mrf.mxu0
        %v983 = vadd.f32 %v434, %v982
        %984 = vmatprep.mubr.bf16.mxu0 0
        %985 = vmatmul.mubr.bf16.gmra.mxu0 %v351
        %v986 = vpop.f32.mrf.mxu0
        %v987 = vadd.f32 %v430, %v986
        %v988 = vpop.f32.mrf.mxu0
        %v989 = vadd.f32 %v434, %v988
        %v990 = vpop.f32.mrf.mxu0
        %v991 = vadd.f32 %v430, %v990
        %v992 = vpop.f32.mrf.mxu0
        %v993 = vadd.f32 %v434, %v992
        %994 = vmatprep.mubr.bf16.mxu0 0
        %995 = vmatmul.mubr.bf16.gmra.mxu0 %v352
        %v996 = vpop.f32.mrf.mxu0
        %v997 = vadd.f32 %v430, %v996
        %v998 = vpop.f32.mrf.mxu0
        %v999 = vadd.f32 %v434, %v998
        %v1000 = vpop.f32.mrf.mxu0
        %v1001 = vadd.f32 %v430, %v1000
        %v1002 = vpop.f32.mrf.mxu0
        %v1003 = vadd.f32 %v434, %v1002
        %1004 = vdwg.mxu0
        %1005 = vmatprep.subr.bf16.mxu0 %v712
        %1006 = vmatpush1.bf16.msra.mxu0 %v711
        %1007 = vmatprep.subr.bf16.mxu0 %v704
        %1008 = vmatpush1.bf16.msra.mxu0 %v703
        %1009 = vmatprep.subr.bf16.mxu0 %v696
        %1010 = vmatpush1.bf16.msra.mxu0 %v695
        %1011 = vmatprep.subr.bf16.mxu0 %v688
        %1012 = vmatpush1.bf16.msra.mxu0 %v687
        %1013 = vmatprep.subr.bf16.mxu0 %v680
        %1014 = vmatpush1.bf16.msra.mxu0 %v679
        %1015 = vmatprep.subr.bf16.mxu0 %v672
        %1016 = vmatpush1.bf16.msra.mxu0 %v671
        %1017 = vmatprep.subr.bf16.mxu0 %v664
        %1018 = vmatpush1.bf16.msra.mxu0 %v663
        %1019 = vmatprep.subr.bf16.mxu0 %v656
        %1020 = vmatpush1.bf16.msra.mxu0 %v655
        %1021 = vmatprep.subr.bf16.mxu0 0
        %1022 = vmatpush2.bf16.msra.mxu0 0
        %1023 = vmatprep.subr.bf16.mxu0 0
        %1024 = vmatpush2.bf16.msra.mxu0 0
        %1025 = vmatprep.subr.bf16.mxu0 0
        %1026 = vmatpush2.bf16.msra.mxu0 0
        %1027 = vmatprep.subr.bf16.mxu0 0
        %1028 = vmatpush2.bf16.msra.mxu0 0
        %1029 = vmatprep.subr.bf16.mxu0 0
        %1030 = vmatpush2.bf16.msra.mxu0 0
        %1031 = vmatprep.subr.bf16.mxu0 0
        %1032 = vmatpush2.bf16.msra.mxu0 0
        %1033 = vmatprep.subr.bf16.mxu0 0
        %1034 = vmatpush2.bf16.msra.mxu0 0
        %1035 = vmatprep.subr.bf16.mxu0 0
        %1036 = vmatpush2.bf16.msra.mxu0 0
        %1037 = vmatprep.mubr.bf16.mxu0 0
        %1038 = vmatmul.mubr.bf16.gmra.mxu0 %v345
        %v1039 = vpop.f32.mrf.mxu0
        %v1040 = vadd.f32 %v438, %v1039
        %v1041 = vpop.f32.mrf.mxu0
        %v1042 = vadd.f32 %v442, %v1041
        %v1043 = vpop.f32.mrf.mxu0
        %v1044 = vadd.f32 %v438, %v1043
        %v1045 = vpop.f32.mrf.mxu0
        %v1046 = vadd.f32 %v442, %v1045
        %1047 = vmatprep.mubr.bf16.mxu0 0
        %1048 = vmatmul.mubr.bf16.gmra.mxu0 %v346
        %v1049 = vpop.f32.mrf.mxu0
        %v1050 = vadd.f32 %v438, %v1049
        %v1051 = vpop.f32.mrf.mxu0
        %v1052 = vadd.f32 %v442, %v1051
        %v1053 = vpop.f32.mrf.mxu0
        %v1054 = vadd.f32 %v438, %v1053
        %v1055 = vpop.f32.mrf.mxu0
        %v1056 = vadd.f32 %v442, %v1055
        %1057 = vmatprep.mubr.bf16.mxu0 0
        %1058 = vmatmul.mubr.bf16.gmra.mxu0 %v347
        %v1059 = vpop.f32.mrf.mxu0
        %v1060 = vadd.f32 %v438, %v1059
        %v1061 = vpop.f32.mrf.mxu0
        %v1062 = vadd.f32 %v442, %v1061
        %v1063 = vpop.f32.mrf.mxu0
        %v1064 = vadd.f32 %v438, %v1063
        %v1065 = vpop.f32.mrf.mxu0
        %v1066 = vadd.f32 %v442, %v1065
        %1067 = vmatprep.mubr.bf16.mxu0 0
        %1068 = vmatmul.mubr.bf16.gmra.mxu0 %v348
        %v1069 = vpop.f32.mrf.mxu0
        %v1070 = vadd.f32 %v438, %v1069
        %v1071 = vpop.f32.mrf.mxu0
        %v1072 = vadd.f32 %v442, %v1071
        %v1073 = vpop.f32.mrf.mxu0
        %v1074 = vadd.f32 %v438, %v1073
        %v1075 = vpop.f32.mrf.mxu0
        %v1076 = vadd.f32 %v442, %v1075
        %1077 = vmatprep.mubr.bf16.mxu0 0
        %1078 = vmatmul.mubr.bf16.gmra.mxu0 %v349
        %v1079 = vpop.f32.mrf.mxu0
        %v1080 = vadd.f32 %v438, %v1079
        %v1081 = vpop.f32.mrf.mxu0
        %v1082 = vadd.f32 %v442, %v1081
        %v1083 = vpop.f32.mrf.mxu0
        %v1084 = vadd.f32 %v438, %v1083
        %v1085 = vpop.f32.mrf.mxu0
        %v1086 = vadd.f32 %v442, %v1085
        %1087 = vmatprep.mubr.bf16.mxu0 0
        %1088 = vmatmul.mubr.bf16.gmra.mxu0 %v350
        %v1089 = vpop.f32.mrf.mxu0
        %v1090 = vadd.f32 %v438, %v1089
        %v1091 = vpop.f32.mrf.mxu0
        %v1092 = vadd.f32 %v442, %v1091
        %v1093 = vpop.f32.mrf.mxu0
        %v1094 = vadd.f32 %v438, %v1093
        %v1095 = vpop.f32.mrf.mxu0
        %v1096 = vadd.f32 %v442, %v1095
        %1097 = vmatprep.mubr.bf16.mxu0 0
        %1098 = vmatmul.mubr.bf16.gmra.mxu0 %v351
        %v1099 = vpop.f32.mrf.mxu0
        %v1100 = vadd.f32 %v438, %v1099
        %v1101 = vpop.f32.mrf.mxu0
        %v1102 = vadd.f32 %v442, %v1101
        %v1103 = vpop.f32.mrf.mxu0
        %v1104 = vadd.f32 %v438, %v1103
        %v1105 = vpop.f32.mrf.mxu0
        %v1106 = vadd.f32 %v442, %v1105
        %1107 = vmatprep.mubr.bf16.mxu0 0
        %1108 = vmatmul.mubr.bf16.gmra.mxu0 %v352
        %v1109 = vpop.f32.mrf.mxu0
        %v1110 = vadd.f32 %v438, %v1109
        %v1111 = vpop.f32.mrf.mxu0
        %v1112 = vadd.f32 %v442, %v1111
        %v1113 = vpop.f32.mrf.mxu0
        %v1114 = vadd.f32 %v438, %v1113
        %v1115 = vpop.f32.mrf.mxu0
        %v1116 = vadd.f32 %v442, %v1115
        %1117 = vdwg.mxu0
        %1118 = vmatprep.subr.bf16.mxu0 %v714
        %1119 = vmatpush1.bf16.msra.mxu0 %v713
        %1120 = vmatprep.subr.bf16.mxu0 %v706
        %1121 = vmatpush1.bf16.msra.mxu0 %v705
        %1122 = vmatprep.subr.bf16.mxu0 %v698
        %1123 = vmatpush1.bf16.msra.mxu0 %v697
        %1124 = vmatprep.subr.bf16.mxu0 %v690
        %1125 = vmatpush1.bf16.msra.mxu0 %v689
        %1126 = vmatprep.subr.bf16.mxu0 %v682
        %1127 = vmatpush1.bf16.msra.mxu0 %v681
        %1128 = vmatprep.subr.bf16.mxu0 %v674
        %1129 = vmatpush1.bf16.msra.mxu0 %v673
        %1130 = vmatprep.subr.bf16.mxu0 %v666
        %1131 = vmatpush1.bf16.msra.mxu0 %v665
        %1132 = vmatprep.subr.bf16.mxu0 %v658
        %1133 = vmatpush1.bf16.msra.mxu0 %v657
        %1134 = vmatprep.subr.bf16.mxu0 0
        %1135 = vmatpush2.bf16.msra.mxu0 0
        %1136 = vmatprep.subr.bf16.mxu0 0
        %1137 = vmatpush2.bf16.msra.mxu0 0
        %1138 = vmatprep.subr.bf16.mxu0 0
        %1139 = vmatpush2.bf16.msra.mxu0 0
        %1140 = vmatprep.subr.bf16.mxu0 0
        %1141 = vmatpush2.bf16.msra.mxu0 0
        %1142 = vmatprep.subr.bf16.mxu0 0
        %1143 = vmatpush2.bf16.msra.mxu0 0
        %1144 = vmatprep.subr.bf16.mxu0 0
        %1145 = vmatpush2.bf16.msra.mxu0 0
        %1146 = vmatprep.subr.bf16.mxu0 0
        %1147 = vmatpush2.bf16.msra.mxu0 0
        %1148 = vmatprep.subr.bf16.mxu0 0
        %1149 = vmatpush2.bf16.msra.mxu0 0
        %1150 = vmatprep.mubr.bf16.mxu0 0
        %1151 = vmatmul.mubr.bf16.gmra.mxu0 %v345
        %v1152 = vpop.f32.mrf.mxu0
        %v1153 = vadd.f32 %v446, %v1152
        %v1154 = vpop.f32.mrf.mxu0
        %v1155 = vadd.f32 %v450, %v1154
        %v1156 = vpop.f32.mrf.mxu0
        %v1157 = vadd.f32 %v446, %v1156
        %v1158 = vpop.f32.mrf.mxu0
        %v1159 = vadd.f32 %v450, %v1158
        %1160 = vmatprep.mubr.bf16.mxu0 0
        %1161 = vmatmul.mubr.bf16.gmra.mxu0 %v346
        %v1162 = vpop.f32.mrf.mxu0
        %v1163 = vadd.f32 %v446, %v1162
        %v1164 = vpop.f32.mrf.mxu0
        %v1165 = vadd.f32 %v450, %v1164
        %v1166 = vpop.f32.mrf.mxu0
        %v1167 = vadd.f32 %v446, %v1166
        %v1168 = vpop.f32.mrf.mxu0
        %v1169 = vadd.f32 %v450, %v1168
        %1170 = vmatprep.mubr.bf16.mxu0 0
        %1171 = vmatmul.mubr.bf16.gmra.mxu0 %v347
        %v1172 = vpop.f32.mrf.mxu0
        %v1173 = vadd.f32 %v446, %v1172
        %v1174 = vpop.f32.mrf.mxu0
        %v1175 = vadd.f32 %v450, %v1174
        %v1176 = vpop.f32.mrf.mxu0
        %v1177 = vadd.f32 %v446, %v1176
        %v1178 = vpop.f32.mrf.mxu0
        %v1179 = vadd.f32 %v450, %v1178
        %1180 = vmatprep.mubr.bf16.mxu0 0
        %1181 = vmatmul.mubr.bf16.gmra.mxu0 %v348
        %v1182 = vpop.f32.mrf.mxu0
        %v1183 = vadd.f32 %v446, %v1182
        %v1184 = vpop.f32.mrf.mxu0
        %v1185 = vadd.f32 %v450, %v1184
        %v1186 = vpop.f32.mrf.mxu0
        %v1187 = vadd.f32 %v446, %v1186
        %v1188 = vpop.f32.mrf.mxu0
        %v1189 = vadd.f32 %v450, %v1188
        %1190 = vmatprep.mubr.bf16.mxu0 0
        %1191 = vmatmul.mubr.bf16.gmra.mxu0 %v349
        %v1192 = vpop.f32.mrf.mxu0
        %v1193 = vadd.f32 %v446, %v1192
        %v1194 = vpop.f32.mrf.mxu0
        %v1195 = vadd.f32 %v450, %v1194
        %v1196 = vpop.f32.mrf.mxu0
        %v1197 = vadd.f32 %v446, %v1196
        %v1198 = vpop.f32.mrf.mxu0
        %v1199 = vadd.f32 %v450, %v1198
        %1200 = vmatprep.mubr.bf16.mxu0 0
        %1201 = vmatmul.mubr.bf16.gmra.mxu0 %v350
        %v1202 = vpop.f32.mrf.mxu0
        %v1203 = vadd.f32 %v446, %v1202
        %v1204 = vpop.f32.mrf.mxu0
        %v1205 = vadd.f32 %v450, %v1204
        %v1206 = vpop.f32.mrf.mxu0
        %v1207 = vadd.f32 %v446, %v1206
        %v1208 = vpop.f32.mrf.mxu0
        %v1209 = vadd.f32 %v450, %v1208
        %1210 = vmatprep.mubr.bf16.mxu0 0
        %1211 = vmatmul.mubr.bf16.gmra.mxu0 %v351
        %v1212 = vpop.f32.mrf.mxu0
        %v1213 = vadd.f32 %v446, %v1212
        %v1214 = vpop.f32.mrf.mxu0
        %v1215 = vadd.f32 %v450, %v1214
        %v1216 = vpop.f32.mrf.mxu0
        %v1217 = vadd.f32 %v446, %v1216
        %v1218 = vpop.f32.mrf.mxu0
        %v1219 = vadd.f32 %v450, %v1218
        %1220 = vmatprep.mubr.bf16.mxu0 0
        %1221 = vmatmul.mubr.bf16.gmra.mxu0 %v352
        %v1222 = vpop.f32.mrf.mxu0
        %v1223 = vadd.f32 %v446, %v1222
        %v1224 = vpop.f32.mrf.mxu0
        %v1225 = vadd.f32 %v450, %v1224
        %v1226 = vpop.f32.mrf.mxu0
        %v1227 = vadd.f32 %v446, %v1226
        %v1228 = vpop.f32.mrf.mxu0
        %v1229 = vadd.f32 %v450, %v1228
        %1230 = vdwg.mxu0
        %v1231 = vmax.f32 %v814, 0.0
        %v1232 = vmax.f32 %v816, 0.0
        %v1233 = vmax.f32 %v927, 0.0
        %v1234 = vmax.f32 %v929, 0.0
        %v1235 = vmax.f32 %v1040, 0.0
        %v1236 = vmax.f32 %v1042, 0.0
        %v1237 = vmax.f32 %v1153, 0.0
        %v1238 = vmax.f32 %v1155, 0.0
        %v1239 = vmax.f32 %v818, 0.0
        %v1240 = vmax.f32 %v820, 0.0
        %v1241 = vmax.f32 %v931, 0.0
        %v1242 = vmax.f32 %v933, 0.0
        %v1243 = vmax.f32 %v1044, 0.0
        %v1244 = vmax.f32 %v1046, 0.0
        %v1245 = vmax.f32 %v1157, 0.0
        %v1246 = vmax.f32 %v1159, 0.0
        %v1247 = vmax.f32 %v824, 0.0
        %v1248 = vmax.f32 %v826, 0.0
        %v1249 = vmax.f32 %v937, 0.0
        %v1250 = vmax.f32 %v939, 0.0
        %v1251 = vmax.f32 %v1050, 0.0
        %v1252 = vmax.f32 %v1052, 0.0
        %v1253 = vmax.f32 %v1163, 0.0
        %v1254 = vmax.f32 %v1165, 0.0
        %v1255 = vmax.f32 %v828, 0.0
        %v1256 = vmax.f32 %v830, 0.0
        %v1257 = vmax.f32 %v941, 0.0
        %v1258 = vmax.f32 %v943, 0.0
        %v1259 = vmax.f32 %v1054, 0.0
        %v1260 = vmax.f32 %v1056, 0.0
        %v1261 = vmax.f32 %v1167, 0.0
        %v1262 = vmax.f32 %v1169, 0.0
        %v1263 = vmax.f32 %v834, 0.0
        %v1264 = vmax.f32 %v836, 0.0
        %v1265 = vmax.f32 %v947, 0.0
        %v1266 = vmax.f32 %v949, 0.0
        %v1267 = vmax.f32 %v1060, 0.0
        %v1268 = vmax.f32 %v1062, 0.0
        %v1269 = vmax.f32 %v1173, 0.0
        %v1270 = vmax.f32 %v1175, 0.0
        %v1271 = vmax.f32 %v838, 0.0
        %v1272 = vmax.f32 %v840, 0.0
        %v1273 = vmax.f32 %v951, 0.0
        %v1274 = vmax.f32 %v953, 0.0
        %v1275 = vmax.f32 %v1064, 0.0
        %v1276 = vmax.f32 %v1066, 0.0
        %v1277 = vmax.f32 %v1177, 0.0
        %v1278 = vmax.f32 %v1179, 0.0
        %v1279 = vmax.f32 %v844, 0.0
        %v1280 = vmax.f32 %v846, 0.0
        %v1281 = vmax.f32 %v957, 0.0
        %v1282 = vmax.f32 %v959, 0.0
        %v1283 = vmax.f32 %v1070, 0.0
        %v1284 = vmax.f32 %v1072, 0.0
        %v1285 = vmax.f32 %v1183, 0.0
        %v1286 = vmax.f32 %v1185, 0.0
        %v1287 = vmax.f32 %v848, 0.0
        %v1288 = vmax.f32 %v850, 0.0
        %v1289 = vmax.f32 %v961, 0.0
        %v1290 = vmax.f32 %v963, 0.0
        %v1291 = vmax.f32 %v1074, 0.0
        %v1292 = vmax.f32 %v1076, 0.0
        %v1293 = vmax.f32 %v1187, 0.0
        %v1294 = vmax.f32 %v1189, 0.0
        %v1295 = vmax.f32 %v854, 0.0
        %v1296 = vmax.f32 %v856, 0.0
        %v1297 = vmax.f32 %v967, 0.0
        %v1298 = vmax.f32 %v969, 0.0
        %v1299 = vmax.f32 %v1080, 0.0
        %v1300 = vmax.f32 %v1082, 0.0
        %v1301 = vmax.f32 %v1193, 0.0
        %v1302 = vmax.f32 %v1195, 0.0
        %v1303 = vmax.f32 %v858, 0.0
        %v1304 = vmax.f32 %v860, 0.0
        %v1305 = vmax.f32 %v971, 0.0
        %v1306 = vmax.f32 %v973, 0.0
        %v1307 = vmax.f32 %v1084, 0.0
        %v1308 = vmax.f32 %v1086, 0.0
        %v1309 = vmax.f32 %v1197, 0.0
        %v1310 = vmax.f32 %v1199, 0.0
        %v1311 = vmax.f32 %v864, 0.0
        %v1312 = vmax.f32 %v866, 0.0
        %v1313 = vmax.f32 %v977, 0.0
        %v1314 = vmax.f32 %v979, 0.0
        %v1315 = vmax.f32 %v1090, 0.0
        %v1316 = vmax.f32 %v1092, 0.0
        %v1317 = vmax.f32 %v1203, 0.0
        %v1318 = vmax.f32 %v1205, 0.0
        %v1319 = vmax.f32 %v868, 0.0
        %v1320 = vmax.f32 %v870, 0.0
        %v1321 = vmax.f32 %v981, 0.0
        %v1322 = vmax.f32 %v983, 0.0
        %v1323 = vmax.f32 %v1094, 0.0
        %v1324 = vmax.f32 %v1096, 0.0
        %v1325 = vmax.f32 %v1207, 0.0
        %v1326 = vmax.f32 %v1209, 0.0
        %v1327 = vmax.f32 %v874, 0.0
        %v1328 = vmax.f32 %v876, 0.0
        %v1329 = vmax.f32 %v987, 0.0
        %v1330 = vmax.f32 %v989, 0.0
        %v1331 = vmax.f32 %v1100, 0.0
        %v1332 = vmax.f32 %v1102, 0.0
        %v1333 = vmax.f32 %v1213, 0.0
        %v1334 = vmax.f32 %v1215, 0.0
        %v1335 = vmax.f32 %v878, 0.0
        %v1336 = vmax.f32 %v880, 0.0
        %v1337 = vmax.f32 %v991, 0.0
        %v1338 = vmax.f32 %v993, 0.0
        %v1339 = vmax.f32 %v1104, 0.0
        %v1340 = vmax.f32 %v1106, 0.0
        %v1341 = vmax.f32 %v1217, 0.0
        %v1342 = vmax.f32 %v1219, 0.0
        %v1343 = vmax.f32 %v884, 0.0
        %v1344 = vmax.f32 %v886, 0.0
        %v1345 = vmax.f32 %v997, 0.0
        %v1346 = vmax.f32 %v999, 0.0
        %v1347 = vmax.f32 %v1110, 0.0
        %v1348 = vmax.f32 %v1112, 0.0
        %v1349 = vmax.f32 %v1223, 0.0
        %v1350 = vmax.f32 %v1225, 0.0
        %v1351 = vmax.f32 %v888, 0.0
        %v1352 = vmax.f32 %v890, 0.0
        %v1353 = vmax.f32 %v1001, 0.0
        %v1354 = vmax.f32 %v1003, 0.0
        %v1355 = vmax.f32 %v1114, 0.0
        %v1356 = vmax.f32 %v1116, 0.0
        %v1357 = vmax.f32 %v1227, 0.0
        %v1358 = vmax.f32 %v1229, 0.0
        %v1359 = vpack.c.bf16 %v1239, %v1231
        %v1360 = vpack.c.bf16 %v1240, %v1232
        %v1361 = vpack.c.bf16 %v1241, %v1233
        %v1362 = vpack.c.bf16 %v1242, %v1234
        %v1363 = vpack.c.bf16 %v1243, %v1235
        %v1364 = vpack.c.bf16 %v1244, %v1236
        %v1365 = vpack.c.bf16 %v1245, %v1237
        %v1366 = vpack.c.bf16 %v1246, %v1238
        %v1367 = vpack.c.bf16 %v1255, %v1247
        %v1368 = vpack.c.bf16 %v1256, %v1248
        %v1369 = vpack.c.bf16 %v1257, %v1249
        %v1370 = vpack.c.bf16 %v1258, %v1250
        %v1371 = vpack.c.bf16 %v1259, %v1251
        %v1372 = vpack.c.bf16 %v1260, %v1252
        %v1373 = vpack.c.bf16 %v1261, %v1253
        %v1374 = vpack.c.bf16 %v1262, %v1254
        %v1375 = vpack.c.bf16 %v1271, %v1263
        %v1376 = vpack.c.bf16 %v1272, %v1264
        %v1377 = vpack.c.bf16 %v1273, %v1265
        %v1378 = vpack.c.bf16 %v1274, %v1266
        %v1379 = vpack.c.bf16 %v1275, %v1267
        %v1380 = vpack.c.bf16 %v1276, %v1268
        %v1381 = vpack.c.bf16 %v1277, %v1269
        %v1382 = vpack.c.bf16 %v1278, %v1270
        %v1383 = vpack.c.bf16 %v1287, %v1279
        %v1384 = vpack.c.bf16 %v1288, %v1280
        %v1385 = vpack.c.bf16 %v1289, %v1281
        %v1386 = vpack.c.bf16 %v1290, %v1282
        %v1387 = vpack.c.bf16 %v1291, %v1283
        %v1388 = vpack.c.bf16 %v1292, %v1284
        %v1389 = vpack.c.bf16 %v1293, %v1285
        %v1390 = vpack.c.bf16 %v1294, %v1286
        %v1391 = vpack.c.bf16 %v1303, %v1295
        %v1392 = vpack.c.bf16 %v1304, %v1296
        %v1393 = vpack.c.bf16 %v1305, %v1297
        %v1394 = vpack.c.bf16 %v1306, %v1298
        %v1395 = vpack.c.bf16 %v1307, %v1299
        %v1396 = vpack.c.bf16 %v1308, %v1300
        %v1397 = vpack.c.bf16 %v1309, %v1301
        %v1398 = vpack.c.bf16 %v1310, %v1302
        %v1399 = vpack.c.bf16 %v1319, %v1311
        %v1400 = vpack.c.bf16 %v1320, %v1312
        %v1401 = vpack.c.bf16 %v1321, %v1313
        %v1402 = vpack.c.bf16 %v1322, %v1314
        %v1403 = vpack.c.bf16 %v1323, %v1315
        %v1404 = vpack.c.bf16 %v1324, %v1316
        %v1405 = vpack.c.bf16 %v1325, %v1317
        %v1406 = vpack.c.bf16 %v1326, %v1318
        %v1407 = vpack.c.bf16 %v1335, %v1327
        %v1408 = vpack.c.bf16 %v1336, %v1328
        %v1409 = vpack.c.bf16 %v1337, %v1329
        %v1410 = vpack.c.bf16 %v1338, %v1330
        %v1411 = vpack.c.bf16 %v1339, %v1331
        %v1412 = vpack.c.bf16 %v1340, %v1332
        %v1413 = vpack.c.bf16 %v1341, %v1333
        %v1414 = vpack.c.bf16 %v1342, %v1334
        %v1415 = vpack.c.bf16 %v1351, %v1343
        %v1416 = vpack.c.bf16 %v1352, %v1344
        %v1417 = vpack.c.bf16 %v1353, %v1345
        %v1418 = vpack.c.bf16 %v1354, %v1346
        %v1419 = vpack.c.bf16 %v1355, %v1347
        %v1420 = vpack.c.bf16 %v1356, %v1348
        %v1421 = vpack.c.bf16 %v1357, %v1349
        %v1422 = vpack.c.bf16 %v1358, %v1350
        %v1423 = vld [vmem:[%s3] sm:$0xf]
        %v1424 = vld [vmem:[%s3 + $0x4] sm:$0xf]
        %v1425 = vld [vmem:[%s3 + $0x8] sm:$0xf]
        %v1426 = vld [vmem:[%s3 + $0xc] sm:$0xf]
        %v1427 = vld [vmem:[%s3 + $0x10] sm:$0xf]
        %v1428 = vld [vmem:[%s3 + $0x14] sm:$0xf]
        %v1429 = vld [vmem:[%s3 + $0x18] sm:$0xf]
        %v1430 = vld [vmem:[%s3 + $0x1c] sm:$0xf]
        %v1431 = vld [vmem:[%s3 + $0x20] sm:$0xf]
        %v1432 = vld [vmem:[%s3 + $0x24] sm:$0xf]
        %v1433 = vld [vmem:[%s3 + $0x28] sm:$0xf]
        %v1434 = vld [vmem:[%s3 + $0x2c] sm:$0xf]
        %v1435 = vld [vmem:[%s3 + $0x30] sm:$0xf]
        %v1436 = vld [vmem:[%s3 + $0x34] sm:$0xf]
        %v1437 = vld [vmem:[%s3 + $0x38] sm:$0xf]
        %v1438 = vld [vmem:[%s3 + $0x3c] sm:$0xf]
        %v1439 = vld [vmem:[%s3 + $0x40] sm:$0xf]
        %v1440 = vld [vmem:[%s3 + $0x44] sm:$0xf]
        %v1441 = vld [vmem:[%s3 + $0x48] sm:$0xf]
        %v1442 = vld [vmem:[%s3 + $0x4c] sm:$0xf]
        %v1443 = vld [vmem:[%s3 + $0x50] sm:$0xf]
        %v1444 = vld [vmem:[%s3 + $0x54] sm:$0xf]
        %v1445 = vld [vmem:[%s3 + $0x58] sm:$0xf]
        %v1446 = vld [vmem:[%s3 + $0x5c] sm:$0xf]
        %v1447 = vld [vmem:[%s3 + $0x60] sm:$0xf]
        %v1448 = vld [vmem:[%s3 + $0x64] sm:$0xf]
        %v1449 = vld [vmem:[%s3 + $0x68] sm:$0xf]
        %v1450 = vld [vmem:[%s3 + $0x6c] sm:$0xf]
        %v1451 = vld [vmem:[%s3 + $0x70] sm:$0xf]
        %v1452 = vld [vmem:[%s3 + $0x74] sm:$0xf]
        %v1453 = vld [vmem:[%s3 + $0x78] sm:$0xf]
        %v1454 = vld [vmem:[%s3 + $0x7c] sm:$0xf]
        %v1455 = vld [vmem:[%s3 + $0x80] sm:$0xf]
        %v1456 = vld [vmem:[%s3 + $0x84] sm:$0xf]
        %v1457 = vld [vmem:[%s3 + $0x88] sm:$0xf]
        %v1458 = vld [vmem:[%s3 + $0x8c] sm:$0xf]
        %v1459 = vld [vmem:[%s3 + $0x90] sm:$0xf]
        %v1460 = vld [vmem:[%s3 + $0x94] sm:$0xf]
        %v1461 = vld [vmem:[%s3 + $0x98] sm:$0xf]
        %v1462 = vld [vmem:[%s3 + $0x9c] sm:$0xf]
        %v1463 = vld [vmem:[%s3 + $0xa0] sm:$0xf]
        %v1464 = vld [vmem:[%s3 + $0xa4] sm:$0xf]
        %v1465 = vld [vmem:[%s3 + $0xa8] sm:$0xf]
        %v1466 = vld [vmem:[%s3 + $0xac] sm:$0xf]
        %v1467 = vld [vmem:[%s3 + $0xb0] sm:$0xf]
        %v1468 = vld [vmem:[%s3 + $0xb4] sm:$0xf]
        %v1469 = vld [vmem:[%s3 + $0xb8] sm:$0xf]
        %v1470 = vld [vmem:[%s3 + $0xbc] sm:$0xf]
        %v1471 = vld [vmem:[%s3 + $0xc0] sm:$0xf]
        %v1472 = vld [vmem:[%s3 + $0xc4] sm:$0xf]
        %v1473 = vld [vmem:[%s3 + $0xc8] sm:$0xf]
        %v1474 = vld [vmem:[%s3 + $0xcc] sm:$0xf]
        %v1475 = vld [vmem:[%s3 + $0xd0] sm:$0xf]
        %v1476 = vld [vmem:[%s3 + $0xd4] sm:$0xf]
        %v1477 = vld [vmem:[%s3 + $0xd8] sm:$0xf]
        %v1478 = vld [vmem:[%s3 + $0xdc] sm:$0xf]
        %v1479 = vld [vmem:[%s3 + $0xe0] sm:$0xf]
        %v1480 = vld [vmem:[%s3 + $0xe4] sm:$0xf]
        %v1481 = vld [vmem:[%s3 + $0xe8] sm:$0xf]
        %v1482 = vld [vmem:[%s3 + $0xec] sm:$0xf]
        %v1483 = vld [vmem:[%s3 + $0xf0] sm:$0xf]
        %v1484 = vld [vmem:[%s3 + $0xf4] sm:$0xf]
        %v1485 = vld [vmem:[%s3 + $0xf8] sm:$0xf]
        %v1486 = vld [vmem:[%s3 + $0xfc] sm:$0xf]
        %v1487 = vld [vmem:[%s3 + $0x100] sm:$0xf]
        %v1488 = vld [vmem:[%s3 + $0x104] sm:$0xf]
        %v1489 = vld [vmem:[%s3 + $0x108] sm:$0xf]
        %v1490 = vld [vmem:[%s3 + $0x10c] sm:$0xf]
        %v1491 = vld [vmem:[%s3 + $0x110] sm:$0xf]
        %v1492 = vld [vmem:[%s3 + $0x114] sm:$0xf]
        %v1493 = vld [vmem:[%s3 + $0x118] sm:$0xf]
        %v1494 = vld [vmem:[%s3 + $0x11c] sm:$0xf]
        %v1495 = vld [vmem:[%s3 + $0x120] sm:$0xf]
        %v1496 = vld [vmem:[%s3 + $0x124] sm:$0xf]
        %v1497 = vld [vmem:[%s3 + $0x128] sm:$0xf]
        %v1498 = vld [vmem:[%s3 + $0x12c] sm:$0xf]
        %v1499 = vld [vmem:[%s3 + $0x130] sm:$0xf]
        %v1500 = vld [vmem:[%s3 + $0x134] sm:$0xf]
        %v1501 = vld [vmem:[%s3 + $0x138] sm:$0xf]
        %v1502 = vld [vmem:[%s3 + $0x13c] sm:$0xf]
        %v1503 = vld [vmem:[%s3 + $0x140] sm:$0xf]
        %v1504 = vld [vmem:[%s3 + $0x144] sm:$0xf]
        %v1505 = vld [vmem:[%s3 + $0x148] sm:$0xf]
        %v1506 = vld [vmem:[%s3 + $0x14c] sm:$0xf]
        %v1507 = vld [vmem:[%s3 + $0x150] sm:$0xf]
        %v1508 = vld [vmem:[%s3 + $0x154] sm:$0xf]
        %v1509 = vld [vmem:[%s3 + $0x158] sm:$0xf]
        %v1510 = vld [vmem:[%s3 + $0x15c] sm:$0xf]
        %v1511 = vld [vmem:[%s3 + $0x160] sm:$0xf]
        %v1512 = vld [vmem:[%s3 + $0x164] sm:$0xf]
        %v1513 = vld [vmem:[%s3 + $0x168] sm:$0xf]
        %v1514 = vld [vmem:[%s3 + $0x16c] sm:$0xf]
        %v1515 = vld [vmem:[%s3 + $0x170] sm:$0xf]
        %v1516 = vld [vmem:[%s3 + $0x174] sm:$0xf]
        %v1517 = vld [vmem:[%s3 + $0x178] sm:$0xf]
        %v1518 = vld [vmem:[%s3 + $0x17c] sm:$0xf]
        %v1519 = vld [vmem:[%s3 + $0x180] sm:$0xf]
        %v1520 = vld [vmem:[%s3 + $0x184] sm:$0xf]
        %v1521 = vld [vmem:[%s3 + $0x188] sm:$0xf]
        %v1522 = vld [vmem:[%s3 + $0x18c] sm:$0xf]
        %v1523 = vld [vmem:[%s3 + $0x190] sm:$0xf]
        %v1524 = vld [vmem:[%s3 + $0x194] sm:$0xf]
        %v1525 = vld [vmem:[%s3 + $0x198] sm:$0xf]
        %v1526 = vld [vmem:[%s3 + $0x19c] sm:$0xf]
        %v1527 = vld [vmem:[%s3 + $0x1a0] sm:$0xf]
        %v1528 = vld [vmem:[%s3 + $0x1a4] sm:$0xf]
        %v1529 = vld [vmem:[%s3 + $0x1a8] sm:$0xf]
        %v1530 = vld [vmem:[%s3 + $0x1ac] sm:$0xf]
        %v1531 = vld [vmem:[%s3 + $0x1b0] sm:$0xf]
        %v1532 = vld [vmem:[%s3 + $0x1b4] sm:$0xf]
        %v1533 = vld [vmem:[%s3 + $0x1b8] sm:$0xf]
        %v1534 = vld [vmem:[%s3 + $0x1bc] sm:$0xf]
        %v1535 = vld [vmem:[%s3 + $0x1c0] sm:$0xf]
        %v1536 = vld [vmem:[%s3 + $0x1c4] sm:$0xf]
        %v1537 = vld [vmem:[%s3 + $0x1c8] sm:$0xf]
        %v1538 = vld [vmem:[%s3 + $0x1cc] sm:$0xf]
        %v1539 = vld [vmem:[%s3 + $0x1d0] sm:$0xf]
        %v1540 = vld [vmem:[%s3 + $0x1d4] sm:$0xf]
        %v1541 = vld [vmem:[%s3 + $0x1d8] sm:$0xf]
        %v1542 = vld [vmem:[%s3 + $0x1dc] sm:$0xf]
        %v1543 = vld [vmem:[%s3 + $0x1e0] sm:$0xf]
        %v1544 = vld [vmem:[%s3 + $0x1e4] sm:$0xf]
        %v1545 = vld [vmem:[%s3 + $0x1e8] sm:$0xf]
        %v1546 = vld [vmem:[%s3 + $0x1ec] sm:$0xf]
        %v1547 = vld [vmem:[%s3 + $0x1f0] sm:$0xf]
        %v1548 = vld [vmem:[%s3 + $0x1f4] sm:$0xf]
        %v1549 = vld [vmem:[%s3 + $0x1f8] sm:$0xf]
        %v1550 = vld [vmem:[%s3 + $0x1fc] sm:$0xf]
        %v1551 = vld [vmem:[%s4] sm:$0x1]
        %v1553 = vlaneseq
        %v1554 = vshrl.u32 %v1553, 7
        %v1555 = vsub.s32 0, %v1554
        %v1556 = vrot.slane %v1551, %v1555
        %v1686 = vunpack.c.l.b16 %v1423
        %v1687 = vunpack.c.l.b16 %v1424
        %v1688 = vunpack.c.l.b16 %v1425
        %v1689 = vunpack.c.l.b16 %v1426
        %v1690 = vunpack.c.l.b16 %v1427
        %v1691 = vunpack.c.l.b16 %v1428
        %v1692 = vunpack.c.l.b16 %v1429
        %v1693 = vunpack.c.l.b16 %v1430
        %v1694 = vunpack.c.l.b16 %v1431
        %v1695 = vunpack.c.l.b16 %v1432
        %v1696 = vunpack.c.l.b16 %v1433
        %v1697 = vunpack.c.l.b16 %v1434
        %v1698 = vunpack.c.l.b16 %v1435
        %v1699 = vunpack.c.l.b16 %v1436
        %v1700 = vunpack.c.l.b16 %v1437
        %v1701 = vunpack.c.l.b16 %v1438
        %v1702 = vunpack.c.l.b16 %v1439
        %v1703 = vunpack.c.l.b16 %v1440
        %v1704 = vunpack.c.l.b16 %v1441
        %v1705 = vunpack.c.l.b16 %v1442
        %v1706 = vunpack.c.l.b16 %v1443
        %v1707 = vunpack.c.l.b16 %v1444
        %v1708 = vunpack.c.l.b16 %v1445
        %v1709 = vunpack.c.l.b16 %v1446
        %v1710 = vunpack.c.l.b16 %v1447
        %v1711 = vunpack.c.l.b16 %v1448
        %v1712 = vunpack.c.l.b16 %v1449
        %v1713 = vunpack.c.l.b16 %v1450
        %v1714 = vunpack.c.l.b16 %v1451
        %v1715 = vunpack.c.l.b16 %v1452
        %v1716 = vunpack.c.l.b16 %v1453
        %v1717 = vunpack.c.l.b16 %v1454
        %v1718 = vunpack.c.l.b16 %v1455
        %v1719 = vunpack.c.l.b16 %v1456
        %v1720 = vunpack.c.l.b16 %v1457
        %v1721 = vunpack.c.l.b16 %v1458
        %v1722 = vunpack.c.l.b16 %v1459
        %v1723 = vunpack.c.l.b16 %v1460
        %v1724 = vunpack.c.l.b16 %v1461
        %v1725 = vunpack.c.l.b16 %v1462
        %v1726 = vunpack.c.l.b16 %v1463
        %v1727 = vunpack.c.l.b16 %v1464
        %v1728 = vunpack.c.l.b16 %v1465
        %v1729 = vunpack.c.l.b16 %v1466
        %v1730 = vunpack.c.l.b16 %v1467
        %v1731 = vunpack.c.l.b16 %v1468
        %v1732 = vunpack.c.l.b16 %v1469
        %v1733 = vunpack.c.l.b16 %v1470
        %v1734 = vunpack.c.l.b16 %v1471
        %v1735 = vunpack.c.l.b16 %v1472
        %v1736 = vunpack.c.l.b16 %v1473
        %v1737 = vunpack.c.l.b16 %v1474
        %v1738 = vunpack.c.l.b16 %v1475
        %v1739 = vunpack.c.l.b16 %v1476
        %v1740 = vunpack.c.l.b16 %v1477
        %v1741 = vunpack.c.l.b16 %v1478
        %v1742 = vunpack.c.l.b16 %v1479
        %v1743 = vunpack.c.l.b16 %v1480
        %v1744 = vunpack.c.l.b16 %v1481
        %v1745 = vunpack.c.l.b16 %v1482
        %v1746 = vunpack.c.l.b16 %v1483
        %v1747 = vunpack.c.l.b16 %v1484
        %v1748 = vunpack.c.l.b16 %v1485
        %v1749 = vunpack.c.l.b16 %v1486
        %v1750 = vunpack.c.l.b16 %v1487
        %v1751 = vunpack.c.l.b16 %v1488
        %v1752 = vunpack.c.l.b16 %v1489
        %v1753 = vunpack.c.l.b16 %v1490
        %v1754 = vunpack.c.l.b16 %v1491
        %v1755 = vunpack.c.l.b16 %v1492
        %v1756 = vunpack.c.l.b16 %v1493
        %v1757 = vunpack.c.l.b16 %v1494
        %v1758 = vunpack.c.l.b16 %v1495
        %v1759 = vunpack.c.l.b16 %v1496
        %v1760 = vunpack.c.l.b16 %v1497
        %v1761 = vunpack.c.l.b16 %v1498
        %v1762 = vunpack.c.l.b16 %v1499
        %v1763 = vunpack.c.l.b16 %v1500
        %v1764 = vunpack.c.l.b16 %v1501
        %v1765 = vunpack.c.l.b16 %v1502
        %v1766 = vunpack.c.l.b16 %v1503
        %v1767 = vunpack.c.l.b16 %v1504
        %v1768 = vunpack.c.l.b16 %v1505
        %v1769 = vunpack.c.l.b16 %v1506
        %v1770 = vunpack.c.l.b16 %v1507
        %v1771 = vunpack.c.l.b16 %v1508
        %v1772 = vunpack.c.l.b16 %v1509
        %v1773 = vunpack.c.l.b16 %v1510
        %v1774 = vunpack.c.l.b16 %v1511
        %v1775 = vunpack.c.l.b16 %v1512
        %v1776 = vunpack.c.l.b16 %v1513
        %v1777 = vunpack.c.l.b16 %v1514
        %v1778 = vunpack.c.l.b16 %v1515
        %v1779 = vunpack.c.l.b16 %v1516
        %v1780 = vunpack.c.l.b16 %v1517
        %v1781 = vunpack.c.l.b16 %v1518
        %v1782 = vunpack.c.l.b16 %v1519
        %v1783 = vunpack.c.l.b16 %v1520
        %v1784 = vunpack.c.l.b16 %v1521
        %v1785 = vunpack.c.l.b16 %v1522
        %v1786 = vunpack.c.l.b16 %v1523
        %v1787 = vunpack.c.l.b16 %v1524
        %v1788 = vunpack.c.l.b16 %v1525
        %v1789 = vunpack.c.l.b16 %v1526
        %v1790 = vunpack.c.l.b16 %v1527
        %v1791 = vunpack.c.l.b16 %v1528
        %v1792 = vunpack.c.l.b16 %v1529
        %v1793 = vunpack.c.l.b16 %v1530
        %v1794 = vunpack.c.l.b16 %v1531
        %v1795 = vunpack.c.l.b16 %v1532
        %v1796 = vunpack.c.l.b16 %v1533
        %v1797 = vunpack.c.l.b16 %v1534
        %v1798 = vunpack.c.l.b16 %v1535
        %v1799 = vunpack.c.l.b16 %v1536
        %v1800 = vunpack.c.l.b16 %v1537
        %v1801 = vunpack.c.l.b16 %v1538
        %v1802 = vunpack.c.l.b16 %v1539
        %v1803 = vunpack.c.l.b16 %v1540
        %v1804 = vunpack.c.l.b16 %v1541
        %v1805 = vunpack.c.l.b16 %v1542
        %v1806 = vunpack.c.l.b16 %v1543
        %v1807 = vunpack.c.l.b16 %v1544
        %v1808 = vunpack.c.l.b16 %v1545
        %v1809 = vunpack.c.l.b16 %v1546
        %v1810 = vunpack.c.l.b16 %v1547
        %v1811 = vunpack.c.l.b16 %v1548
        %v1812 = vunpack.c.l.b16 %v1549
        %v1813 = vunpack.c.l.b16 %v1550
        %v1814 = vpack.c.b16 %v1687, %v1686
        %v1815 = vpack.c.b16 %v1689, %v1688
        %v1816 = vpack.c.b16 %v1691, %v1690
        %v1817 = vpack.c.b16 %v1693, %v1692
        %v1818 = vpack.c.b16 %v1695, %v1694
        %v1819 = vpack.c.b16 %v1697, %v1696
        %v1820 = vpack.c.b16 %v1699, %v1698
        %v1821 = vpack.c.b16 %v1701, %v1700
        %v1822 = vpack.c.b16 %v1703, %v1702
        %v1823 = vpack.c.b16 %v1705, %v1704
        %v1824 = vpack.c.b16 %v1707, %v1706
        %v1825 = vpack.c.b16 %v1709, %v1708
        %v1826 = vpack.c.b16 %v1711, %v1710
        %v1827 = vpack.c.b16 %v1713, %v1712
        %v1828 = vpack.c.b16 %v1715, %v1714
        %v1829 = vpack.c.b16 %v1717, %v1716
        %v1830 = vpack.c.b16 %v1719, %v1718
        %v1831 = vpack.c.b16 %v1721, %v1720
        %v1832 = vpack.c.b16 %v1723, %v1722
        %v1833 = vpack.c.b16 %v1725, %v1724
        %v1834 = vpack.c.b16 %v1727, %v1726
        %v1835 = vpack.c.b16 %v1729, %v1728
        %v1836 = vpack.c.b16 %v1731, %v1730
        %v1837 = vpack.c.b16 %v1733, %v1732
        %v1838 = vpack.c.b16 %v1735, %v1734
        %v1839 = vpack.c.b16 %v1737, %v1736
        %v1840 = vpack.c.b16 %v1739, %v1738
        %v1841 = vpack.c.b16 %v1741, %v1740
        %v1842 = vpack.c.b16 %v1743, %v1742
        %v1843 = vpack.c.b16 %v1745, %v1744
        %v1844 = vpack.c.b16 %v1747, %v1746
        %v1845 = vpack.c.b16 %v1749, %v1748
        %v1846 = vpack.c.b16 %v1751, %v1750
        %v1847 = vpack.c.b16 %v1753, %v1752
        %v1848 = vpack.c.b16 %v1755, %v1754
        %v1849 = vpack.c.b16 %v1757, %v1756
        %v1850 = vpack.c.b16 %v1759, %v1758
        %v1851 = vpack.c.b16 %v1761, %v1760
        %v1852 = vpack.c.b16 %v1763, %v1762
        %v1853 = vpack.c.b16 %v1765, %v1764
        %v1854 = vpack.c.b16 %v1767, %v1766
        %v1855 = vpack.c.b16 %v1769, %v1768
        %v1856 = vpack.c.b16 %v1771, %v1770
        %v1857 = vpack.c.b16 %v1773, %v1772
        %v1858 = vpack.c.b16 %v1775, %v1774
        %v1859 = vpack.c.b16 %v1777, %v1776
        %v1860 = vpack.c.b16 %v1779, %v1778
        %v1861 = vpack.c.b16 %v1781, %v1780
        %v1862 = vpack.c.b16 %v1783, %v1782
        %v1863 = vpack.c.b16 %v1785, %v1784
        %v1864 = vpack.c.b16 %v1787, %v1786
        %v1865 = vpack.c.b16 %v1789, %v1788
        %v1866 = vpack.c.b16 %v1791, %v1790
        %v1867 = vpack.c.b16 %v1793, %v1792
        %v1868 = vpack.c.b16 %v1795, %v1794
        %v1869 = vpack.c.b16 %v1797, %v1796
        %v1870 = vpack.c.b16 %v1799, %v1798
        %v1871 = vpack.c.b16 %v1801, %v1800
        %v1872 = vpack.c.b16 %v1803, %v1802
        %v1873 = vpack.c.b16 %v1805, %v1804
        %v1874 = vpack.c.b16 %v1807, %v1806
        %v1875 = vpack.c.b16 %v1809, %v1808
        %v1876 = vpack.c.b16 %v1811, %v1810
        %v1877 = vpack.c.b16 %v1813, %v1812
        %1942 = vmatprep.subr.bf16.mxu0 0
        %1943 = vmatpush1.bf16.msra.mxu0 %v1821
        %1944 = vmatprep.subr.bf16.mxu0 0
        %1945 = vmatpush1.bf16.msra.mxu0 %v1820
        %1946 = vmatprep.subr.bf16.mxu0 0
        %1947 = vmatpush1.bf16.msra.mxu0 %v1819
        %1948 = vmatprep.subr.bf16.mxu0 0
        %1949 = vmatpush1.bf16.msra.mxu0 %v1818
        %1950 = vmatprep.subr.bf16.mxu0 0
        %1951 = vmatpush1.bf16.msra.mxu0 %v1817
        %1952 = vmatprep.subr.bf16.mxu0 0
        %1953 = vmatpush1.bf16.msra.mxu0 %v1816
        %1954 = vmatprep.subr.bf16.mxu0 0
        %1955 = vmatpush1.bf16.msra.mxu0 %v1815
        %1956 = vmatprep.subr.bf16.mxu0 0
        %1957 = vmatpush1.bf16.msra.mxu0 %v1814
        %1958 = vmatprep.subr.bf16.mxu0 0
        %1959 = vmatpush2.bf16.msra.mxu0 %v1829
        %1960 = vmatprep.subr.bf16.mxu0 0
        %1961 = vmatpush2.bf16.msra.mxu0 %v1828
        %1962 = vmatprep.subr.bf16.mxu0 0
        %1963 = vmatpush2.bf16.msra.mxu0 %v1827
        %1964 = vmatprep.subr.bf16.mxu0 0
        %1965 = vmatpush2.bf16.msra.mxu0 %v1826
        %1966 = vmatprep.subr.bf16.mxu0 0
        %1967 = vmatpush2.bf16.msra.mxu0 %v1825
        %1968 = vmatprep.subr.bf16.mxu0 0
        %1969 = vmatpush2.bf16.msra.mxu0 %v1824
        %1970 = vmatprep.subr.bf16.mxu0 0
        %1971 = vmatpush2.bf16.msra.mxu0 %v1823
        %1972 = vmatprep.subr.bf16.mxu0 0
        %1973 = vmatpush2.bf16.msra.mxu0 %v1822
        %1974 = vmatprep.mubr.bf16.mxu0 %v1360
        %1975 = vmatmul.mubr.bf16.gmra.mxu0 %v1359
        %v1976 = vpop.f32.mrf.mxu0
        %v1977 = vadd.f32 %v1556, %v1976
        %v1978 = vpop.f32.mrf.mxu0
        %v1979 = vpop.f32.mrf.mxu0
        %v1980 = vadd.f32 %v1556, %v1979
        %v1981 = vpop.f32.mrf.mxu0
        %1982 = vmatprep.mubr.bf16.mxu0 %v1368
        %1983 = vmatmul.mubr.bf16.gmra.mxu0 %v1367
        %v1984 = vpop.f32.mrf.mxu0
        %v1985 = vadd.f32 %v1556, %v1984
        %v1986 = vpop.f32.mrf.mxu0
        %v1987 = vpop.f32.mrf.mxu0
        %v1988 = vadd.f32 %v1556, %v1987
        %v1989 = vpop.f32.mrf.mxu0
        %1990 = vmatprep.mubr.bf16.mxu0 %v1376
        %1991 = vmatmul.mubr.bf16.gmra.mxu0 %v1375
        %v1992 = vpop.f32.mrf.mxu0
        %v1993 = vadd.f32 %v1556, %v1992
        %v1994 = vpop.f32.mrf.mxu0
        %v1995 = vpop.f32.mrf.mxu0
        %v1996 = vadd.f32 %v1556, %v1995
        %v1997 = vpop.f32.mrf.mxu0
        %1998 = vmatprep.mubr.bf16.mxu0 %v1384
        %1999 = vmatmul.mubr.bf16.gmra.mxu0 %v1383
        %v2000 = vpop.f32.mrf.mxu0
        %v2001 = vadd.f32 %v1556, %v2000
        %v2002 = vpop.f32.mrf.mxu0
        %v2003 = vpop.f32.mrf.mxu0
        %v2004 = vadd.f32 %v1556, %v2003
        %v2005 = vpop.f32.mrf.mxu0
        %2006 = vmatprep.mubr.bf16.mxu0 %v1392
        %2007 = vmatmul.mubr.bf16.gmra.mxu0 %v1391
        %v2008 = vpop.f32.mrf.mxu0
        %v2009 = vadd.f32 %v1556, %v2008
        %v2010 = vpop.f32.mrf.mxu0
        %v2011 = vpop.f32.mrf.mxu0
        %v2012 = vadd.f32 %v1556, %v2011
        %v2013 = vpop.f32.mrf.mxu0
        %2014 = vmatprep.mubr.bf16.mxu0 %v1400
        %2015 = vmatmul.mubr.bf16.gmra.mxu0 %v1399
        %v2016 = vpop.f32.mrf.mxu0
        %v2017 = vadd.f32 %v1556, %v2016
        %v2018 = vpop.f32.mrf.mxu0
        %v2019 = vpop.f32.mrf.mxu0
        %v2020 = vadd.f32 %v1556, %v2019
        %v2021 = vpop.f32.mrf.mxu0
        %2022 = vmatprep.mubr.bf16.mxu0 %v1408
        %2023 = vmatmul.mubr.bf16.gmra.mxu0 %v1407
        %v2024 = vpop.f32.mrf.mxu0
        %v2025 = vadd.f32 %v1556, %v2024
        %v2026 = vpop.f32.mrf.mxu0
        %v2027 = vpop.f32.mrf.mxu0
        %v2028 = vadd.f32 %v1556, %v2027
        %v2029 = vpop.f32.mrf.mxu0
        %2030 = vmatprep.mubr.bf16.mxu0 %v1416
        %2031 = vmatmul.mubr.bf16.gmra.mxu0 %v1415
        %v2032 = vpop.f32.mrf.mxu0
        %v2033 = vadd.f32 %v1556, %v2032
        %v2034 = vpop.f32.mrf.mxu0
        %v2035 = vpop.f32.mrf.mxu0
        %v2036 = vadd.f32 %v1556, %v2035
        %v2037 = vpop.f32.mrf.mxu0
        %2038 = vdwg.mxu0
        %2039 = vmatprep.subr.bf16.mxu0 0
        %2040 = vmatpush1.bf16.msra.mxu0 %v1837
        %2041 = vmatprep.subr.bf16.mxu0 0
        %2042 = vmatpush1.bf16.msra.mxu0 %v1836
        %2043 = vmatprep.subr.bf16.mxu0 0
        %2044 = vmatpush1.bf16.msra.mxu0 %v1835
        %2045 = vmatprep.subr.bf16.mxu0 0
        %2046 = vmatpush1.bf16.msra.mxu0 %v1834
        %2047 = vmatprep.subr.bf16.mxu0 0
        %2048 = vmatpush1.bf16.msra.mxu0 %v1833
        %2049 = vmatprep.subr.bf16.mxu0 0
        %2050 = vmatpush1.bf16.msra.mxu0 %v1832
        %2051 = vmatprep.subr.bf16.mxu0 0
        %2052 = vmatpush1.bf16.msra.mxu0 %v1831
        %2053 = vmatprep.subr.bf16.mxu0 0
        %2054 = vmatpush1.bf16.msra.mxu0 %v1830
        %2055 = vmatprep.subr.bf16.mxu0 0
        %2056 = vmatpush2.bf16.msra.mxu0 %v1845
        %2057 = vmatprep.subr.bf16.mxu0 0
        %2058 = vmatpush2.bf16.msra.mxu0 %v1844
        %2059 = vmatprep.subr.bf16.mxu0 0
        %2060 = vmatpush2.bf16.msra.mxu0 %v1843
        %2061 = vmatprep.subr.bf16.mxu0 0
        %2062 = vmatpush2.bf16.msra.mxu0 %v1842
        %2063 = vmatprep.subr.bf16.mxu0 0
        %2064 = vmatpush2.bf16.msra.mxu0 %v1841
        %2065 = vmatprep.subr.bf16.mxu0 0
        %2066 = vmatpush2.bf16.msra.mxu0 %v1840
        %2067 = vmatprep.subr.bf16.mxu0 0
        %2068 = vmatpush2.bf16.msra.mxu0 %v1839
        %2069 = vmatprep.subr.bf16.mxu0 0
        %2070 = vmatpush2.bf16.msra.mxu0 %v1838
        %2071 = vmatprep.mubr.bf16.mxu0 %v1362
        %2072 = vmatmul.mubr.bf16.gmra.mxu0 %v1361
        %v2073 = vpop.f32.mrf.mxu0
        %v2074 = vadd.f32 %v1977, %v2073
        %v2075 = vpop.f32.mrf.mxu0
        %v2076 = vpop.f32.mrf.mxu0
        %v2077 = vadd.f32 %v1980, %v2076
        %v2078 = vpop.f32.mrf.mxu0
        %2079 = vmatprep.mubr.bf16.mxu0 %v1370
        %2080 = vmatmul.mubr.bf16.gmra.mxu0 %v1369
        %v2081 = vpop.f32.mrf.mxu0
        %v2082 = vadd.f32 %v1985, %v2081
        %v2083 = vpop.f32.mrf.mxu0
        %v2084 = vpop.f32.mrf.mxu0
        %v2085 = vadd.f32 %v1988, %v2084
        %v2086 = vpop.f32.mrf.mxu0
        %2087 = vmatprep.mubr.bf16.mxu0 %v1378
        %2088 = vmatmul.mubr.bf16.gmra.mxu0 %v1377
        %v2089 = vpop.f32.mrf.mxu0
        %v2090 = vadd.f32 %v1993, %v2089
        %v2091 = vpop.f32.mrf.mxu0
        %v2092 = vpop.f32.mrf.mxu0
        %v2093 = vadd.f32 %v1996, %v2092
        %v2094 = vpop.f32.mrf.mxu0
        %2095 = vmatprep.mubr.bf16.mxu0 %v1386
        %2096 = vmatmul.mubr.bf16.gmra.mxu0 %v1385
        %v2097 = vpop.f32.mrf.mxu0
        %v2098 = vadd.f32 %v2001, %v2097
        %v2099 = vpop.f32.mrf.mxu0
        %v2100 = vpop.f32.mrf.mxu0
        %v2101 = vadd.f32 %v2004, %v2100
        %v2102 = vpop.f32.mrf.mxu0
        %2103 = vmatprep.mubr.bf16.mxu0 %v1394
        %2104 = vmatmul.mubr.bf16.gmra.mxu0 %v1393
        %v2105 = vpop.f32.mrf.mxu0
        %v2106 = vadd.f32 %v2009, %v2105
        %v2107 = vpop.f32.mrf.mxu0
        %v2108 = vpop.f32.mrf.mxu0
        %v2109 = vadd.f32 %v2012, %v2108
        %v2110 = vpop.f32.mrf.mxu0
        %2111 = vmatprep.mubr.bf16.mxu0 %v1402
        %2112 = vmatmul.mubr.bf16.gmra.mxu0 %v1401
        %v2113 = vpop.f32.mrf.mxu0
        %v2114 = vadd.f32 %v2017, %v2113
        %v2115 = vpop.f32.mrf.mxu0
        %v2116 = vpop.f32.mrf.mxu0
        %v2117 = vadd.f32 %v2020, %v2116
        %v2118 = vpop.f32.mrf.mxu0
        %2119 = vmatprep.mubr.bf16.mxu0 %v1410
        %2120 = vmatmul.mubr.bf16.gmra.mxu0 %v1409
        %v2121 = vpop.f32.mrf.mxu0
        %v2122 = vadd.f32 %v2025, %v2121
        %v2123 = vpop.f32.mrf.mxu0
        %v2124 = vpop.f32.mrf.mxu0
        %v2125 = vadd.f32 %v2028, %v2124
        %v2126 = vpop.f32.mrf.mxu0
        %2127 = vmatprep.mubr.bf16.mxu0 %v1418
        %2128 = vmatmul.mubr.bf16.gmra.mxu0 %v1417
        %v2129 = vpop.f32.mrf.mxu0
        %v2130 = vadd.f32 %v2033, %v2129
        %v2131 = vpop.f32.mrf.mxu0
        %v2132 = vpop.f32.mrf.mxu0
        %v2133 = vadd.f32 %v2036, %v2132
        %v2134 = vpop.f32.mrf.mxu0
        %2135 = vdwg.mxu0
        %2136 = vmatprep.subr.bf16.mxu0 0
        %2137 = vmatpush1.bf16.msra.mxu0 %v1853
        %2138 = vmatprep.subr.bf16.mxu0 0
        %2139 = vmatpush1.bf16.msra.mxu0 %v1852
        %2140 = vmatprep.subr.bf16.mxu0 0
        %2141 = vmatpush1.bf16.msra.mxu0 %v1851
        %2142 = vmatprep.subr.bf16.mxu0 0
        %2143 = vmatpush1.bf16.msra.mxu0 %v1850
        %2144 = vmatprep.subr.bf16.mxu0 0
        %2145 = vmatpush1.bf16.msra.mxu0 %v1849
        %2146 = vmatprep.subr.bf16.mxu0 0
        %2147 = vmatpush1.bf16.msra.mxu0 %v1848
        %2148 = vmatprep.subr.bf16.mxu0 0
        %2149 = vmatpush1.bf16.msra.mxu0 %v1847
        %2150 = vmatprep.subr.bf16.mxu0 0
        %2151 = vmatpush1.bf16.msra.mxu0 %v1846
        %2152 = vmatprep.subr.bf16.mxu0 0
        %2153 = vmatpush2.bf16.msra.mxu0 %v1861
        %2154 = vmatprep.subr.bf16.mxu0 0
        %2155 = vmatpush2.bf16.msra.mxu0 %v1860
        %2156 = vmatprep.subr.bf16.mxu0 0
        %2157 = vmatpush2.bf16.msra.mxu0 %v1859
        %2158 = vmatprep.subr.bf16.mxu0 0
        %2159 = vmatpush2.bf16.msra.mxu0 %v1858
        %2160 = vmatprep.subr.bf16.mxu0 0
        %2161 = vmatpush2.bf16.msra.mxu0 %v1857
        %2162 = vmatprep.subr.bf16.mxu0 0
        %2163 = vmatpush2.bf16.msra.mxu0 %v1856
        %2164 = vmatprep.subr.bf16.mxu0 0
        %2165 = vmatpush2.bf16.msra.mxu0 %v1855
        %2166 = vmatprep.subr.bf16.mxu0 0
        %2167 = vmatpush2.bf16.msra.mxu0 %v1854
        %2168 = vmatprep.mubr.bf16.mxu0 %v1364
        %2169 = vmatmul.mubr.bf16.gmra.mxu0 %v1363
        %v2170 = vpop.f32.mrf.mxu0
        %v2171 = vadd.f32 %v2074, %v2170
        %v2172 = vpop.f32.mrf.mxu0
        %v2173 = vpop.f32.mrf.mxu0
        %v2174 = vadd.f32 %v2077, %v2173
        %v2175 = vpop.f32.mrf.mxu0
        %2176 = vmatprep.mubr.bf16.mxu0 %v1372
        %2177 = vmatmul.mubr.bf16.gmra.mxu0 %v1371
        %v2178 = vpop.f32.mrf.mxu0
        %v2179 = vadd.f32 %v2082, %v2178
        %v2180 = vpop.f32.mrf.mxu0
        %v2181 = vpop.f32.mrf.mxu0
        %v2182 = vadd.f32 %v2085, %v2181
        %v2183 = vpop.f32.mrf.mxu0
        %2184 = vmatprep.mubr.bf16.mxu0 %v1380
        %2185 = vmatmul.mubr.bf16.gmra.mxu0 %v1379
        %v2186 = vpop.f32.mrf.mxu0
        %v2187 = vadd.f32 %v2090, %v2186
        %v2188 = vpop.f32.mrf.mxu0
        %v2189 = vpop.f32.mrf.mxu0
        %v2190 = vadd.f32 %v2093, %v2189
        %v2191 = vpop.f32.mrf.mxu0
        %2192 = vmatprep.mubr.bf16.mxu0 %v1388
        %2193 = vmatmul.mubr.bf16.gmra.mxu0 %v1387
        %v2194 = vpop.f32.mrf.mxu0
        %v2195 = vadd.f32 %v2098, %v2194
        %v2196 = vpop.f32.mrf.mxu0
        %v2197 = vpop.f32.mrf.mxu0
        %v2198 = vadd.f32 %v2101, %v2197
        %v2199 = vpop.f32.mrf.mxu0
        %2200 = vmatprep.mubr.bf16.mxu0 %v1396
        %2201 = vmatmul.mubr.bf16.gmra.mxu0 %v1395
        %v2202 = vpop.f32.mrf.mxu0
        %v2203 = vadd.f32 %v2106, %v2202
        %v2204 = vpop.f32.mrf.mxu0
        %v2205 = vpop.f32.mrf.mxu0
        %v2206 = vadd.f32 %v2109, %v2205
        %v2207 = vpop.f32.mrf.mxu0
        %2208 = vmatprep.mubr.bf16.mxu0 %v1404
        %2209 = vmatmul.mubr.bf16.gmra.mxu0 %v1403
        %v2210 = vpop.f32.mrf.mxu0
        %v2211 = vadd.f32 %v2114, %v2210
        %v2212 = vpop.f32.mrf.mxu0
        %v2213 = vpop.f32.mrf.mxu0
        %v2214 = vadd.f32 %v2117, %v2213
        %v2215 = vpop.f32.mrf.mxu0
        %2216 = vmatprep.mubr.bf16.mxu0 %v1412
        %2217 = vmatmul.mubr.bf16.gmra.mxu0 %v1411
        %v2218 = vpop.f32.mrf.mxu0
        %v2219 = vadd.f32 %v2122, %v2218
        %v2220 = vpop.f32.mrf.mxu0
        %v2221 = vpop.f32.mrf.mxu0
        %v2222 = vadd.f32 %v2125, %v2221
        %v2223 = vpop.f32.mrf.mxu0
        %2224 = vmatprep.mubr.bf16.mxu0 %v1420
        %2225 = vmatmul.mubr.bf16.gmra.mxu0 %v1419
        %v2226 = vpop.f32.mrf.mxu0
        %v2227 = vadd.f32 %v2130, %v2226
        %v2228 = vpop.f32.mrf.mxu0
        %v2229 = vpop.f32.mrf.mxu0
        %v2230 = vadd.f32 %v2133, %v2229
        %v2231 = vpop.f32.mrf.mxu0
        %2232 = vdwg.mxu0
        %2233 = vmatprep.subr.bf16.mxu0 0
        %2234 = vmatpush1.bf16.msra.mxu0 %v1869
        %2235 = vmatprep.subr.bf16.mxu0 0
        %2236 = vmatpush1.bf16.msra.mxu0 %v1868
        %2237 = vmatprep.subr.bf16.mxu0 0
        %2238 = vmatpush1.bf16.msra.mxu0 %v1867
        %2239 = vmatprep.subr.bf16.mxu0 0
        %2240 = vmatpush1.bf16.msra.mxu0 %v1866
        %2241 = vmatprep.subr.bf16.mxu0 0
        %2242 = vmatpush1.bf16.msra.mxu0 %v1865
        %2243 = vmatprep.subr.bf16.mxu0 0
        %2244 = vmatpush1.bf16.msra.mxu0 %v1864
        %2245 = vmatprep.subr.bf16.mxu0 0
        %2246 = vmatpush1.bf16.msra.mxu0 %v1863
        %2247 = vmatprep.subr.bf16.mxu0 0
        %2248 = vmatpush1.bf16.msra.mxu0 %v1862
        %2249 = vmatprep.subr.bf16.mxu0 0
        %2250 = vmatpush2.bf16.msra.mxu0 %v1877
        %2251 = vmatprep.subr.bf16.mxu0 0
        %2252 = vmatpush2.bf16.msra.mxu0 %v1876
        %2253 = vmatprep.subr.bf16.mxu0 0
        %2254 = vmatpush2.bf16.msra.mxu0 %v1875
        %2255 = vmatprep.subr.bf16.mxu0 0
        %2256 = vmatpush2.bf16.msra.mxu0 %v1874
        %2257 = vmatprep.subr.bf16.mxu0 0
        %2258 = vmatpush2.bf16.msra.mxu0 %v1873
        %2259 = vmatprep.subr.bf16.mxu0 0
        %2260 = vmatpush2.bf16.msra.mxu0 %v1872
        %2261 = vmatprep.subr.bf16.mxu0 0
        %2262 = vmatpush2.bf16.msra.mxu0 %v1871
        %2263 = vmatprep.subr.bf16.mxu0 0
        %2264 = vmatpush2.bf16.msra.mxu0 %v1870
        %2265 = vmatprep.mubr.bf16.mxu0 %v1366
        %2266 = vmatmul.mubr.bf16.gmra.mxu0 %v1365
        %v2267 = vpop.f32.mrf.mxu0
        %v2268 = vadd.f32 %v2171, %v2267
        %v2269 = vpop.f32.mrf.mxu0
        %v2270 = vpop.f32.mrf.mxu0
        %v2271 = vadd.f32 %v2174, %v2270
        %v2272 = vpop.f32.mrf.mxu0
        %2273 = vmatprep.mubr.bf16.mxu0 %v1374
        %2274 = vmatmul.mubr.bf16.gmra.mxu0 %v1373
        %v2275 = vpop.f32.mrf.mxu0
        %v2276 = vadd.f32 %v2179, %v2275
        %v2277 = vpop.f32.mrf.mxu0
        %v2278 = vpop.f32.mrf.mxu0
        %v2279 = vadd.f32 %v2182, %v2278
        %v2280 = vpop.f32.mrf.mxu0
        %2281 = vmatprep.mubr.bf16.mxu0 %v1382
        %2282 = vmatmul.mubr.bf16.gmra.mxu0 %v1381
        %v2283 = vpop.f32.mrf.mxu0
        %v2284 = vadd.f32 %v2187, %v2283
        %v2285 = vpop.f32.mrf.mxu0
        %v2286 = vpop.f32.mrf.mxu0
        %v2287 = vadd.f32 %v2190, %v2286
        %v2288 = vpop.f32.mrf.mxu0
        %2289 = vmatprep.mubr.bf16.mxu0 %v1390
        %2290 = vmatmul.mubr.bf16.gmra.mxu0 %v1389
        %v2291 = vpop.f32.mrf.mxu0
        %v2292 = vadd.f32 %v2195, %v2291
        %v2293 = vpop.f32.mrf.mxu0
        %v2294 = vpop.f32.mrf.mxu0
        %v2295 = vadd.f32 %v2198, %v2294
        %v2296 = vpop.f32.mrf.mxu0
        %2297 = vmatprep.mubr.bf16.mxu0 %v1398
        %2298 = vmatmul.mubr.bf16.gmra.mxu0 %v1397
        %v2299 = vpop.f32.mrf.mxu0
        %v2300 = vadd.f32 %v2203, %v2299
        %v2301 = vpop.f32.mrf.mxu0
        %v2302 = vpop.f32.mrf.mxu0
        %v2303 = vadd.f32 %v2206, %v2302
        %v2304 = vpop.f32.mrf.mxu0
        %2305 = vmatprep.mubr.bf16.mxu0 %v1406
        %2306 = vmatmul.mubr.bf16.gmra.mxu0 %v1405
        %v2307 = vpop.f32.mrf.mxu0
        %v2308 = vadd.f32 %v2211, %v2307
        %v2309 = vpop.f32.mrf.mxu0
        %v2310 = vpop.f32.mrf.mxu0
        %v2311 = vadd.f32 %v2214, %v2310
        %v2312 = vpop.f32.mrf.mxu0
        %2313 = vmatprep.mubr.bf16.mxu0 %v1414
        %2314 = vmatmul.mubr.bf16.gmra.mxu0 %v1413
        %v2315 = vpop.f32.mrf.mxu0
        %v2316 = vadd.f32 %v2219, %v2315
        %v2317 = vpop.f32.mrf.mxu0
        %v2318 = vpop.f32.mrf.mxu0
        %v2319 = vadd.f32 %v2222, %v2318
        %v2320 = vpop.f32.mrf.mxu0
        %2321 = vmatprep.mubr.bf16.mxu0 %v1422
        %2322 = vmatmul.mubr.bf16.gmra.mxu0 %v1421
        %v2323 = vpop.f32.mrf.mxu0
        %v2324 = vadd.f32 %v2227, %v2323
        %v2325 = vpop.f32.mrf.mxu0
        %v2326 = vpop.f32.mrf.mxu0
        %v2327 = vadd.f32 %v2230, %v2326
        %v2328 = vpop.f32.mrf.mxu0
        %2329 = vdwg.mxu0
        %vm2330 = vcmask 261120
        %v2331 = vsel %vm2330, %v2268, -inf
        %2332 = vmax.xlane.f32.xlu0 %v2331
        %v2333 = vpop.xlane.xlu0 %2332
        %v2334 = vsel %vm2330, %v2271, -inf
        %2335 = vmax.xlane.f32.xlu0 %v2334
        %v2336 = vpop.xlane.xlu0 %2335
        %v2337 = vsel %vm2330, %v2276, -inf
        %2338 = vmax.xlane.f32.xlu0 %v2337
        %v2339 = vpop.xlane.xlu0 %2338
        %v2340 = vsel %vm2330, %v2279, -inf
        %2341 = vmax.xlane.f32.xlu0 %v2340
        %v2342 = vpop.xlane.xlu0 %2341
        %v2343 = vsel %vm2330, %v2284, -inf
        %2344 = vmax.xlane.f32.xlu0 %v2343
        %v2345 = vpop.xlane.xlu0 %2344
        %v2346 = vsel %vm2330, %v2287, -inf
        %2347 = vmax.xlane.f32.xlu0 %v2346
        %v2348 = vpop.xlane.xlu0 %2347
        %v2349 = vsel %vm2330, %v2292, -inf
        %2350 = vmax.xlane.f32.xlu0 %v2349
        %v2351 = vpop.xlane.xlu0 %2350
        %v2352 = vsel %vm2330, %v2295, -inf
        %2353 = vmax.xlane.f32.xlu0 %v2352
        %v2354 = vpop.xlane.xlu0 %2353
        %v2355 = vsel %vm2330, %v2300, -inf
        %2356 = vmax.xlane.f32.xlu0 %v2355
        %v2357 = vpop.xlane.xlu0 %2356
        %v2358 = vsel %vm2330, %v2303, -inf
        %2359 = vmax.xlane.f32.xlu0 %v2358
        %v2360 = vpop.xlane.xlu0 %2359
        %v2361 = vsel %vm2330, %v2308, -inf
        %2362 = vmax.xlane.f32.xlu0 %v2361
        %v2363 = vpop.xlane.xlu0 %2362
        %v2364 = vsel %vm2330, %v2311, -inf
        %2365 = vmax.xlane.f32.xlu0 %v2364
        %v2366 = vpop.xlane.xlu0 %2365
        %v2367 = vsel %vm2330, %v2316, -inf
        %2368 = vmax.xlane.f32.xlu0 %v2367
        %v2369 = vpop.xlane.xlu0 %2368
        %v2370 = vsel %vm2330, %v2319, -inf
        %2371 = vmax.xlane.f32.xlu0 %v2370
        %v2372 = vpop.xlane.xlu0 %2371
        %v2373 = vsel %vm2330, %v2324, -inf
        %2374 = vmax.xlane.f32.xlu0 %v2373
        %v2375 = vpop.xlane.xlu0 %2374
        %v2376 = vsel %vm2330, %v2327, -inf
        %2377 = vmax.xlane.f32.xlu0 %v2376
        %v2378 = vpop.xlane.xlu0 %2377
        %v2379 = vsub.f32 %v2268, %v2333
        %v2380 = vsub.f32 %v2271, %v2336
        %v2381 = vsub.f32 %v2276, %v2339
        %v2382 = vsub.f32 %v2279, %v2342
        %v2383 = vsub.f32 %v2284, %v2345
        %v2384 = vsub.f32 %v2287, %v2348
        %v2385 = vsub.f32 %v2292, %v2351
        %v2386 = vsub.f32 %v2295, %v2354
        %v2387 = vsub.f32 %v2300, %v2357
        %v2388 = vsub.f32 %v2303, %v2360
        %v2389 = vsub.f32 %v2308, %v2363
        %v2390 = vsub.f32 %v2311, %v2366
        %v2391 = vsub.f32 %v2316, %v2369
        %v2392 = vsub.f32 %v2319, %v2372
        %v2393 = vsub.f32 %v2324, %v2375
        %v2394 = vsub.f32 %v2327, %v2378
        %v2395 = vmul.f32 %v2379, 1.442695
        %v2396 = vpow.pop %v2395
        %v2397 = vmul.f32 %v2380, 1.442695
        %v2398 = vpow.pop %v2397
        %v2399 = vmul.f32 %v2381, 1.442695
        %v2400 = vpow.pop %v2399
        %v2401 = vmul.f32 %v2382, 1.442695
        %v2402 = vpow.pop %v2401
        %v2403 = vmul.f32 %v2383, 1.442695
        %v2404 = vpow.pop %v2403
        %v2405 = vmul.f32 %v2384, 1.442695
        %v2406 = vpow.pop %v2405
        %v2407 = vmul.f32 %v2385, 1.442695
        %v2408 = vpow.pop %v2407
        %v2409 = vmul.f32 %v2386, 1.442695
        %v2410 = vpow.pop %v2409
        %v2411 = vmul.f32 %v2387, 1.442695
        %v2412 = vpow.pop %v2411
        %v2413 = vmul.f32 %v2388, 1.442695
        %v2414 = vpow.pop %v2413
        %v2415 = vmul.f32 %v2389, 1.442695
        %v2416 = vpow.pop %v2415
        %v2417 = vmul.f32 %v2390, 1.442695
        %v2418 = vpow.pop %v2417
        %v2419 = vmul.f32 %v2391, 1.442695
        %v2420 = vpow.pop %v2419
        %v2421 = vmul.f32 %v2392, 1.442695
        %v2422 = vpow.pop %v2421
        %v2423 = vmul.f32 %v2393, 1.442695
        %v2424 = vpow.pop %v2423
        %v2425 = vmul.f32 %v2394, 1.442695
        %v2426 = vpow.pop %v2425
        %v2427 = vsel %vm2330, %v2396, 0.0
        %2428 = vadd.xlane.f32.xlu0 %v2427
        %v2429 = vpop.xlane.xlu0 %2428
        %v2430 = vsel %vm2330, %v2398, 0.0
        %2431 = vadd.xlane.f32.xlu0 %v2430
        %v2432 = vpop.xlane.xlu0 %2431
        %v2433 = vsel %vm2330, %v2400, 0.0
        %2434 = vadd.xlane.f32.xlu0 %v2433
        %v2435 = vpop.xlane.xlu0 %2434
        %v2436 = vsel %vm2330, %v2402, 0.0
        %2437 = vadd.xlane.f32.xlu0 %v2436
        %v2438 = vpop.xlane.xlu0 %2437
        %v2439 = vsel %vm2330, %v2404, 0.0
        %2440 = vadd.xlane.f32.xlu0 %v2439
        %v2441 = vpop.xlane.xlu0 %2440
        %v2442 = vsel %vm2330, %v2406, 0.0
        %2443 = vadd.xlane.f32.xlu0 %v2442
        %v2444 = vpop.xlane.xlu0 %2443
        %v2445 = vsel %vm2330, %v2408, 0.0
        %2446 = vadd.xlane.f32.xlu0 %v2445
        %v2447 = vpop.xlane.xlu0 %2446
        %v2448 = vsel %vm2330, %v2410, 0.0
        %2449 = vadd.xlane.f32.xlu0 %v2448
        %v2450 = vpop.xlane.xlu0 %2449
        %v2451 = vsel %vm2330, %v2412, 0.0
        %2452 = vadd.xlane.f32.xlu0 %v2451
        %v2453 = vpop.xlane.xlu0 %2452
        %v2454 = vsel %vm2330, %v2414, 0.0
        %2455 = vadd.xlane.f32.xlu0 %v2454
        %v2456 = vpop.xlane.xlu0 %2455
        %v2457 = vsel %vm2330, %v2416, 0.0
        %2458 = vadd.xlane.f32.xlu0 %v2457
        %v2459 = vpop.xlane.xlu0 %2458
        %v2460 = vsel %vm2330, %v2418, 0.0
        %2461 = vadd.xlane.f32.xlu0 %v2460
        %v2462 = vpop.xlane.xlu0 %2461
        %v2463 = vsel %vm2330, %v2420, 0.0
        %2464 = vadd.xlane.f32.xlu0 %v2463
        %v2465 = vpop.xlane.xlu0 %2464
        %v2466 = vsel %vm2330, %v2422, 0.0
        %2467 = vadd.xlane.f32.xlu0 %v2466
        %v2468 = vpop.xlane.xlu0 %2467
        %v2469 = vsel %vm2330, %v2424, 0.0
        %2470 = vadd.xlane.f32.xlu0 %v2469
        %v2471 = vpop.xlane.xlu0 %2470
        %v2472 = vsel %vm2330, %v2426, 0.0
        %2473 = vadd.xlane.f32.xlu0 %v2472
        %v2474 = vpop.xlane.xlu0 %2473
        %v2475 = vrcp.pop %v2429
        %v2476 = vrcp.pop %v2432
        %v2477 = vrcp.pop %v2435
        %v2478 = vrcp.pop %v2438
        %v2479 = vrcp.pop %v2441
        %v2480 = vrcp.pop %v2444
        %v2481 = vrcp.pop %v2447
        %v2482 = vrcp.pop %v2450
        %v2483 = vrcp.pop %v2453
        %v2484 = vrcp.pop %v2456
        %v2485 = vrcp.pop %v2459
        %v2486 = vrcp.pop %v2462
        %v2487 = vrcp.pop %v2465
        %v2488 = vrcp.pop %v2468
        %v2489 = vrcp.pop %v2471
        %v2490 = vrcp.pop %v2474
        %v2491 = vmul.f32 %v2429, %v2475
        %v2492 = vmul.f32 %v2432, %v2476
        %v2493 = vmul.f32 %v2435, %v2477
        %v2494 = vmul.f32 %v2438, %v2478
        %v2495 = vmul.f32 %v2441, %v2479
        %v2496 = vmul.f32 %v2444, %v2480
        %v2497 = vmul.f32 %v2447, %v2481
        %v2498 = vmul.f32 %v2450, %v2482
        %v2499 = vmul.f32 %v2453, %v2483
        %v2500 = vmul.f32 %v2456, %v2484
        %v2501 = vmul.f32 %v2459, %v2485
        %v2502 = vmul.f32 %v2462, %v2486
        %v2503 = vmul.f32 %v2465, %v2487
        %v2504 = vmul.f32 %v2468, %v2488
        %v2505 = vmul.f32 %v2471, %v2489
        %v2506 = vmul.f32 %v2474, %v2490
        %v2507 = vsub.f32 2.0, %v2491
        %v2508 = vsub.f32 2.0, %v2492
        %v2509 = vsub.f32 2.0, %v2493
        %v2510 = vsub.f32 2.0, %v2494
        %v2511 = vsub.f32 2.0, %v2495
        %v2512 = vsub.f32 2.0, %v2496
        %v2513 = vsub.f32 2.0, %v2497
        %v2514 = vsub.f32 2.0, %v2498
        %v2515 = vsub.f32 2.0, %v2499
        %v2516 = vsub.f32 2.0, %v2500
        %v2517 = vsub.f32 2.0, %v2501
        %v2518 = vsub.f32 2.0, %v2502
        %v2519 = vsub.f32 2.0, %v2503
        %v2520 = vsub.f32 2.0, %v2504
        %v2521 = vsub.f32 2.0, %v2505
        %v2522 = vsub.f32 2.0, %v2506
        %v2523 = vmul.f32 %v2475, %v2507
        %v2524 = vmul.f32 %v2476, %v2508
        %v2525 = vmul.f32 %v2477, %v2509
        %v2526 = vmul.f32 %v2478, %v2510
        %v2527 = vmul.f32 %v2479, %v2511
        %v2528 = vmul.f32 %v2480, %v2512
        %v2529 = vmul.f32 %v2481, %v2513
        %v2530 = vmul.f32 %v2482, %v2514
        %v2531 = vmul.f32 %v2483, %v2515
        %v2532 = vmul.f32 %v2484, %v2516
        %v2533 = vmul.f32 %v2485, %v2517
        %v2534 = vmul.f32 %v2486, %v2518
        %v2535 = vmul.f32 %v2487, %v2519
        %v2536 = vmul.f32 %v2488, %v2520
        %v2537 = vmul.f32 %v2489, %v2521
        %v2538 = vmul.f32 %v2490, %v2522
        %v2539 = vmul.f32 %v2396, %v2523
        %v2540 = vmul.f32 %v2398, %v2524
        %v2541 = vmul.f32 %v2400, %v2525
        %v2542 = vmul.f32 %v2402, %v2526
        %v2543 = vmul.f32 %v2404, %v2527
        %v2544 = vmul.f32 %v2406, %v2528
        %v2545 = vmul.f32 %v2408, %v2529
        %v2546 = vmul.f32 %v2410, %v2530
        %v2547 = vmul.f32 %v2412, %v2531
        %v2548 = vmul.f32 %v2414, %v2532
        %v2549 = vmul.f32 %v2416, %v2533
        %v2550 = vmul.f32 %v2418, %v2534
        %v2551 = vmul.f32 %v2420, %v2535
        %v2552 = vmul.f32 %v2422, %v2536
        %v2553 = vmul.f32 %v2424, %v2537
        %v2554 = vmul.f32 %v2426, %v2538
        %v2555 = vpack.c.bf16 %v2540, %v2539
        %v2556 = vpack.c.bf16 %v2542, %v2541
        %v2557 = vpack.c.bf16 %v2544, %v2543
        %v2558 = vpack.c.bf16 %v2546, %v2545
        %v2559 = vpack.c.bf16 %v2548, %v2547
        %v2560 = vpack.c.bf16 %v2550, %v2549
        %v2561 = vpack.c.bf16 %v2552, %v2551
        %v2562 = vpack.c.bf16 %v2554, %v2553
        %v2563 = vld [vmem:[#allocation5] sm:$0xff]
        %v2564 = vld [vmem:[#allocation5 + $0x8] sm:$0xff]
        %v2565 = vld [vmem:[#allocation5 + $0x10] sm:$0xff]
        %v2566 = vld [vmem:[#allocation5 + $0x18] sm:$0xff]
        %v2567 = vld [vmem:[#allocation5 + $0x20] sm:$0xff]
        %v2568 = vld [vmem:[#allocation5 + $0x28] sm:$0xff]
        %v2569 = vld [vmem:[#allocation5 + $0x30] sm:$0xff]
        %v2570 = vld [vmem:[#allocation5 + $0x38] sm:$0xff]
        %v2571 = vld [vmem:[#allocation5 + $0x40] sm:$0xff]
        %v2572 = vld [vmem:[#allocation5 + $0x48] sm:$0xff]
        %v2573 = vld [vmem:[#allocation5 + $0x50] sm:$0xff]
        %v2574 = vld [vmem:[#allocation5 + $0x58] sm:$0xff]
        %v2575 = vld [vmem:[#allocation5 + $0x60] sm:$0xff]
        %v2576 = vld [vmem:[#allocation5 + $0x68] sm:$0xff]
        %v2577 = vld [vmem:[#allocation5 + $0x70] sm:$0xff]
        %v2578 = vld [vmem:[#allocation5 + $0x78] sm:$0xff]
        %v2579 = vld [vmem:[#allocation5 + $0x80] sm:$0xff]
        %v2580 = vld [vmem:[#allocation5 + $0x88] sm:$0xff]
        %v2581 = vld [vmem:[#allocation5 + $0x90] sm:$0xff]
        %v2582 = vld [vmem:[#allocation5 + $0x98] sm:$0xff]
        %v2583 = vld [vmem:[#allocation5 + $0xa0] sm:$0xff]
        %v2584 = vld [vmem:[#allocation5 + $0xa8] sm:$0xff]
        %v2585 = vld [vmem:[#allocation5 + $0xb0] sm:$0xff]
        %v2586 = vld [vmem:[#allocation5 + $0xb8] sm:$0xff]
        %v2587 = vld [vmem:[#allocation5 + $0xc0] sm:$0xff]
        %v2588 = vld [vmem:[#allocation5 + $0xc8] sm:$0xff]
        %v2589 = vld [vmem:[#allocation5 + $0xd0] sm:$0xff]
        %v2590 = vld [vmem:[#allocation5 + $0xd8] sm:$0xff]
        %v2591 = vld [vmem:[#allocation5 + $0xe0] sm:$0xff]
        %v2592 = vld [vmem:[#allocation5 + $0xe8] sm:$0xff]
        %v2593 = vld [vmem:[#allocation5 + $0xf0] sm:$0xff]
        %v2594 = vld [vmem:[#allocation5 + $0xf8] sm:$0xff]
        %v2595 = vld [vmem:[#allocation5 + $0x100] sm:$0xff]
        %v2596 = vld [vmem:[#allocation5 + $0x108] sm:$0xff]
        %v2597 = vld [vmem:[#allocation5 + $0x110] sm:$0xff]
        %v2598 = vld [vmem:[#allocation5 + $0x118] sm:$0xff]
        %v2599 = vld [vmem:[#allocation5 + $0x120] sm:$0xff]
        %v2600 = vld [vmem:[#allocation5 + $0x128] sm:$0xff]
        %v2601 = vld [vmem:[#allocation5 + $0x130] sm:$0xff]
        %v2602 = vld [vmem:[#allocation5 + $0x138] sm:$0xff]
        %v2603 = vld [vmem:[#allocation5 + $0x140] sm:$0xff]
        %v2604 = vld [vmem:[#allocation5 + $0x148] sm:$0xff]
        %v2605 = vld [vmem:[#allocation5 + $0x150] sm:$0xff]
        %v2606 = vld [vmem:[#allocation5 + $0x158] sm:$0xff]
        %v2607 = vld [vmem:[#allocation5 + $0x160] sm:$0xff]
        %v2608 = vld [vmem:[#allocation5 + $0x168] sm:$0xff]
        %v2609 = vld [vmem:[#allocation5 + $0x170] sm:$0xff]
        %v2610 = vld [vmem:[#allocation5 + $0x178] sm:$0xff]
        %v2611 = vld [vmem:[#allocation5 + $0x180] sm:$0xff]
        %v2612 = vld [vmem:[#allocation5 + $0x188] sm:$0xff]
        %v2613 = vld [vmem:[#allocation5 + $0x190] sm:$0xff]
        %v2614 = vld [vmem:[#allocation5 + $0x198] sm:$0xff]
        %v2615 = vld [vmem:[#allocation5 + $0x1a0] sm:$0xff]
        %v2616 = vld [vmem:[#allocation5 + $0x1a8] sm:$0xff]
        %v2617 = vld [vmem:[#allocation5 + $0x1b0] sm:$0xff]
        %v2618 = vld [vmem:[#allocation5 + $0x1b8] sm:$0xff]
        %v2619 = vld [vmem:[#allocation5 + $0x1c0] sm:$0xff]
        %v2620 = vld [vmem:[#allocation5 + $0x1c8] sm:$0xff]
        %v2621 = vld [vmem:[#allocation5 + $0x1d0] sm:$0xff]
        %v2622 = vld [vmem:[#allocation5 + $0x1d8] sm:$0xff]
        %v2623 = vld [vmem:[#allocation5 + $0x1e0] sm:$0xff]
        %v2624 = vld [vmem:[#allocation5 + $0x1e8] sm:$0xff]
        %v2625 = vld [vmem:[#allocation5 + $0x1f0] sm:$0xff]
        %v2626 = vld [vmem:[#allocation5 + $0x1f8] sm:$0xff]
        %v2691 = vunpack.c.l.b16 %v2563
        %v2692 = vunpack.c.h.b16 %v2563
        %v2693 = vunpack.c.l.b16 %v2564
        %v2694 = vunpack.c.h.b16 %v2564
        %v2695 = vunpack.c.l.b16 %v2565
        %v2696 = vunpack.c.h.b16 %v2565
        %v2697 = vunpack.c.l.b16 %v2566
        %v2698 = vunpack.c.h.b16 %v2566
        %v2699 = vunpack.c.l.b16 %v2567
        %v2700 = vunpack.c.h.b16 %v2567
        %v2701 = vunpack.c.l.b16 %v2568
        %v2702 = vunpack.c.h.b16 %v2568
        %v2703 = vunpack.c.l.b16 %v2569
        %v2704 = vunpack.c.h.b16 %v2569
        %v2705 = vunpack.c.l.b16 %v2570
        %v2706 = vunpack.c.h.b16 %v2570
        %v2707 = vunpack.c.l.b16 %v2571
        %v2708 = vunpack.c.h.b16 %v2571
        %v2709 = vunpack.c.l.b16 %v2572
        %v2710 = vunpack.c.h.b16 %v2572
        %v2711 = vunpack.c.l.b16 %v2573
        %v2712 = vunpack.c.h.b16 %v2573
        %v2713 = vunpack.c.l.b16 %v2574
        %v2714 = vunpack.c.h.b16 %v2574
        %v2715 = vunpack.c.l.b16 %v2575
        %v2716 = vunpack.c.h.b16 %v2575
        %v2717 = vunpack.c.l.b16 %v2576
        %v2718 = vunpack.c.h.b16 %v2576
        %v2719 = vunpack.c.l.b16 %v2577
        %v2720 = vunpack.c.h.b16 %v2577
        %v2721 = vunpack.c.l.b16 %v2578
        %v2722 = vunpack.c.h.b16 %v2578
        %v2723 = vunpack.c.l.b16 %v2579
        %v2724 = vunpack.c.h.b16 %v2579
        %v2725 = vunpack.c.l.b16 %v2580
        %v2726 = vunpack.c.h.b16 %v2580
        %v2727 = vunpack.c.l.b16 %v2581
        %v2728 = vunpack.c.h.b16 %v2581
        %v2729 = vunpack.c.l.b16 %v2582
        %v2730 = vunpack.c.h.b16 %v2582
        %v2731 = vunpack.c.l.b16 %v2583
        %v2732 = vunpack.c.h.b16 %v2583
        %v2733 = vunpack.c.l.b16 %v2584
        %v2734 = vunpack.c.h.b16 %v2584
        %v2735 = vunpack.c.l.b16 %v2585
        %v2736 = vunpack.c.h.b16 %v2585
        %v2737 = vunpack.c.l.b16 %v2586
        %v2738 = vunpack.c.h.b16 %v2586
        %v2739 = vunpack.c.l.b16 %v2587
        %v2740 = vunpack.c.h.b16 %v2587
        %v2741 = vunpack.c.l.b16 %v2588
        %v2742 = vunpack.c.h.b16 %v2588
        %v2743 = vunpack.c.l.b16 %v2589
        %v2744 = vunpack.c.h.b16 %v2589
        %v2745 = vunpack.c.l.b16 %v2590
        %v2746 = vunpack.c.h.b16 %v2590
        %v2747 = vunpack.c.l.b16 %v2591
        %v2748 = vunpack.c.h.b16 %v2591
        %v2749 = vunpack.c.l.b16 %v2592
        %v2750 = vunpack.c.h.b16 %v2592
        %v2751 = vunpack.c.l.b16 %v2593
        %v2752 = vunpack.c.h.b16 %v2593
        %v2753 = vunpack.c.l.b16 %v2594
        %v2754 = vunpack.c.h.b16 %v2594
        %v2755 = vunpack.c.l.b16 %v2595
        %v2756 = vunpack.c.h.b16 %v2595
        %v2757 = vunpack.c.l.b16 %v2596
        %v2758 = vunpack.c.h.b16 %v2596
        %v2759 = vunpack.c.l.b16 %v2597
        %v2760 = vunpack.c.h.b16 %v2597
        %v2761 = vunpack.c.l.b16 %v2598
        %v2762 = vunpack.c.h.b16 %v2598
        %v2763 = vunpack.c.l.b16 %v2599
        %v2764 = vunpack.c.h.b16 %v2599
        %v2765 = vunpack.c.l.b16 %v2600
        %v2766 = vunpack.c.h.b16 %v2600
        %v2767 = vunpack.c.l.b16 %v2601
        %v2768 = vunpack.c.h.b16 %v2601
        %v2769 = vunpack.c.l.b16 %v2602
        %v2770 = vunpack.c.h.b16 %v2602
        %v2771 = vunpack.c.l.b16 %v2603
        %v2772 = vunpack.c.h.b16 %v2603
        %v2773 = vunpack.c.l.b16 %v2604
        %v2774 = vunpack.c.h.b16 %v2604
        %v2775 = vunpack.c.l.b16 %v2605
        %v2776 = vunpack.c.h.b16 %v2605
        %v2777 = vunpack.c.l.b16 %v2606
        %v2778 = vunpack.c.h.b16 %v2606
        %v2779 = vunpack.c.l.b16 %v2607
        %v2780 = vunpack.c.h.b16 %v2607
        %v2781 = vunpack.c.l.b16 %v2608
        %v2782 = vunpack.c.h.b16 %v2608
        %v2783 = vunpack.c.l.b16 %v2609
        %v2784 = vunpack.c.h.b16 %v2609
        %v2785 = vunpack.c.l.b16 %v2610
        %v2786 = vunpack.c.h.b16 %v2610
        %v2787 = vunpack.c.l.b16 %v2611
        %v2788 = vunpack.c.h.b16 %v2611
        %v2789 = vunpack.c.l.b16 %v2612
        %v2790 = vunpack.c.h.b16 %v2612
        %v2791 = vunpack.c.l.b16 %v2613
        %v2792 = vunpack.c.h.b16 %v2613
        %v2793 = vunpack.c.l.b16 %v2614
        %v2794 = vunpack.c.h.b16 %v2614
        %v2795 = vunpack.c.l.b16 %v2615
        %v2796 = vunpack.c.h.b16 %v2615
        %v2797 = vunpack.c.l.b16 %v2616
        %v2798 = vunpack.c.h.b16 %v2616
        %v2799 = vunpack.c.l.b16 %v2617
        %v2800 = vunpack.c.h.b16 %v2617
        %v2801 = vunpack.c.l.b16 %v2618
        %v2802 = vunpack.c.h.b16 %v2618
        %v2803 = vunpack.c.l.b16 %v2619
        %v2804 = vunpack.c.h.b16 %v2619
        %v2805 = vunpack.c.l.b16 %v2620
        %v2806 = vunpack.c.h.b16 %v2620
        %v2807 = vunpack.c.l.b16 %v2621
        %v2808 = vunpack.c.h.b16 %v2621
        %v2809 = vunpack.c.l.b16 %v2622
        %v2810 = vunpack.c.h.b16 %v2622
        %v2811 = vunpack.c.l.b16 %v2623
        %v2812 = vunpack.c.h.b16 %v2623
        %v2813 = vunpack.c.l.b16 %v2624
        %v2814 = vunpack.c.h.b16 %v2624
        %v2815 = vunpack.c.l.b16 %v2625
        %v2816 = vunpack.c.h.b16 %v2625
        %v2817 = vunpack.c.l.b16 %v2626
        %v2818 = vunpack.c.h.b16 %v2626
        %v2819 = vpack.c.b16 %v2723, %v2691
        %v2820 = vpack.c.b16 %v2724, %v2692
        %v2821 = vpack.c.b16 %v2725, %v2693
        %v2822 = vpack.c.b16 %v2726, %v2694
        %v2823 = vpack.c.b16 %v2727, %v2695
        %v2824 = vpack.c.b16 %v2728, %v2696
        %v2825 = vpack.c.b16 %v2729, %v2697
        %v2826 = vpack.c.b16 %v2730, %v2698
        %v2827 = vpack.c.b16 %v2731, %v2699
        %v2828 = vpack.c.b16 %v2732, %v2700
        %v2829 = vpack.c.b16 %v2733, %v2701
        %v2830 = vpack.c.b16 %v2734, %v2702
        %v2831 = vpack.c.b16 %v2735, %v2703
        %v2832 = vpack.c.b16 %v2736, %v2704
        %v2833 = vpack.c.b16 %v2737, %v2705
        %v2834 = vpack.c.b16 %v2738, %v2706
        %v2835 = vpack.c.b16 %v2739, %v2707
        %v2836 = vpack.c.b16 %v2740, %v2708
        %v2837 = vpack.c.b16 %v2741, %v2709
        %v2838 = vpack.c.b16 %v2742, %v2710
        %v2839 = vpack.c.b16 %v2743, %v2711
        %v2840 = vpack.c.b16 %v2744, %v2712
        %v2841 = vpack.c.b16 %v2745, %v2713
        %v2842 = vpack.c.b16 %v2746, %v2714
        %v2843 = vpack.c.b16 %v2747, %v2715
        %v2844 = vpack.c.b16 %v2748, %v2716
        %v2845 = vpack.c.b16 %v2749, %v2717
        %v2846 = vpack.c.b16 %v2750, %v2718
        %v2847 = vpack.c.b16 %v2751, %v2719
        %v2848 = vpack.c.b16 %v2752, %v2720
        %v2849 = vpack.c.b16 %v2753, %v2721
        %v2850 = vpack.c.b16 %v2754, %v2722
        %v2851 = vpack.c.b16 %v2787, %v2755
        %v2852 = vpack.c.b16 %v2788, %v2756
        %v2853 = vpack.c.b16 %v2789, %v2757
        %v2854 = vpack.c.b16 %v2790, %v2758
        %v2855 = vpack.c.b16 %v2791, %v2759
        %v2856 = vpack.c.b16 %v2792, %v2760
        %v2857 = vpack.c.b16 %v2793, %v2761
        %v2858 = vpack.c.b16 %v2794, %v2762
        %v2859 = vpack.c.b16 %v2795, %v2763
        %v2860 = vpack.c.b16 %v2796, %v2764
        %v2861 = vpack.c.b16 %v2797, %v2765
        %v2862 = vpack.c.b16 %v2798, %v2766
        %v2863 = vpack.c.b16 %v2799, %v2767
        %v2864 = vpack.c.b16 %v2800, %v2768
        %v2865 = vpack.c.b16 %v2801, %v2769
        %v2866 = vpack.c.b16 %v2802, %v2770
        %v2867 = vpack.c.b16 %v2803, %v2771
        %v2868 = vpack.c.b16 %v2804, %v2772
        %v2869 = vpack.c.b16 %v2805, %v2773
        %v2870 = vpack.c.b16 %v2806, %v2774
        %v2871 = vpack.c.b16 %v2807, %v2775
        %v2872 = vpack.c.b16 %v2808, %v2776
        %v2873 = vpack.c.b16 %v2809, %v2777
        %v2874 = vpack.c.b16 %v2810, %v2778
        %v2875 = vpack.c.b16 %v2811, %v2779
        %v2876 = vpack.c.b16 %v2812, %v2780
        %v2877 = vpack.c.b16 %v2813, %v2781
        %v2878 = vpack.c.b16 %v2814, %v2782
        %v2879 = vpack.c.b16 %v2815, %v2783
        %v2880 = vpack.c.b16 %v2816, %v2784
        %v2881 = vpack.c.b16 %v2817, %v2785
        %v2882 = vpack.c.b16 %v2818, %v2786
        %v2948 = vsel %vm2330, %v2555, 0
        %v2951 = vsel %vm2330, %v2556, 0
        %v2954 = vsel %vm2330, %v2557, 0
        %v2957 = vsel %vm2330, %v2558, 0
        %v2960 = vsel %vm2330, %v2559, 0
        %v2963 = vsel %vm2330, %v2560, 0
        %v2966 = vsel %vm2330, %v2561, 0
        %v2969 = vsel %vm2330, %v2562, 0
        %2971 = vmatprep.subr.bf16.mxu0 0
        %2972 = vmatpush1.bf16.msra.mxu0 0
        %2973 = vmatprep.subr.bf16.mxu0 0
        %2974 = vmatpush1.bf16.msra.mxu0 0
        %2975 = vmatprep.subr.bf16.mxu0 0
        %2976 = vmatpush1.bf16.msra.mxu0 0
        %2977 = vmatprep.subr.bf16.mxu0 0
        %2978 = vmatpush1.bf16.msra.mxu0 0
        %2979 = vmatprep.subr.bf16.mxu0 0
        %2980 = vmatpush1.bf16.msra.mxu0 0
        %2981 = vmatprep.subr.bf16.mxu0 0
        %2982 = vmatpush1.bf16.msra.mxu0 0
        %2983 = vmatprep.subr.bf16.mxu0 %v2852
        %2984 = vmatpush1.bf16.msra.mxu0 %v2851
        %2985 = vmatprep.subr.bf16.mxu0 %v2820
        %2986 = vmatpush1.bf16.msra.mxu0 %v2819
        %2987 = vmatprep.subr.bf16.mxu0 0
        %2988 = vmatpush2.bf16.msra.mxu0 0
        %2989 = vmatprep.subr.bf16.mxu0 0
        %2990 = vmatpush2.bf16.msra.mxu0 0
        %2991 = vmatprep.subr.bf16.mxu0 0
        %2992 = vmatpush2.bf16.msra.mxu0 0
        %2993 = vmatprep.subr.bf16.mxu0 0
        %2994 = vmatpush2.bf16.msra.mxu0 0
        %2995 = vmatprep.subr.bf16.mxu0 0
        %2996 = vmatpush2.bf16.msra.mxu0 0
        %2997 = vmatprep.subr.bf16.mxu0 0
        %2998 = vmatpush2.bf16.msra.mxu0 0
        %2999 = vmatprep.subr.bf16.mxu0 0
        %3000 = vmatpush2.bf16.msra.mxu0 0
        %3001 = vmatprep.subr.bf16.mxu0 0
        %3002 = vmatpush2.bf16.msra.mxu0 0
        %3003 = vmatprep.mubr.bf16.mxu0 0
        %3004 = vmatmul.mubr.bf16.gmra.mxu0 %v2948
        %v3005 = vpop.f32.mrf.mxu0
        %v3006 = vadd.f32 0.0, %v3005
        %v3007 = vpop.f32.mrf.mxu0
        %v3008 = vadd.f32 0.0, %v3007
        %v3009 = vpop.f32.mrf.mxu0
        %v3010 = vadd.f32 0.0, %v3009
        %v3011 = vpop.f32.mrf.mxu0
        %v3012 = vadd.f32 0.0, %v3011
        %3013 = vmatprep.mubr.bf16.mxu0 0
        %3014 = vmatmul.mubr.bf16.gmra.mxu0 %v2951
        %v3015 = vpop.f32.mrf.mxu0
        %v3016 = vadd.f32 0.0, %v3015
        %v3017 = vpop.f32.mrf.mxu0
        %v3018 = vadd.f32 0.0, %v3017
        %v3019 = vpop.f32.mrf.mxu0
        %v3020 = vadd.f32 0.0, %v3019
        %v3021 = vpop.f32.mrf.mxu0
        %v3022 = vadd.f32 0.0, %v3021
        %3023 = vmatprep.mubr.bf16.mxu0 0
        %3024 = vmatmul.mubr.bf16.gmra.mxu0 %v2954
        %v3025 = vpop.f32.mrf.mxu0
        %v3026 = vadd.f32 0.0, %v3025
        %v3027 = vpop.f32.mrf.mxu0
        %v3028 = vadd.f32 0.0, %v3027
        %v3029 = vpop.f32.mrf.mxu0
        %v3030 = vadd.f32 0.0, %v3029
        %v3031 = vpop.f32.mrf.mxu0
        %v3032 = vadd.f32 0.0, %v3031
        %3033 = vmatprep.mubr.bf16.mxu0 0
        %3034 = vmatmul.mubr.bf16.gmra.mxu0 %v2957
        %v3035 = vpop.f32.mrf.mxu0
        %v3036 = vadd.f32 0.0, %v3035
        %v3037 = vpop.f32.mrf.mxu0
        %v3038 = vadd.f32 0.0, %v3037
        %v3039 = vpop.f32.mrf.mxu0
        %v3040 = vadd.f32 0.0, %v3039
        %v3041 = vpop.f32.mrf.mxu0
        %v3042 = vadd.f32 0.0, %v3041
        %3043 = vmatprep.mubr.bf16.mxu0 0
        %3044 = vmatmul.mubr.bf16.gmra.mxu0 %v2960
        %v3045 = vpop.f32.mrf.mxu0
        %v3046 = vadd.f32 0.0, %v3045
        %v3047 = vpop.f32.mrf.mxu0
        %v3048 = vadd.f32 0.0, %v3047
        %v3049 = vpop.f32.mrf.mxu0
        %v3050 = vadd.f32 0.0, %v3049
        %v3051 = vpop.f32.mrf.mxu0
        %v3052 = vadd.f32 0.0, %v3051
        %3053 = vmatprep.mubr.bf16.mxu0 0
        %3054 = vmatmul.mubr.bf16.gmra.mxu0 %v2963
        %v3055 = vpop.f32.mrf.mxu0
        %v3056 = vadd.f32 0.0, %v3055
        %v3057 = vpop.f32.mrf.mxu0
        %v3058 = vadd.f32 0.0, %v3057
        %v3059 = vpop.f32.mrf.mxu0
        %v3060 = vadd.f32 0.0, %v3059
        %v3061 = vpop.f32.mrf.mxu0
        %v3062 = vadd.f32 0.0, %v3061
        %3063 = vmatprep.mubr.bf16.mxu0 0
        %3064 = vmatmul.mubr.bf16.gmra.mxu0 %v2966
        %v3065 = vpop.f32.mrf.mxu0
        %v3066 = vadd.f32 0.0, %v3065
        %v3067 = vpop.f32.mrf.mxu0
        %v3068 = vadd.f32 0.0, %v3067
        %v3069 = vpop.f32.mrf.mxu0
        %v3070 = vadd.f32 0.0, %v3069
        %v3071 = vpop.f32.mrf.mxu0
        %v3072 = vadd.f32 0.0, %v3071
        %3073 = vmatprep.mubr.bf16.mxu0 0
        %3074 = vmatmul.mubr.bf16.gmra.mxu0 %v2969
        %v3075 = vpop.f32.mrf.mxu0
        %v3076 = vadd.f32 0.0, %v3075
        %v3077 = vpop.f32.mrf.mxu0
        %v3078 = vadd.f32 0.0, %v3077
        %v3079 = vpop.f32.mrf.mxu0
        %v3080 = vadd.f32 0.0, %v3079
        %v3081 = vpop.f32.mrf.mxu0
        %v3082 = vadd.f32 0.0, %v3081
        %3083 = vdwg.mxu0
        %3084 = vmatprep.subr.bf16.mxu0 0
        %3085 = vmatpush1.bf16.msra.mxu0 0
        %3086 = vmatprep.subr.bf16.mxu0 0
        %3087 = vmatpush1.bf16.msra.mxu0 0
        %3088 = vmatprep.subr.bf16.mxu0 0
        %3089 = vmatpush1.bf16.msra.mxu0 0
        %3090 = vmatprep.subr.bf16.mxu0 0
        %3091 = vmatpush1.bf16.msra.mxu0 0
        %3092 = vmatprep.subr.bf16.mxu0 0
        %3093 = vmatpush1.bf16.msra.mxu0 0
        %3094 = vmatprep.subr.bf16.mxu0 0
        %3095 = vmatpush1.bf16.msra.mxu0 0
        %3096 = vmatprep.subr.bf16.mxu0 %v2854
        %3097 = vmatpush1.bf16.msra.mxu0 %v2853
        %3098 = vmatprep.subr.bf16.mxu0 %v2822
        %3099 = vmatpush1.bf16.msra.mxu0 %v2821
        %3100 = vmatprep.subr.bf16.mxu0 0
        %3101 = vmatpush2.bf16.msra.mxu0 0
        %3102 = vmatprep.subr.bf16.mxu0 0
        %3103 = vmatpush2.bf16.msra.mxu0 0
        %3104 = vmatprep.subr.bf16.mxu0 0
        %3105 = vmatpush2.bf16.msra.mxu0 0
        %3106 = vmatprep.subr.bf16.mxu0 0
        %3107 = vmatpush2.bf16.msra.mxu0 0
        %3108 = vmatprep.subr.bf16.mxu0 0
        %3109 = vmatpush2.bf16.msra.mxu0 0
        %3110 = vmatprep.subr.bf16.mxu0 0
        %3111 = vmatpush2.bf16.msra.mxu0 0
        %3112 = vmatprep.subr.bf16.mxu0 0
        %3113 = vmatpush2.bf16.msra.mxu0 0
        %3114 = vmatprep.subr.bf16.mxu0 0
        %3115 = vmatpush2.bf16.msra.mxu0 0
        %3116 = vmatprep.mubr.bf16.mxu0 0
        %3117 = vmatmul.mubr.bf16.gmra.mxu0 %v2948
        %v3118 = vpop.f32.mrf.mxu0
        %v3119 = vadd.f32 0.0, %v3118
        %v3120 = vpop.f32.mrf.mxu0
        %v3121 = vadd.f32 0.0, %v3120
        %v3122 = vpop.f32.mrf.mxu0
        %v3123 = vadd.f32 0.0, %v3122
        %v3124 = vpop.f32.mrf.mxu0
        %v3125 = vadd.f32 0.0, %v3124
        %3126 = vmatprep.mubr.bf16.mxu0 0
        %3127 = vmatmul.mubr.bf16.gmra.mxu0 %v2951
        %v3128 = vpop.f32.mrf.mxu0
        %v3129 = vadd.f32 0.0, %v3128
        %v3130 = vpop.f32.mrf.mxu0
        %v3131 = vadd.f32 0.0, %v3130
        %v3132 = vpop.f32.mrf.mxu0
        %v3133 = vadd.f32 0.0, %v3132
        %v3134 = vpop.f32.mrf.mxu0
        %v3135 = vadd.f32 0.0, %v3134
        %3136 = vmatprep.mubr.bf16.mxu0 0
        %3137 = vmatmul.mubr.bf16.gmra.mxu0 %v2954
        %v3138 = vpop.f32.mrf.mxu0
        %v3139 = vadd.f32 0.0, %v3138
        %v3140 = vpop.f32.mrf.mxu0
        %v3141 = vadd.f32 0.0, %v3140
        %v3142 = vpop.f32.mrf.mxu0
        %v3143 = vadd.f32 0.0, %v3142
        %v3144 = vpop.f32.mrf.mxu0
        %v3145 = vadd.f32 0.0, %v3144
        %3146 = vmatprep.mubr.bf16.mxu0 0
        %3147 = vmatmul.mubr.bf16.gmra.mxu0 %v2957
        %v3148 = vpop.f32.mrf.mxu0
        %v3149 = vadd.f32 0.0, %v3148
        %v3150 = vpop.f32.mrf.mxu0
        %v3151 = vadd.f32 0.0, %v3150
        %v3152 = vpop.f32.mrf.mxu0
        %v3153 = vadd.f32 0.0, %v3152
        %v3154 = vpop.f32.mrf.mxu0
        %v3155 = vadd.f32 0.0, %v3154
        %3156 = vmatprep.mubr.bf16.mxu0 0
        %3157 = vmatmul.mubr.bf16.gmra.mxu0 %v2960
        %v3158 = vpop.f32.mrf.mxu0
        %v3159 = vadd.f32 0.0, %v3158
        %v3160 = vpop.f32.mrf.mxu0
        %v3161 = vadd.f32 0.0, %v3160
        %v3162 = vpop.f32.mrf.mxu0
        %v3163 = vadd.f32 0.0, %v3162
        %v3164 = vpop.f32.mrf.mxu0
        %v3165 = vadd.f32 0.0, %v3164
        %3166 = vmatprep.mubr.bf16.mxu0 0
        %3167 = vmatmul.mubr.bf16.gmra.mxu0 %v2963
        %v3168 = vpop.f32.mrf.mxu0
        %v3169 = vadd.f32 0.0, %v3168
        %v3170 = vpop.f32.mrf.mxu0
        %v3171 = vadd.f32 0.0, %v3170
        %v3172 = vpop.f32.mrf.mxu0
        %v3173 = vadd.f32 0.0, %v3172
        %v3174 = vpop.f32.mrf.mxu0
        %v3175 = vadd.f32 0.0, %v3174
        %3176 = vmatprep.mubr.bf16.mxu0 0
        %3177 = vmatmul.mubr.bf16.gmra.mxu0 %v2966
        %v3178 = vpop.f32.mrf.mxu0
        %v3179 = vadd.f32 0.0, %v3178
        %v3180 = vpop.f32.mrf.mxu0
        %v3181 = vadd.f32 0.0, %v3180
        %v3182 = vpop.f32.mrf.mxu0
        %v3183 = vadd.f32 0.0, %v3182
        %v3184 = vpop.f32.mrf.mxu0
        %v3185 = vadd.f32 0.0, %v3184
        %3186 = vmatprep.mubr.bf16.mxu0 0
        %3187 = vmatmul.mubr.bf16.gmra.mxu0 %v2969
        %v3188 = vpop.f32.mrf.mxu0
        %v3189 = vadd.f32 0.0, %v3188
        %v3190 = vpop.f32.mrf.mxu0
        %v3191 = vadd.f32 0.0, %v3190
        %v3192 = vpop.f32.mrf.mxu0
        %v3193 = vadd.f32 0.0, %v3192
        %v3194 = vpop.f32.mrf.mxu0
        %v3195 = vadd.f32 0.0, %v3194
        %3196 = vdwg.mxu0
        %3197 = vmatprep.subr.bf16.mxu0 0
        %3198 = vmatpush1.bf16.msra.mxu0 0
        %3199 = vmatprep.subr.bf16.mxu0 0
        %3200 = vmatpush1.bf16.msra.mxu0 0
        %3201 = vmatprep.subr.bf16.mxu0 0
        %3202 = vmatpush1.bf16.msra.mxu0 0
        %3203 = vmatprep.subr.bf16.mxu0 0
        %3204 = vmatpush1.bf16.msra.mxu0 0
        %3205 = vmatprep.subr.bf16.mxu0 0
        %3206 = vmatpush1.bf16.msra.mxu0 0
        %3207 = vmatprep.subr.bf16.mxu0 0
        %3208 = vmatpush1.bf16.msra.mxu0 0
        %3209 = vmatprep.subr.bf16.mxu0 %v2856
        %3210 = vmatpush1.bf16.msra.mxu0 %v2855
        %3211 = vmatprep.subr.bf16.mxu0 %v2824
        %3212 = vmatpush1.bf16.msra.mxu0 %v2823
        %3213 = vmatprep.subr.bf16.mxu0 0
        %3214 = vmatpush2.bf16.msra.mxu0 0
        %3215 = vmatprep.subr.bf16.mxu0 0
        %3216 = vmatpush2.bf16.msra.mxu0 0
        %3217 = vmatprep.subr.bf16.mxu0 0
        %3218 = vmatpush2.bf16.msra.mxu0 0
        %3219 = vmatprep.subr.bf16.mxu0 0
        %3220 = vmatpush2.bf16.msra.mxu0 0
        %3221 = vmatprep.subr.bf16.mxu0 0
        %3222 = vmatpush2.bf16.msra.mxu0 0
        %3223 = vmatprep.subr.bf16.mxu0 0
        %3224 = vmatpush2.bf16.msra.mxu0 0
        %3225 = vmatprep.subr.bf16.mxu0 0
        %3226 = vmatpush2.bf16.msra.mxu0 0
        %3227 = vmatprep.subr.bf16.mxu0 0
        %3228 = vmatpush2.bf16.msra.mxu0 0
        %3229 = vmatprep.mubr.bf16.mxu0 0
        %3230 = vmatmul.mubr.bf16.gmra.mxu0 %v2948
        %v3231 = vpop.f32.mrf.mxu0
        %v3232 = vadd.f32 0.0, %v3231
        %v3233 = vpop.f32.mrf.mxu0
        %v3234 = vadd.f32 0.0, %v3233
        %v3235 = vpop.f32.mrf.mxu0
        %v3236 = vadd.f32 0.0, %v3235
        %v3237 = vpop.f32.mrf.mxu0
        %v3238 = vadd.f32 0.0, %v3237
        %3239 = vmatprep.mubr.bf16.mxu0 0
        %3240 = vmatmul.mubr.bf16.gmra.mxu0 %v2951
        %v3241 = vpop.f32.mrf.mxu0
        %v3242 = vadd.f32 0.0, %v3241
        %v3243 = vpop.f32.mrf.mxu0
        %v3244 = vadd.f32 0.0, %v3243
        %v3245 = vpop.f32.mrf.mxu0
        %v3246 = vadd.f32 0.0, %v3245
        %v3247 = vpop.f32.mrf.mxu0
        %v3248 = vadd.f32 0.0, %v3247
        %3249 = vmatprep.mubr.bf16.mxu0 0
        %3250 = vmatmul.mubr.bf16.gmra.mxu0 %v2954
        %v3251 = vpop.f32.mrf.mxu0
        %v3252 = vadd.f32 0.0, %v3251
        %v3253 = vpop.f32.mrf.mxu0
        %v3254 = vadd.f32 0.0, %v3253
        %v3255 = vpop.f32.mrf.mxu0
        %v3256 = vadd.f32 0.0, %v3255
        %v3257 = vpop.f32.mrf.mxu0
        %v3258 = vadd.f32 0.0, %v3257
        %3259 = vmatprep.mubr.bf16.mxu0 0
        %3260 = vmatmul.mubr.bf16.gmra.mxu0 %v2957
        %v3261 = vpop.f32.mrf.mxu0
        %v3262 = vadd.f32 0.0, %v3261
        %v3263 = vpop.f32.mrf.mxu0
        %v3264 = vadd.f32 0.0, %v3263
        %v3265 = vpop.f32.mrf.mxu0
        %v3266 = vadd.f32 0.0, %v3265
        %v3267 = vpop.f32.mrf.mxu0
        %v3268 = vadd.f32 0.0, %v3267
        %3269 = vmatprep.mubr.bf16.mxu0 0
        %3270 = vmatmul.mubr.bf16.gmra.mxu0 %v2960
        %v3271 = vpop.f32.mrf.mxu0
        %v3272 = vadd.f32 0.0, %v3271
        %v3273 = vpop.f32.mrf.mxu0
        %v3274 = vadd.f32 0.0, %v3273
        %v3275 = vpop.f32.mrf.mxu0
        %v3276 = vadd.f32 0.0, %v3275
        %v3277 = vpop.f32.mrf.mxu0
        %v3278 = vadd.f32 0.0, %v3277
        %3279 = vmatprep.mubr.bf16.mxu0 0
        %3280 = vmatmul.mubr.bf16.gmra.mxu0 %v2963
        %v3281 = vpop.f32.mrf.mxu0
        %v3282 = vadd.f32 0.0, %v3281
        %v3283 = vpop.f32.mrf.mxu0
        %v3284 = vadd.f32 0.0, %v3283
        %v3285 = vpop.f32.mrf.mxu0
        %v3286 = vadd.f32 0.0, %v3285
        %v3287 = vpop.f32.mrf.mxu0
        %v3288 = vadd.f32 0.0, %v3287
        %3289 = vmatprep.mubr.bf16.mxu0 0
        %3290 = vmatmul.mubr.bf16.gmra.mxu0 %v2966
        %v3291 = vpop.f32.mrf.mxu0
        %v3292 = vadd.f32 0.0, %v3291
        %v3293 = vpop.f32.mrf.mxu0
        %v3294 = vadd.f32 0.0, %v3293
        %v3295 = vpop.f32.mrf.mxu0
        %v3296 = vadd.f32 0.0, %v3295
        %v3297 = vpop.f32.mrf.mxu0
        %v3298 = vadd.f32 0.0, %v3297
        %3299 = vmatprep.mubr.bf16.mxu0 0
        %3300 = vmatmul.mubr.bf16.gmra.mxu0 %v2969
        %v3301 = vpop.f32.mrf.mxu0
        %v3302 = vadd.f32 0.0, %v3301
        %v3303 = vpop.f32.mrf.mxu0
        %v3304 = vadd.f32 0.0, %v3303
        %v3305 = vpop.f32.mrf.mxu0
        %v3306 = vadd.f32 0.0, %v3305
        %v3307 = vpop.f32.mrf.mxu0
        %v3308 = vadd.f32 0.0, %v3307
        %3309 = vdwg.mxu0
        %3310 = vmatprep.subr.bf16.mxu0 0
        %3311 = vmatpush1.bf16.msra.mxu0 0
        %3312 = vmatprep.subr.bf16.mxu0 0
        %3313 = vmatpush1.bf16.msra.mxu0 0
        %3314 = vmatprep.subr.bf16.mxu0 0
        %3315 = vmatpush1.bf16.msra.mxu0 0
        %3316 = vmatprep.subr.bf16.mxu0 0
        %3317 = vmatpush1.bf16.msra.mxu0 0
        %3318 = vmatprep.subr.bf16.mxu0 0
        %3319 = vmatpush1.bf16.msra.mxu0 0
        %3320 = vmatprep.subr.bf16.mxu0 0
        %3321 = vmatpush1.bf16.msra.mxu0 0
        %3322 = vmatprep.subr.bf16.mxu0 %v2858
        %3323 = vmatpush1.bf16.msra.mxu0 %v2857
        %3324 = vmatprep.subr.bf16.mxu0 %v2826
        %3325 = vmatpush1.bf16.msra.mxu0 %v2825
        %3326 = vmatprep.subr.bf16.mxu0 0
        %3327 = vmatpush2.bf16.msra.mxu0 0
        %3328 = vmatprep.subr.bf16.mxu0 0
        %3329 = vmatpush2.bf16.msra.mxu0 0
        %3330 = vmatprep.subr.bf16.mxu0 0
        %3331 = vmatpush2.bf16.msra.mxu0 0
        %3332 = vmatprep.subr.bf16.mxu0 0
        %3333 = vmatpush2.bf16.msra.mxu0 0
        %3334 = vmatprep.subr.bf16.mxu0 0
        %3335 = vmatpush2.bf16.msra.mxu0 0
        %3336 = vmatprep.subr.bf16.mxu0 0
        %3337 = vmatpush2.bf16.msra.mxu0 0
        %3338 = vmatprep.subr.bf16.mxu0 0
        %3339 = vmatpush2.bf16.msra.mxu0 0
        %3340 = vmatprep.subr.bf16.mxu0 0
        %3341 = vmatpush2.bf16.msra.mxu0 0
        %3342 = vmatprep.mubr.bf16.mxu0 0
        %3343 = vmatmul.mubr.bf16.gmra.mxu0 %v2948
        %v3344 = vpop.f32.mrf.mxu0
        %v3345 = vadd.f32 0.0, %v3344
        %v3346 = vpop.f32.mrf.mxu0
        %v3347 = vadd.f32 0.0, %v3346
        %v3348 = vpop.f32.mrf.mxu0
        %v3349 = vadd.f32 0.0, %v3348
        %v3350 = vpop.f32.mrf.mxu0
        %v3351 = vadd.f32 0.0, %v3350
        %3352 = vmatprep.mubr.bf16.mxu0 0
        %3353 = vmatmul.mubr.bf16.gmra.mxu0 %v2951
        %v3354 = vpop.f32.mrf.mxu0
        %v3355 = vadd.f32 0.0, %v3354
        %v3356 = vpop.f32.mrf.mxu0
        %v3357 = vadd.f32 0.0, %v3356
        %v3358 = vpop.f32.mrf.mxu0
        %v3359 = vadd.f32 0.0, %v3358
        %v3360 = vpop.f32.mrf.mxu0
        %v3361 = vadd.f32 0.0, %v3360
        %3362 = vmatprep.mubr.bf16.mxu0 0
        %3363 = vmatmul.mubr.bf16.gmra.mxu0 %v2954
        %v3364 = vpop.f32.mrf.mxu0
        %v3365 = vadd.f32 0.0, %v3364
        %v3366 = vpop.f32.mrf.mxu0
        %v3367 = vadd.f32 0.0, %v3366
        %v3368 = vpop.f32.mrf.mxu0
        %v3369 = vadd.f32 0.0, %v3368
        %v3370 = vpop.f32.mrf.mxu0
        %v3371 = vadd.f32 0.0, %v3370
        %3372 = vmatprep.mubr.bf16.mxu0 0
        %3373 = vmatmul.mubr.bf16.gmra.mxu0 %v2957
        %v3374 = vpop.f32.mrf.mxu0
        %v3375 = vadd.f32 0.0, %v3374
        %v3376 = vpop.f32.mrf.mxu0
        %v3377 = vadd.f32 0.0, %v3376
        %v3378 = vpop.f32.mrf.mxu0
        %v3379 = vadd.f32 0.0, %v3378
        %v3380 = vpop.f32.mrf.mxu0
        %v3381 = vadd.f32 0.0, %v3380
        %3382 = vmatprep.mubr.bf16.mxu0 0
        %3383 = vmatmul.mubr.bf16.gmra.mxu0 %v2960
        %v3384 = vpop.f32.mrf.mxu0
        %v3385 = vadd.f32 0.0, %v3384
        %v3386 = vpop.f32.mrf.mxu0
        %v3387 = vadd.f32 0.0, %v3386
        %v3388 = vpop.f32.mrf.mxu0
        %v3389 = vadd.f32 0.0, %v3388
        %v3390 = vpop.f32.mrf.mxu0
        %v3391 = vadd.f32 0.0, %v3390
        %3392 = vmatprep.mubr.bf16.mxu0 0
        %3393 = vmatmul.mubr.bf16.gmra.mxu0 %v2963
        %v3394 = vpop.f32.mrf.mxu0
        %v3395 = vadd.f32 0.0, %v3394
        %v3396 = vpop.f32.mrf.mxu0
        %v3397 = vadd.f32 0.0, %v3396
        %v3398 = vpop.f32.mrf.mxu0
        %v3399 = vadd.f32 0.0, %v3398
        %v3400 = vpop.f32.mrf.mxu0
        %v3401 = vadd.f32 0.0, %v3400
        %3402 = vmatprep.mubr.bf16.mxu0 0
        %3403 = vmatmul.mubr.bf16.gmra.mxu0 %v2966
        %v3404 = vpop.f32.mrf.mxu0
        %v3405 = vadd.f32 0.0, %v3404
        %v3406 = vpop.f32.mrf.mxu0
        %v3407 = vadd.f32 0.0, %v3406
        %v3408 = vpop.f32.mrf.mxu0
        %v3409 = vadd.f32 0.0, %v3408
        %v3410 = vpop.f32.mrf.mxu0
        %v3411 = vadd.f32 0.0, %v3410
        %3412 = vmatprep.mubr.bf16.mxu0 0
        %3413 = vmatmul.mubr.bf16.gmra.mxu0 %v2969
        %v3414 = vpop.f32.mrf.mxu0
        %v3415 = vadd.f32 0.0, %v3414
        %v3416 = vpop.f32.mrf.mxu0
        %v3417 = vadd.f32 0.0, %v3416
        %v3418 = vpop.f32.mrf.mxu0
        %v3419 = vadd.f32 0.0, %v3418
        %v3420 = vpop.f32.mrf.mxu0
        %v3421 = vadd.f32 0.0, %v3420
        %3422 = vdwg.mxu0
        %3423 = vmatprep.subr.bf16.mxu0 0
        %3424 = vmatpush1.bf16.msra.mxu0 0
        %3425 = vmatprep.subr.bf16.mxu0 0
        %3426 = vmatpush1.bf16.msra.mxu0 0
        %3427 = vmatprep.subr.bf16.mxu0 0
        %3428 = vmatpush1.bf16.msra.mxu0 0
        %3429 = vmatprep.subr.bf16.mxu0 0
        %3430 = vmatpush1.bf16.msra.mxu0 0
        %3431 = vmatprep.subr.bf16.mxu0 0
        %3432 = vmatpush1.bf16.msra.mxu0 0
        %3433 = vmatprep.subr.bf16.mxu0 0
        %3434 = vmatpush1.bf16.msra.mxu0 0
        %3435 = vmatprep.subr.bf16.mxu0 %v2860
        %3436 = vmatpush1.bf16.msra.mxu0 %v2859
        %3437 = vmatprep.subr.bf16.mxu0 %v2828
        %3438 = vmatpush1.bf16.msra.mxu0 %v2827
        %3439 = vmatprep.subr.bf16.mxu0 0
        %3440 = vmatpush2.bf16.msra.mxu0 0
        %3441 = vmatprep.subr.bf16.mxu0 0
        %3442 = vmatpush2.bf16.msra.mxu0 0
        %3443 = vmatprep.subr.bf16.mxu0 0
        %3444 = vmatpush2.bf16.msra.mxu0 0
        %3445 = vmatprep.subr.bf16.mxu0 0
        %3446 = vmatpush2.bf16.msra.mxu0 0
        %3447 = vmatprep.subr.bf16.mxu0 0
        %3448 = vmatpush2.bf16.msra.mxu0 0
        %3449 = vmatprep.subr.bf16.mxu0 0
        %3450 = vmatpush2.bf16.msra.mxu0 0
        %3451 = vmatprep.subr.bf16.mxu0 0
        %3452 = vmatpush2.bf16.msra.mxu0 0
        %3453 = vmatprep.subr.bf16.mxu0 0
        %3454 = vmatpush2.bf16.msra.mxu0 0
        %3455 = vmatprep.mubr.bf16.mxu0 0
        %3456 = vmatmul.mubr.bf16.gmra.mxu0 %v2948
        %v3457 = vpop.f32.mrf.mxu0
        %v3458 = vadd.f32 0.0, %v3457
        %v3459 = vpop.f32.mrf.mxu0
        %v3460 = vadd.f32 0.0, %v3459
        %v3461 = vpop.f32.mrf.mxu0
        %v3462 = vadd.f32 0.0, %v3461
        %v3463 = vpop.f32.mrf.mxu0
        %v3464 = vadd.f32 0.0, %v3463
        %3465 = vmatprep.mubr.bf16.mxu0 0
        %3466 = vmatmul.mubr.bf16.gmra.mxu0 %v2951
        %v3467 = vpop.f32.mrf.mxu0
        %v3468 = vadd.f32 0.0, %v3467
        %v3469 = vpop.f32.mrf.mxu0
        %v3470 = vadd.f32 0.0, %v3469
        %v3471 = vpop.f32.mrf.mxu0
        %v3472 = vadd.f32 0.0, %v3471
        %v3473 = vpop.f32.mrf.mxu0
        %v3474 = vadd.f32 0.0, %v3473
        %3475 = vmatprep.mubr.bf16.mxu0 0
        %3476 = vmatmul.mubr.bf16.gmra.mxu0 %v2954
        %v3477 = vpop.f32.mrf.mxu0
        %v3478 = vadd.f32 0.0, %v3477
        %v3479 = vpop.f32.mrf.mxu0
        %v3480 = vadd.f32 0.0, %v3479
        %v3481 = vpop.f32.mrf.mxu0
        %v3482 = vadd.f32 0.0, %v3481
        %v3483 = vpop.f32.mrf.mxu0
        %v3484 = vadd.f32 0.0, %v3483
        %3485 = vmatprep.mubr.bf16.mxu0 0
        %3486 = vmatmul.mubr.bf16.gmra.mxu0 %v2957
        %v3487 = vpop.f32.mrf.mxu0
        %v3488 = vadd.f32 0.0, %v3487
        %v3489 = vpop.f32.mrf.mxu0
        %v3490 = vadd.f32 0.0, %v3489
        %v3491 = vpop.f32.mrf.mxu0
        %v3492 = vadd.f32 0.0, %v3491
        %v3493 = vpop.f32.mrf.mxu0
        %v3494 = vadd.f32 0.0, %v3493
        %3495 = vmatprep.mubr.bf16.mxu0 0
        %3496 = vmatmul.mubr.bf16.gmra.mxu0 %v2960
        %v3497 = vpop.f32.mrf.mxu0
        %v3498 = vadd.f32 0.0, %v3497
        %v3499 = vpop.f32.mrf.mxu0
        %v3500 = vadd.f32 0.0, %v3499
        %v3501 = vpop.f32.mrf.mxu0
        %v3502 = vadd.f32 0.0, %v3501
        %v3503 = vpop.f32.mrf.mxu0
        %v3504 = vadd.f32 0.0, %v3503
        %3505 = vmatprep.mubr.bf16.mxu0 0
        %3506 = vmatmul.mubr.bf16.gmra.mxu0 %v2963
        %v3507 = vpop.f32.mrf.mxu0
        %v3508 = vadd.f32 0.0, %v3507
        %v3509 = vpop.f32.mrf.mxu0
        %v3510 = vadd.f32 0.0, %v3509
        %v3511 = vpop.f32.mrf.mxu0
        %v3512 = vadd.f32 0.0, %v3511
        %v3513 = vpop.f32.mrf.mxu0
        %v3514 = vadd.f32 0.0, %v3513
        %3515 = vmatprep.mubr.bf16.mxu0 0
        %3516 = vmatmul.mubr.bf16.gmra.mxu0 %v2966
        %v3517 = vpop.f32.mrf.mxu0
        %v3518 = vadd.f32 0.0, %v3517
        %v3519 = vpop.f32.mrf.mxu0
        %v3520 = vadd.f32 0.0, %v3519
        %v3521 = vpop.f32.mrf.mxu0
        %v3522 = vadd.f32 0.0, %v3521
        %v3523 = vpop.f32.mrf.mxu0
        %v3524 = vadd.f32 0.0, %v3523
        %3525 = vmatprep.mubr.bf16.mxu0 0
        %3526 = vmatmul.mubr.bf16.gmra.mxu0 %v2969
        %v3527 = vpop.f32.mrf.mxu0
        %v3528 = vadd.f32 0.0, %v3527
        %v3529 = vpop.f32.mrf.mxu0
        %v3530 = vadd.f32 0.0, %v3529
        %v3531 = vpop.f32.mrf.mxu0
        %v3532 = vadd.f32 0.0, %v3531
        %v3533 = vpop.f32.mrf.mxu0
        %v3534 = vadd.f32 0.0, %v3533
        %3535 = vdwg.mxu0
        %3536 = vmatprep.subr.bf16.mxu0 0
        %3537 = vmatpush1.bf16.msra.mxu0 0
        %3538 = vmatprep.subr.bf16.mxu0 0
        %3539 = vmatpush1.bf16.msra.mxu0 0
        %3540 = vmatprep.subr.bf16.mxu0 0
        %3541 = vmatpush1.bf16.msra.mxu0 0
        %3542 = vmatprep.subr.bf16.mxu0 0
        %3543 = vmatpush1.bf16.msra.mxu0 0
        %3544 = vmatprep.subr.bf16.mxu0 0
        %3545 = vmatpush1.bf16.msra.mxu0 0
        %3546 = vmatprep.subr.bf16.mxu0 0
        %3547 = vmatpush1.bf16.msra.mxu0 0
        %3548 = vmatprep.subr.bf16.mxu0 %v2862
        %3549 = vmatpush1.bf16.msra.mxu0 %v2861
        %3550 = vmatprep.subr.bf16.mxu0 %v2830
        %3551 = vmatpush1.bf16.msra.mxu0 %v2829
        %3552 = vmatprep.subr.bf16.mxu0 0
        %3553 = vmatpush2.bf16.msra.mxu0 0
        %3554 = vmatprep.subr.bf16.mxu0 0
        %3555 = vmatpush2.bf16.msra.mxu0 0
        %3556 = vmatprep.subr.bf16.mxu0 0
        %3557 = vmatpush2.bf16.msra.mxu0 0
        %3558 = vmatprep.subr.bf16.mxu0 0
        %3559 = vmatpush2.bf16.msra.mxu0 0
        %3560 = vmatprep.subr.bf16.mxu0 0
        %3561 = vmatpush2.bf16.msra.mxu0 0
        %3562 = vmatprep.subr.bf16.mxu0 0
        %3563 = vmatpush2.bf16.msra.mxu0 0
        %3564 = vmatprep.subr.bf16.mxu0 0
        %3565 = vmatpush2.bf16.msra.mxu0 0
        %3566 = vmatprep.subr.bf16.mxu0 0
        %3567 = vmatpush2.bf16.msra.mxu0 0
        %3568 = vmatprep.mubr.bf16.mxu0 0
        %3569 = vmatmul.mubr.bf16.gmra.mxu0 %v2948
        %v3570 = vpop.f32.mrf.mxu0
        %v3571 = vadd.f32 0.0, %v3570
        %v3572 = vpop.f32.mrf.mxu0
        %v3573 = vadd.f32 0.0, %v3572
        %v3574 = vpop.f32.mrf.mxu0
        %v3575 = vadd.f32 0.0, %v3574
        %v3576 = vpop.f32.mrf.mxu0
        %v3577 = vadd.f32 0.0, %v3576
        %3578 = vmatprep.mubr.bf16.mxu0 0
        %3579 = vmatmul.mubr.bf16.gmra.mxu0 %v2951
        %v3580 = vpop.f32.mrf.mxu0
        %v3581 = vadd.f32 0.0, %v3580
        %v3582 = vpop.f32.mrf.mxu0
        %v3583 = vadd.f32 0.0, %v3582
        %v3584 = vpop.f32.mrf.mxu0
        %v3585 = vadd.f32 0.0, %v3584
        %v3586 = vpop.f32.mrf.mxu0
        %v3587 = vadd.f32 0.0, %v3586
        %3588 = vmatprep.mubr.bf16.mxu0 0
        %3589 = vmatmul.mubr.bf16.gmra.mxu0 %v2954
        %v3590 = vpop.f32.mrf.mxu0
        %v3591 = vadd.f32 0.0, %v3590
        %v3592 = vpop.f32.mrf.mxu0
        %v3593 = vadd.f32 0.0, %v3592
        %v3594 = vpop.f32.mrf.mxu0
        %v3595 = vadd.f32 0.0, %v3594
        %v3596 = vpop.f32.mrf.mxu0
        %v3597 = vadd.f32 0.0, %v3596
        %3598 = vmatprep.mubr.bf16.mxu0 0
        %3599 = vmatmul.mubr.bf16.gmra.mxu0 %v2957
        %v3600 = vpop.f32.mrf.mxu0
        %v3601 = vadd.f32 0.0, %v3600
        %v3602 = vpop.f32.mrf.mxu0
        %v3603 = vadd.f32 0.0, %v3602
        %v3604 = vpop.f32.mrf.mxu0
        %v3605 = vadd.f32 0.0, %v3604
        %v3606 = vpop.f32.mrf.mxu0
        %v3607 = vadd.f32 0.0, %v3606
        %3608 = vmatprep.mubr.bf16.mxu0 0
        %3609 = vmatmul.mubr.bf16.gmra.mxu0 %v2960
        %v3610 = vpop.f32.mrf.mxu0
        %v3611 = vadd.f32 0.0, %v3610
        %v3612 = vpop.f32.mrf.mxu0
        %v3613 = vadd.f32 0.0, %v3612
        %v3614 = vpop.f32.mrf.mxu0
        %v3615 = vadd.f32 0.0, %v3614
        %v3616 = vpop.f32.mrf.mxu0
        %v3617 = vadd.f32 0.0, %v3616
        %3618 = vmatprep.mubr.bf16.mxu0 0
        %3619 = vmatmul.mubr.bf16.gmra.mxu0 %v2963
        %v3620 = vpop.f32.mrf.mxu0
        %v3621 = vadd.f32 0.0, %v3620
        %v3622 = vpop.f32.mrf.mxu0
        %v3623 = vadd.f32 0.0, %v3622
        %v3624 = vpop.f32.mrf.mxu0
        %v3625 = vadd.f32 0.0, %v3624
        %v3626 = vpop.f32.mrf.mxu0
        %v3627 = vadd.f32 0.0, %v3626
        %3628 = vmatprep.mubr.bf16.mxu0 0
        %3629 = vmatmul.mubr.bf16.gmra.mxu0 %v2966
        %v3630 = vpop.f32.mrf.mxu0
        %v3631 = vadd.f32 0.0, %v3630
        %v3632 = vpop.f32.mrf.mxu0
        %v3633 = vadd.f32 0.0, %v3632
        %v3634 = vpop.f32.mrf.mxu0
        %v3635 = vadd.f32 0.0, %v3634
        %v3636 = vpop.f32.mrf.mxu0
        %v3637 = vadd.f32 0.0, %v3636
        %3638 = vmatprep.mubr.bf16.mxu0 0
        %3639 = vmatmul.mubr.bf16.gmra.mxu0 %v2969
        %v3640 = vpop.f32.mrf.mxu0
        %v3641 = vadd.f32 0.0, %v3640
        %v3642 = vpop.f32.mrf.mxu0
        %v3643 = vadd.f32 0.0, %v3642
        %v3644 = vpop.f32.mrf.mxu0
        %v3645 = vadd.f32 0.0, %v3644
        %v3646 = vpop.f32.mrf.mxu0
        %v3647 = vadd.f32 0.0, %v3646
        %3648 = vdwg.mxu0
        %3649 = vmatprep.subr.bf16.mxu0 0
        %3650 = vmatpush1.bf16.msra.mxu0 0
        %3651 = vmatprep.subr.bf16.mxu0 0
        %3652 = vmatpush1.bf16.msra.mxu0 0
        %3653 = vmatprep.subr.bf16.mxu0 0
        %3654 = vmatpush1.bf16.msra.mxu0 0
        %3655 = vmatprep.subr.bf16.mxu0 0
        %3656 = vmatpush1.bf16.msra.mxu0 0
        %3657 = vmatprep.subr.bf16.mxu0 0
        %3658 = vmatpush1.bf16.msra.mxu0 0
        %3659 = vmatprep.subr.bf16.mxu0 0
        %3660 = vmatpush1.bf16.msra.mxu0 0
        %3661 = vmatprep.subr.bf16.mxu0 %v2864
        %3662 = vmatpush1.bf16.msra.mxu0 %v2863
        %3663 = vmatprep.subr.bf16.mxu0 %v2832
        %3664 = vmatpush1.bf16.msra.mxu0 %v2831
        %3665 = vmatprep.subr.bf16.mxu0 0
        %3666 = vmatpush2.bf16.msra.mxu0 0
        %3667 = vmatprep.subr.bf16.mxu0 0
        %3668 = vmatpush2.bf16.msra.mxu0 0
        %3669 = vmatprep.subr.bf16.mxu0 0
        %3670 = vmatpush2.bf16.msra.mxu0 0
        %3671 = vmatprep.subr.bf16.mxu0 0
        %3672 = vmatpush2.bf16.msra.mxu0 0
        %3673 = vmatprep.subr.bf16.mxu0 0
        %3674 = vmatpush2.bf16.msra.mxu0 0
        %3675 = vmatprep.subr.bf16.mxu0 0
        %3676 = vmatpush2.bf16.msra.mxu0 0
        %3677 = vmatprep.subr.bf16.mxu0 0
        %3678 = vmatpush2.bf16.msra.mxu0 0
        %3679 = vmatprep.subr.bf16.mxu0 0
        %3680 = vmatpush2.bf16.msra.mxu0 0
        %3681 = vmatprep.mubr.bf16.mxu0 0
        %3682 = vmatmul.mubr.bf16.gmra.mxu0 %v2948
        %v3683 = vpop.f32.mrf.mxu0
        %v3684 = vadd.f32 0.0, %v3683
        %v3685 = vpop.f32.mrf.mxu0
        %v3686 = vadd.f32 0.0, %v3685
        %v3687 = vpop.f32.mrf.mxu0
        %v3688 = vadd.f32 0.0, %v3687
        %v3689 = vpop.f32.mrf.mxu0
        %v3690 = vadd.f32 0.0, %v3689
        %3691 = vmatprep.mubr.bf16.mxu0 0
        %3692 = vmatmul.mubr.bf16.gmra.mxu0 %v2951
        %v3693 = vpop.f32.mrf.mxu0
        %v3694 = vadd.f32 0.0, %v3693
        %v3695 = vpop.f32.mrf.mxu0
        %v3696 = vadd.f32 0.0, %v3695
        %v3697 = vpop.f32.mrf.mxu0
        %v3698 = vadd.f32 0.0, %v3697
        %v3699 = vpop.f32.mrf.mxu0
        %v3700 = vadd.f32 0.0, %v3699
        %3701 = vmatprep.mubr.bf16.mxu0 0
        %3702 = vmatmul.mubr.bf16.gmra.mxu0 %v2954
        %v3703 = vpop.f32.mrf.mxu0
        %v3704 = vadd.f32 0.0, %v3703
        %v3705 = vpop.f32.mrf.mxu0
        %v3706 = vadd.f32 0.0, %v3705
        %v3707 = vpop.f32.mrf.mxu0
        %v3708 = vadd.f32 0.0, %v3707
        %v3709 = vpop.f32.mrf.mxu0
        %v3710 = vadd.f32 0.0, %v3709
        %3711 = vmatprep.mubr.bf16.mxu0 0
        %3712 = vmatmul.mubr.bf16.gmra.mxu0 %v2957
        %v3713 = vpop.f32.mrf.mxu0
        %v3714 = vadd.f32 0.0, %v3713
        %v3715 = vpop.f32.mrf.mxu0
        %v3716 = vadd.f32 0.0, %v3715
        %v3717 = vpop.f32.mrf.mxu0
        %v3718 = vadd.f32 0.0, %v3717
        %v3719 = vpop.f32.mrf.mxu0
        %v3720 = vadd.f32 0.0, %v3719
        %3721 = vmatprep.mubr.bf16.mxu0 0
        %3722 = vmatmul.mubr.bf16.gmra.mxu0 %v2960
        %v3723 = vpop.f32.mrf.mxu0
        %v3724 = vadd.f32 0.0, %v3723
        %v3725 = vpop.f32.mrf.mxu0
        %v3726 = vadd.f32 0.0, %v3725
        %v3727 = vpop.f32.mrf.mxu0
        %v3728 = vadd.f32 0.0, %v3727
        %v3729 = vpop.f32.mrf.mxu0
        %v3730 = vadd.f32 0.0, %v3729
        %3731 = vmatprep.mubr.bf16.mxu0 0
        %3732 = vmatmul.mubr.bf16.gmra.mxu0 %v2963
        %v3733 = vpop.f32.mrf.mxu0
        %v3734 = vadd.f32 0.0, %v3733
        %v3735 = vpop.f32.mrf.mxu0
        %v3736 = vadd.f32 0.0, %v3735
        %v3737 = vpop.f32.mrf.mxu0
        %v3738 = vadd.f32 0.0, %v3737
        %v3739 = vpop.f32.mrf.mxu0
        %v3740 = vadd.f32 0.0, %v3739
        %3741 = vmatprep.mubr.bf16.mxu0 0
        %3742 = vmatmul.mubr.bf16.gmra.mxu0 %v2966
        %v3743 = vpop.f32.mrf.mxu0
        %v3744 = vadd.f32 0.0, %v3743
        %v3745 = vpop.f32.mrf.mxu0
        %v3746 = vadd.f32 0.0, %v3745
        %v3747 = vpop.f32.mrf.mxu0
        %v3748 = vadd.f32 0.0, %v3747
        %v3749 = vpop.f32.mrf.mxu0
        %v3750 = vadd.f32 0.0, %v3749
        %3751 = vmatprep.mubr.bf16.mxu0 0
        %3752 = vmatmul.mubr.bf16.gmra.mxu0 %v2969
        %v3753 = vpop.f32.mrf.mxu0
        %v3754 = vadd.f32 0.0, %v3753
        %v3755 = vpop.f32.mrf.mxu0
        %v3756 = vadd.f32 0.0, %v3755
        %v3757 = vpop.f32.mrf.mxu0
        %v3758 = vadd.f32 0.0, %v3757
        %v3759 = vpop.f32.mrf.mxu0
        %v3760 = vadd.f32 0.0, %v3759
        %3761 = vdwg.mxu0
        %3762 = vmatprep.subr.bf16.mxu0 0
        %3763 = vmatpush1.bf16.msra.mxu0 0
        %3764 = vmatprep.subr.bf16.mxu0 0
        %3765 = vmatpush1.bf16.msra.mxu0 0
        %3766 = vmatprep.subr.bf16.mxu0 0
        %3767 = vmatpush1.bf16.msra.mxu0 0
        %3768 = vmatprep.subr.bf16.mxu0 0
        %3769 = vmatpush1.bf16.msra.mxu0 0
        %3770 = vmatprep.subr.bf16.mxu0 0
        %3771 = vmatpush1.bf16.msra.mxu0 0
        %3772 = vmatprep.subr.bf16.mxu0 0
        %3773 = vmatpush1.bf16.msra.mxu0 0
        %3774 = vmatprep.subr.bf16.mxu0 %v2866
        %3775 = vmatpush1.bf16.msra.mxu0 %v2865
        %3776 = vmatprep.subr.bf16.mxu0 %v2834
        %3777 = vmatpush1.bf16.msra.mxu0 %v2833
        %3778 = vmatprep.subr.bf16.mxu0 0
        %3779 = vmatpush2.bf16.msra.mxu0 0
        %3780 = vmatprep.subr.bf16.mxu0 0
        %3781 = vmatpush2.bf16.msra.mxu0 0
        %3782 = vmatprep.subr.bf16.mxu0 0
        %3783 = vmatpush2.bf16.msra.mxu0 0
        %3784 = vmatprep.subr.bf16.mxu0 0
        %3785 = vmatpush2.bf16.msra.mxu0 0
        %3786 = vmatprep.subr.bf16.mxu0 0
        %3787 = vmatpush2.bf16.msra.mxu0 0
        %3788 = vmatprep.subr.bf16.mxu0 0
        %3789 = vmatpush2.bf16.msra.mxu0 0
        %3790 = vmatprep.subr.bf16.mxu0 0
        %3791 = vmatpush2.bf16.msra.mxu0 0
        %3792 = vmatprep.subr.bf16.mxu0 0
        %3793 = vmatpush2.bf16.msra.mxu0 0
        %3794 = vmatprep.mubr.bf16.mxu0 0
        %3795 = vmatmul.mubr.bf16.gmra.mxu0 %v2948
        %v3796 = vpop.f32.mrf.mxu0
        %v3797 = vadd.f32 0.0, %v3796
        %v3798 = vpop.f32.mrf.mxu0
        %v3799 = vadd.f32 0.0, %v3798
        %v3800 = vpop.f32.mrf.mxu0
        %v3801 = vadd.f32 0.0, %v3800
        %v3802 = vpop.f32.mrf.mxu0
        %v3803 = vadd.f32 0.0, %v3802
        %3804 = vmatprep.mubr.bf16.mxu0 0
        %3805 = vmatmul.mubr.bf16.gmra.mxu0 %v2951
        %v3806 = vpop.f32.mrf.mxu0
        %v3807 = vadd.f32 0.0, %v3806
        %v3808 = vpop.f32.mrf.mxu0
        %v3809 = vadd.f32 0.0, %v3808
        %v3810 = vpop.f32.mrf.mxu0
        %v3811 = vadd.f32 0.0, %v3810
        %v3812 = vpop.f32.mrf.mxu0
        %v3813 = vadd.f32 0.0, %v3812
        %3814 = vmatprep.mubr.bf16.mxu0 0
        %3815 = vmatmul.mubr.bf16.gmra.mxu0 %v2954
        %v3816 = vpop.f32.mrf.mxu0
        %v3817 = vadd.f32 0.0, %v3816
        %v3818 = vpop.f32.mrf.mxu0
        %v3819 = vadd.f32 0.0, %v3818
        %v3820 = vpop.f32.mrf.mxu0
        %v3821 = vadd.f32 0.0, %v3820
        %v3822 = vpop.f32.mrf.mxu0
        %v3823 = vadd.f32 0.0, %v3822
        %3824 = vmatprep.mubr.bf16.mxu0 0
        %3825 = vmatmul.mubr.bf16.gmra.mxu0 %v2957
        %v3826 = vpop.f32.mrf.mxu0
        %v3827 = vadd.f32 0.0, %v3826
        %v3828 = vpop.f32.mrf.mxu0
        %v3829 = vadd.f32 0.0, %v3828
        %v3830 = vpop.f32.mrf.mxu0
        %v3831 = vadd.f32 0.0, %v3830
        %v3832 = vpop.f32.mrf.mxu0
        %v3833 = vadd.f32 0.0, %v3832
        %3834 = vmatprep.mubr.bf16.mxu0 0
        %3835 = vmatmul.mubr.bf16.gmra.mxu0 %v2960
        %v3836 = vpop.f32.mrf.mxu0
        %v3837 = vadd.f32 0.0, %v3836
        %v3838 = vpop.f32.mrf.mxu0
        %v3839 = vadd.f32 0.0, %v3838
        %v3840 = vpop.f32.mrf.mxu0
        %v3841 = vadd.f32 0.0, %v3840
        %v3842 = vpop.f32.mrf.mxu0
        %v3843 = vadd.f32 0.0, %v3842
        %3844 = vmatprep.mubr.bf16.mxu0 0
        %3845 = vmatmul.mubr.bf16.gmra.mxu0 %v2963
        %v3846 = vpop.f32.mrf.mxu0
        %v3847 = vadd.f32 0.0, %v3846
        %v3848 = vpop.f32.mrf.mxu0
        %v3849 = vadd.f32 0.0, %v3848
        %v3850 = vpop.f32.mrf.mxu0
        %v3851 = vadd.f32 0.0, %v3850
        %v3852 = vpop.f32.mrf.mxu0
        %v3853 = vadd.f32 0.0, %v3852
        %3854 = vmatprep.mubr.bf16.mxu0 0
        %3855 = vmatmul.mubr.bf16.gmra.mxu0 %v2966
        %v3856 = vpop.f32.mrf.mxu0
        %v3857 = vadd.f32 0.0, %v3856
        %v3858 = vpop.f32.mrf.mxu0
        %v3859 = vadd.f32 0.0, %v3858
        %v3860 = vpop.f32.mrf.mxu0
        %v3861 = vadd.f32 0.0, %v3860
        %v3862 = vpop.f32.mrf.mxu0
        %v3863 = vadd.f32 0.0, %v3862
        %3864 = vmatprep.mubr.bf16.mxu0 0
        %3865 = vmatmul.mubr.bf16.gmra.mxu0 %v2969
        %v3866 = vpop.f32.mrf.mxu0
        %v3867 = vadd.f32 0.0, %v3866
        %v3868 = vpop.f32.mrf.mxu0
        %v3869 = vadd.f32 0.0, %v3868
        %v3870 = vpop.f32.mrf.mxu0
        %v3871 = vadd.f32 0.0, %v3870
        %v3872 = vpop.f32.mrf.mxu0
        %v3873 = vadd.f32 0.0, %v3872
        %3874 = vdwg.mxu0
        %3875 = vmatprep.subr.bf16.mxu0 0
        %3876 = vmatpush1.bf16.msra.mxu0 0
        %3877 = vmatprep.subr.bf16.mxu0 0
        %3878 = vmatpush1.bf16.msra.mxu0 0
        %3879 = vmatprep.subr.bf16.mxu0 0
        %3880 = vmatpush1.bf16.msra.mxu0 0
        %3881 = vmatprep.subr.bf16.mxu0 0
        %3882 = vmatpush1.bf16.msra.mxu0 0
        %3883 = vmatprep.subr.bf16.mxu0 0
        %3884 = vmatpush1.bf16.msra.mxu0 0
        %3885 = vmatprep.subr.bf16.mxu0 0
        %3886 = vmatpush1.bf16.msra.mxu0 0
        %3887 = vmatprep.subr.bf16.mxu0 %v2868
        %3888 = vmatpush1.bf16.msra.mxu0 %v2867
        %3889 = vmatprep.subr.bf16.mxu0 %v2836
        %3890 = vmatpush1.bf16.msra.mxu0 %v2835
        %3891 = vmatprep.subr.bf16.mxu0 0
        %3892 = vmatpush2.bf16.msra.mxu0 0
        %3893 = vmatprep.subr.bf16.mxu0 0
        %3894 = vmatpush2.bf16.msra.mxu0 0
        %3895 = vmatprep.subr.bf16.mxu0 0
        %3896 = vmatpush2.bf16.msra.mxu0 0
        %3897 = vmatprep.subr.bf16.mxu0 0
        %3898 = vmatpush2.bf16.msra.mxu0 0
        %3899 = vmatprep.subr.bf16.mxu0 0
        %3900 = vmatpush2.bf16.msra.mxu0 0
        %3901 = vmatprep.subr.bf16.mxu0 0
        %3902 = vmatpush2.bf16.msra.mxu0 0
        %3903 = vmatprep.subr.bf16.mxu0 0
        %3904 = vmatpush2.bf16.msra.mxu0 0
        %3905 = vmatprep.subr.bf16.mxu0 0
        %3906 = vmatpush2.bf16.msra.mxu0 0
        %3907 = vmatprep.mubr.bf16.mxu0 0
        %3908 = vmatmul.mubr.bf16.gmra.mxu0 %v2948
        %v3909 = vpop.f32.mrf.mxu0
        %v3910 = vadd.f32 0.0, %v3909
        %v3911 = vpop.f32.mrf.mxu0
        %v3912 = vadd.f32 0.0, %v3911
        %v3913 = vpop.f32.mrf.mxu0
        %v3914 = vadd.f32 0.0, %v3913
        %v3915 = vpop.f32.mrf.mxu0
        %v3916 = vadd.f32 0.0, %v3915
        %3917 = vmatprep.mubr.bf16.mxu0 0
        %3918 = vmatmul.mubr.bf16.gmra.mxu0 %v2951
        %v3919 = vpop.f32.mrf.mxu0
        %v3920 = vadd.f32 0.0, %v3919
        %v3921 = vpop.f32.mrf.mxu0
        %v3922 = vadd.f32 0.0, %v3921
        %v3923 = vpop.f32.mrf.mxu0
        %v3924 = vadd.f32 0.0, %v3923
        %v3925 = vpop.f32.mrf.mxu0
        %v3926 = vadd.f32 0.0, %v3925
        %3927 = vmatprep.mubr.bf16.mxu0 0
        %3928 = vmatmul.mubr.bf16.gmra.mxu0 %v2954
        %v3929 = vpop.f32.mrf.mxu0
        %v3930 = vadd.f32 0.0, %v3929
        %v3931 = vpop.f32.mrf.mxu0
        %v3932 = vadd.f32 0.0, %v3931
        %v3933 = vpop.f32.mrf.mxu0
        %v3934 = vadd.f32 0.0, %v3933
        %v3935 = vpop.f32.mrf.mxu0
        %v3936 = vadd.f32 0.0, %v3935
        %3937 = vmatprep.mubr.bf16.mxu0 0
        %3938 = vmatmul.mubr.bf16.gmra.mxu0 %v2957
        %v3939 = vpop.f32.mrf.mxu0
        %v3940 = vadd.f32 0.0, %v3939
        %v3941 = vpop.f32.mrf.mxu0
        %v3942 = vadd.f32 0.0, %v3941
        %v3943 = vpop.f32.mrf.mxu0
        %v3944 = vadd.f32 0.0, %v3943
        %v3945 = vpop.f32.mrf.mxu0
        %v3946 = vadd.f32 0.0, %v3945
        %3947 = vmatprep.mubr.bf16.mxu0 0
        %3948 = vmatmul.mubr.bf16.gmra.mxu0 %v2960
        %v3949 = vpop.f32.mrf.mxu0
        %v3950 = vadd.f32 0.0, %v3949
        %v3951 = vpop.f32.mrf.mxu0
        %v3952 = vadd.f32 0.0, %v3951
        %v3953 = vpop.f32.mrf.mxu0
        %v3954 = vadd.f32 0.0, %v3953
        %v3955 = vpop.f32.mrf.mxu0
        %v3956 = vadd.f32 0.0, %v3955
        %3957 = vmatprep.mubr.bf16.mxu0 0
        %3958 = vmatmul.mubr.bf16.gmra.mxu0 %v2963
        %v3959 = vpop.f32.mrf.mxu0
        %v3960 = vadd.f32 0.0, %v3959
        %v3961 = vpop.f32.mrf.mxu0
        %v3962 = vadd.f32 0.0, %v3961
        %v3963 = vpop.f32.mrf.mxu0
        %v3964 = vadd.f32 0.0, %v3963
        %v3965 = vpop.f32.mrf.mxu0
        %v3966 = vadd.f32 0.0, %v3965
        %3967 = vmatprep.mubr.bf16.mxu0 0
        %3968 = vmatmul.mubr.bf16.gmra.mxu0 %v2966
        %v3969 = vpop.f32.mrf.mxu0
        %v3970 = vadd.f32 0.0, %v3969
        %v3971 = vpop.f32.mrf.mxu0
        %v3972 = vadd.f32 0.0, %v3971
        %v3973 = vpop.f32.mrf.mxu0
        %v3974 = vadd.f32 0.0, %v3973
        %v3975 = vpop.f32.mrf.mxu0
        %v3976 = vadd.f32 0.0, %v3975
        %3977 = vmatprep.mubr.bf16.mxu0 0
        %3978 = vmatmul.mubr.bf16.gmra.mxu0 %v2969
        %v3979 = vpop.f32.mrf.mxu0
        %v3980 = vadd.f32 0.0, %v3979
        %v3981 = vpop.f32.mrf.mxu0
        %v3982 = vadd.f32 0.0, %v3981
        %v3983 = vpop.f32.mrf.mxu0
        %v3984 = vadd.f32 0.0, %v3983
        %v3985 = vpop.f32.mrf.mxu0
        %v3986 = vadd.f32 0.0, %v3985
        %3987 = vdwg.mxu0
        %3988 = vmatprep.subr.bf16.mxu0 0
        %3989 = vmatpush1.bf16.msra.mxu0 0
        %3990 = vmatprep.subr.bf16.mxu0 0
        %3991 = vmatpush1.bf16.msra.mxu0 0
        %3992 = vmatprep.subr.bf16.mxu0 0
        %3993 = vmatpush1.bf16.msra.mxu0 0
        %3994 = vmatprep.subr.bf16.mxu0 0
        %3995 = vmatpush1.bf16.msra.mxu0 0
        %3996 = vmatprep.subr.bf16.mxu0 0
        %3997 = vmatpush1.bf16.msra.mxu0 0
        %3998 = vmatprep.subr.bf16.mxu0 0
        %3999 = vmatpush1.bf16.msra.mxu0 0
        %4000 = vmatprep.subr.bf16.mxu0 %v2870
        %4001 = vmatpush1.bf16.msra.mxu0 %v2869
        %4002 = vmatprep.subr.bf16.mxu0 %v2838
        %4003 = vmatpush1.bf16.msra.mxu0 %v2837
        %4004 = vmatprep.subr.bf16.mxu0 0
        %4005 = vmatpush2.bf16.msra.mxu0 0
        %4006 = vmatprep.subr.bf16.mxu0 0
        %4007 = vmatpush2.bf16.msra.mxu0 0
        %4008 = vmatprep.subr.bf16.mxu0 0
        %4009 = vmatpush2.bf16.msra.mxu0 0
        %4010 = vmatprep.subr.bf16.mxu0 0
        %4011 = vmatpush2.bf16.msra.mxu0 0
        %4012 = vmatprep.subr.bf16.mxu0 0
        %4013 = vmatpush2.bf16.msra.mxu0 0
        %4014 = vmatprep.subr.bf16.mxu0 0
        %4015 = vmatpush2.bf16.msra.mxu0 0
        %4016 = vmatprep.subr.bf16.mxu0 0
        %4017 = vmatpush2.bf16.msra.mxu0 0
        %4018 = vmatprep.subr.bf16.mxu0 0
        %4019 = vmatpush2.bf16.msra.mxu0 0
        %4020 = vmatprep.mubr.bf16.mxu0 0
        %4021 = vmatmul.mubr.bf16.gmra.mxu0 %v2948
        %v4022 = vpop.f32.mrf.mxu0
        %v4023 = vadd.f32 0.0, %v4022
        %v4024 = vpop.f32.mrf.mxu0
        %v4025 = vadd.f32 0.0, %v4024
        %v4026 = vpop.f32.mrf.mxu0
        %v4027 = vadd.f32 0.0, %v4026
        %v4028 = vpop.f32.mrf.mxu0
        %v4029 = vadd.f32 0.0, %v4028
        %4030 = vmatprep.mubr.bf16.mxu0 0
        %4031 = vmatmul.mubr.bf16.gmra.mxu0 %v2951
        %v4032 = vpop.f32.mrf.mxu0
        %v4033 = vadd.f32 0.0, %v4032
        %v4034 = vpop.f32.mrf.mxu0
        %v4035 = vadd.f32 0.0, %v4034
        %v4036 = vpop.f32.mrf.mxu0
        %v4037 = vadd.f32 0.0, %v4036
        %v4038 = vpop.f32.mrf.mxu0
        %v4039 = vadd.f32 0.0, %v4038
        %4040 = vmatprep.mubr.bf16.mxu0 0
        %4041 = vmatmul.mubr.bf16.gmra.mxu0 %v2954
        %v4042 = vpop.f32.mrf.mxu0
        %v4043 = vadd.f32 0.0, %v4042
        %v4044 = vpop.f32.mrf.mxu0
        %v4045 = vadd.f32 0.0, %v4044
        %v4046 = vpop.f32.mrf.mxu0
        %v4047 = vadd.f32 0.0, %v4046
        %v4048 = vpop.f32.mrf.mxu0
        %v4049 = vadd.f32 0.0, %v4048
        %4050 = vmatprep.mubr.bf16.mxu0 0
        %4051 = vmatmul.mubr.bf16.gmra.mxu0 %v2957
        %v4052 = vpop.f32.mrf.mxu0
        %v4053 = vadd.f32 0.0, %v4052
        %v4054 = vpop.f32.mrf.mxu0
        %v4055 = vadd.f32 0.0, %v4054
        %v4056 = vpop.f32.mrf.mxu0
        %v4057 = vadd.f32 0.0, %v4056
        %v4058 = vpop.f32.mrf.mxu0
        %v4059 = vadd.f32 0.0, %v4058
        %4060 = vmatprep.mubr.bf16.mxu0 0
        %4061 = vmatmul.mubr.bf16.gmra.mxu0 %v2960
        %v4062 = vpop.f32.mrf.mxu0
        %v4063 = vadd.f32 0.0, %v4062
        %v4064 = vpop.f32.mrf.mxu0
        %v4065 = vadd.f32 0.0, %v4064
        %v4066 = vpop.f32.mrf.mxu0
        %v4067 = vadd.f32 0.0, %v4066
        %v4068 = vpop.f32.mrf.mxu0
        %v4069 = vadd.f32 0.0, %v4068
        %4070 = vmatprep.mubr.bf16.mxu0 0
        %4071 = vmatmul.mubr.bf16.gmra.mxu0 %v2963
        %v4072 = vpop.f32.mrf.mxu0
        %v4073 = vadd.f32 0.0, %v4072
        %v4074 = vpop.f32.mrf.mxu0
        %v4075 = vadd.f32 0.0, %v4074
        %v4076 = vpop.f32.mrf.mxu0
        %v4077 = vadd.f32 0.0, %v4076
        %v4078 = vpop.f32.mrf.mxu0
        %v4079 = vadd.f32 0.0, %v4078
        %4080 = vmatprep.mubr.bf16.mxu0 0
        %4081 = vmatmul.mubr.bf16.gmra.mxu0 %v2966
        %v4082 = vpop.f32.mrf.mxu0
        %v4083 = vadd.f32 0.0, %v4082
        %v4084 = vpop.f32.mrf.mxu0
        %v4085 = vadd.f32 0.0, %v4084
        %v4086 = vpop.f32.mrf.mxu0
        %v4087 = vadd.f32 0.0, %v4086
        %v4088 = vpop.f32.mrf.mxu0
        %v4089 = vadd.f32 0.0, %v4088
        %4090 = vmatprep.mubr.bf16.mxu0 0
        %4091 = vmatmul.mubr.bf16.gmra.mxu0 %v2969
        %v4092 = vpop.f32.mrf.mxu0
        %v4093 = vadd.f32 0.0, %v4092
        %v4094 = vpop.f32.mrf.mxu0
        %v4095 = vadd.f32 0.0, %v4094
        %v4096 = vpop.f32.mrf.mxu0
        %v4097 = vadd.f32 0.0, %v4096
        %v4098 = vpop.f32.mrf.mxu0
        %v4099 = vadd.f32 0.0, %v4098
        %4100 = vdwg.mxu0
        %4101 = vmatprep.subr.bf16.mxu0 0
        %4102 = vmatpush1.bf16.msra.mxu0 0
        %4103 = vmatprep.subr.bf16.mxu0 0
        %4104 = vmatpush1.bf16.msra.mxu0 0
        %4105 = vmatprep.subr.bf16.mxu0 0
        %4106 = vmatpush1.bf16.msra.mxu0 0
        %4107 = vmatprep.subr.bf16.mxu0 0
        %4108 = vmatpush1.bf16.msra.mxu0 0
        %4109 = vmatprep.subr.bf16.mxu0 0
        %4110 = vmatpush1.bf16.msra.mxu0 0
        %4111 = vmatprep.subr.bf16.mxu0 0
        %4112 = vmatpush1.bf16.msra.mxu0 0
        %4113 = vmatprep.subr.bf16.mxu0 %v2872
        %4114 = vmatpush1.bf16.msra.mxu0 %v2871
        %4115 = vmatprep.subr.bf16.mxu0 %v2840
        %4116 = vmatpush1.bf16.msra.mxu0 %v2839
        %4117 = vmatprep.subr.bf16.mxu0 0
        %4118 = vmatpush2.bf16.msra.mxu0 0
        %4119 = vmatprep.subr.bf16.mxu0 0
        %4120 = vmatpush2.bf16.msra.mxu0 0
        %4121 = vmatprep.subr.bf16.mxu0 0
        %4122 = vmatpush2.bf16.msra.mxu0 0
        %4123 = vmatprep.subr.bf16.mxu0 0
        %4124 = vmatpush2.bf16.msra.mxu0 0
        %4125 = vmatprep.subr.bf16.mxu0 0
        %4126 = vmatpush2.bf16.msra.mxu0 0
        %4127 = vmatprep.subr.bf16.mxu0 0
        %4128 = vmatpush2.bf16.msra.mxu0 0
        %4129 = vmatprep.subr.bf16.mxu0 0
        %4130 = vmatpush2.bf16.msra.mxu0 0
        %4131 = vmatprep.subr.bf16.mxu0 0
        %4132 = vmatpush2.bf16.msra.mxu0 0
        %4133 = vmatprep.mubr.bf16.mxu0 0
        %4134 = vmatmul.mubr.bf16.gmra.mxu0 %v2948
        %v4135 = vpop.f32.mrf.mxu0
        %v4136 = vadd.f32 0.0, %v4135
        %v4137 = vpop.f32.mrf.mxu0
        %v4138 = vadd.f32 0.0, %v4137
        %v4139 = vpop.f32.mrf.mxu0
        %v4140 = vadd.f32 0.0, %v4139
        %v4141 = vpop.f32.mrf.mxu0
        %v4142 = vadd.f32 0.0, %v4141
        %4143 = vmatprep.mubr.bf16.mxu0 0
        %4144 = vmatmul.mubr.bf16.gmra.mxu0 %v2951
        %v4145 = vpop.f32.mrf.mxu0
        %v4146 = vadd.f32 0.0, %v4145
        %v4147 = vpop.f32.mrf.mxu0
        %v4148 = vadd.f32 0.0, %v4147
        %v4149 = vpop.f32.mrf.mxu0
        %v4150 = vadd.f32 0.0, %v4149
        %v4151 = vpop.f32.mrf.mxu0
        %v4152 = vadd.f32 0.0, %v4151
        %4153 = vmatprep.mubr.bf16.mxu0 0
        %4154 = vmatmul.mubr.bf16.gmra.mxu0 %v2954
        %v4155 = vpop.f32.mrf.mxu0
        %v4156 = vadd.f32 0.0, %v4155
        %v4157 = vpop.f32.mrf.mxu0
        %v4158 = vadd.f32 0.0, %v4157
        %v4159 = vpop.f32.mrf.mxu0
        %v4160 = vadd.f32 0.0, %v4159
        %v4161 = vpop.f32.mrf.mxu0
        %v4162 = vadd.f32 0.0, %v4161
        %4163 = vmatprep.mubr.bf16.mxu0 0
        %4164 = vmatmul.mubr.bf16.gmra.mxu0 %v2957
        %v4165 = vpop.f32.mrf.mxu0
        %v4166 = vadd.f32 0.0, %v4165
        %v4167 = vpop.f32.mrf.mxu0
        %v4168 = vadd.f32 0.0, %v4167
        %v4169 = vpop.f32.mrf.mxu0
        %v4170 = vadd.f32 0.0, %v4169
        %v4171 = vpop.f32.mrf.mxu0
        %v4172 = vadd.f32 0.0, %v4171
        %4173 = vmatprep.mubr.bf16.mxu0 0
        %4174 = vmatmul.mubr.bf16.gmra.mxu0 %v2960
        %v4175 = vpop.f32.mrf.mxu0
        %v4176 = vadd.f32 0.0, %v4175
        %v4177 = vpop.f32.mrf.mxu0
        %v4178 = vadd.f32 0.0, %v4177
        %v4179 = vpop.f32.mrf.mxu0
        %v4180 = vadd.f32 0.0, %v4179
        %v4181 = vpop.f32.mrf.mxu0
        %v4182 = vadd.f32 0.0, %v4181
        %4183 = vmatprep.mubr.bf16.mxu0 0
        %4184 = vmatmul.mubr.bf16.gmra.mxu0 %v2963
        %v4185 = vpop.f32.mrf.mxu0
        %v4186 = vadd.f32 0.0, %v4185
        %v4187 = vpop.f32.mrf.mxu0
        %v4188 = vadd.f32 0.0, %v4187
        %v4189 = vpop.f32.mrf.mxu0
        %v4190 = vadd.f32 0.0, %v4189
        %v4191 = vpop.f32.mrf.mxu0
        %v4192 = vadd.f32 0.0, %v4191
        %4193 = vmatprep.mubr.bf16.mxu0 0
        %4194 = vmatmul.mubr.bf16.gmra.mxu0 %v2966
        %v4195 = vpop.f32.mrf.mxu0
        %v4196 = vadd.f32 0.0, %v4195
        %v4197 = vpop.f32.mrf.mxu0
        %v4198 = vadd.f32 0.0, %v4197
        %v4199 = vpop.f32.mrf.mxu0
        %v4200 = vadd.f32 0.0, %v4199
        %v4201 = vpop.f32.mrf.mxu0
        %v4202 = vadd.f32 0.0, %v4201
        %4203 = vmatprep.mubr.bf16.mxu0 0
        %4204 = vmatmul.mubr.bf16.gmra.mxu0 %v2969
        %v4205 = vpop.f32.mrf.mxu0
        %v4206 = vadd.f32 0.0, %v4205
        %v4207 = vpop.f32.mrf.mxu0
        %v4208 = vadd.f32 0.0, %v4207
        %v4209 = vpop.f32.mrf.mxu0
        %v4210 = vadd.f32 0.0, %v4209
        %v4211 = vpop.f32.mrf.mxu0
        %v4212 = vadd.f32 0.0, %v4211
        %4213 = vdwg.mxu0
        %4214 = vmatprep.subr.bf16.mxu0 0
        %4215 = vmatpush1.bf16.msra.mxu0 0
        %4216 = vmatprep.subr.bf16.mxu0 0
        %4217 = vmatpush1.bf16.msra.mxu0 0
        %4218 = vmatprep.subr.bf16.mxu0 0
        %4219 = vmatpush1.bf16.msra.mxu0 0
        %4220 = vmatprep.subr.bf16.mxu0 0
        %4221 = vmatpush1.bf16.msra.mxu0 0
        %4222 = vmatprep.subr.bf16.mxu0 0
        %4223 = vmatpush1.bf16.msra.mxu0 0
        %4224 = vmatprep.subr.bf16.mxu0 0
        %4225 = vmatpush1.bf16.msra.mxu0 0
        %4226 = vmatprep.subr.bf16.mxu0 %v2874
        %4227 = vmatpush1.bf16.msra.mxu0 %v2873
        %4228 = vmatprep.subr.bf16.mxu0 %v2842
        %4229 = vmatpush1.bf16.msra.mxu0 %v2841
        %4230 = vmatprep.subr.bf16.mxu0 0
        %4231 = vmatpush2.bf16.msra.mxu0 0
        %4232 = vmatprep.subr.bf16.mxu0 0
        %4233 = vmatpush2.bf16.msra.mxu0 0
        %4234 = vmatprep.subr.bf16.mxu0 0
        %4235 = vmatpush2.bf16.msra.mxu0 0
        %4236 = vmatprep.subr.bf16.mxu0 0
        %4237 = vmatpush2.bf16.msra.mxu0 0
        %4238 = vmatprep.subr.bf16.mxu0 0
        %4239 = vmatpush2.bf16.msra.mxu0 0
        %4240 = vmatprep.subr.bf16.mxu0 0
        %4241 = vmatpush2.bf16.msra.mxu0 0
        %4242 = vmatprep.subr.bf16.mxu0 0
        %4243 = vmatpush2.bf16.msra.mxu0 0
        %4244 = vmatprep.subr.bf16.mxu0 0
        %4245 = vmatpush2.bf16.msra.mxu0 0
        %4246 = vmatprep.mubr.bf16.mxu0 0
        %4247 = vmatmul.mubr.bf16.gmra.mxu0 %v2948
        %v4248 = vpop.f32.mrf.mxu0
        %v4249 = vadd.f32 0.0, %v4248
        %v4250 = vpop.f32.mrf.mxu0
        %v4251 = vadd.f32 0.0, %v4250
        %v4252 = vpop.f32.mrf.mxu0
        %v4253 = vadd.f32 0.0, %v4252
        %v4254 = vpop.f32.mrf.mxu0
        %v4255 = vadd.f32 0.0, %v4254
        %4256 = vmatprep.mubr.bf16.mxu0 0
        %4257 = vmatmul.mubr.bf16.gmra.mxu0 %v2951
        %v4258 = vpop.f32.mrf.mxu0
        %v4259 = vadd.f32 0.0, %v4258
        %v4260 = vpop.f32.mrf.mxu0
        %v4261 = vadd.f32 0.0, %v4260
        %v4262 = vpop.f32.mrf.mxu0
        %v4263 = vadd.f32 0.0, %v4262
        %v4264 = vpop.f32.mrf.mxu0
        %v4265 = vadd.f32 0.0, %v4264
        %4266 = vmatprep.mubr.bf16.mxu0 0
        %4267 = vmatmul.mubr.bf16.gmra.mxu0 %v2954
        %v4268 = vpop.f32.mrf.mxu0
        %v4269 = vadd.f32 0.0, %v4268
        %v4270 = vpop.f32.mrf.mxu0
        %v4271 = vadd.f32 0.0, %v4270
        %v4272 = vpop.f32.mrf.mxu0
        %v4273 = vadd.f32 0.0, %v4272
        %v4274 = vpop.f32.mrf.mxu0
        %v4275 = vadd.f32 0.0, %v4274
        %4276 = vmatprep.mubr.bf16.mxu0 0
        %4277 = vmatmul.mubr.bf16.gmra.mxu0 %v2957
        %v4278 = vpop.f32.mrf.mxu0
        %v4279 = vadd.f32 0.0, %v4278
        %v4280 = vpop.f32.mrf.mxu0
        %v4281 = vadd.f32 0.0, %v4280
        %v4282 = vpop.f32.mrf.mxu0
        %v4283 = vadd.f32 0.0, %v4282
        %v4284 = vpop.f32.mrf.mxu0
        %v4285 = vadd.f32 0.0, %v4284
        %4286 = vmatprep.mubr.bf16.mxu0 0
        %4287 = vmatmul.mubr.bf16.gmra.mxu0 %v2960
        %v4288 = vpop.f32.mrf.mxu0
        %v4289 = vadd.f32 0.0, %v4288
        %v4290 = vpop.f32.mrf.mxu0
        %v4291 = vadd.f32 0.0, %v4290
        %v4292 = vpop.f32.mrf.mxu0
        %v4293 = vadd.f32 0.0, %v4292
        %v4294 = vpop.f32.mrf.mxu0
        %v4295 = vadd.f32 0.0, %v4294
        %4296 = vmatprep.mubr.bf16.mxu0 0
        %4297 = vmatmul.mubr.bf16.gmra.mxu0 %v2963
        %v4298 = vpop.f32.mrf.mxu0
        %v4299 = vadd.f32 0.0, %v4298
        %v4300 = vpop.f32.mrf.mxu0
        %v4301 = vadd.f32 0.0, %v4300
        %v4302 = vpop.f32.mrf.mxu0
        %v4303 = vadd.f32 0.0, %v4302
        %v4304 = vpop.f32.mrf.mxu0
        %v4305 = vadd.f32 0.0, %v4304
        %4306 = vmatprep.mubr.bf16.mxu0 0
        %4307 = vmatmul.mubr.bf16.gmra.mxu0 %v2966
        %v4308 = vpop.f32.mrf.mxu0
        %v4309 = vadd.f32 0.0, %v4308
        %v4310 = vpop.f32.mrf.mxu0
        %v4311 = vadd.f32 0.0, %v4310
        %v4312 = vpop.f32.mrf.mxu0
        %v4313 = vadd.f32 0.0, %v4312
        %v4314 = vpop.f32.mrf.mxu0
        %v4315 = vadd.f32 0.0, %v4314
        %4316 = vmatprep.mubr.bf16.mxu0 0
        %4317 = vmatmul.mubr.bf16.gmra.mxu0 %v2969
        %v4318 = vpop.f32.mrf.mxu0
        %v4319 = vadd.f32 0.0, %v4318
        %v4320 = vpop.f32.mrf.mxu0
        %v4321 = vadd.f32 0.0, %v4320
        %v4322 = vpop.f32.mrf.mxu0
        %v4323 = vadd.f32 0.0, %v4322
        %v4324 = vpop.f32.mrf.mxu0
        %v4325 = vadd.f32 0.0, %v4324
        %4326 = vdwg.mxu0
        %4327 = vmatprep.subr.bf16.mxu0 0
        %4328 = vmatpush1.bf16.msra.mxu0 0
        %4329 = vmatprep.subr.bf16.mxu0 0
        %4330 = vmatpush1.bf16.msra.mxu0 0
        %4331 = vmatprep.subr.bf16.mxu0 0
        %4332 = vmatpush1.bf16.msra.mxu0 0
        %4333 = vmatprep.subr.bf16.mxu0 0
        %4334 = vmatpush1.bf16.msra.mxu0 0
        %4335 = vmatprep.subr.bf16.mxu0 0
        %4336 = vmatpush1.bf16.msra.mxu0 0
        %4337 = vmatprep.subr.bf16.mxu0 0
        %4338 = vmatpush1.bf16.msra.mxu0 0
        %4339 = vmatprep.subr.bf16.mxu0 %v2876
        %4340 = vmatpush1.bf16.msra.mxu0 %v2875
        %4341 = vmatprep.subr.bf16.mxu0 %v2844
        %4342 = vmatpush1.bf16.msra.mxu0 %v2843
        %4343 = vmatprep.subr.bf16.mxu0 0
        %4344 = vmatpush2.bf16.msra.mxu0 0
        %4345 = vmatprep.subr.bf16.mxu0 0
        %4346 = vmatpush2.bf16.msra.mxu0 0
        %4347 = vmatprep.subr.bf16.mxu0 0
        %4348 = vmatpush2.bf16.msra.mxu0 0
        %4349 = vmatprep.subr.bf16.mxu0 0
        %4350 = vmatpush2.bf16.msra.mxu0 0
        %4351 = vmatprep.subr.bf16.mxu0 0
        %4352 = vmatpush2.bf16.msra.mxu0 0
        %4353 = vmatprep.subr.bf16.mxu0 0
        %4354 = vmatpush2.bf16.msra.mxu0 0
        %4355 = vmatprep.subr.bf16.mxu0 0
        %4356 = vmatpush2.bf16.msra.mxu0 0
        %4357 = vmatprep.subr.bf16.mxu0 0
        %4358 = vmatpush2.bf16.msra.mxu0 0
        %4359 = vmatprep.mubr.bf16.mxu0 0
        %4360 = vmatmul.mubr.bf16.gmra.mxu0 %v2948
        %v4361 = vpop.f32.mrf.mxu0
        %v4362 = vadd.f32 0.0, %v4361
        %v4363 = vpop.f32.mrf.mxu0
        %v4364 = vadd.f32 0.0, %v4363
        %v4365 = vpop.f32.mrf.mxu0
        %v4366 = vadd.f32 0.0, %v4365
        %v4367 = vpop.f32.mrf.mxu0
        %v4368 = vadd.f32 0.0, %v4367
        %4369 = vmatprep.mubr.bf16.mxu0 0
        %4370 = vmatmul.mubr.bf16.gmra.mxu0 %v2951
        %v4371 = vpop.f32.mrf.mxu0
        %v4372 = vadd.f32 0.0, %v4371
        %v4373 = vpop.f32.mrf.mxu0
        %v4374 = vadd.f32 0.0, %v4373
        %v4375 = vpop.f32.mrf.mxu0
        %v4376 = vadd.f32 0.0, %v4375
        %v4377 = vpop.f32.mrf.mxu0
        %v4378 = vadd.f32 0.0, %v4377
        %4379 = vmatprep.mubr.bf16.mxu0 0
        %4380 = vmatmul.mubr.bf16.gmra.mxu0 %v2954
        %v4381 = vpop.f32.mrf.mxu0
        %v4382 = vadd.f32 0.0, %v4381
        %v4383 = vpop.f32.mrf.mxu0
        %v4384 = vadd.f32 0.0, %v4383
        %v4385 = vpop.f32.mrf.mxu0
        %v4386 = vadd.f32 0.0, %v4385
        %v4387 = vpop.f32.mrf.mxu0
        %v4388 = vadd.f32 0.0, %v4387
        %4389 = vmatprep.mubr.bf16.mxu0 0
        %4390 = vmatmul.mubr.bf16.gmra.mxu0 %v2957
        %v4391 = vpop.f32.mrf.mxu0
        %v4392 = vadd.f32 0.0, %v4391
        %v4393 = vpop.f32.mrf.mxu0
        %v4394 = vadd.f32 0.0, %v4393
        %v4395 = vpop.f32.mrf.mxu0
        %v4396 = vadd.f32 0.0, %v4395
        %v4397 = vpop.f32.mrf.mxu0
        %v4398 = vadd.f32 0.0, %v4397
        %4399 = vmatprep.mubr.bf16.mxu0 0
        %4400 = vmatmul.mubr.bf16.gmra.mxu0 %v2960
        %v4401 = vpop.f32.mrf.mxu0
        %v4402 = vadd.f32 0.0, %v4401
        %v4403 = vpop.f32.mrf.mxu0
        %v4404 = vadd.f32 0.0, %v4403
        %v4405 = vpop.f32.mrf.mxu0
        %v4406 = vadd.f32 0.0, %v4405
        %v4407 = vpop.f32.mrf.mxu0
        %v4408 = vadd.f32 0.0, %v4407
        %4409 = vmatprep.mubr.bf16.mxu0 0
        %4410 = vmatmul.mubr.bf16.gmra.mxu0 %v2963
        %v4411 = vpop.f32.mrf.mxu0
        %v4412 = vadd.f32 0.0, %v4411
        %v4413 = vpop.f32.mrf.mxu0
        %v4414 = vadd.f32 0.0, %v4413
        %v4415 = vpop.f32.mrf.mxu0
        %v4416 = vadd.f32 0.0, %v4415
        %v4417 = vpop.f32.mrf.mxu0
        %v4418 = vadd.f32 0.0, %v4417
        %4419 = vmatprep.mubr.bf16.mxu0 0
        %4420 = vmatmul.mubr.bf16.gmra.mxu0 %v2966
        %v4421 = vpop.f32.mrf.mxu0
        %v4422 = vadd.f32 0.0, %v4421
        %v4423 = vpop.f32.mrf.mxu0
        %v4424 = vadd.f32 0.0, %v4423
        %v4425 = vpop.f32.mrf.mxu0
        %v4426 = vadd.f32 0.0, %v4425
        %v4427 = vpop.f32.mrf.mxu0
        %v4428 = vadd.f32 0.0, %v4427
        %4429 = vmatprep.mubr.bf16.mxu0 0
        %4430 = vmatmul.mubr.bf16.gmra.mxu0 %v2969
        %v4431 = vpop.f32.mrf.mxu0
        %v4432 = vadd.f32 0.0, %v4431
        %v4433 = vpop.f32.mrf.mxu0
        %v4434 = vadd.f32 0.0, %v4433
        %v4435 = vpop.f32.mrf.mxu0
        %v4436 = vadd.f32 0.0, %v4435
        %v4437 = vpop.f32.mrf.mxu0
        %v4438 = vadd.f32 0.0, %v4437
        %4439 = vdwg.mxu0
        %4440 = vmatprep.subr.bf16.mxu0 0
        %4441 = vmatpush1.bf16.msra.mxu0 0
        %4442 = vmatprep.subr.bf16.mxu0 0
        %4443 = vmatpush1.bf16.msra.mxu0 0
        %4444 = vmatprep.subr.bf16.mxu0 0
        %4445 = vmatpush1.bf16.msra.mxu0 0
        %4446 = vmatprep.subr.bf16.mxu0 0
        %4447 = vmatpush1.bf16.msra.mxu0 0
        %4448 = vmatprep.subr.bf16.mxu0 0
        %4449 = vmatpush1.bf16.msra.mxu0 0
        %4450 = vmatprep.subr.bf16.mxu0 0
        %4451 = vmatpush1.bf16.msra.mxu0 0
        %4452 = vmatprep.subr.bf16.mxu0 %v2878
        %4453 = vmatpush1.bf16.msra.mxu0 %v2877
        %4454 = vmatprep.subr.bf16.mxu0 %v2846
        %4455 = vmatpush1.bf16.msra.mxu0 %v2845
        %4456 = vmatprep.subr.bf16.mxu0 0
        %4457 = vmatpush2.bf16.msra.mxu0 0
        %4458 = vmatprep.subr.bf16.mxu0 0
        %4459 = vmatpush2.bf16.msra.mxu0 0
        %4460 = vmatprep.subr.bf16.mxu0 0
        %4461 = vmatpush2.bf16.msra.mxu0 0
        %4462 = vmatprep.subr.bf16.mxu0 0
        %4463 = vmatpush2.bf16.msra.mxu0 0
        %4464 = vmatprep.subr.bf16.mxu0 0
        %4465 = vmatpush2.bf16.msra.mxu0 0
        %4466 = vmatprep.subr.bf16.mxu0 0
        %4467 = vmatpush2.bf16.msra.mxu0 0
        %4468 = vmatprep.subr.bf16.mxu0 0
        %4469 = vmatpush2.bf16.msra.mxu0 0
        %4470 = vmatprep.subr.bf16.mxu0 0
        %4471 = vmatpush2.bf16.msra.mxu0 0
        %4472 = vmatprep.mubr.bf16.mxu0 0
        %4473 = vmatmul.mubr.bf16.gmra.mxu0 %v2948
        %v4474 = vpop.f32.mrf.mxu0
        %v4475 = vadd.f32 0.0, %v4474
        %v4476 = vpop.f32.mrf.mxu0
        %v4477 = vadd.f32 0.0, %v4476
        %v4478 = vpop.f32.mrf.mxu0
        %v4479 = vadd.f32 0.0, %v4478
        %v4480 = vpop.f32.mrf.mxu0
        %v4481 = vadd.f32 0.0, %v4480
        %4482 = vmatprep.mubr.bf16.mxu0 0
        %4483 = vmatmul.mubr.bf16.gmra.mxu0 %v2951
        %v4484 = vpop.f32.mrf.mxu0
        %v4485 = vadd.f32 0.0, %v4484
        %v4486 = vpop.f32.mrf.mxu0
        %v4487 = vadd.f32 0.0, %v4486
        %v4488 = vpop.f32.mrf.mxu0
        %v4489 = vadd.f32 0.0, %v4488
        %v4490 = vpop.f32.mrf.mxu0
        %v4491 = vadd.f32 0.0, %v4490
        %4492 = vmatprep.mubr.bf16.mxu0 0
        %4493 = vmatmul.mubr.bf16.gmra.mxu0 %v2954
        %v4494 = vpop.f32.mrf.mxu0
        %v4495 = vadd.f32 0.0, %v4494
        %v4496 = vpop.f32.mrf.mxu0
        %v4497 = vadd.f32 0.0, %v4496
        %v4498 = vpop.f32.mrf.mxu0
        %v4499 = vadd.f32 0.0, %v4498
        %v4500 = vpop.f32.mrf.mxu0
        %v4501 = vadd.f32 0.0, %v4500
        %4502 = vmatprep.mubr.bf16.mxu0 0
        %4503 = vmatmul.mubr.bf16.gmra.mxu0 %v2957
        %v4504 = vpop.f32.mrf.mxu0
        %v4505 = vadd.f32 0.0, %v4504
        %v4506 = vpop.f32.mrf.mxu0
        %v4507 = vadd.f32 0.0, %v4506
        %v4508 = vpop.f32.mrf.mxu0
        %v4509 = vadd.f32 0.0, %v4508
        %v4510 = vpop.f32.mrf.mxu0
        %v4511 = vadd.f32 0.0, %v4510
        %4512 = vmatprep.mubr.bf16.mxu0 0
        %4513 = vmatmul.mubr.bf16.gmra.mxu0 %v2960
        %v4514 = vpop.f32.mrf.mxu0
        %v4515 = vadd.f32 0.0, %v4514
        %v4516 = vpop.f32.mrf.mxu0
        %v4517 = vadd.f32 0.0, %v4516
        %v4518 = vpop.f32.mrf.mxu0
        %v4519 = vadd.f32 0.0, %v4518
        %v4520 = vpop.f32.mrf.mxu0
        %v4521 = vadd.f32 0.0, %v4520
        %4522 = vmatprep.mubr.bf16.mxu0 0
        %4523 = vmatmul.mubr.bf16.gmra.mxu0 %v2963
        %v4524 = vpop.f32.mrf.mxu0
        %v4525 = vadd.f32 0.0, %v4524
        %v4526 = vpop.f32.mrf.mxu0
        %v4527 = vadd.f32 0.0, %v4526
        %v4528 = vpop.f32.mrf.mxu0
        %v4529 = vadd.f32 0.0, %v4528
        %v4530 = vpop.f32.mrf.mxu0
        %v4531 = vadd.f32 0.0, %v4530
        %4532 = vmatprep.mubr.bf16.mxu0 0
        %4533 = vmatmul.mubr.bf16.gmra.mxu0 %v2966
        %v4534 = vpop.f32.mrf.mxu0
        %v4535 = vadd.f32 0.0, %v4534
        %v4536 = vpop.f32.mrf.mxu0
        %v4537 = vadd.f32 0.0, %v4536
        %v4538 = vpop.f32.mrf.mxu0
        %v4539 = vadd.f32 0.0, %v4538
        %v4540 = vpop.f32.mrf.mxu0
        %v4541 = vadd.f32 0.0, %v4540
        %4542 = vmatprep.mubr.bf16.mxu0 0
        %4543 = vmatmul.mubr.bf16.gmra.mxu0 %v2969
        %v4544 = vpop.f32.mrf.mxu0
        %v4545 = vadd.f32 0.0, %v4544
        %v4546 = vpop.f32.mrf.mxu0
        %v4547 = vadd.f32 0.0, %v4546
        %v4548 = vpop.f32.mrf.mxu0
        %v4549 = vadd.f32 0.0, %v4548
        %v4550 = vpop.f32.mrf.mxu0
        %v4551 = vadd.f32 0.0, %v4550
        %4552 = vdwg.mxu0
        %4553 = vmatprep.subr.bf16.mxu0 0
        %4554 = vmatpush1.bf16.msra.mxu0 0
        %4555 = vmatprep.subr.bf16.mxu0 0
        %4556 = vmatpush1.bf16.msra.mxu0 0
        %4557 = vmatprep.subr.bf16.mxu0 0
        %4558 = vmatpush1.bf16.msra.mxu0 0
        %4559 = vmatprep.subr.bf16.mxu0 0
        %4560 = vmatpush1.bf16.msra.mxu0 0
        %4561 = vmatprep.subr.bf16.mxu0 0
        %4562 = vmatpush1.bf16.msra.mxu0 0
        %4563 = vmatprep.subr.bf16.mxu0 0
        %4564 = vmatpush1.bf16.msra.mxu0 0
        %4565 = vmatprep.subr.bf16.mxu0 %v2880
        %4566 = vmatpush1.bf16.msra.mxu0 %v2879
        %4567 = vmatprep.subr.bf16.mxu0 %v2848
        %4568 = vmatpush1.bf16.msra.mxu0 %v2847
        %4569 = vmatprep.subr.bf16.mxu0 0
        %4570 = vmatpush2.bf16.msra.mxu0 0
        %4571 = vmatprep.subr.bf16.mxu0 0
        %4572 = vmatpush2.bf16.msra.mxu0 0
        %4573 = vmatprep.subr.bf16.mxu0 0
        %4574 = vmatpush2.bf16.msra.mxu0 0
        %4575 = vmatprep.subr.bf16.mxu0 0
        %4576 = vmatpush2.bf16.msra.mxu0 0
        %4577 = vmatprep.subr.bf16.mxu0 0
        %4578 = vmatpush2.bf16.msra.mxu0 0
        %4579 = vmatprep.subr.bf16.mxu0 0
        %4580 = vmatpush2.bf16.msra.mxu0 0
        %4581 = vmatprep.subr.bf16.mxu0 0
        %4582 = vmatpush2.bf16.msra.mxu0 0
        %4583 = vmatprep.subr.bf16.mxu0 0
        %4584 = vmatpush2.bf16.msra.mxu0 0
        %4585 = vmatprep.mubr.bf16.mxu0 0
        %4586 = vmatmul.mubr.bf16.gmra.mxu0 %v2948
        %v4587 = vpop.f32.mrf.mxu0
        %v4588 = vadd.f32 0.0, %v4587
        %v4589 = vpop.f32.mrf.mxu0
        %v4590 = vadd.f32 0.0, %v4589
        %v4591 = vpop.f32.mrf.mxu0
        %v4592 = vadd.f32 0.0, %v4591
        %v4593 = vpop.f32.mrf.mxu0
        %v4594 = vadd.f32 0.0, %v4593
        %4595 = vmatprep.mubr.bf16.mxu0 0
        %4596 = vmatmul.mubr.bf16.gmra.mxu0 %v2951
        %v4597 = vpop.f32.mrf.mxu0
        %v4598 = vadd.f32 0.0, %v4597
        %v4599 = vpop.f32.mrf.mxu0
        %v4600 = vadd.f32 0.0, %v4599
        %v4601 = vpop.f32.mrf.mxu0
        %v4602 = vadd.f32 0.0, %v4601
        %v4603 = vpop.f32.mrf.mxu0
        %v4604 = vadd.f32 0.0, %v4603
        %4605 = vmatprep.mubr.bf16.mxu0 0
        %4606 = vmatmul.mubr.bf16.gmra.mxu0 %v2954
        %v4607 = vpop.f32.mrf.mxu0
        %v4608 = vadd.f32 0.0, %v4607
        %v4609 = vpop.f32.mrf.mxu0
        %v4610 = vadd.f32 0.0, %v4609
        %v4611 = vpop.f32.mrf.mxu0
        %v4612 = vadd.f32 0.0, %v4611
        %v4613 = vpop.f32.mrf.mxu0
        %v4614 = vadd.f32 0.0, %v4613
        %4615 = vmatprep.mubr.bf16.mxu0 0
        %4616 = vmatmul.mubr.bf16.gmra.mxu0 %v2957
        %v4617 = vpop.f32.mrf.mxu0
        %v4618 = vadd.f32 0.0, %v4617
        %v4619 = vpop.f32.mrf.mxu0
        %v4620 = vadd.f32 0.0, %v4619
        %v4621 = vpop.f32.mrf.mxu0
        %v4622 = vadd.f32 0.0, %v4621
        %v4623 = vpop.f32.mrf.mxu0
        %v4624 = vadd.f32 0.0, %v4623
        %4625 = vmatprep.mubr.bf16.mxu0 0
        %4626 = vmatmul.mubr.bf16.gmra.mxu0 %v2960
        %v4627 = vpop.f32.mrf.mxu0
        %v4628 = vadd.f32 0.0, %v4627
        %v4629 = vpop.f32.mrf.mxu0
        %v4630 = vadd.f32 0.0, %v4629
        %v4631 = vpop.f32.mrf.mxu0
        %v4632 = vadd.f32 0.0, %v4631
        %v4633 = vpop.f32.mrf.mxu0
        %v4634 = vadd.f32 0.0, %v4633
        %4635 = vmatprep.mubr.bf16.mxu0 0
        %4636 = vmatmul.mubr.bf16.gmra.mxu0 %v2963
        %v4637 = vpop.f32.mrf.mxu0
        %v4638 = vadd.f32 0.0, %v4637
        %v4639 = vpop.f32.mrf.mxu0
        %v4640 = vadd.f32 0.0, %v4639
        %v4641 = vpop.f32.mrf.mxu0
        %v4642 = vadd.f32 0.0, %v4641
        %v4643 = vpop.f32.mrf.mxu0
        %v4644 = vadd.f32 0.0, %v4643
        %4645 = vmatprep.mubr.bf16.mxu0 0
        %4646 = vmatmul.mubr.bf16.gmra.mxu0 %v2966
        %v4647 = vpop.f32.mrf.mxu0
        %v4648 = vadd.f32 0.0, %v4647
        %v4649 = vpop.f32.mrf.mxu0
        %v4650 = vadd.f32 0.0, %v4649
        %v4651 = vpop.f32.mrf.mxu0
        %v4652 = vadd.f32 0.0, %v4651
        %v4653 = vpop.f32.mrf.mxu0
        %v4654 = vadd.f32 0.0, %v4653
        %4655 = vmatprep.mubr.bf16.mxu0 0
        %4656 = vmatmul.mubr.bf16.gmra.mxu0 %v2969
        %v4657 = vpop.f32.mrf.mxu0
        %v4658 = vadd.f32 0.0, %v4657
        %v4659 = vpop.f32.mrf.mxu0
        %v4660 = vadd.f32 0.0, %v4659
        %v4661 = vpop.f32.mrf.mxu0
        %v4662 = vadd.f32 0.0, %v4661
        %v4663 = vpop.f32.mrf.mxu0
        %v4664 = vadd.f32 0.0, %v4663
        %4665 = vdwg.mxu0
        %4666 = vmatprep.subr.bf16.mxu0 0
        %4667 = vmatpush1.bf16.msra.mxu0 0
        %4668 = vmatprep.subr.bf16.mxu0 0
        %4669 = vmatpush1.bf16.msra.mxu0 0
        %4670 = vmatprep.subr.bf16.mxu0 0
        %4671 = vmatpush1.bf16.msra.mxu0 0
        %4672 = vmatprep.subr.bf16.mxu0 0
        %4673 = vmatpush1.bf16.msra.mxu0 0
        %4674 = vmatprep.subr.bf16.mxu0 0
        %4675 = vmatpush1.bf16.msra.mxu0 0
        %4676 = vmatprep.subr.bf16.mxu0 0
        %4677 = vmatpush1.bf16.msra.mxu0 0
        %4678 = vmatprep.subr.bf16.mxu0 %v2882
        %4679 = vmatpush1.bf16.msra.mxu0 %v2881
        %4680 = vmatprep.subr.bf16.mxu0 %v2850
        %4681 = vmatpush1.bf16.msra.mxu0 %v2849
        %4682 = vmatprep.subr.bf16.mxu0 0
        %4683 = vmatpush2.bf16.msra.mxu0 0
        %4684 = vmatprep.subr.bf16.mxu0 0
        %4685 = vmatpush2.bf16.msra.mxu0 0
        %4686 = vmatprep.subr.bf16.mxu0 0
        %4687 = vmatpush2.bf16.msra.mxu0 0
        %4688 = vmatprep.subr.bf16.mxu0 0
        %4689 = vmatpush2.bf16.msra.mxu0 0
        %4690 = vmatprep.subr.bf16.mxu0 0
        %4691 = vmatpush2.bf16.msra.mxu0 0
        %4692 = vmatprep.subr.bf16.mxu0 0
        %4693 = vmatpush2.bf16.msra.mxu0 0
        %4694 = vmatprep.subr.bf16.mxu0 0
        %4695 = vmatpush2.bf16.msra.mxu0 0
        %4696 = vmatprep.subr.bf16.mxu0 0
        %4697 = vmatpush2.bf16.msra.mxu0 0
        %4698 = vmatprep.mubr.bf16.mxu0 0
        %4699 = vmatmul.mubr.bf16.gmra.mxu0 %v2948
        %v4700 = vpop.f32.mrf.mxu0
        %v4701 = vadd.f32 0.0, %v4700
        %v4702 = vpop.f32.mrf.mxu0
        %v4703 = vadd.f32 0.0, %v4702
        %v4704 = vpop.f32.mrf.mxu0
        %v4705 = vadd.f32 0.0, %v4704
        %v4706 = vpop.f32.mrf.mxu0
        %v4707 = vadd.f32 0.0, %v4706
        %4708 = vmatprep.mubr.bf16.mxu0 0
        %4709 = vmatmul.mubr.bf16.gmra.mxu0 %v2951
        %v4710 = vpop.f32.mrf.mxu0
        %v4711 = vadd.f32 0.0, %v4710
        %v4712 = vpop.f32.mrf.mxu0
        %v4713 = vadd.f32 0.0, %v4712
        %v4714 = vpop.f32.mrf.mxu0
        %v4715 = vadd.f32 0.0, %v4714
        %v4716 = vpop.f32.mrf.mxu0
        %v4717 = vadd.f32 0.0, %v4716
        %4718 = vmatprep.mubr.bf16.mxu0 0
        %4719 = vmatmul.mubr.bf16.gmra.mxu0 %v2954
        %v4720 = vpop.f32.mrf.mxu0
        %v4721 = vadd.f32 0.0, %v4720
        %v4722 = vpop.f32.mrf.mxu0
        %v4723 = vadd.f32 0.0, %v4722
        %v4724 = vpop.f32.mrf.mxu0
        %v4725 = vadd.f32 0.0, %v4724
        %v4726 = vpop.f32.mrf.mxu0
        %v4727 = vadd.f32 0.0, %v4726
        %4728 = vmatprep.mubr.bf16.mxu0 0
        %4729 = vmatmul.mubr.bf16.gmra.mxu0 %v2957
        %v4730 = vpop.f32.mrf.mxu0
        %v4731 = vadd.f32 0.0, %v4730
        %v4732 = vpop.f32.mrf.mxu0
        %v4733 = vadd.f32 0.0, %v4732
        %v4734 = vpop.f32.mrf.mxu0
        %v4735 = vadd.f32 0.0, %v4734
        %v4736 = vpop.f32.mrf.mxu0
        %v4737 = vadd.f32 0.0, %v4736
        %4738 = vmatprep.mubr.bf16.mxu0 0
        %4739 = vmatmul.mubr.bf16.gmra.mxu0 %v2960
        %v4740 = vpop.f32.mrf.mxu0
        %v4741 = vadd.f32 0.0, %v4740
        %v4742 = vpop.f32.mrf.mxu0
        %v4743 = vadd.f32 0.0, %v4742
        %v4744 = vpop.f32.mrf.mxu0
        %v4745 = vadd.f32 0.0, %v4744
        %v4746 = vpop.f32.mrf.mxu0
        %v4747 = vadd.f32 0.0, %v4746
        %4748 = vmatprep.mubr.bf16.mxu0 0
        %4749 = vmatmul.mubr.bf16.gmra.mxu0 %v2963
        %v4750 = vpop.f32.mrf.mxu0
        %v4751 = vadd.f32 0.0, %v4750
        %v4752 = vpop.f32.mrf.mxu0
        %v4753 = vadd.f32 0.0, %v4752
        %v4754 = vpop.f32.mrf.mxu0
        %v4755 = vadd.f32 0.0, %v4754
        %v4756 = vpop.f32.mrf.mxu0
        %v4757 = vadd.f32 0.0, %v4756
        %4758 = vmatprep.mubr.bf16.mxu0 0
        %4759 = vmatmul.mubr.bf16.gmra.mxu0 %v2966
        %v4760 = vpop.f32.mrf.mxu0
        %v4761 = vadd.f32 0.0, %v4760
        %v4762 = vpop.f32.mrf.mxu0
        %v4763 = vadd.f32 0.0, %v4762
        %v4764 = vpop.f32.mrf.mxu0
        %v4765 = vadd.f32 0.0, %v4764
        %v4766 = vpop.f32.mrf.mxu0
        %v4767 = vadd.f32 0.0, %v4766
        %4768 = vmatprep.mubr.bf16.mxu0 0
        %4769 = vmatmul.mubr.bf16.gmra.mxu0 %v2969
        %v4770 = vpop.f32.mrf.mxu0
        %v4771 = vadd.f32 0.0, %v4770
        %v4772 = vpop.f32.mrf.mxu0
        %v4773 = vadd.f32 0.0, %v4772
        %v4774 = vpop.f32.mrf.mxu0
        %v4775 = vadd.f32 0.0, %v4774
        %v4776 = vpop.f32.mrf.mxu0
        %v4777 = vadd.f32 0.0, %v4776
        %4778 = vdwg.mxu0
        %v4779 = vld [vmem:[#allocation7] sm:$0xff]
        %v4780 = vld [vmem:[#allocation7 + $0x8] sm:$0xff]
        %v4781 = vld [vmem:[#allocation7 + $0x10] sm:$0xff]
        %v4782 = vld [vmem:[#allocation7 + $0x18] sm:$0xff]
        %v4783 = vld [vmem:[#allocation7 + $0x20] sm:$0xff]
        %v4784 = vld [vmem:[#allocation7 + $0x28] sm:$0xff]
        %v4785 = vld [vmem:[#allocation7 + $0x30] sm:$0xff]
        %v4786 = vld [vmem:[#allocation7 + $0x38] sm:$0xff]
        %v4787 = vld [vmem:[#allocation7 + $0x40] sm:$0xff]
        %v4788 = vld [vmem:[#allocation7 + $0x48] sm:$0xff]
        %v4789 = vld [vmem:[#allocation7 + $0x50] sm:$0xff]
        %v4790 = vld [vmem:[#allocation7 + $0x58] sm:$0xff]
        %v4791 = vld [vmem:[#allocation7 + $0x60] sm:$0xff]
        %v4792 = vld [vmem:[#allocation7 + $0x68] sm:$0xff]
        %v4793 = vld [vmem:[#allocation7 + $0x70] sm:$0xff]
        %v4794 = vld [vmem:[#allocation7 + $0x78] sm:$0xff]
        %v4795 = vld [vmem:[#allocation7 + $0x80] sm:$0xff]
        %v4796 = vld [vmem:[#allocation7 + $0x88] sm:$0xff]
        %v4797 = vld [vmem:[#allocation7 + $0x90] sm:$0xff]
        %v4798 = vld [vmem:[#allocation7 + $0x98] sm:$0xff]
        %v4799 = vld [vmem:[#allocation7 + $0xa0] sm:$0xff]
        %v4800 = vld [vmem:[#allocation7 + $0xa8] sm:$0xff]
        %v4801 = vld [vmem:[#allocation7 + $0xb0] sm:$0xff]
        %v4802 = vld [vmem:[#allocation7 + $0xb8] sm:$0xff]
        %v4803 = vld [vmem:[#allocation7 + $0xc0] sm:$0xff]
        %v4804 = vld [vmem:[#allocation7 + $0xc8] sm:$0xff]
        %v4805 = vld [vmem:[#allocation7 + $0xd0] sm:$0xff]
        %v4806 = vld [vmem:[#allocation7 + $0xd8] sm:$0xff]
        %v4807 = vld [vmem:[#allocation7 + $0xe0] sm:$0xff]
        %v4808 = vld [vmem:[#allocation7 + $0xe8] sm:$0xff]
        %v4809 = vld [vmem:[#allocation7 + $0xf0] sm:$0xff]
        %v4810 = vld [vmem:[#allocation7 + $0xf8] sm:$0xff]
        %v4811 = vld [vmem:[#allocation7 + $0x100] sm:$0xff]
        %v4812 = vld [vmem:[#allocation7 + $0x108] sm:$0xff]
        %v4813 = vld [vmem:[#allocation7 + $0x110] sm:$0xff]
        %v4814 = vld [vmem:[#allocation7 + $0x118] sm:$0xff]
        %v4815 = vld [vmem:[#allocation7 + $0x120] sm:$0xff]
        %v4816 = vld [vmem:[#allocation7 + $0x128] sm:$0xff]
        %v4817 = vld [vmem:[#allocation7 + $0x130] sm:$0xff]
        %v4818 = vld [vmem:[#allocation7 + $0x138] sm:$0xff]
        %v4819 = vld [vmem:[#allocation7 + $0x140] sm:$0xff]
        %v4820 = vld [vmem:[#allocation7 + $0x148] sm:$0xff]
        %v4821 = vld [vmem:[#allocation7 + $0x150] sm:$0xff]
        %v4822 = vld [vmem:[#allocation7 + $0x158] sm:$0xff]
        %v4823 = vld [vmem:[#allocation7 + $0x160] sm:$0xff]
        %v4824 = vld [vmem:[#allocation7 + $0x168] sm:$0xff]
        %v4825 = vld [vmem:[#allocation7 + $0x170] sm:$0xff]
        %v4826 = vld [vmem:[#allocation7 + $0x178] sm:$0xff]
        %v4827 = vld [vmem:[#allocation7 + $0x180] sm:$0xff]
        %v4828 = vld [vmem:[#allocation7 + $0x188] sm:$0xff]
        %v4829 = vld [vmem:[#allocation7 + $0x190] sm:$0xff]
        %v4830 = vld [vmem:[#allocation7 + $0x198] sm:$0xff]
        %v4831 = vld [vmem:[#allocation7 + $0x1a0] sm:$0xff]
        %v4832 = vld [vmem:[#allocation7 + $0x1a8] sm:$0xff]
        %v4833 = vld [vmem:[#allocation7 + $0x1b0] sm:$0xff]
        %v4834 = vld [vmem:[#allocation7 + $0x1b8] sm:$0xff]
        %v4835 = vld [vmem:[#allocation7 + $0x1c0] sm:$0xff]
        %v4836 = vld [vmem:[#allocation7 + $0x1c8] sm:$0xff]
        %v4837 = vld [vmem:[#allocation7 + $0x1d0] sm:$0xff]
        %v4838 = vld [vmem:[#allocation7 + $0x1d8] sm:$0xff]
        %v4839 = vld [vmem:[#allocation7 + $0x1e0] sm:$0xff]
        %v4840 = vld [vmem:[#allocation7 + $0x1e8] sm:$0xff]
        %v4841 = vld [vmem:[#allocation7 + $0x1f0] sm:$0xff]
        %v4842 = vld [vmem:[#allocation7 + $0x1f8] sm:$0xff]
        %v4843 = vld [vmem:[#allocation7 + $0x200] sm:$0xff]
        %v4844 = vld [vmem:[#allocation7 + $0x208] sm:$0xff]
        %v4845 = vld [vmem:[#allocation7 + $0x210] sm:$0xff]
        %v4846 = vld [vmem:[#allocation7 + $0x218] sm:$0xff]
        %v4847 = vld [vmem:[#allocation7 + $0x220] sm:$0xff]
        %v4848 = vld [vmem:[#allocation7 + $0x228] sm:$0xff]
        %v4849 = vld [vmem:[#allocation7 + $0x230] sm:$0xff]
        %v4850 = vld [vmem:[#allocation7 + $0x238] sm:$0xff]
        %v4851 = vld [vmem:[#allocation7 + $0x240] sm:$0xff]
        %v4852 = vld [vmem:[#allocation7 + $0x248] sm:$0xff]
        %v4853 = vld [vmem:[#allocation7 + $0x250] sm:$0xff]
        %v4854 = vld [vmem:[#allocation7 + $0x258] sm:$0xff]
        %v4855 = vld [vmem:[#allocation7 + $0x260] sm:$0xff]
        %v4856 = vld [vmem:[#allocation7 + $0x268] sm:$0xff]
        %v4857 = vld [vmem:[#allocation7 + $0x270] sm:$0xff]
        %v4858 = vld [vmem:[#allocation7 + $0x278] sm:$0xff]
        %v4859 = vld [vmem:[#allocation7 + $0x280] sm:$0xff]
        %v4860 = vld [vmem:[#allocation7 + $0x288] sm:$0xff]
        %v4861 = vld [vmem:[#allocation7 + $0x290] sm:$0xff]
        %v4862 = vld [vmem:[#allocation7 + $0x298] sm:$0xff]
        %v4863 = vld [vmem:[#allocation7 + $0x2a0] sm:$0xff]
        %v4864 = vld [vmem:[#allocation7 + $0x2a8] sm:$0xff]
        %v4865 = vld [vmem:[#allocation7 + $0x2b0] sm:$0xff]
        %v4866 = vld [vmem:[#allocation7 + $0x2b8] sm:$0xff]
        %v4867 = vld [vmem:[#allocation7 + $0x2c0] sm:$0xff]
        %v4868 = vld [vmem:[#allocation7 + $0x2c8] sm:$0xff]
        %v4869 = vld [vmem:[#allocation7 + $0x2d0] sm:$0xff]
        %v4870 = vld [vmem:[#allocation7 + $0x2d8] sm:$0xff]
        %v4871 = vld [vmem:[#allocation7 + $0x2e0] sm:$0xff]
        %v4872 = vld [vmem:[#allocation7 + $0x2e8] sm:$0xff]
        %v4873 = vld [vmem:[#allocation7 + $0x2f0] sm:$0xff]
        %v4874 = vld [vmem:[#allocation7 + $0x2f8] sm:$0xff]
        %v4875 = vld [vmem:[#allocation7 + $0x300] sm:$0xff]
        %v4876 = vld [vmem:[#allocation7 + $0x308] sm:$0xff]
        %v4877 = vld [vmem:[#allocation7 + $0x310] sm:$0xff]
        %v4878 = vld [vmem:[#allocation7 + $0x318] sm:$0xff]
        %v4879 = vld [vmem:[#allocation7 + $0x320] sm:$0xff]
        %v4880 = vld [vmem:[#allocation7 + $0x328] sm:$0xff]
        %v4881 = vld [vmem:[#allocation7 + $0x330] sm:$0xff]
        %v4882 = vld [vmem:[#allocation7 + $0x338] sm:$0xff]
        %v4883 = vld [vmem:[#allocation7 + $0x340] sm:$0xff]
        %v4884 = vld [vmem:[#allocation7 + $0x348] sm:$0xff]
        %v4885 = vld [vmem:[#allocation7 + $0x350] sm:$0xff]
        %v4886 = vld [vmem:[#allocation7 + $0x358] sm:$0xff]
        %v4887 = vld [vmem:[#allocation7 + $0x360] sm:$0xff]
        %v4888 = vld [vmem:[#allocation7 + $0x368] sm:$0xff]
        %v4889 = vld [vmem:[#allocation7 + $0x370] sm:$0xff]
        %v4890 = vld [vmem:[#allocation7 + $0x378] sm:$0xff]
        %v4891 = vld [vmem:[#allocation7 + $0x380] sm:$0xff]
        %v4892 = vld [vmem:[#allocation7 + $0x388] sm:$0xff]
        %v4893 = vld [vmem:[#allocation7 + $0x390] sm:$0xff]
        %v4894 = vld [vmem:[#allocation7 + $0x398] sm:$0xff]
        %v4895 = vld [vmem:[#allocation7 + $0x3a0] sm:$0xff]
        %v4896 = vld [vmem:[#allocation7 + $0x3a8] sm:$0xff]
        %v4897 = vld [vmem:[#allocation7 + $0x3b0] sm:$0xff]
        %v4898 = vld [vmem:[#allocation7 + $0x3b8] sm:$0xff]
        %v4899 = vld [vmem:[#allocation7 + $0x3c0] sm:$0xff]
        %v4900 = vld [vmem:[#allocation7 + $0x3c8] sm:$0xff]
        %v4901 = vld [vmem:[#allocation7 + $0x3d0] sm:$0xff]
        %v4902 = vld [vmem:[#allocation7 + $0x3d8] sm:$0xff]
        %v4903 = vld [vmem:[#allocation7 + $0x3e0] sm:$0xff]
        %v4904 = vld [vmem:[#allocation7 + $0x3e8] sm:$0xff]
        %v4905 = vld [vmem:[#allocation7 + $0x3f0] sm:$0xff]
        %v4906 = vld [vmem:[#allocation7 + $0x3f8] sm:$0xff]
        %v4907 = vld [vmem:[#allocation7 + $0x400] sm:$0xff]
        %v4908 = vld [vmem:[#allocation7 + $0x408] sm:$0xff]
        %v4909 = vld [vmem:[#allocation7 + $0x410] sm:$0xff]
        %v4910 = vld [vmem:[#allocation7 + $0x418] sm:$0xff]
        %v4911 = vld [vmem:[#allocation7 + $0x420] sm:$0xff]
        %v4912 = vld [vmem:[#allocation7 + $0x428] sm:$0xff]
        %v4913 = vld [vmem:[#allocation7 + $0x430] sm:$0xff]
        %v4914 = vld [vmem:[#allocation7 + $0x438] sm:$0xff]
        %v4915 = vld [vmem:[#allocation7 + $0x440] sm:$0xff]
        %v4916 = vld [vmem:[#allocation7 + $0x448] sm:$0xff]
        %v4917 = vld [vmem:[#allocation7 + $0x450] sm:$0xff]
        %v4918 = vld [vmem:[#allocation7 + $0x458] sm:$0xff]
        %v4919 = vld [vmem:[#allocation7 + $0x460] sm:$0xff]
        %v4920 = vld [vmem:[#allocation7 + $0x468] sm:$0xff]
        %v4921 = vld [vmem:[#allocation7 + $0x470] sm:$0xff]
        %v4922 = vld [vmem:[#allocation7 + $0x478] sm:$0xff]
        %v4923 = vld [vmem:[#allocation7 + $0x480] sm:$0xff]
        %v4924 = vld [vmem:[#allocation7 + $0x488] sm:$0xff]
        %v4925 = vld [vmem:[#allocation7 + $0x490] sm:$0xff]
        %v4926 = vld [vmem:[#allocation7 + $0x498] sm:$0xff]
        %v4927 = vld [vmem:[#allocation7 + $0x4a0] sm:$0xff]
        %v4928 = vld [vmem:[#allocation7 + $0x4a8] sm:$0xff]
        %v4929 = vld [vmem:[#allocation7 + $0x4b0] sm:$0xff]
        %v4930 = vld [vmem:[#allocation7 + $0x4b8] sm:$0xff]
        %v4931 = vld [vmem:[#allocation7 + $0x4c0] sm:$0xff]
        %v4932 = vld [vmem:[#allocation7 + $0x4c8] sm:$0xff]
        %v4933 = vld [vmem:[#allocation7 + $0x4d0] sm:$0xff]
        %v4934 = vld [vmem:[#allocation7 + $0x4d8] sm:$0xff]
        %v4935 = vld [vmem:[#allocation7 + $0x4e0] sm:$0xff]
        %v4936 = vld [vmem:[#allocation7 + $0x4e8] sm:$0xff]
        %v4937 = vld [vmem:[#allocation7 + $0x4f0] sm:$0xff]
        %v4938 = vld [vmem:[#allocation7 + $0x4f8] sm:$0xff]
        %v4939 = vld [vmem:[#allocation7 + $0x500] sm:$0xff]
        %v4940 = vld [vmem:[#allocation7 + $0x508] sm:$0xff]
        %v4941 = vld [vmem:[#allocation7 + $0x510] sm:$0xff]
        %v4942 = vld [vmem:[#allocation7 + $0x518] sm:$0xff]
        %v4943 = vld [vmem:[#allocation7 + $0x520] sm:$0xff]
        %v4944 = vld [vmem:[#allocation7 + $0x528] sm:$0xff]
        %v4945 = vld [vmem:[#allocation7 + $0x530] sm:$0xff]
        %v4946 = vld [vmem:[#allocation7 + $0x538] sm:$0xff]
        %v4947 = vld [vmem:[#allocation7 + $0x540] sm:$0xff]
        %v4948 = vld [vmem:[#allocation7 + $0x548] sm:$0xff]
        %v4949 = vld [vmem:[#allocation7 + $0x550] sm:$0xff]
        %v4950 = vld [vmem:[#allocation7 + $0x558] sm:$0xff]
        %v4951 = vld [vmem:[#allocation7 + $0x560] sm:$0xff]
        %v4952 = vld [vmem:[#allocation7 + $0x568] sm:$0xff]
        %v4953 = vld [vmem:[#allocation7 + $0x570] sm:$0xff]
        %v4954 = vld [vmem:[#allocation7 + $0x578] sm:$0xff]
        %v4955 = vld [vmem:[#allocation7 + $0x580] sm:$0xff]
        %v4956 = vld [vmem:[#allocation7 + $0x588] sm:$0xff]
        %v4957 = vld [vmem:[#allocation7 + $0x590] sm:$0xff]
        %v4958 = vld [vmem:[#allocation7 + $0x598] sm:$0xff]
        %v4959 = vld [vmem:[#allocation7 + $0x5a0] sm:$0xff]
        %v4960 = vld [vmem:[#allocation7 + $0x5a8] sm:$0xff]
        %v4961 = vld [vmem:[#allocation7 + $0x5b0] sm:$0xff]
        %v4962 = vld [vmem:[#allocation7 + $0x5b8] sm:$0xff]
        %v4963 = vld [vmem:[#allocation7 + $0x5c0] sm:$0xff]
        %v4964 = vld [vmem:[#allocation7 + $0x5c8] sm:$0xff]
        %v4965 = vld [vmem:[#allocation7 + $0x5d0] sm:$0xff]
        %v4966 = vld [vmem:[#allocation7 + $0x5d8] sm:$0xff]
        %v4967 = vld [vmem:[#allocation7 + $0x5e0] sm:$0xff]
        %v4968 = vld [vmem:[#allocation7 + $0x5e8] sm:$0xff]
        %v4969 = vld [vmem:[#allocation7 + $0x5f0] sm:$0xff]
        %v4970 = vld [vmem:[#allocation7 + $0x5f8] sm:$0xff]
        %v4971 = vld [vmem:[#allocation7 + $0x600] sm:$0xff]
        %v4972 = vld [vmem:[#allocation7 + $0x608] sm:$0xff]
        %v4973 = vld [vmem:[#allocation7 + $0x610] sm:$0xff]
        %v4974 = vld [vmem:[#allocation7 + $0x618] sm:$0xff]
        %v4975 = vld [vmem:[#allocation7 + $0x620] sm:$0xff]
        %v4976 = vld [vmem:[#allocation7 + $0x628] sm:$0xff]
        %v4977 = vld [vmem:[#allocation7 + $0x630] sm:$0xff]
        %v4978 = vld [vmem:[#allocation7 + $0x638] sm:$0xff]
        %v4979 = vld [vmem:[#allocation7 + $0x640] sm:$0xff]
        %v4980 = vld [vmem:[#allocation7 + $0x648] sm:$0xff]
        %v4981 = vld [vmem:[#allocation7 + $0x650] sm:$0xff]
        %v4982 = vld [vmem:[#allocation7 + $0x658] sm:$0xff]
        %v4983 = vld [vmem:[#allocation7 + $0x660] sm:$0xff]
        %v4984 = vld [vmem:[#allocation7 + $0x668] sm:$0xff]
        %v4985 = vld [vmem:[#allocation7 + $0x670] sm:$0xff]
        %v4986 = vld [vmem:[#allocation7 + $0x678] sm:$0xff]
        %v4987 = vld [vmem:[#allocation7 + $0x680] sm:$0xff]
        %v4988 = vld [vmem:[#allocation7 + $0x688] sm:$0xff]
        %v4989 = vld [vmem:[#allocation7 + $0x690] sm:$0xff]
        %v4990 = vld [vmem:[#allocation7 + $0x698] sm:$0xff]
        %v4991 = vld [vmem:[#allocation7 + $0x6a0] sm:$0xff]
        %v4992 = vld [vmem:[#allocation7 + $0x6a8] sm:$0xff]
        %v4993 = vld [vmem:[#allocation7 + $0x6b0] sm:$0xff]
        %v4994 = vld [vmem:[#allocation7 + $0x6b8] sm:$0xff]
        %v4995 = vld [vmem:[#allocation7 + $0x6c0] sm:$0xff]
        %v4996 = vld [vmem:[#allocation7 + $0x6c8] sm:$0xff]
        %v4997 = vld [vmem:[#allocation7 + $0x6d0] sm:$0xff]
        %v4998 = vld [vmem:[#allocation7 + $0x6d8] sm:$0xff]
        %v4999 = vld [vmem:[#allocation7 + $0x6e0] sm:$0xff]
        %v5000 = vld [vmem:[#allocation7 + $0x6e8] sm:$0xff]
        %v5001 = vld [vmem:[#allocation7 + $0x6f0] sm:$0xff]
        %v5002 = vld [vmem:[#allocation7 + $0x6f8] sm:$0xff]
        %v5003 = vld [vmem:[#allocation7 + $0x700] sm:$0xff]
        %v5004 = vld [vmem:[#allocation7 + $0x708] sm:$0xff]
        %v5005 = vld [vmem:[#allocation7 + $0x710] sm:$0xff]
        %v5006 = vld [vmem:[#allocation7 + $0x718] sm:$0xff]
        %v5007 = vld [vmem:[#allocation7 + $0x720] sm:$0xff]
        %v5008 = vld [vmem:[#allocation7 + $0x728] sm:$0xff]
        %v5009 = vld [vmem:[#allocation7 + $0x730] sm:$0xff]
        %v5010 = vld [vmem:[#allocation7 + $0x738] sm:$0xff]
        %v5011 = vld [vmem:[#allocation7 + $0x740] sm:$0xff]
        %v5012 = vld [vmem:[#allocation7 + $0x748] sm:$0xff]
        %v5013 = vld [vmem:[#allocation7 + $0x750] sm:$0xff]
        %v5014 = vld [vmem:[#allocation7 + $0x758] sm:$0xff]
        %v5015 = vld [vmem:[#allocation7 + $0x760] sm:$0xff]
        %v5016 = vld [vmem:[#allocation7 + $0x768] sm:$0xff]
        %v5017 = vld [vmem:[#allocation7 + $0x770] sm:$0xff]
        %v5018 = vld [vmem:[#allocation7 + $0x778] sm:$0xff]
        %v5019 = vld [vmem:[#allocation7 + $0x780] sm:$0xff]
        %v5020 = vld [vmem:[#allocation7 + $0x788] sm:$0xff]
        %v5021 = vld [vmem:[#allocation7 + $0x790] sm:$0xff]
        %v5022 = vld [vmem:[#allocation7 + $0x798] sm:$0xff]
        %v5023 = vld [vmem:[#allocation7 + $0x7a0] sm:$0xff]
        %v5024 = vld [vmem:[#allocation7 + $0x7a8] sm:$0xff]
        %v5025 = vld [vmem:[#allocation7 + $0x7b0] sm:$0xff]
        %v5026 = vld [vmem:[#allocation7 + $0x7b8] sm:$0xff]
        %v5027 = vld [vmem:[#allocation7 + $0x7c0] sm:$0xff]
        %v5028 = vld [vmem:[#allocation7 + $0x7c8] sm:$0xff]
        %v5029 = vld [vmem:[#allocation7 + $0x7d0] sm:$0xff]
        %v5030 = vld [vmem:[#allocation7 + $0x7d8] sm:$0xff]
        %v5031 = vld [vmem:[#allocation7 + $0x7e0] sm:$0xff]
        %v5032 = vld [vmem:[#allocation7 + $0x7e8] sm:$0xff]
        %v5033 = vld [vmem:[#allocation7 + $0x7f0] sm:$0xff]
        %v5034 = vld [vmem:[#allocation7 + $0x7f8] sm:$0xff]
        %v5291 = vunpack.c.l.b16 %v4779
        %v5292 = vunpack.c.h.b16 %v4779
        %v5293 = vunpack.c.l.b16 %v4780
        %v5294 = vunpack.c.h.b16 %v4780
        %v5295 = vunpack.c.l.b16 %v4781
        %v5296 = vunpack.c.h.b16 %v4781
        %v5297 = vunpack.c.l.b16 %v4782
        %v5298 = vunpack.c.h.b16 %v4782
        %v5299 = vunpack.c.l.b16 %v4783
        %v5300 = vunpack.c.h.b16 %v4783
        %v5301 = vunpack.c.l.b16 %v4784
        %v5302 = vunpack.c.h.b16 %v4784
        %v5303 = vunpack.c.l.b16 %v4785
        %v5304 = vunpack.c.h.b16 %v4785
        %v5305 = vunpack.c.l.b16 %v4786
        %v5306 = vunpack.c.h.b16 %v4786
        %v5307 = vunpack.c.l.b16 %v4787
        %v5308 = vunpack.c.h.b16 %v4787
        %v5309 = vunpack.c.l.b16 %v4788
        %v5310 = vunpack.c.h.b16 %v4788
        %v5311 = vunpack.c.l.b16 %v4789
        %v5312 = vunpack.c.h.b16 %v4789
        %v5313 = vunpack.c.l.b16 %v4790
        %v5314 = vunpack.c.h.b16 %v4790
        %v5315 = vunpack.c.l.b16 %v4791
        %v5316 = vunpack.c.h.b16 %v4791
        %v5317 = vunpack.c.l.b16 %v4792
        %v5318 = vunpack.c.h.b16 %v4792
        %v5319 = vunpack.c.l.b16 %v4793
        %v5320 = vunpack.c.h.b16 %v4793
        %v5321 = vunpack.c.l.b16 %v4794
        %v5322 = vunpack.c.h.b16 %v4794
        %v5323 = vunpack.c.l.b16 %v4795
        %v5324 = vunpack.c.h.b16 %v4795
        %v5325 = vunpack.c.l.b16 %v4796
        %v5326 = vunpack.c.h.b16 %v4796
        %v5327 = vunpack.c.l.b16 %v4797
        %v5328 = vunpack.c.h.b16 %v4797
        %v5329 = vunpack.c.l.b16 %v4798
        %v5330 = vunpack.c.h.b16 %v4798
        %v5331 = vunpack.c.l.b16 %v4799
        %v5332 = vunpack.c.h.b16 %v4799
        %v5333 = vunpack.c.l.b16 %v4800
        %v5334 = vunpack.c.h.b16 %v4800
        %v5335 = vunpack.c.l.b16 %v4801
        %v5336 = vunpack.c.h.b16 %v4801
        %v5337 = vunpack.c.l.b16 %v4802
        %v5338 = vunpack.c.h.b16 %v4802
        %v5339 = vunpack.c.l.b16 %v4803
        %v5340 = vunpack.c.h.b16 %v4803
        %v5341 = vunpack.c.l.b16 %v4804
        %v5342 = vunpack.c.h.b16 %v4804
        %v5343 = vunpack.c.l.b16 %v4805
        %v5344 = vunpack.c.h.b16 %v4805
        %v5345 = vunpack.c.l.b16 %v4806
        %v5346 = vunpack.c.h.b16 %v4806
        %v5347 = vunpack.c.l.b16 %v4807
        %v5348 = vunpack.c.h.b16 %v4807
        %v5349 = vunpack.c.l.b16 %v4808
        %v5350 = vunpack.c.h.b16 %v4808
        %v5351 = vunpack.c.l.b16 %v4809
        %v5352 = vunpack.c.h.b16 %v4809
        %v5353 = vunpack.c.l.b16 %v4810
        %v5354 = vunpack.c.h.b16 %v4810
        %v5355 = vunpack.c.l.b16 %v4811
        %v5356 = vunpack.c.h.b16 %v4811
        %v5357 = vunpack.c.l.b16 %v4812
        %v5358 = vunpack.c.h.b16 %v4812
        %v5359 = vunpack.c.l.b16 %v4813
        %v5360 = vunpack.c.h.b16 %v4813
        %v5361 = vunpack.c.l.b16 %v4814
        %v5362 = vunpack.c.h.b16 %v4814
        %v5363 = vunpack.c.l.b16 %v4815
        %v5364 = vunpack.c.h.b16 %v4815
        %v5365 = vunpack.c.l.b16 %v4816
        %v5366 = vunpack.c.h.b16 %v4816
        %v5367 = vunpack.c.l.b16 %v4817
        %v5368 = vunpack.c.h.b16 %v4817
        %v5369 = vunpack.c.l.b16 %v4818
        %v5370 = vunpack.c.h.b16 %v4818
        %v5371 = vunpack.c.l.b16 %v4819
        %v5372 = vunpack.c.h.b16 %v4819
        %v5373 = vunpack.c.l.b16 %v4820
        %v5374 = vunpack.c.h.b16 %v4820
        %v5375 = vunpack.c.l.b16 %v4821
        %v5376 = vunpack.c.h.b16 %v4821
        %v5377 = vunpack.c.l.b16 %v4822
        %v5378 = vunpack.c.h.b16 %v4822
        %v5379 = vunpack.c.l.b16 %v4823
        %v5380 = vunpack.c.h.b16 %v4823
        %v5381 = vunpack.c.l.b16 %v4824
        %v5382 = vunpack.c.h.b16 %v4824
        %v5383 = vunpack.c.l.b16 %v4825
        %v5384 = vunpack.c.h.b16 %v4825
        %v5385 = vunpack.c.l.b16 %v4826
        %v5386 = vunpack.c.h.b16 %v4826
        %v5387 = vunpack.c.l.b16 %v4827
        %v5388 = vunpack.c.h.b16 %v4827
        %v5389 = vunpack.c.l.b16 %v4828
        %v5390 = vunpack.c.h.b16 %v4828
        %v5391 = vunpack.c.l.b16 %v4829
        %v5392 = vunpack.c.h.b16 %v4829
        %v5393 = vunpack.c.l.b16 %v4830
        %v5394 = vunpack.c.h.b16 %v4830
        %v5395 = vunpack.c.l.b16 %v4831
        %v5396 = vunpack.c.h.b16 %v4831
        %v5397 = vunpack.c.l.b16 %v4832
        %v5398 = vunpack.c.h.b16 %v4832
        %v5399 = vunpack.c.l.b16 %v4833
        %v5400 = vunpack.c.h.b16 %v4833
        %v5401 = vunpack.c.l.b16 %v4834
        %v5402 = vunpack.c.h.b16 %v4834
        %v5403 = vunpack.c.l.b16 %v4835
        %v5404 = vunpack.c.h.b16 %v4835
        %v5405 = vunpack.c.l.b16 %v4836
        %v5406 = vunpack.c.h.b16 %v4836
        %v5407 = vunpack.c.l.b16 %v4837
        %v5408 = vunpack.c.h.b16 %v4837
        %v5409 = vunpack.c.l.b16 %v4838
        %v5410 = vunpack.c.h.b16 %v4838
        %v5411 = vunpack.c.l.b16 %v4839
        %v5412 = vunpack.c.h.b16 %v4839
        %v5413 = vunpack.c.l.b16 %v4840
        %v5414 = vunpack.c.h.b16 %v4840
        %v5415 = vunpack.c.l.b16 %v4841
        %v5416 = vunpack.c.h.b16 %v4841
        %v5417 = vunpack.c.l.b16 %v4842
        %v5418 = vunpack.c.h.b16 %v4842
        %v5419 = vunpack.c.l.b16 %v4843
        %v5420 = vunpack.c.h.b16 %v4843
        %v5421 = vunpack.c.l.b16 %v4844
        %v5422 = vunpack.c.h.b16 %v4844
        %v5423 = vunpack.c.l.b16 %v4845
        %v5424 = vunpack.c.h.b16 %v4845
        %v5425 = vunpack.c.l.b16 %v4846
        %v5426 = vunpack.c.h.b16 %v4846
        %v5427 = vunpack.c.l.b16 %v4847
        %v5428 = vunpack.c.h.b16 %v4847
        %v5429 = vunpack.c.l.b16 %v4848
        %v5430 = vunpack.c.h.b16 %v4848
        %v5431 = vunpack.c.l.b16 %v4849
        %v5432 = vunpack.c.h.b16 %v4849
        %v5433 = vunpack.c.l.b16 %v4850
        %v5434 = vunpack.c.h.b16 %v4850
        %v5435 = vunpack.c.l.b16 %v4851
        %v5436 = vunpack.c.h.b16 %v4851
        %v5437 = vunpack.c.l.b16 %v4852
        %v5438 = vunpack.c.h.b16 %v4852
        %v5439 = vunpack.c.l.b16 %v4853
        %v5440 = vunpack.c.h.b16 %v4853
        %v5441 = vunpack.c.l.b16 %v4854
        %v5442 = vunpack.c.h.b16 %v4854
        %v5443 = vunpack.c.l.b16 %v4855
        %v5444 = vunpack.c.h.b16 %v4855
        %v5445 = vunpack.c.l.b16 %v4856
        %v5446 = vunpack.c.h.b16 %v4856
        %v5447 = vunpack.c.l.b16 %v4857
        %v5448 = vunpack.c.h.b16 %v4857
        %v5449 = vunpack.c.l.b16 %v4858
        %v5450 = vunpack.c.h.b16 %v4858
        %v5451 = vunpack.c.l.b16 %v4859
        %v5452 = vunpack.c.h.b16 %v4859
        %v5453 = vunpack.c.l.b16 %v4860
        %v5454 = vunpack.c.h.b16 %v4860
        %v5455 = vunpack.c.l.b16 %v4861
        %v5456 = vunpack.c.h.b16 %v4861
        %v5457 = vunpack.c.l.b16 %v4862
        %v5458 = vunpack.c.h.b16 %v4862
        %v5459 = vunpack.c.l.b16 %v4863
        %v5460 = vunpack.c.h.b16 %v4863
        %v5461 = vunpack.c.l.b16 %v4864
        %v5462 = vunpack.c.h.b16 %v4864
        %v5463 = vunpack.c.l.b16 %v4865
        %v5464 = vunpack.c.h.b16 %v4865
        %v5465 = vunpack.c.l.b16 %v4866
        %v5466 = vunpack.c.h.b16 %v4866
        %v5467 = vunpack.c.l.b16 %v4867
        %v5468 = vunpack.c.h.b16 %v4867
        %v5469 = vunpack.c.l.b16 %v4868
        %v5470 = vunpack.c.h.b16 %v4868
        %v5471 = vunpack.c.l.b16 %v4869
        %v5472 = vunpack.c.h.b16 %v4869
        %v5473 = vunpack.c.l.b16 %v4870
        %v5474 = vunpack.c.h.b16 %v4870
        %v5475 = vunpack.c.l.b16 %v4871
        %v5476 = vunpack.c.h.b16 %v4871
        %v5477 = vunpack.c.l.b16 %v4872
        %v5478 = vunpack.c.h.b16 %v4872
        %v5479 = vunpack.c.l.b16 %v4873
        %v5480 = vunpack.c.h.b16 %v4873
        %v5481 = vunpack.c.l.b16 %v4874
        %v5482 = vunpack.c.h.b16 %v4874
        %v5483 = vunpack.c.l.b16 %v4875
        %v5484 = vunpack.c.h.b16 %v4875
        %v5485 = vunpack.c.l.b16 %v4876
        %v5486 = vunpack.c.h.b16 %v4876
        %v5487 = vunpack.c.l.b16 %v4877
        %v5488 = vunpack.c.h.b16 %v4877
        %v5489 = vunpack.c.l.b16 %v4878
        %v5490 = vunpack.c.h.b16 %v4878
        %v5491 = vunpack.c.l.b16 %v4879
        %v5492 = vunpack.c.h.b16 %v4879
        %v5493 = vunpack.c.l.b16 %v4880
        %v5494 = vunpack.c.h.b16 %v4880
        %v5495 = vunpack.c.l.b16 %v4881
        %v5496 = vunpack.c.h.b16 %v4881
        %v5497 = vunpack.c.l.b16 %v4882
        %v5498 = vunpack.c.h.b16 %v4882
        %v5499 = vunpack.c.l.b16 %v4883
        %v5500 = vunpack.c.h.b16 %v4883
        %v5501 = vunpack.c.l.b16 %v4884
        %v5502 = vunpack.c.h.b16 %v4884
        %v5503 = vunpack.c.l.b16 %v4885
        %v5504 = vunpack.c.h.b16 %v4885
        %v5505 = vunpack.c.l.b16 %v4886
        %v5506 = vunpack.c.h.b16 %v4886
        %v5507 = vunpack.c.l.b16 %v4887
        %v5508 = vunpack.c.h.b16 %v4887
        %v5509 = vunpack.c.l.b16 %v4888
        %v5510 = vunpack.c.h.b16 %v4888
        %v5511 = vunpack.c.l.b16 %v4889
        %v5512 = vunpack.c.h.b16 %v4889
        %v5513 = vunpack.c.l.b16 %v4890
        %v5514 = vunpack.c.h.b16 %v4890
        %v5515 = vunpack.c.l.b16 %v4891
        %v5516 = vunpack.c.h.b16 %v4891
        %v5517 = vunpack.c.l.b16 %v4892
        %v5518 = vunpack.c.h.b16 %v4892
        %v5519 = vunpack.c.l.b16 %v4893
        %v5520 = vunpack.c.h.b16 %v4893
        %v5521 = vunpack.c.l.b16 %v4894
        %v5522 = vunpack.c.h.b16 %v4894
        %v5523 = vunpack.c.l.b16 %v4895
        %v5524 = vunpack.c.h.b16 %v4895
        %v5525 = vunpack.c.l.b16 %v4896
        %v5526 = vunpack.c.h.b16 %v4896
        %v5527 = vunpack.c.l.b16 %v4897
        %v5528 = vunpack.c.h.b16 %v4897
        %v5529 = vunpack.c.l.b16 %v4898
        %v5530 = vunpack.c.h.b16 %v4898
        %v5531 = vunpack.c.l.b16 %v4899
        %v5532 = vunpack.c.h.b16 %v4899
        %v5533 = vunpack.c.l.b16 %v4900
        %v5534 = vunpack.c.h.b16 %v4900
        %v5535 = vunpack.c.l.b16 %v4901
        %v5536 = vunpack.c.h.b16 %v4901
        %v5537 = vunpack.c.l.b16 %v4902
        %v5538 = vunpack.c.h.b16 %v4902
        %v5539 = vunpack.c.l.b16 %v4903
        %v5540 = vunpack.c.h.b16 %v4903
        %v5541 = vunpack.c.l.b16 %v4904
        %v5542 = vunpack.c.h.b16 %v4904
        %v5543 = vunpack.c.l.b16 %v4905
        %v5544 = vunpack.c.h.b16 %v4905
        %v5545 = vunpack.c.l.b16 %v4906
        %v5546 = vunpack.c.h.b16 %v4906
        %v5547 = vunpack.c.l.b16 %v4907
        %v5548 = vunpack.c.h.b16 %v4907
        %v5549 = vunpack.c.l.b16 %v4908
        %v5550 = vunpack.c.h.b16 %v4908
        %v5551 = vunpack.c.l.b16 %v4909
        %v5552 = vunpack.c.h.b16 %v4909
        %v5553 = vunpack.c.l.b16 %v4910
        %v5554 = vunpack.c.h.b16 %v4910
        %v5555 = vunpack.c.l.b16 %v4911
        %v5556 = vunpack.c.h.b16 %v4911
        %v5557 = vunpack.c.l.b16 %v4912
        %v5558 = vunpack.c.h.b16 %v4912
        %v5559 = vunpack.c.l.b16 %v4913
        %v5560 = vunpack.c.h.b16 %v4913
        %v5561 = vunpack.c.l.b16 %v4914
        %v5562 = vunpack.c.h.b16 %v4914
        %v5563 = vunpack.c.l.b16 %v4915
        %v5564 = vunpack.c.h.b16 %v4915
        %v5565 = vunpack.c.l.b16 %v4916
        %v5566 = vunpack.c.h.b16 %v4916
        %v5567 = vunpack.c.l.b16 %v4917
        %v5568 = vunpack.c.h.b16 %v4917
        %v5569 = vunpack.c.l.b16 %v4918
        %v5570 = vunpack.c.h.b16 %v4918
        %v5571 = vunpack.c.l.b16 %v4919
        %v5572 = vunpack.c.h.b16 %v4919
        %v5573 = vunpack.c.l.b16 %v4920
        %v5574 = vunpack.c.h.b16 %v4920
        %v5575 = vunpack.c.l.b16 %v4921
        %v5576 = vunpack.c.h.b16 %v4921
        %v5577 = vunpack.c.l.b16 %v4922
        %v5578 = vunpack.c.h.b16 %v4922
        %v5579 = vunpack.c.l.b16 %v4923
        %v5580 = vunpack.c.h.b16 %v4923
        %v5581 = vunpack.c.l.b16 %v4924
        %v5582 = vunpack.c.h.b16 %v4924
        %v5583 = vunpack.c.l.b16 %v4925
        %v5584 = vunpack.c.h.b16 %v4925
        %v5585 = vunpack.c.l.b16 %v4926
        %v5586 = vunpack.c.h.b16 %v4926
        %v5587 = vunpack.c.l.b16 %v4927
        %v5588 = vunpack.c.h.b16 %v4927
        %v5589 = vunpack.c.l.b16 %v4928
        %v5590 = vunpack.c.h.b16 %v4928
        %v5591 = vunpack.c.l.b16 %v4929
        %v5592 = vunpack.c.h.b16 %v4929
        %v5593 = vunpack.c.l.b16 %v4930
        %v5594 = vunpack.c.h.b16 %v4930
        %v5595 = vunpack.c.l.b16 %v4931
        %v5596 = vunpack.c.h.b16 %v4931
        %v5597 = vunpack.c.l.b16 %v4932
        %v5598 = vunpack.c.h.b16 %v4932
        %v5599 = vunpack.c.l.b16 %v4933
        %v5600 = vunpack.c.h.b16 %v4933
        %v5601 = vunpack.c.l.b16 %v4934
        %v5602 = vunpack.c.h.b16 %v4934
        %v5603 = vunpack.c.l.b16 %v4935
        %v5604 = vunpack.c.h.b16 %v4935
        %v5605 = vunpack.c.l.b16 %v4936
        %v5606 = vunpack.c.h.b16 %v4936
        %v5607 = vunpack.c.l.b16 %v4937
        %v5608 = vunpack.c.h.b16 %v4937
        %v5609 = vunpack.c.l.b16 %v4938
        %v5610 = vunpack.c.h.b16 %v4938
        %v5611 = vunpack.c.l.b16 %v4939
        %v5612 = vunpack.c.h.b16 %v4939
        %v5613 = vunpack.c.l.b16 %v4940
        %v5614 = vunpack.c.h.b16 %v4940
        %v5615 = vunpack.c.l.b16 %v4941
        %v5616 = vunpack.c.h.b16 %v4941
        %v5617 = vunpack.c.l.b16 %v4942
        %v5618 = vunpack.c.h.b16 %v4942
        %v5619 = vunpack.c.l.b16 %v4943
        %v5620 = vunpack.c.h.b16 %v4943
        %v5621 = vunpack.c.l.b16 %v4944
        %v5622 = vunpack.c.h.b16 %v4944
        %v5623 = vunpack.c.l.b16 %v4945
        %v5624 = vunpack.c.h.b16 %v4945
        %v5625 = vunpack.c.l.b16 %v4946
        %v5626 = vunpack.c.h.b16 %v4946
        %v5627 = vunpack.c.l.b16 %v4947
        %v5628 = vunpack.c.h.b16 %v4947
        %v5629 = vunpack.c.l.b16 %v4948
        %v5630 = vunpack.c.h.b16 %v4948
        %v5631 = vunpack.c.l.b16 %v4949
        %v5632 = vunpack.c.h.b16 %v4949
        %v5633 = vunpack.c.l.b16 %v4950
        %v5634 = vunpack.c.h.b16 %v4950
        %v5635 = vunpack.c.l.b16 %v4951
        %v5636 = vunpack.c.h.b16 %v4951
        %v5637 = vunpack.c.l.b16 %v4952
        %v5638 = vunpack.c.h.b16 %v4952
        %v5639 = vunpack.c.l.b16 %v4953
        %v5640 = vunpack.c.h.b16 %v4953
        %v5641 = vunpack.c.l.b16 %v4954
        %v5642 = vunpack.c.h.b16 %v4954
        %v5643 = vunpack.c.l.b16 %v4955
        %v5644 = vunpack.c.h.b16 %v4955
        %v5645 = vunpack.c.l.b16 %v4956
        %v5646 = vunpack.c.h.b16 %v4956
        %v5647 = vunpack.c.l.b16 %v4957
        %v5648 = vunpack.c.h.b16 %v4957
        %v5649 = vunpack.c.l.b16 %v4958
        %v5650 = vunpack.c.h.b16 %v4958
        %v5651 = vunpack.c.l.b16 %v4959
        %v5652 = vunpack.c.h.b16 %v4959
        %v5653 = vunpack.c.l.b16 %v4960
        %v5654 = vunpack.c.h.b16 %v4960
        %v5655 = vunpack.c.l.b16 %v4961
        %v5656 = vunpack.c.h.b16 %v4961
        %v5657 = vunpack.c.l.b16 %v4962
        %v5658 = vunpack.c.h.b16 %v4962
        %v5659 = vunpack.c.l.b16 %v4963
        %v5660 = vunpack.c.h.b16 %v4963
        %v5661 = vunpack.c.l.b16 %v4964
        %v5662 = vunpack.c.h.b16 %v4964
        %v5663 = vunpack.c.l.b16 %v4965
        %v5664 = vunpack.c.h.b16 %v4965
        %v5665 = vunpack.c.l.b16 %v4966
        %v5666 = vunpack.c.h.b16 %v4966
        %v5667 = vunpack.c.l.b16 %v4967
        %v5668 = vunpack.c.h.b16 %v4967
        %v5669 = vunpack.c.l.b16 %v4968
        %v5670 = vunpack.c.h.b16 %v4968
        %v5671 = vunpack.c.l.b16 %v4969
        %v5672 = vunpack.c.h.b16 %v4969
        %v5673 = vunpack.c.l.b16 %v4970
        %v5674 = vunpack.c.h.b16 %v4970
        %v5675 = vunpack.c.l.b16 %v4971
        %v5676 = vunpack.c.h.b16 %v4971
        %v5677 = vunpack.c.l.b16 %v4972
        %v5678 = vunpack.c.h.b16 %v4972
        %v5679 = vunpack.c.l.b16 %v4973
        %v5680 = vunpack.c.h.b16 %v4973
        %v5681 = vunpack.c.l.b16 %v4974
        %v5682 = vunpack.c.h.b16 %v4974
        %v5683 = vunpack.c.l.b16 %v4975
        %v5684 = vunpack.c.h.b16 %v4975
        %v5685 = vunpack.c.l.b16 %v4976
        %v5686 = vunpack.c.h.b16 %v4976
        %v5687 = vunpack.c.l.b16 %v4977
        %v5688 = vunpack.c.h.b16 %v4977
        %v5689 = vunpack.c.l.b16 %v4978
        %v5690 = vunpack.c.h.b16 %v4978
        %v5691 = vunpack.c.l.b16 %v4979
        %v5692 = vunpack.c.h.b16 %v4979
        %v5693 = vunpack.c.l.b16 %v4980
        %v5694 = vunpack.c.h.b16 %v4980
        %v5695 = vunpack.c.l.b16 %v4981
        %v5696 = vunpack.c.h.b16 %v4981
        %v5697 = vunpack.c.l.b16 %v4982
        %v5698 = vunpack.c.h.b16 %v4982
        %v5699 = vunpack.c.l.b16 %v4983
        %v5700 = vunpack.c.h.b16 %v4983
        %v5701 = vunpack.c.l.b16 %v4984
        %v5702 = vunpack.c.h.b16 %v4984
        %v5703 = vunpack.c.l.b16 %v4985
        %v5704 = vunpack.c.h.b16 %v4985
        %v5705 = vunpack.c.l.b16 %v4986
        %v5706 = vunpack.c.h.b16 %v4986
        %v5707 = vunpack.c.l.b16 %v4987
        %v5708 = vunpack.c.h.b16 %v4987
        %v5709 = vunpack.c.l.b16 %v4988
        %v5710 = vunpack.c.h.b16 %v4988
        %v5711 = vunpack.c.l.b16 %v4989
        %v5712 = vunpack.c.h.b16 %v4989
        %v5713 = vunpack.c.l.b16 %v4990
        %v5714 = vunpack.c.h.b16 %v4990
        %v5715 = vunpack.c.l.b16 %v4991
        %v5716 = vunpack.c.h.b16 %v4991
        %v5717 = vunpack.c.l.b16 %v4992
        %v5718 = vunpack.c.h.b16 %v4992
        %v5719 = vunpack.c.l.b16 %v4993
        %v5720 = vunpack.c.h.b16 %v4993
        %v5721 = vunpack.c.l.b16 %v4994
        %v5722 = vunpack.c.h.b16 %v4994
        %v5723 = vunpack.c.l.b16 %v4995
        %v5724 = vunpack.c.h.b16 %v4995
        %v5725 = vunpack.c.l.b16 %v4996
        %v5726 = vunpack.c.h.b16 %v4996
        %v5727 = vunpack.c.l.b16 %v4997
        %v5728 = vunpack.c.h.b16 %v4997
        %v5729 = vunpack.c.l.b16 %v4998
        %v5730 = vunpack.c.h.b16 %v4998
        %v5731 = vunpack.c.l.b16 %v4999
        %v5732 = vunpack.c.h.b16 %v4999
        %v5733 = vunpack.c.l.b16 %v5000
        %v5734 = vunpack.c.h.b16 %v5000
        %v5735 = vunpack.c.l.b16 %v5001
        %v5736 = vunpack.c.h.b16 %v5001
        %v5737 = vunpack.c.l.b16 %v5002
        %v5738 = vunpack.c.h.b16 %v5002
        %v5739 = vunpack.c.l.b16 %v5003
        %v5740 = vunpack.c.h.b16 %v5003
        %v5741 = vunpack.c.l.b16 %v5004
        %v5742 = vunpack.c.h.b16 %v5004
        %v5743 = vunpack.c.l.b16 %v5005
        %v5744 = vunpack.c.h.b16 %v5005
        %v5745 = vunpack.c.l.b16 %v5006
        %v5746 = vunpack.c.h.b16 %v5006
        %v5747 = vunpack.c.l.b16 %v5007
        %v5748 = vunpack.c.h.b16 %v5007
        %v5749 = vunpack.c.l.b16 %v5008
        %v5750 = vunpack.c.h.b16 %v5008
        %v5751 = vunpack.c.l.b16 %v5009
        %v5752 = vunpack.c.h.b16 %v5009
        %v5753 = vunpack.c.l.b16 %v5010
        %v5754 = vunpack.c.h.b16 %v5010
        %v5755 = vunpack.c.l.b16 %v5011
        %v5756 = vunpack.c.h.b16 %v5011
        %v5757 = vunpack.c.l.b16 %v5012
        %v5758 = vunpack.c.h.b16 %v5012
        %v5759 = vunpack.c.l.b16 %v5013
        %v5760 = vunpack.c.h.b16 %v5013
        %v5761 = vunpack.c.l.b16 %v5014
        %v5762 = vunpack.c.h.b16 %v5014
        %v5763 = vunpack.c.l.b16 %v5015
        %v5764 = vunpack.c.h.b16 %v5015
        %v5765 = vunpack.c.l.b16 %v5016
        %v5766 = vunpack.c.h.b16 %v5016
        %v5767 = vunpack.c.l.b16 %v5017
        %v5768 = vunpack.c.h.b16 %v5017
        %v5769 = vunpack.c.l.b16 %v5018
        %v5770 = vunpack.c.h.b16 %v5018
        %v5771 = vunpack.c.l.b16 %v5019
        %v5772 = vunpack.c.h.b16 %v5019
        %v5773 = vunpack.c.l.b16 %v5020
        %v5774 = vunpack.c.h.b16 %v5020
        %v5775 = vunpack.c.l.b16 %v5021
        %v5776 = vunpack.c.h.b16 %v5021
        %v5777 = vunpack.c.l.b16 %v5022
        %v5778 = vunpack.c.h.b16 %v5022
        %v5779 = vunpack.c.l.b16 %v5023
        %v5780 = vunpack.c.h.b16 %v5023
        %v5781 = vunpack.c.l.b16 %v5024
        %v5782 = vunpack.c.h.b16 %v5024
        %v5783 = vunpack.c.l.b16 %v5025
        %v5784 = vunpack.c.h.b16 %v5025
        %v5785 = vunpack.c.l.b16 %v5026
        %v5786 = vunpack.c.h.b16 %v5026
        %v5787 = vunpack.c.l.b16 %v5027
        %v5788 = vunpack.c.h.b16 %v5027
        %v5789 = vunpack.c.l.b16 %v5028
        %v5790 = vunpack.c.h.b16 %v5028
        %v5791 = vunpack.c.l.b16 %v5029
        %v5792 = vunpack.c.h.b16 %v5029
        %v5793 = vunpack.c.l.b16 %v5030
        %v5794 = vunpack.c.h.b16 %v5030
        %v5795 = vunpack.c.l.b16 %v5031
        %v5796 = vunpack.c.h.b16 %v5031
        %v5797 = vunpack.c.l.b16 %v5032
        %v5798 = vunpack.c.h.b16 %v5032
        %v5799 = vunpack.c.l.b16 %v5033
        %v5800 = vunpack.c.h.b16 %v5033
        %v5801 = vunpack.c.l.b16 %v5034
        %v5802 = vunpack.c.h.b16 %v5034
        %v5803 = vpack.c.b16 %v5323, %v5291
        %v5804 = vpack.c.b16 %v5324, %v5292
        %v5805 = vpack.c.b16 %v5325, %v5293
        %v5806 = vpack.c.b16 %v5326, %v5294
        %v5807 = vpack.c.b16 %v5327, %v5295
        %v5808 = vpack.c.b16 %v5328, %v5296
        %v5809 = vpack.c.b16 %v5329, %v5297
        %v5810 = vpack.c.b16 %v5330, %v5298
        %v5811 = vpack.c.b16 %v5331, %v5299
        %v5812 = vpack.c.b16 %v5332, %v5300
        %v5813 = vpack.c.b16 %v5333, %v5301
        %v5814 = vpack.c.b16 %v5334, %v5302
        %v5815 = vpack.c.b16 %v5335, %v5303
        %v5816 = vpack.c.b16 %v5336, %v5304
        %v5817 = vpack.c.b16 %v5337, %v5305
        %v5818 = vpack.c.b16 %v5338, %v5306
        %v5819 = vpack.c.b16 %v5339, %v5307
        %v5820 = vpack.c.b16 %v5340, %v5308
        %v5821 = vpack.c.b16 %v5341, %v5309
        %v5822 = vpack.c.b16 %v5342, %v5310
        %v5823 = vpack.c.b16 %v5343, %v5311
        %v5824 = vpack.c.b16 %v5344, %v5312
        %v5825 = vpack.c.b16 %v5345, %v5313
        %v5826 = vpack.c.b16 %v5346, %v5314
        %v5827 = vpack.c.b16 %v5347, %v5315
        %v5828 = vpack.c.b16 %v5348, %v5316
        %v5829 = vpack.c.b16 %v5349, %v5317
        %v5830 = vpack.c.b16 %v5350, %v5318
        %v5831 = vpack.c.b16 %v5351, %v5319
        %v5832 = vpack.c.b16 %v5352, %v5320
        %v5833 = vpack.c.b16 %v5353, %v5321
        %v5834 = vpack.c.b16 %v5354, %v5322
        %v5835 = vpack.c.b16 %v5387, %v5355
        %v5836 = vpack.c.b16 %v5388, %v5356
        %v5837 = vpack.c.b16 %v5389, %v5357
        %v5838 = vpack.c.b16 %v5390, %v5358
        %v5839 = vpack.c.b16 %v5391, %v5359
        %v5840 = vpack.c.b16 %v5392, %v5360
        %v5841 = vpack.c.b16 %v5393, %v5361
        %v5842 = vpack.c.b16 %v5394, %v5362
        %v5843 = vpack.c.b16 %v5395, %v5363
        %v5844 = vpack.c.b16 %v5396, %v5364
        %v5845 = vpack.c.b16 %v5397, %v5365
        %v5846 = vpack.c.b16 %v5398, %v5366
        %v5847 = vpack.c.b16 %v5399, %v5367
        %v5848 = vpack.c.b16 %v5400, %v5368
        %v5849 = vpack.c.b16 %v5401, %v5369
        %v5850 = vpack.c.b16 %v5402, %v5370
        %v5851 = vpack.c.b16 %v5403, %v5371
        %v5852 = vpack.c.b16 %v5404, %v5372
        %v5853 = vpack.c.b16 %v5405, %v5373
        %v5854 = vpack.c.b16 %v5406, %v5374
        %v5855 = vpack.c.b16 %v5407, %v5375
        %v5856 = vpack.c.b16 %v5408, %v5376
        %v5857 = vpack.c.b16 %v5409, %v5377
        %v5858 = vpack.c.b16 %v5410, %v5378
        %v5859 = vpack.c.b16 %v5411, %v5379
        %v5860 = vpack.c.b16 %v5412, %v5380
        %v5861 = vpack.c.b16 %v5413, %v5381
        %v5862 = vpack.c.b16 %v5414, %v5382
        %v5863 = vpack.c.b16 %v5415, %v5383
        %v5864 = vpack.c.b16 %v5416, %v5384
        %v5865 = vpack.c.b16 %v5417, %v5385
        %v5866 = vpack.c.b16 %v5418, %v5386
        %v5867 = vpack.c.b16 %v5451, %v5419
        %v5868 = vpack.c.b16 %v5452, %v5420
        %v5869 = vpack.c.b16 %v5453, %v5421
        %v5870 = vpack.c.b16 %v5454, %v5422
        %v5871 = vpack.c.b16 %v5455, %v5423
        %v5872 = vpack.c.b16 %v5456, %v5424
        %v5873 = vpack.c.b16 %v5457, %v5425
        %v5874 = vpack.c.b16 %v5458, %v5426
        %v5875 = vpack.c.b16 %v5459, %v5427
        %v5876 = vpack.c.b16 %v5460, %v5428
        %v5877 = vpack.c.b16 %v5461, %v5429
        %v5878 = vpack.c.b16 %v5462, %v5430
        %v5879 = vpack.c.b16 %v5463, %v5431
        %v5880 = vpack.c.b16 %v5464, %v5432
        %v5881 = vpack.c.b16 %v5465, %v5433
        %v5882 = vpack.c.b16 %v5466, %v5434
        %v5883 = vpack.c.b16 %v5467, %v5435
        %v5884 = vpack.c.b16 %v5468, %v5436
        %v5885 = vpack.c.b16 %v5469, %v5437
        %v5886 = vpack.c.b16 %v5470, %v5438
        %v5887 = vpack.c.b16 %v5471, %v5439
        %v5888 = vpack.c.b16 %v5472, %v5440
        %v5889 = vpack.c.b16 %v5473, %v5441
        %v5890 = vpack.c.b16 %v5474, %v5442
        %v5891 = vpack.c.b16 %v5475, %v5443
        %v5892 = vpack.c.b16 %v5476, %v5444
        %v5893 = vpack.c.b16 %v5477, %v5445
        %v5894 = vpack.c.b16 %v5478, %v5446
        %v5895 = vpack.c.b16 %v5479, %v5447
        %v5896 = vpack.c.b16 %v5480, %v5448
        %v5897 = vpack.c.b16 %v5481, %v5449
        %v5898 = vpack.c.b16 %v5482, %v5450
        %v5899 = vpack.c.b16 %v5515, %v5483
        %v5900 = vpack.c.b16 %v5516, %v5484
        %v5901 = vpack.c.b16 %v5517, %v5485
        %v5902 = vpack.c.b16 %v5518, %v5486
        %v5903 = vpack.c.b16 %v5519, %v5487
        %v5904 = vpack.c.b16 %v5520, %v5488
        %v5905 = vpack.c.b16 %v5521, %v5489
        %v5906 = vpack.c.b16 %v5522, %v5490
        %v5907 = vpack.c.b16 %v5523, %v5491
        %v5908 = vpack.c.b16 %v5524, %v5492
        %v5909 = vpack.c.b16 %v5525, %v5493
        %v5910 = vpack.c.b16 %v5526, %v5494
        %v5911 = vpack.c.b16 %v5527, %v5495
        %v5912 = vpack.c.b16 %v5528, %v5496
        %v5913 = vpack.c.b16 %v5529, %v5497
        %v5914 = vpack.c.b16 %v5530, %v5498
        %v5915 = vpack.c.b16 %v5531, %v5499
        %v5916 = vpack.c.b16 %v5532, %v5500
        %v5917 = vpack.c.b16 %v5533, %v5501
        %v5918 = vpack.c.b16 %v5534, %v5502
        %v5919 = vpack.c.b16 %v5535, %v5503
        %v5920 = vpack.c.b16 %v5536, %v5504
        %v5921 = vpack.c.b16 %v5537, %v5505
        %v5922 = vpack.c.b16 %v5538, %v5506
        %v5923 = vpack.c.b16 %v5539, %v5507
        %v5924 = vpack.c.b16 %v5540, %v5508
        %v5925 = vpack.c.b16 %v5541, %v5509
        %v5926 = vpack.c.b16 %v5542, %v5510
        %v5927 = vpack.c.b16 %v5543, %v5511
        %v5928 = vpack.c.b16 %v5544, %v5512
        %v5929 = vpack.c.b16 %v5545, %v5513
        %v5930 = vpack.c.b16 %v5546, %v5514
        %v5931 = vpack.c.b16 %v5579, %v5547
        %v5932 = vpack.c.b16 %v5580, %v5548
        %v5933 = vpack.c.b16 %v5581, %v5549
        %v5934 = vpack.c.b16 %v5582, %v5550
        %v5935 = vpack.c.b16 %v5583, %v5551
        %v5936 = vpack.c.b16 %v5584, %v5552
        %v5937 = vpack.c.b16 %v5585, %v5553
        %v5938 = vpack.c.b16 %v5586, %v5554
        %v5939 = vpack.c.b16 %v5587, %v5555
        %v5940 = vpack.c.b16 %v5588, %v5556
        %v5941 = vpack.c.b16 %v5589, %v5557
        %v5942 = vpack.c.b16 %v5590, %v5558
        %v5943 = vpack.c.b16 %v5591, %v5559
        %v5944 = vpack.c.b16 %v5592, %v5560
        %v5945 = vpack.c.b16 %v5593, %v5561
        %v5946 = vpack.c.b16 %v5594, %v5562
        %v5947 = vpack.c.b16 %v5595, %v5563
        %v5948 = vpack.c.b16 %v5596, %v5564
        %v5949 = vpack.c.b16 %v5597, %v5565
        %v5950 = vpack.c.b16 %v5598, %v5566
        %v5951 = vpack.c.b16 %v5599, %v5567
        %v5952 = vpack.c.b16 %v5600, %v5568
        %v5953 = vpack.c.b16 %v5601, %v5569
        %v5954 = vpack.c.b16 %v5602, %v5570
        %v5955 = vpack.c.b16 %v5603, %v5571
        %v5956 = vpack.c.b16 %v5604, %v5572
        %v5957 = vpack.c.b16 %v5605, %v5573
        %v5958 = vpack.c.b16 %v5606, %v5574
        %v5959 = vpack.c.b16 %v5607, %v5575
        %v5960 = vpack.c.b16 %v5608, %v5576
        %v5961 = vpack.c.b16 %v5609, %v5577
        %v5962 = vpack.c.b16 %v5610, %v5578
        %v5963 = vpack.c.b16 %v5643, %v5611
        %v5964 = vpack.c.b16 %v5644, %v5612
        %v5965 = vpack.c.b16 %v5645, %v5613
        %v5966 = vpack.c.b16 %v5646, %v5614
        %v5967 = vpack.c.b16 %v5647, %v5615
        %v5968 = vpack.c.b16 %v5648, %v5616
        %v5969 = vpack.c.b16 %v5649, %v5617
        %v5970 = vpack.c.b16 %v5650, %v5618
        %v5971 = vpack.c.b16 %v5651, %v5619
        %v5972 = vpack.c.b16 %v5652, %v5620
        %v5973 = vpack.c.b16 %v5653, %v5621
        %v5974 = vpack.c.b16 %v5654, %v5622
        %v5975 = vpack.c.b16 %v5655, %v5623
        %v5976 = vpack.c.b16 %v5656, %v5624
        %v5977 = vpack.c.b16 %v5657, %v5625
        %v5978 = vpack.c.b16 %v5658, %v5626
        %v5979 = vpack.c.b16 %v5659, %v5627
        %v5980 = vpack.c.b16 %v5660, %v5628
        %v5981 = vpack.c.b16 %v5661, %v5629
        %v5982 = vpack.c.b16 %v5662, %v5630
        %v5983 = vpack.c.b16 %v5663, %v5631
        %v5984 = vpack.c.b16 %v5664, %v5632
        %v5985 = vpack.c.b16 %v5665, %v5633
        %v5986 = vpack.c.b16 %v5666, %v5634
        %v5987 = vpack.c.b16 %v5667, %v5635
        %v5988 = vpack.c.b16 %v5668, %v5636
        %v5989 = vpack.c.b16 %v5669, %v5637
        %v5990 = vpack.c.b16 %v5670, %v5638
        %v5991 = vpack.c.b16 %v5671, %v5639
        %v5992 = vpack.c.b16 %v5672, %v5640
        %v5993 = vpack.c.b16 %v5673, %v5641
        %v5994 = vpack.c.b16 %v5674, %v5642
        %v5995 = vpack.c.b16 %v5707, %v5675
        %v5996 = vpack.c.b16 %v5708, %v5676
        %v5997 = vpack.c.b16 %v5709, %v5677
        %v5998 = vpack.c.b16 %v5710, %v5678
        %v5999 = vpack.c.b16 %v5711, %v5679
        %v6000 = vpack.c.b16 %v5712, %v5680
        %v6001 = vpack.c.b16 %v5713, %v5681
        %v6002 = vpack.c.b16 %v5714, %v5682
        %v6003 = vpack.c.b16 %v5715, %v5683
        %v6004 = vpack.c.b16 %v5716, %v5684
        %v6005 = vpack.c.b16 %v5717, %v5685
        %v6006 = vpack.c.b16 %v5718, %v5686
        %v6007 = vpack.c.b16 %v5719, %v5687
        %v6008 = vpack.c.b16 %v5720, %v5688
        %v6009 = vpack.c.b16 %v5721, %v5689
        %v6010 = vpack.c.b16 %v5722, %v5690
        %v6011 = vpack.c.b16 %v5723, %v5691
        %v6012 = vpack.c.b16 %v5724, %v5692
        %v6013 = vpack.c.b16 %v5725, %v5693
        %v6014 = vpack.c.b16 %v5726, %v5694
        %v6015 = vpack.c.b16 %v5727, %v5695
        %v6016 = vpack.c.b16 %v5728, %v5696
        %v6017 = vpack.c.b16 %v5729, %v5697
        %v6018 = vpack.c.b16 %v5730, %v5698
        %v6019 = vpack.c.b16 %v5731, %v5699
        %v6020 = vpack.c.b16 %v5732, %v5700
        %v6021 = vpack.c.b16 %v5733, %v5701
        %v6022 = vpack.c.b16 %v5734, %v5702
        %v6023 = vpack.c.b16 %v5735, %v5703
        %v6024 = vpack.c.b16 %v5736, %v5704
        %v6025 = vpack.c.b16 %v5737, %v5705
        %v6026 = vpack.c.b16 %v5738, %v5706
        %v6027 = vpack.c.b16 %v5771, %v5739
        %v6028 = vpack.c.b16 %v5772, %v5740
        %v6029 = vpack.c.b16 %v5773, %v5741
        %v6030 = vpack.c.b16 %v5774, %v5742
        %v6031 = vpack.c.b16 %v5775, %v5743
        %v6032 = vpack.c.b16 %v5776, %v5744
        %v6033 = vpack.c.b16 %v5777, %v5745
        %v6034 = vpack.c.b16 %v5778, %v5746
        %v6035 = vpack.c.b16 %v5779, %v5747
        %v6036 = vpack.c.b16 %v5780, %v5748
        %v6037 = vpack.c.b16 %v5781, %v5749
        %v6038 = vpack.c.b16 %v5782, %v5750
        %v6039 = vpack.c.b16 %v5783, %v5751
        %v6040 = vpack.c.b16 %v5784, %v5752
        %v6041 = vpack.c.b16 %v5785, %v5753
        %v6042 = vpack.c.b16 %v5786, %v5754
        %v6043 = vpack.c.b16 %v5787, %v5755
        %v6044 = vpack.c.b16 %v5788, %v5756
        %v6045 = vpack.c.b16 %v5789, %v5757
        %v6046 = vpack.c.b16 %v5790, %v5758
        %v6047 = vpack.c.b16 %v5791, %v5759
        %v6048 = vpack.c.b16 %v5792, %v5760
        %v6049 = vpack.c.b16 %v5793, %v5761
        %v6050 = vpack.c.b16 %v5794, %v5762
        %v6051 = vpack.c.b16 %v5795, %v5763
        %v6052 = vpack.c.b16 %v5796, %v5764
        %v6053 = vpack.c.b16 %v5797, %v5765
        %v6054 = vpack.c.b16 %v5798, %v5766
        %v6055 = vpack.c.b16 %v5799, %v5767
        %v6056 = vpack.c.b16 %v5800, %v5768
        %v6057 = vpack.c.b16 %v5801, %v5769
        %v6058 = vpack.c.b16 %v5802, %v5770
        %6315 = vmatprep.subr.bf16.mxu0 %v6028
        %6316 = vmatpush1.bf16.msra.mxu0 %v6027
        %6317 = vmatprep.subr.bf16.mxu0 %v5996
        %6318 = vmatpush1.bf16.msra.mxu0 %v5995
        %6319 = vmatprep.subr.bf16.mxu0 %v5964
        %6320 = vmatpush1.bf16.msra.mxu0 %v5963
        %6321 = vmatprep.subr.bf16.mxu0 %v5932
        %6322 = vmatpush1.bf16.msra.mxu0 %v5931
        %6323 = vmatprep.subr.bf16.mxu0 %v5900
        %6324 = vmatpush1.bf16.msra.mxu0 %v5899
        %6325 = vmatprep.subr.bf16.mxu0 %v5868
        %6326 = vmatpush1.bf16.msra.mxu0 %v5867
        %6327 = vmatprep.subr.bf16.mxu0 %v5836
        %6328 = vmatpush1.bf16.msra.mxu0 %v5835
        %6329 = vmatprep.subr.bf16.mxu0 %v5804
        %6330 = vmatpush1.bf16.msra.mxu0 %v5803
        %6331 = vmatprep.subr.bf16.mxu0 0
        %6332 = vmatpush2.bf16.msra.mxu0 0
        %6333 = vmatprep.subr.bf16.mxu0 0
        %6334 = vmatpush2.bf16.msra.mxu0 0
        %6335 = vmatprep.subr.bf16.mxu0 0
        %6336 = vmatpush2.bf16.msra.mxu0 0
        %6337 = vmatprep.subr.bf16.mxu0 0
        %6338 = vmatpush2.bf16.msra.mxu0 0
        %6339 = vmatprep.subr.bf16.mxu0 0
        %6340 = vmatpush2.bf16.msra.mxu0 0
        %6341 = vmatprep.subr.bf16.mxu0 0
        %6342 = vmatpush2.bf16.msra.mxu0 0
        %6343 = vmatprep.subr.bf16.mxu0 0
        %6344 = vmatpush2.bf16.msra.mxu0 0
        %6345 = vmatprep.subr.bf16.mxu0 0
        %6346 = vmatpush2.bf16.msra.mxu0 0
        %6347 = vmatprep.mubr.bf16.mxu0 0
        %6348 = vmatmul.mubr.bf16.gmra.mxu0 %v345
        %v6349 = vpop.f32.mrf.mxu0
        %v6350 = vadd.f32 0.0, %v6349
        %v6351 = vpop.f32.mrf.mxu0
        %v6352 = vadd.f32 0.0, %v6351
        %v6353 = vpop.f32.mrf.mxu0
        %v6354 = vadd.f32 0.0, %v6353
        %v6355 = vpop.f32.mrf.mxu0
        %v6356 = vadd.f32 0.0, %v6355
        %6357 = vmatprep.mubr.bf16.mxu0 0
        %6358 = vmatmul.mubr.bf16.gmra.mxu0 %v346
        %v6359 = vpop.f32.mrf.mxu0
        %v6360 = vadd.f32 0.0, %v6359
        %v6361 = vpop.f32.mrf.mxu0
        %v6362 = vadd.f32 0.0, %v6361
        %v6363 = vpop.f32.mrf.mxu0
        %v6364 = vadd.f32 0.0, %v6363
        %v6365 = vpop.f32.mrf.mxu0
        %v6366 = vadd.f32 0.0, %v6365
        %6367 = vmatprep.mubr.bf16.mxu0 0
        %6368 = vmatmul.mubr.bf16.gmra.mxu0 %v347
        %v6369 = vpop.f32.mrf.mxu0
        %v6370 = vadd.f32 0.0, %v6369
        %v6371 = vpop.f32.mrf.mxu0
        %v6372 = vadd.f32 0.0, %v6371
        %v6373 = vpop.f32.mrf.mxu0
        %v6374 = vadd.f32 0.0, %v6373
        %v6375 = vpop.f32.mrf.mxu0
        %v6376 = vadd.f32 0.0, %v6375
        %6377 = vmatprep.mubr.bf16.mxu0 0
        %6378 = vmatmul.mubr.bf16.gmra.mxu0 %v348
        %v6379 = vpop.f32.mrf.mxu0
        %v6380 = vadd.f32 0.0, %v6379
        %v6381 = vpop.f32.mrf.mxu0
        %v6382 = vadd.f32 0.0, %v6381
        %v6383 = vpop.f32.mrf.mxu0
        %v6384 = vadd.f32 0.0, %v6383
        %v6385 = vpop.f32.mrf.mxu0
        %v6386 = vadd.f32 0.0, %v6385
        %6387 = vmatprep.mubr.bf16.mxu0 0
        %6388 = vmatmul.mubr.bf16.gmra.mxu0 %v349
        %v6389 = vpop.f32.mrf.mxu0
        %v6390 = vadd.f32 0.0, %v6389
        %v6391 = vpop.f32.mrf.mxu0
        %v6392 = vadd.f32 0.0, %v6391
        %v6393 = vpop.f32.mrf.mxu0
        %v6394 = vadd.f32 0.0, %v6393
        %v6395 = vpop.f32.mrf.mxu0
        %v6396 = vadd.f32 0.0, %v6395
        %6397 = vmatprep.mubr.bf16.mxu0 0
        %6398 = vmatmul.mubr.bf16.gmra.mxu0 %v350
        %v6399 = vpop.f32.mrf.mxu0
        %v6400 = vadd.f32 0.0, %v6399
        %v6401 = vpop.f32.mrf.mxu0
        %v6402 = vadd.f32 0.0, %v6401
        %v6403 = vpop.f32.mrf.mxu0
        %v6404 = vadd.f32 0.0, %v6403
        %v6405 = vpop.f32.mrf.mxu0
        %v6406 = vadd.f32 0.0, %v6405
        %6407 = vmatprep.mubr.bf16.mxu0 0
        %6408 = vmatmul.mubr.bf16.gmra.mxu0 %v351
        %v6409 = vpop.f32.mrf.mxu0
        %v6410 = vadd.f32 0.0, %v6409
        %v6411 = vpop.f32.mrf.mxu0
        %v6412 = vadd.f32 0.0, %v6411
        %v6413 = vpop.f32.mrf.mxu0
        %v6414 = vadd.f32 0.0, %v6413
        %v6415 = vpop.f32.mrf.mxu0
        %v6416 = vadd.f32 0.0, %v6415
        %6417 = vmatprep.mubr.bf16.mxu0 0
        %6418 = vmatmul.mubr.bf16.gmra.mxu0 %v352
        %v6419 = vpop.f32.mrf.mxu0
        %v6420 = vadd.f32 0.0, %v6419
        %v6421 = vpop.f32.mrf.mxu0
        %v6422 = vadd.f32 0.0, %v6421
        %v6423 = vpop.f32.mrf.mxu0
        %v6424 = vadd.f32 0.0, %v6423
        %v6425 = vpop.f32.mrf.mxu0
        %v6426 = vadd.f32 0.0, %v6425
        %6427 = vdwg.mxu0
        %6428 = vmatprep.subr.bf16.mxu0 %v6030
        %6429 = vmatpush1.bf16.msra.mxu0 %v6029
        %6430 = vmatprep.subr.bf16.mxu0 %v5998
        %6431 = vmatpush1.bf16.msra.mxu0 %v5997
        %6432 = vmatprep.subr.bf16.mxu0 %v5966
        %6433 = vmatpush1.bf16.msra.mxu0 %v5965
        %6434 = vmatprep.subr.bf16.mxu0 %v5934
        %6435 = vmatpush1.bf16.msra.mxu0 %v5933
        %6436 = vmatprep.subr.bf16.mxu0 %v5902
        %6437 = vmatpush1.bf16.msra.mxu0 %v5901
        %6438 = vmatprep.subr.bf16.mxu0 %v5870
        %6439 = vmatpush1.bf16.msra.mxu0 %v5869
        %6440 = vmatprep.subr.bf16.mxu0 %v5838
        %6441 = vmatpush1.bf16.msra.mxu0 %v5837
        %6442 = vmatprep.subr.bf16.mxu0 %v5806
        %6443 = vmatpush1.bf16.msra.mxu0 %v5805
        %6444 = vmatprep.subr.bf16.mxu0 0
        %6445 = vmatpush2.bf16.msra.mxu0 0
        %6446 = vmatprep.subr.bf16.mxu0 0
        %6447 = vmatpush2.bf16.msra.mxu0 0
        %6448 = vmatprep.subr.bf16.mxu0 0
        %6449 = vmatpush2.bf16.msra.mxu0 0
        %6450 = vmatprep.subr.bf16.mxu0 0
        %6451 = vmatpush2.bf16.msra.mxu0 0
        %6452 = vmatprep.subr.bf16.mxu0 0
        %6453 = vmatpush2.bf16.msra.mxu0 0
        %6454 = vmatprep.subr.bf16.mxu0 0
        %6455 = vmatpush2.bf16.msra.mxu0 0
        %6456 = vmatprep.subr.bf16.mxu0 0
        %6457 = vmatpush2.bf16.msra.mxu0 0
        %6458 = vmatprep.subr.bf16.mxu0 0
        %6459 = vmatpush2.bf16.msra.mxu0 0
        %6460 = vmatprep.mubr.bf16.mxu0 0
        %6461 = vmatmul.mubr.bf16.gmra.mxu0 %v345
        %v6462 = vpop.f32.mrf.mxu0
        %v6463 = vadd.f32 0.0, %v6462
        %v6464 = vpop.f32.mrf.mxu0
        %v6465 = vadd.f32 0.0, %v6464
        %v6466 = vpop.f32.mrf.mxu0
        %v6467 = vadd.f32 0.0, %v6466
        %v6468 = vpop.f32.mrf.mxu0
        %v6469 = vadd.f32 0.0, %v6468
        %6470 = vmatprep.mubr.bf16.mxu0 0
        %6471 = vmatmul.mubr.bf16.gmra.mxu0 %v346
        %v6472 = vpop.f32.mrf.mxu0
        %v6473 = vadd.f32 0.0, %v6472
        %v6474 = vpop.f32.mrf.mxu0
        %v6475 = vadd.f32 0.0, %v6474
        %v6476 = vpop.f32.mrf.mxu0
        %v6477 = vadd.f32 0.0, %v6476
        %v6478 = vpop.f32.mrf.mxu0
        %v6479 = vadd.f32 0.0, %v6478
        %6480 = vmatprep.mubr.bf16.mxu0 0
        %6481 = vmatmul.mubr.bf16.gmra.mxu0 %v347
        %v6482 = vpop.f32.mrf.mxu0
        %v6483 = vadd.f32 0.0, %v6482
        %v6484 = vpop.f32.mrf.mxu0
        %v6485 = vadd.f32 0.0, %v6484
        %v6486 = vpop.f32.mrf.mxu0
        %v6487 = vadd.f32 0.0, %v6486
        %v6488 = vpop.f32.mrf.mxu0
        %v6489 = vadd.f32 0.0, %v6488
        %6490 = vmatprep.mubr.bf16.mxu0 0
        %6491 = vmatmul.mubr.bf16.gmra.mxu0 %v348
        %v6492 = vpop.f32.mrf.mxu0
        %v6493 = vadd.f32 0.0, %v6492
        %v6494 = vpop.f32.mrf.mxu0
        %v6495 = vadd.f32 0.0, %v6494
        %v6496 = vpop.f32.mrf.mxu0
        %v6497 = vadd.f32 0.0, %v6496
        %v6498 = vpop.f32.mrf.mxu0
        %v6499 = vadd.f32 0.0, %v6498
        %6500 = vmatprep.mubr.bf16.mxu0 0
        %6501 = vmatmul.mubr.bf16.gmra.mxu0 %v349
        %v6502 = vpop.f32.mrf.mxu0
        %v6503 = vadd.f32 0.0, %v6502
        %v6504 = vpop.f32.mrf.mxu0
        %v6505 = vadd.f32 0.0, %v6504
        %v6506 = vpop.f32.mrf.mxu0
        %v6507 = vadd.f32 0.0, %v6506
        %v6508 = vpop.f32.mrf.mxu0
        %v6509 = vadd.f32 0.0, %v6508
        %6510 = vmatprep.mubr.bf16.mxu0 0
        %6511 = vmatmul.mubr.bf16.gmra.mxu0 %v350
        %v6512 = vpop.f32.mrf.mxu0
        %v6513 = vadd.f32 0.0, %v6512
        %v6514 = vpop.f32.mrf.mxu0
        %v6515 = vadd.f32 0.0, %v6514
        %v6516 = vpop.f32.mrf.mxu0
        %v6517 = vadd.f32 0.0, %v6516
        %v6518 = vpop.f32.mrf.mxu0
        %v6519 = vadd.f32 0.0, %v6518
        %6520 = vmatprep.mubr.bf16.mxu0 0
        %6521 = vmatmul.mubr.bf16.gmra.mxu0 %v351
        %v6522 = vpop.f32.mrf.mxu0
        %v6523 = vadd.f32 0.0, %v6522
        %v6524 = vpop.f32.mrf.mxu0
        %v6525 = vadd.f32 0.0, %v6524
        %v6526 = vpop.f32.mrf.mxu0
        %v6527 = vadd.f32 0.0, %v6526
        %v6528 = vpop.f32.mrf.mxu0
        %v6529 = vadd.f32 0.0, %v6528
        %6530 = vmatprep.mubr.bf16.mxu0 0
        %6531 = vmatmul.mubr.bf16.gmra.mxu0 %v352
        %v6532 = vpop.f32.mrf.mxu0
        %v6533 = vadd.f32 0.0, %v6532
        %v6534 = vpop.f32.mrf.mxu0
        %v6535 = vadd.f32 0.0, %v6534
        %v6536 = vpop.f32.mrf.mxu0
        %v6537 = vadd.f32 0.0, %v6536
        %v6538 = vpop.f32.mrf.mxu0
        %v6539 = vadd.f32 0.0, %v6538
        %6540 = vdwg.mxu0
        %6541 = vmatprep.subr.bf16.mxu0 %v6032
        %6542 = vmatpush1.bf16.msra.mxu0 %v6031
        %6543 = vmatprep.subr.bf16.mxu0 %v6000
        %6544 = vmatpush1.bf16.msra.mxu0 %v5999
        %6545 = vmatprep.subr.bf16.mxu0 %v5968
        %6546 = vmatpush1.bf16.msra.mxu0 %v5967
        %6547 = vmatprep.subr.bf16.mxu0 %v5936
        %6548 = vmatpush1.bf16.msra.mxu0 %v5935
        %6549 = vmatprep.subr.bf16.mxu0 %v5904
        %6550 = vmatpush1.bf16.msra.mxu0 %v5903
        %6551 = vmatprep.subr.bf16.mxu0 %v5872
        %6552 = vmatpush1.bf16.msra.mxu0 %v5871
        %6553 = vmatprep.subr.bf16.mxu0 %v5840
        %6554 = vmatpush1.bf16.msra.mxu0 %v5839
        %6555 = vmatprep.subr.bf16.mxu0 %v5808
        %6556 = vmatpush1.bf16.msra.mxu0 %v5807
        %6557 = vmatprep.subr.bf16.mxu0 0
        %6558 = vmatpush2.bf16.msra.mxu0 0
        %6559 = vmatprep.subr.bf16.mxu0 0
        %6560 = vmatpush2.bf16.msra.mxu0 0
        %6561 = vmatprep.subr.bf16.mxu0 0
        %6562 = vmatpush2.bf16.msra.mxu0 0
        %6563 = vmatprep.subr.bf16.mxu0 0
        %6564 = vmatpush2.bf16.msra.mxu0 0
        %6565 = vmatprep.subr.bf16.mxu0 0
        %6566 = vmatpush2.bf16.msra.mxu0 0
        %6567 = vmatprep.subr.bf16.mxu0 0
        %6568 = vmatpush2.bf16.msra.mxu0 0
        %6569 = vmatprep.subr.bf16.mxu0 0
        %6570 = vmatpush2.bf16.msra.mxu0 0
        %6571 = vmatprep.subr.bf16.mxu0 0
        %6572 = vmatpush2.bf16.msra.mxu0 0
        %6573 = vmatprep.mubr.bf16.mxu0 0
        %6574 = vmatmul.mubr.bf16.gmra.mxu0 %v345
        %v6575 = vpop.f32.mrf.mxu0
        %v6576 = vadd.f32 0.0, %v6575
        %v6577 = vpop.f32.mrf.mxu0
        %v6578 = vadd.f32 0.0, %v6577
        %v6579 = vpop.f32.mrf.mxu0
        %v6580 = vadd.f32 0.0, %v6579
        %v6581 = vpop.f32.mrf.mxu0
        %v6582 = vadd.f32 0.0, %v6581
        %6583 = vmatprep.mubr.bf16.mxu0 0
        %6584 = vmatmul.mubr.bf16.gmra.mxu0 %v346
        %v6585 = vpop.f32.mrf.mxu0
        %v6586 = vadd.f32 0.0, %v6585
        %v6587 = vpop.f32.mrf.mxu0
        %v6588 = vadd.f32 0.0, %v6587
        %v6589 = vpop.f32.mrf.mxu0
        %v6590 = vadd.f32 0.0, %v6589
        %v6591 = vpop.f32.mrf.mxu0
        %v6592 = vadd.f32 0.0, %v6591
        %6593 = vmatprep.mubr.bf16.mxu0 0
        %6594 = vmatmul.mubr.bf16.gmra.mxu0 %v347
        %v6595 = vpop.f32.mrf.mxu0
        %v6596 = vadd.f32 0.0, %v6595
        %v6597 = vpop.f32.mrf.mxu0
        %v6598 = vadd.f32 0.0, %v6597
        %v6599 = vpop.f32.mrf.mxu0
        %v6600 = vadd.f32 0.0, %v6599
        %v6601 = vpop.f32.mrf.mxu0
        %v6602 = vadd.f32 0.0, %v6601
        %6603 = vmatprep.mubr.bf16.mxu0 0
        %6604 = vmatmul.mubr.bf16.gmra.mxu0 %v348
        %v6605 = vpop.f32.mrf.mxu0
        %v6606 = vadd.f32 0.0, %v6605
        %v6607 = vpop.f32.mrf.mxu0
        %v6608 = vadd.f32 0.0, %v6607
        %v6609 = vpop.f32.mrf.mxu0
        %v6610 = vadd.f32 0.0, %v6609
        %v6611 = vpop.f32.mrf.mxu0
        %v6612 = vadd.f32 0.0, %v6611
        %6613 = vmatprep.mubr.bf16.mxu0 0
        %6614 = vmatmul.mubr.bf16.gmra.mxu0 %v349
        %v6615 = vpop.f32.mrf.mxu0
        %v6616 = vadd.f32 0.0, %v6615
        %v6617 = vpop.f32.mrf.mxu0
        %v6618 = vadd.f32 0.0, %v6617
        %v6619 = vpop.f32.mrf.mxu0
        %v6620 = vadd.f32 0.0, %v6619
        %v6621 = vpop.f32.mrf.mxu0
        %v6622 = vadd.f32 0.0, %v6621
        %6623 = vmatprep.mubr.bf16.mxu0 0
        %6624 = vmatmul.mubr.bf16.gmra.mxu0 %v350
        %v6625 = vpop.f32.mrf.mxu0
        %v6626 = vadd.f32 0.0, %v6625
        %v6627 = vpop.f32.mrf.mxu0
        %v6628 = vadd.f32 0.0, %v6627
        %v6629 = vpop.f32.mrf.mxu0
        %v6630 = vadd.f32 0.0, %v6629
        %v6631 = vpop.f32.mrf.mxu0
        %v6632 = vadd.f32 0.0, %v6631
        %6633 = vmatprep.mubr.bf16.mxu0 0
        %6634 = vmatmul.mubr.bf16.gmra.mxu0 %v351
        %v6635 = vpop.f32.mrf.mxu0
        %v6636 = vadd.f32 0.0, %v6635
        %v6637 = vpop.f32.mrf.mxu0
        %v6638 = vadd.f32 0.0, %v6637
        %v6639 = vpop.f32.mrf.mxu0
        %v6640 = vadd.f32 0.0, %v6639
        %v6641 = vpop.f32.mrf.mxu0
        %v6642 = vadd.f32 0.0, %v6641
        %6643 = vmatprep.mubr.bf16.mxu0 0
        %6644 = vmatmul.mubr.bf16.gmra.mxu0 %v352
        %v6645 = vpop.f32.mrf.mxu0
        %v6646 = vadd.f32 0.0, %v6645
        %v6647 = vpop.f32.mrf.mxu0
        %v6648 = vadd.f32 0.0, %v6647
        %v6649 = vpop.f32.mrf.mxu0
        %v6650 = vadd.f32 0.0, %v6649
        %v6651 = vpop.f32.mrf.mxu0
        %v6652 = vadd.f32 0.0, %v6651
        %6653 = vdwg.mxu0
        %6654 = vmatprep.subr.bf16.mxu0 %v6034
        %6655 = vmatpush1.bf16.msra.mxu0 %v6033
        %6656 = vmatprep.subr.bf16.mxu0 %v6002
        %6657 = vmatpush1.bf16.msra.mxu0 %v6001
        %6658 = vmatprep.subr.bf16.mxu0 %v5970
        %6659 = vmatpush1.bf16.msra.mxu0 %v5969
        %6660 = vmatprep.subr.bf16.mxu0 %v5938
        %6661 = vmatpush1.bf16.msra.mxu0 %v5937
        %6662 = vmatprep.subr.bf16.mxu0 %v5906
        %6663 = vmatpush1.bf16.msra.mxu0 %v5905
        %6664 = vmatprep.subr.bf16.mxu0 %v5874
        %6665 = vmatpush1.bf16.msra.mxu0 %v5873
        %6666 = vmatprep.subr.bf16.mxu0 %v5842
        %6667 = vmatpush1.bf16.msra.mxu0 %v5841
        %6668 = vmatprep.subr.bf16.mxu0 %v5810
        %6669 = vmatpush1.bf16.msra.mxu0 %v5809
        %6670 = vmatprep.subr.bf16.mxu0 0
        %6671 = vmatpush2.bf16.msra.mxu0 0
        %6672 = vmatprep.subr.bf16.mxu0 0
        %6673 = vmatpush2.bf16.msra.mxu0 0
        %6674 = vmatprep.subr.bf16.mxu0 0
        %6675 = vmatpush2.bf16.msra.mxu0 0
        %6676 = vmatprep.subr.bf16.mxu0 0
        %6677 = vmatpush2.bf16.msra.mxu0 0
        %6678 = vmatprep.subr.bf16.mxu0 0
        %6679 = vmatpush2.bf16.msra.mxu0 0
        %6680 = vmatprep.subr.bf16.mxu0 0
        %6681 = vmatpush2.bf16.msra.mxu0 0
        %6682 = vmatprep.subr.bf16.mxu0 0
        %6683 = vmatpush2.bf16.msra.mxu0 0
        %6684 = vmatprep.subr.bf16.mxu0 0
        %6685 = vmatpush2.bf16.msra.mxu0 0
        %6686 = vmatprep.mubr.bf16.mxu0 0
        %6687 = vmatmul.mubr.bf16.gmra.mxu0 %v345
        %v6688 = vpop.f32.mrf.mxu0
        %v6689 = vadd.f32 0.0, %v6688
        %v6690 = vpop.f32.mrf.mxu0
        %v6691 = vadd.f32 0.0, %v6690
        %v6692 = vpop.f32.mrf.mxu0
        %v6693 = vadd.f32 0.0, %v6692
        %v6694 = vpop.f32.mrf.mxu0
        %v6695 = vadd.f32 0.0, %v6694
        %6696 = vmatprep.mubr.bf16.mxu0 0
        %6697 = vmatmul.mubr.bf16.gmra.mxu0 %v346
        %v6698 = vpop.f32.mrf.mxu0
        %v6699 = vadd.f32 0.0, %v6698
        %v6700 = vpop.f32.mrf.mxu0
        %v6701 = vadd.f32 0.0, %v6700
        %v6702 = vpop.f32.mrf.mxu0
        %v6703 = vadd.f32 0.0, %v6702
        %v6704 = vpop.f32.mrf.mxu0
        %v6705 = vadd.f32 0.0, %v6704
        %6706 = vmatprep.mubr.bf16.mxu0 0
        %6707 = vmatmul.mubr.bf16.gmra.mxu0 %v347
        %v6708 = vpop.f32.mrf.mxu0
        %v6709 = vadd.f32 0.0, %v6708
        %v6710 = vpop.f32.mrf.mxu0
        %v6711 = vadd.f32 0.0, %v6710
        %v6712 = vpop.f32.mrf.mxu0
        %v6713 = vadd.f32 0.0, %v6712
        %v6714 = vpop.f32.mrf.mxu0
        %v6715 = vadd.f32 0.0, %v6714
        %6716 = vmatprep.mubr.bf16.mxu0 0
        %6717 = vmatmul.mubr.bf16.gmra.mxu0 %v348
        %v6718 = vpop.f32.mrf.mxu0
        %v6719 = vadd.f32 0.0, %v6718
        %v6720 = vpop.f32.mrf.mxu0
        %v6721 = vadd.f32 0.0, %v6720
        %v6722 = vpop.f32.mrf.mxu0
        %v6723 = vadd.f32 0.0, %v6722
        %v6724 = vpop.f32.mrf.mxu0
        %v6725 = vadd.f32 0.0, %v6724
        %6726 = vmatprep.mubr.bf16.mxu0 0
        %6727 = vmatmul.mubr.bf16.gmra.mxu0 %v349
        %v6728 = vpop.f32.mrf.mxu0
        %v6729 = vadd.f32 0.0, %v6728
        %v6730 = vpop.f32.mrf.mxu0
        %v6731 = vadd.f32 0.0, %v6730
        %v6732 = vpop.f32.mrf.mxu0
        %v6733 = vadd.f32 0.0, %v6732
        %v6734 = vpop.f32.mrf.mxu0
        %v6735 = vadd.f32 0.0, %v6734
        %6736 = vmatprep.mubr.bf16.mxu0 0
        %6737 = vmatmul.mubr.bf16.gmra.mxu0 %v350
        %v6738 = vpop.f32.mrf.mxu0
        %v6739 = vadd.f32 0.0, %v6738
        %v6740 = vpop.f32.mrf.mxu0
        %v6741 = vadd.f32 0.0, %v6740
        %v6742 = vpop.f32.mrf.mxu0
        %v6743 = vadd.f32 0.0, %v6742
        %v6744 = vpop.f32.mrf.mxu0
        %v6745 = vadd.f32 0.0, %v6744
        %6746 = vmatprep.mubr.bf16.mxu0 0
        %6747 = vmatmul.mubr.bf16.gmra.mxu0 %v351
        %v6748 = vpop.f32.mrf.mxu0
        %v6749 = vadd.f32 0.0, %v6748
        %v6750 = vpop.f32.mrf.mxu0
        %v6751 = vadd.f32 0.0, %v6750
        %v6752 = vpop.f32.mrf.mxu0
        %v6753 = vadd.f32 0.0, %v6752
        %v6754 = vpop.f32.mrf.mxu0
        %v6755 = vadd.f32 0.0, %v6754
        %6756 = vmatprep.mubr.bf16.mxu0 0
        %6757 = vmatmul.mubr.bf16.gmra.mxu0 %v352
        %v6758 = vpop.f32.mrf.mxu0
        %v6759 = vadd.f32 0.0, %v6758
        %v6760 = vpop.f32.mrf.mxu0
        %v6761 = vadd.f32 0.0, %v6760
        %v6762 = vpop.f32.mrf.mxu0
        %v6763 = vadd.f32 0.0, %v6762
        %v6764 = vpop.f32.mrf.mxu0
        %v6765 = vadd.f32 0.0, %v6764
        %6766 = vdwg.mxu0
        %6767 = vmatprep.subr.bf16.mxu0 %v6036
        %6768 = vmatpush1.bf16.msra.mxu0 %v6035
        %6769 = vmatprep.subr.bf16.mxu0 %v6004
        %6770 = vmatpush1.bf16.msra.mxu0 %v6003
        %6771 = vmatprep.subr.bf16.mxu0 %v5972
        %6772 = vmatpush1.bf16.msra.mxu0 %v5971
        %6773 = vmatprep.subr.bf16.mxu0 %v5940
        %6774 = vmatpush1.bf16.msra.mxu0 %v5939
        %6775 = vmatprep.subr.bf16.mxu0 %v5908
        %6776 = vmatpush1.bf16.msra.mxu0 %v5907
        %6777 = vmatprep.subr.bf16.mxu0 %v5876
        %6778 = vmatpush1.bf16.msra.mxu0 %v5875
        %6779 = vmatprep.subr.bf16.mxu0 %v5844
        %6780 = vmatpush1.bf16.msra.mxu0 %v5843
        %6781 = vmatprep.subr.bf16.mxu0 %v5812
        %6782 = vmatpush1.bf16.msra.mxu0 %v5811
        %6783 = vmatprep.subr.bf16.mxu0 0
        %6784 = vmatpush2.bf16.msra.mxu0 0
        %6785 = vmatprep.subr.bf16.mxu0 0
        %6786 = vmatpush2.bf16.msra.mxu0 0
        %6787 = vmatprep.subr.bf16.mxu0 0
        %6788 = vmatpush2.bf16.msra.mxu0 0
        %6789 = vmatprep.subr.bf16.mxu0 0
        %6790 = vmatpush2.bf16.msra.mxu0 0
        %6791 = vmatprep.subr.bf16.mxu0 0
        %6792 = vmatpush2.bf16.msra.mxu0 0
        %6793 = vmatprep.subr.bf16.mxu0 0
        %6794 = vmatpush2.bf16.msra.mxu0 0
        %6795 = vmatprep.subr.bf16.mxu0 0
        %6796 = vmatpush2.bf16.msra.mxu0 0
        %6797 = vmatprep.subr.bf16.mxu0 0
        %6798 = vmatpush2.bf16.msra.mxu0 0
        %6799 = vmatprep.mubr.bf16.mxu0 0
        %6800 = vmatmul.mubr.bf16.gmra.mxu0 %v345
        %v6801 = vpop.f32.mrf.mxu0
        %v6802 = vadd.f32 0.0, %v6801
        %v6803 = vpop.f32.mrf.mxu0
        %v6804 = vadd.f32 0.0, %v6803
        %v6805 = vpop.f32.mrf.mxu0
        %v6806 = vadd.f32 0.0, %v6805
        %v6807 = vpop.f32.mrf.mxu0
        %v6808 = vadd.f32 0.0, %v6807
        %6809 = vmatprep.mubr.bf16.mxu0 0
        %6810 = vmatmul.mubr.bf16.gmra.mxu0 %v346
        %v6811 = vpop.f32.mrf.mxu0
        %v6812 = vadd.f32 0.0, %v6811
        %v6813 = vpop.f32.mrf.mxu0
        %v6814 = vadd.f32 0.0, %v6813
        %v6815 = vpop.f32.mrf.mxu0
        %v6816 = vadd.f32 0.0, %v6815
        %v6817 = vpop.f32.mrf.mxu0
        %v6818 = vadd.f32 0.0, %v6817
        %6819 = vmatprep.mubr.bf16.mxu0 0
        %6820 = vmatmul.mubr.bf16.gmra.mxu0 %v347
        %v6821 = vpop.f32.mrf.mxu0
        %v6822 = vadd.f32 0.0, %v6821
        %v6823 = vpop.f32.mrf.mxu0
        %v6824 = vadd.f32 0.0, %v6823
        %v6825 = vpop.f32.mrf.mxu0
        %v6826 = vadd.f32 0.0, %v6825
        %v6827 = vpop.f32.mrf.mxu0
        %v6828 = vadd.f32 0.0, %v6827
        %6829 = vmatprep.mubr.bf16.mxu0 0
        %6830 = vmatmul.mubr.bf16.gmra.mxu0 %v348
        %v6831 = vpop.f32.mrf.mxu0
        %v6832 = vadd.f32 0.0, %v6831
        %v6833 = vpop.f32.mrf.mxu0
        %v6834 = vadd.f32 0.0, %v6833
        %v6835 = vpop.f32.mrf.mxu0
        %v6836 = vadd.f32 0.0, %v6835
        %v6837 = vpop.f32.mrf.mxu0
        %v6838 = vadd.f32 0.0, %v6837
        %6839 = vmatprep.mubr.bf16.mxu0 0
        %6840 = vmatmul.mubr.bf16.gmra.mxu0 %v349
        %v6841 = vpop.f32.mrf.mxu0
        %v6842 = vadd.f32 0.0, %v6841
        %v6843 = vpop.f32.mrf.mxu0
        %v6844 = vadd.f32 0.0, %v6843
        %v6845 = vpop.f32.mrf.mxu0
        %v6846 = vadd.f32 0.0, %v6845
        %v6847 = vpop.f32.mrf.mxu0
        %v6848 = vadd.f32 0.0, %v6847
        %6849 = vmatprep.mubr.bf16.mxu0 0
        %6850 = vmatmul.mubr.bf16.gmra.mxu0 %v350
        %v6851 = vpop.f32.mrf.mxu0
        %v6852 = vadd.f32 0.0, %v6851
        %v6853 = vpop.f32.mrf.mxu0
        %v6854 = vadd.f32 0.0, %v6853
        %v6855 = vpop.f32.mrf.mxu0
        %v6856 = vadd.f32 0.0, %v6855
        %v6857 = vpop.f32.mrf.mxu0
        %v6858 = vadd.f32 0.0, %v6857
        %6859 = vmatprep.mubr.bf16.mxu0 0
        %6860 = vmatmul.mubr.bf16.gmra.mxu0 %v351
        %v6861 = vpop.f32.mrf.mxu0
        %v6862 = vadd.f32 0.0, %v6861
        %v6863 = vpop.f32.mrf.mxu0
        %v6864 = vadd.f32 0.0, %v6863
        %v6865 = vpop.f32.mrf.mxu0
        %v6866 = vadd.f32 0.0, %v6865
        %v6867 = vpop.f32.mrf.mxu0
        %v6868 = vadd.f32 0.0, %v6867
        %6869 = vmatprep.mubr.bf16.mxu0 0
        %6870 = vmatmul.mubr.bf16.gmra.mxu0 %v352
        %v6871 = vpop.f32.mrf.mxu0
        %v6872 = vadd.f32 0.0, %v6871
        %v6873 = vpop.f32.mrf.mxu0
        %v6874 = vadd.f32 0.0, %v6873
        %v6875 = vpop.f32.mrf.mxu0
        %v6876 = vadd.f32 0.0, %v6875
        %v6877 = vpop.f32.mrf.mxu0
        %v6878 = vadd.f32 0.0, %v6877
        %6879 = vdwg.mxu0
        %6880 = vmatprep.subr.bf16.mxu0 %v6038
        %6881 = vmatpush1.bf16.msra.mxu0 %v6037
        %6882 = vmatprep.subr.bf16.mxu0 %v6006
        %6883 = vmatpush1.bf16.msra.mxu0 %v6005
        %6884 = vmatprep.subr.bf16.mxu0 %v5974
        %6885 = vmatpush1.bf16.msra.mxu0 %v5973
        %6886 = vmatprep.subr.bf16.mxu0 %v5942
        %6887 = vmatpush1.bf16.msra.mxu0 %v5941
        %6888 = vmatprep.subr.bf16.mxu0 %v5910
        %6889 = vmatpush1.bf16.msra.mxu0 %v5909
        %6890 = vmatprep.subr.bf16.mxu0 %v5878
        %6891 = vmatpush1.bf16.msra.mxu0 %v5877
        %6892 = vmatprep.subr.bf16.mxu0 %v5846
        %6893 = vmatpush1.bf16.msra.mxu0 %v5845
        %6894 = vmatprep.subr.bf16.mxu0 %v5814
        %6895 = vmatpush1.bf16.msra.mxu0 %v5813
        %6896 = vmatprep.subr.bf16.mxu0 0
        %6897 = vmatpush2.bf16.msra.mxu0 0
        %6898 = vmatprep.subr.bf16.mxu0 0
        %6899 = vmatpush2.bf16.msra.mxu0 0
        %6900 = vmatprep.subr.bf16.mxu0 0
        %6901 = vmatpush2.bf16.msra.mxu0 0
        %6902 = vmatprep.subr.bf16.mxu0 0
        %6903 = vmatpush2.bf16.msra.mxu0 0
        %6904 = vmatprep.subr.bf16.mxu0 0
        %6905 = vmatpush2.bf16.msra.mxu0 0
        %6906 = vmatprep.subr.bf16.mxu0 0
        %6907 = vmatpush2.bf16.msra.mxu0 0
        %6908 = vmatprep.subr.bf16.mxu0 0
        %6909 = vmatpush2.bf16.msra.mxu0 0
        %6910 = vmatprep.subr.bf16.mxu0 0
        %6911 = vmatpush2.bf16.msra.mxu0 0
        %6912 = vmatprep.mubr.bf16.mxu0 0
        %6913 = vmatmul.mubr.bf16.gmra.mxu0 %v345
        %v6914 = vpop.f32.mrf.mxu0
        %v6915 = vadd.f32 0.0, %v6914
        %v6916 = vpop.f32.mrf.mxu0
        %v6917 = vadd.f32 0.0, %v6916
        %v6918 = vpop.f32.mrf.mxu0
        %v6919 = vadd.f32 0.0, %v6918
        %v6920 = vpop.f32.mrf.mxu0
        %v6921 = vadd.f32 0.0, %v6920
        %6922 = vmatprep.mubr.bf16.mxu0 0
        %6923 = vmatmul.mubr.bf16.gmra.mxu0 %v346
        %v6924 = vpop.f32.mrf.mxu0
        %v6925 = vadd.f32 0.0, %v6924
        %v6926 = vpop.f32.mrf.mxu0
        %v6927 = vadd.f32 0.0, %v6926
        %v6928 = vpop.f32.mrf.mxu0
        %v6929 = vadd.f32 0.0, %v6928
        %v6930 = vpop.f32.mrf.mxu0
        %v6931 = vadd.f32 0.0, %v6930
        %6932 = vmatprep.mubr.bf16.mxu0 0
        %6933 = vmatmul.mubr.bf16.gmra.mxu0 %v347
        %v6934 = vpop.f32.mrf.mxu0
        %v6935 = vadd.f32 0.0, %v6934
        %v6936 = vpop.f32.mrf.mxu0
        %v6937 = vadd.f32 0.0, %v6936
        %v6938 = vpop.f32.mrf.mxu0
        %v6939 = vadd.f32 0.0, %v6938
        %v6940 = vpop.f32.mrf.mxu0
        %v6941 = vadd.f32 0.0, %v6940
        %6942 = vmatprep.mubr.bf16.mxu0 0
        %6943 = vmatmul.mubr.bf16.gmra.mxu0 %v348
        %v6944 = vpop.f32.mrf.mxu0
        %v6945 = vadd.f32 0.0, %v6944
        %v6946 = vpop.f32.mrf.mxu0
        %v6947 = vadd.f32 0.0, %v6946
        %v6948 = vpop.f32.mrf.mxu0
        %v6949 = vadd.f32 0.0, %v6948
        %v6950 = vpop.f32.mrf.mxu0
        %v6951 = vadd.f32 0.0, %v6950
        %6952 = vmatprep.mubr.bf16.mxu0 0
        %6953 = vmatmul.mubr.bf16.gmra.mxu0 %v349
        %v6954 = vpop.f32.mrf.mxu0
        %v6955 = vadd.f32 0.0, %v6954
        %v6956 = vpop.f32.mrf.mxu0
        %v6957 = vadd.f32 0.0, %v6956
        %v6958 = vpop.f32.mrf.mxu0
        %v6959 = vadd.f32 0.0, %v6958
        %v6960 = vpop.f32.mrf.mxu0
        %v6961 = vadd.f32 0.0, %v6960
        %6962 = vmatprep.mubr.bf16.mxu0 0
        %6963 = vmatmul.mubr.bf16.gmra.mxu0 %v350
        %v6964 = vpop.f32.mrf.mxu0
        %v6965 = vadd.f32 0.0, %v6964
        %v6966 = vpop.f32.mrf.mxu0
        %v6967 = vadd.f32 0.0, %v6966
        %v6968 = vpop.f32.mrf.mxu0
        %v6969 = vadd.f32 0.0, %v6968
        %v6970 = vpop.f32.mrf.mxu0
        %v6971 = vadd.f32 0.0, %v6970
        %6972 = vmatprep.mubr.bf16.mxu0 0
        %6973 = vmatmul.mubr.bf16.gmra.mxu0 %v351
        %v6974 = vpop.f32.mrf.mxu0
        %v6975 = vadd.f32 0.0, %v6974
        %v6976 = vpop.f32.mrf.mxu0
        %v6977 = vadd.f32 0.0, %v6976
        %v6978 = vpop.f32.mrf.mxu0
        %v6979 = vadd.f32 0.0, %v6978
        %v6980 = vpop.f32.mrf.mxu0
        %v6981 = vadd.f32 0.0, %v6980
        %6982 = vmatprep.mubr.bf16.mxu0 0
        %6983 = vmatmul.mubr.bf16.gmra.mxu0 %v352
        %v6984 = vpop.f32.mrf.mxu0
        %v6985 = vadd.f32 0.0, %v6984
        %v6986 = vpop.f32.mrf.mxu0
        %v6987 = vadd.f32 0.0, %v6986
        %v6988 = vpop.f32.mrf.mxu0
        %v6989 = vadd.f32 0.0, %v6988
        %v6990 = vpop.f32.mrf.mxu0
        %v6991 = vadd.f32 0.0, %v6990
        %6992 = vdwg.mxu0
        %6993 = vmatprep.subr.bf16.mxu0 %v6040
        %6994 = vmatpush1.bf16.msra.mxu0 %v6039
        %6995 = vmatprep.subr.bf16.mxu0 %v6008
        %6996 = vmatpush1.bf16.msra.mxu0 %v6007
        %6997 = vmatprep.subr.bf16.mxu0 %v5976
        %6998 = vmatpush1.bf16.msra.mxu0 %v5975
        %6999 = vmatprep.subr.bf16.mxu0 %v5944
        %7000 = vmatpush1.bf16.msra.mxu0 %v5943
        %7001 = vmatprep.subr.bf16.mxu0 %v5912
        %7002 = vmatpush1.bf16.msra.mxu0 %v5911
        %7003 = vmatprep.subr.bf16.mxu0 %v5880
        %7004 = vmatpush1.bf16.msra.mxu0 %v5879
        %7005 = vmatprep.subr.bf16.mxu0 %v5848
        %7006 = vmatpush1.bf16.msra.mxu0 %v5847
        %7007 = vmatprep.subr.bf16.mxu0 %v5816
        %7008 = vmatpush1.bf16.msra.mxu0 %v5815
        %7009 = vmatprep.subr.bf16.mxu0 0
        %7010 = vmatpush2.bf16.msra.mxu0 0
        %7011 = vmatprep.subr.bf16.mxu0 0
        %7012 = vmatpush2.bf16.msra.mxu0 0
        %7013 = vmatprep.subr.bf16.mxu0 0
        %7014 = vmatpush2.bf16.msra.mxu0 0
        %7015 = vmatprep.subr.bf16.mxu0 0
        %7016 = vmatpush2.bf16.msra.mxu0 0
        %7017 = vmatprep.subr.bf16.mxu0 0
        %7018 = vmatpush2.bf16.msra.mxu0 0
        %7019 = vmatprep.subr.bf16.mxu0 0
        %7020 = vmatpush2.bf16.msra.mxu0 0
        %7021 = vmatprep.subr.bf16.mxu0 0
        %7022 = vmatpush2.bf16.msra.mxu0 0
        %7023 = vmatprep.subr.bf16.mxu0 0
        %7024 = vmatpush2.bf16.msra.mxu0 0
        %7025 = vmatprep.mubr.bf16.mxu0 0
        %7026 = vmatmul.mubr.bf16.gmra.mxu0 %v345
        %v7027 = vpop.f32.mrf.mxu0
        %v7028 = vadd.f32 0.0, %v7027
        %v7029 = vpop.f32.mrf.mxu0
        %v7030 = vadd.f32 0.0, %v7029
        %v7031 = vpop.f32.mrf.mxu0
        %v7032 = vadd.f32 0.0, %v7031
        %v7033 = vpop.f32.mrf.mxu0
        %v7034 = vadd.f32 0.0, %v7033
        %7035 = vmatprep.mubr.bf16.mxu0 0
        %7036 = vmatmul.mubr.bf16.gmra.mxu0 %v346
        %v7037 = vpop.f32.mrf.mxu0
        %v7038 = vadd.f32 0.0, %v7037
        %v7039 = vpop.f32.mrf.mxu0
        %v7040 = vadd.f32 0.0, %v7039
        %v7041 = vpop.f32.mrf.mxu0
        %v7042 = vadd.f32 0.0, %v7041
        %v7043 = vpop.f32.mrf.mxu0
        %v7044 = vadd.f32 0.0, %v7043
        %7045 = vmatprep.mubr.bf16.mxu0 0
        %7046 = vmatmul.mubr.bf16.gmra.mxu0 %v347
        %v7047 = vpop.f32.mrf.mxu0
        %v7048 = vadd.f32 0.0, %v7047
        %v7049 = vpop.f32.mrf.mxu0
        %v7050 = vadd.f32 0.0, %v7049
        %v7051 = vpop.f32.mrf.mxu0
        %v7052 = vadd.f32 0.0, %v7051
        %v7053 = vpop.f32.mrf.mxu0
        %v7054 = vadd.f32 0.0, %v7053
        %7055 = vmatprep.mubr.bf16.mxu0 0
        %7056 = vmatmul.mubr.bf16.gmra.mxu0 %v348
        %v7057 = vpop.f32.mrf.mxu0
        %v7058 = vadd.f32 0.0, %v7057
        %v7059 = vpop.f32.mrf.mxu0
        %v7060 = vadd.f32 0.0, %v7059
        %v7061 = vpop.f32.mrf.mxu0
        %v7062 = vadd.f32 0.0, %v7061
        %v7063 = vpop.f32.mrf.mxu0
        %v7064 = vadd.f32 0.0, %v7063
        %7065 = vmatprep.mubr.bf16.mxu0 0
        %7066 = vmatmul.mubr.bf16.gmra.mxu0 %v349
        %v7067 = vpop.f32.mrf.mxu0
        %v7068 = vadd.f32 0.0, %v7067
        %v7069 = vpop.f32.mrf.mxu0
        %v7070 = vadd.f32 0.0, %v7069
        %v7071 = vpop.f32.mrf.mxu0
        %v7072 = vadd.f32 0.0, %v7071
        %v7073 = vpop.f32.mrf.mxu0
        %v7074 = vadd.f32 0.0, %v7073
        %7075 = vmatprep.mubr.bf16.mxu0 0
        %7076 = vmatmul.mubr.bf16.gmra.mxu0 %v350
        %v7077 = vpop.f32.mrf.mxu0
        %v7078 = vadd.f32 0.0, %v7077
        %v7079 = vpop.f32.mrf.mxu0
        %v7080 = vadd.f32 0.0, %v7079
        %v7081 = vpop.f32.mrf.mxu0
        %v7082 = vadd.f32 0.0, %v7081
        %v7083 = vpop.f32.mrf.mxu0
        %v7084 = vadd.f32 0.0, %v7083
        %7085 = vmatprep.mubr.bf16.mxu0 0
        %7086 = vmatmul.mubr.bf16.gmra.mxu0 %v351
        %v7087 = vpop.f32.mrf.mxu0
        %v7088 = vadd.f32 0.0, %v7087
        %v7089 = vpop.f32.mrf.mxu0
        %v7090 = vadd.f32 0.0, %v7089
        %v7091 = vpop.f32.mrf.mxu0
        %v7092 = vadd.f32 0.0, %v7091
        %v7093 = vpop.f32.mrf.mxu0
        %v7094 = vadd.f32 0.0, %v7093
        %7095 = vmatprep.mubr.bf16.mxu0 0
        %7096 = vmatmul.mubr.bf16.gmra.mxu0 %v352
        %v7097 = vpop.f32.mrf.mxu0
        %v7098 = vadd.f32 0.0, %v7097
        %v7099 = vpop.f32.mrf.mxu0
        %v7100 = vadd.f32 0.0, %v7099
        %v7101 = vpop.f32.mrf.mxu0
        %v7102 = vadd.f32 0.0, %v7101
        %v7103 = vpop.f32.mrf.mxu0
        %v7104 = vadd.f32 0.0, %v7103
        %7105 = vdwg.mxu0
        %7106 = vmatprep.subr.bf16.mxu0 %v6042
        %7107 = vmatpush1.bf16.msra.mxu0 %v6041
        %7108 = vmatprep.subr.bf16.mxu0 %v6010
        %7109 = vmatpush1.bf16.msra.mxu0 %v6009
        %7110 = vmatprep.subr.bf16.mxu0 %v5978
        %7111 = vmatpush1.bf16.msra.mxu0 %v5977
        %7112 = vmatprep.subr.bf16.mxu0 %v5946
        %7113 = vmatpush1.bf16.msra.mxu0 %v5945
        %7114 = vmatprep.subr.bf16.mxu0 %v5914
        %7115 = vmatpush1.bf16.msra.mxu0 %v5913
        %7116 = vmatprep.subr.bf16.mxu0 %v5882
        %7117 = vmatpush1.bf16.msra.mxu0 %v5881
        %7118 = vmatprep.subr.bf16.mxu0 %v5850
        %7119 = vmatpush1.bf16.msra.mxu0 %v5849
        %7120 = vmatprep.subr.bf16.mxu0 %v5818
        %7121 = vmatpush1.bf16.msra.mxu0 %v5817
        %7122 = vmatprep.subr.bf16.mxu0 0
        %7123 = vmatpush2.bf16.msra.mxu0 0
        %7124 = vmatprep.subr.bf16.mxu0 0
        %7125 = vmatpush2.bf16.msra.mxu0 0
        %7126 = vmatprep.subr.bf16.mxu0 0
        %7127 = vmatpush2.bf16.msra.mxu0 0
        %7128 = vmatprep.subr.bf16.mxu0 0
        %7129 = vmatpush2.bf16.msra.mxu0 0
        %7130 = vmatprep.subr.bf16.mxu0 0
        %7131 = vmatpush2.bf16.msra.mxu0 0
        %7132 = vmatprep.subr.bf16.mxu0 0
        %7133 = vmatpush2.bf16.msra.mxu0 0
        %7134 = vmatprep.subr.bf16.mxu0 0
        %7135 = vmatpush2.bf16.msra.mxu0 0
        %7136 = vmatprep.subr.bf16.mxu0 0
        %7137 = vmatpush2.bf16.msra.mxu0 0
        %7138 = vmatprep.mubr.bf16.mxu0 0
        %7139 = vmatmul.mubr.bf16.gmra.mxu0 %v345
        %v7140 = vpop.f32.mrf.mxu0
        %v7141 = vadd.f32 0.0, %v7140
        %v7142 = vpop.f32.mrf.mxu0
        %v7143 = vadd.f32 0.0, %v7142
        %v7144 = vpop.f32.mrf.mxu0
        %v7145 = vadd.f32 0.0, %v7144
        %v7146 = vpop.f32.mrf.mxu0
        %v7147 = vadd.f32 0.0, %v7146
        %7148 = vmatprep.mubr.bf16.mxu0 0
        %7149 = vmatmul.mubr.bf16.gmra.mxu0 %v346
        %v7150 = vpop.f32.mrf.mxu0
        %v7151 = vadd.f32 0.0, %v7150
        %v7152 = vpop.f32.mrf.mxu0
        %v7153 = vadd.f32 0.0, %v7152
        %v7154 = vpop.f32.mrf.mxu0
        %v7155 = vadd.f32 0.0, %v7154
        %v7156 = vpop.f32.mrf.mxu0
        %v7157 = vadd.f32 0.0, %v7156
        %7158 = vmatprep.mubr.bf16.mxu0 0
        %7159 = vmatmul.mubr.bf16.gmra.mxu0 %v347
        %v7160 = vpop.f32.mrf.mxu0
        %v7161 = vadd.f32 0.0, %v7160
        %v7162 = vpop.f32.mrf.mxu0
        %v7163 = vadd.f32 0.0, %v7162
        %v7164 = vpop.f32.mrf.mxu0
        %v7165 = vadd.f32 0.0, %v7164
        %v7166 = vpop.f32.mrf.mxu0
        %v7167 = vadd.f32 0.0, %v7166
        %7168 = vmatprep.mubr.bf16.mxu0 0
        %7169 = vmatmul.mubr.bf16.gmra.mxu0 %v348
        %v7170 = vpop.f32.mrf.mxu0
        %v7171 = vadd.f32 0.0, %v7170
        %v7172 = vpop.f32.mrf.mxu0
        %v7173 = vadd.f32 0.0, %v7172
        %v7174 = vpop.f32.mrf.mxu0
        %v7175 = vadd.f32 0.0, %v7174
        %v7176 = vpop.f32.mrf.mxu0
        %v7177 = vadd.f32 0.0, %v7176
        %7178 = vmatprep.mubr.bf16.mxu0 0
        %7179 = vmatmul.mubr.bf16.gmra.mxu0 %v349
        %v7180 = vpop.f32.mrf.mxu0
        %v7181 = vadd.f32 0.0, %v7180
        %v7182 = vpop.f32.mrf.mxu0
        %v7183 = vadd.f32 0.0, %v7182
        %v7184 = vpop.f32.mrf.mxu0
        %v7185 = vadd.f32 0.0, %v7184
        %v7186 = vpop.f32.mrf.mxu0
        %v7187 = vadd.f32 0.0, %v7186
        %7188 = vmatprep.mubr.bf16.mxu0 0
        %7189 = vmatmul.mubr.bf16.gmra.mxu0 %v350
        %v7190 = vpop.f32.mrf.mxu0
        %v7191 = vadd.f32 0.0, %v7190
        %v7192 = vpop.f32.mrf.mxu0
        %v7193 = vadd.f32 0.0, %v7192
        %v7194 = vpop.f32.mrf.mxu0
        %v7195 = vadd.f32 0.0, %v7194
        %v7196 = vpop.f32.mrf.mxu0
        %v7197 = vadd.f32 0.0, %v7196
        %7198 = vmatprep.mubr.bf16.mxu0 0
        %7199 = vmatmul.mubr.bf16.gmra.mxu0 %v351
        %v7200 = vpop.f32.mrf.mxu0
        %v7201 = vadd.f32 0.0, %v7200
        %v7202 = vpop.f32.mrf.mxu0
        %v7203 = vadd.f32 0.0, %v7202
        %v7204 = vpop.f32.mrf.mxu0
        %v7205 = vadd.f32 0.0, %v7204
        %v7206 = vpop.f32.mrf.mxu0
        %v7207 = vadd.f32 0.0, %v7206
        %7208 = vmatprep.mubr.bf16.mxu0 0
        %7209 = vmatmul.mubr.bf16.gmra.mxu0 %v352
        %v7210 = vpop.f32.mrf.mxu0
        %v7211 = vadd.f32 0.0, %v7210
        %v7212 = vpop.f32.mrf.mxu0
        %v7213 = vadd.f32 0.0, %v7212
        %v7214 = vpop.f32.mrf.mxu0
        %v7215 = vadd.f32 0.0, %v7214
        %v7216 = vpop.f32.mrf.mxu0
        %v7217 = vadd.f32 0.0, %v7216
        %7218 = vdwg.mxu0
        %7219 = vmatprep.subr.bf16.mxu0 %v6044
        %7220 = vmatpush1.bf16.msra.mxu0 %v6043
        %7221 = vmatprep.subr.bf16.mxu0 %v6012
        %7222 = vmatpush1.bf16.msra.mxu0 %v6011
        %7223 = vmatprep.subr.bf16.mxu0 %v5980
        %7224 = vmatpush1.bf16.msra.mxu0 %v5979
        %7225 = vmatprep.subr.bf16.mxu0 %v5948
        %7226 = vmatpush1.bf16.msra.mxu0 %v5947
        %7227 = vmatprep.subr.bf16.mxu0 %v5916
        %7228 = vmatpush1.bf16.msra.mxu0 %v5915
        %7229 = vmatprep.subr.bf16.mxu0 %v5884
        %7230 = vmatpush1.bf16.msra.mxu0 %v5883
        %7231 = vmatprep.subr.bf16.mxu0 %v5852
        %7232 = vmatpush1.bf16.msra.mxu0 %v5851
        %7233 = vmatprep.subr.bf16.mxu0 %v5820
        %7234 = vmatpush1.bf16.msra.mxu0 %v5819
        %7235 = vmatprep.subr.bf16.mxu0 0
        %7236 = vmatpush2.bf16.msra.mxu0 0
        %7237 = vmatprep.subr.bf16.mxu0 0
        %7238 = vmatpush2.bf16.msra.mxu0 0
        %7239 = vmatprep.subr.bf16.mxu0 0
        %7240 = vmatpush2.bf16.msra.mxu0 0
        %7241 = vmatprep.subr.bf16.mxu0 0
        %7242 = vmatpush2.bf16.msra.mxu0 0
        %7243 = vmatprep.subr.bf16.mxu0 0
        %7244 = vmatpush2.bf16.msra.mxu0 0
        %7245 = vmatprep.subr.bf16.mxu0 0
        %7246 = vmatpush2.bf16.msra.mxu0 0
        %7247 = vmatprep.subr.bf16.mxu0 0
        %7248 = vmatpush2.bf16.msra.mxu0 0
        %7249 = vmatprep.subr.bf16.mxu0 0
        %7250 = vmatpush2.bf16.msra.mxu0 0
        %7251 = vmatprep.mubr.bf16.mxu0 0
        %7252 = vmatmul.mubr.bf16.gmra.mxu0 %v345
        %v7253 = vpop.f32.mrf.mxu0
        %v7254 = vadd.f32 0.0, %v7253
        %v7255 = vpop.f32.mrf.mxu0
        %v7256 = vadd.f32 0.0, %v7255
        %v7257 = vpop.f32.mrf.mxu0
        %v7258 = vadd.f32 0.0, %v7257
        %v7259 = vpop.f32.mrf.mxu0
        %v7260 = vadd.f32 0.0, %v7259
        %7261 = vmatprep.mubr.bf16.mxu0 0
        %7262 = vmatmul.mubr.bf16.gmra.mxu0 %v346
        %v7263 = vpop.f32.mrf.mxu0
        %v7264 = vadd.f32 0.0, %v7263
        %v7265 = vpop.f32.mrf.mxu0
        %v7266 = vadd.f32 0.0, %v7265
        %v7267 = vpop.f32.mrf.mxu0
        %v7268 = vadd.f32 0.0, %v7267
        %v7269 = vpop.f32.mrf.mxu0
        %v7270 = vadd.f32 0.0, %v7269
        %7271 = vmatprep.mubr.bf16.mxu0 0
        %7272 = vmatmul.mubr.bf16.gmra.mxu0 %v347
        %v7273 = vpop.f32.mrf.mxu0
        %v7274 = vadd.f32 0.0, %v7273
        %v7275 = vpop.f32.mrf.mxu0
        %v7276 = vadd.f32 0.0, %v7275
        %v7277 = vpop.f32.mrf.mxu0
        %v7278 = vadd.f32 0.0, %v7277
        %v7279 = vpop.f32.mrf.mxu0
        %v7280 = vadd.f32 0.0, %v7279
        %7281 = vmatprep.mubr.bf16.mxu0 0
        %7282 = vmatmul.mubr.bf16.gmra.mxu0 %v348
        %v7283 = vpop.f32.mrf.mxu0
        %v7284 = vadd.f32 0.0, %v7283
        %v7285 = vpop.f32.mrf.mxu0
        %v7286 = vadd.f32 0.0, %v7285
        %v7287 = vpop.f32.mrf.mxu0
        %v7288 = vadd.f32 0.0, %v7287
        %v7289 = vpop.f32.mrf.mxu0
        %v7290 = vadd.f32 0.0, %v7289
        %7291 = vmatprep.mubr.bf16.mxu0 0
        %7292 = vmatmul.mubr.bf16.gmra.mxu0 %v349
        %v7293 = vpop.f32.mrf.mxu0
        %v7294 = vadd.f32 0.0, %v7293
        %v7295 = vpop.f32.mrf.mxu0
        %v7296 = vadd.f32 0.0, %v7295
        %v7297 = vpop.f32.mrf.mxu0
        %v7298 = vadd.f32 0.0, %v7297
        %v7299 = vpop.f32.mrf.mxu0
        %v7300 = vadd.f32 0.0, %v7299
        %7301 = vmatprep.mubr.bf16.mxu0 0
        %7302 = vmatmul.mubr.bf16.gmra.mxu0 %v350
        %v7303 = vpop.f32.mrf.mxu0
        %v7304 = vadd.f32 0.0, %v7303
        %v7305 = vpop.f32.mrf.mxu0
        %v7306 = vadd.f32 0.0, %v7305
        %v7307 = vpop.f32.mrf.mxu0
        %v7308 = vadd.f32 0.0, %v7307
        %v7309 = vpop.f32.mrf.mxu0
        %v7310 = vadd.f32 0.0, %v7309
        %7311 = vmatprep.mubr.bf16.mxu0 0
        %7312 = vmatmul.mubr.bf16.gmra.mxu0 %v351
        %v7313 = vpop.f32.mrf.mxu0
        %v7314 = vadd.f32 0.0, %v7313
        %v7315 = vpop.f32.mrf.mxu0
        %v7316 = vadd.f32 0.0, %v7315
        %v7317 = vpop.f32.mrf.mxu0
        %v7318 = vadd.f32 0.0, %v7317
        %v7319 = vpop.f32.mrf.mxu0
        %v7320 = vadd.f32 0.0, %v7319
        %7321 = vmatprep.mubr.bf16.mxu0 0
        %7322 = vmatmul.mubr.bf16.gmra.mxu0 %v352
        %v7323 = vpop.f32.mrf.mxu0
        %v7324 = vadd.f32 0.0, %v7323
        %v7325 = vpop.f32.mrf.mxu0
        %v7326 = vadd.f32 0.0, %v7325
        %v7327 = vpop.f32.mrf.mxu0
        %v7328 = vadd.f32 0.0, %v7327
        %v7329 = vpop.f32.mrf.mxu0
        %v7330 = vadd.f32 0.0, %v7329
        %7331 = vdwg.mxu0
        %7332 = vmatprep.subr.bf16.mxu0 %v6046
        %7333 = vmatpush1.bf16.msra.mxu0 %v6045
        %7334 = vmatprep.subr.bf16.mxu0 %v6014
        %7335 = vmatpush1.bf16.msra.mxu0 %v6013
        %7336 = vmatprep.subr.bf16.mxu0 %v5982
        %7337 = vmatpush1.bf16.msra.mxu0 %v5981
        %7338 = vmatprep.subr.bf16.mxu0 %v5950
        %7339 = vmatpush1.bf16.msra.mxu0 %v5949
        %7340 = vmatprep.subr.bf16.mxu0 %v5918
        %7341 = vmatpush1.bf16.msra.mxu0 %v5917
        %7342 = vmatprep.subr.bf16.mxu0 %v5886
        %7343 = vmatpush1.bf16.msra.mxu0 %v5885
        %7344 = vmatprep.subr.bf16.mxu0 %v5854
        %7345 = vmatpush1.bf16.msra.mxu0 %v5853
        %7346 = vmatprep.subr.bf16.mxu0 %v5822
        %7347 = vmatpush1.bf16.msra.mxu0 %v5821
        %7348 = vmatprep.subr.bf16.mxu0 0
        %7349 = vmatpush2.bf16.msra.mxu0 0
        %7350 = vmatprep.subr.bf16.mxu0 0
        %7351 = vmatpush2.bf16.msra.mxu0 0
        %7352 = vmatprep.subr.bf16.mxu0 0
        %7353 = vmatpush2.bf16.msra.mxu0 0
        %7354 = vmatprep.subr.bf16.mxu0 0
        %7355 = vmatpush2.bf16.msra.mxu0 0
        %7356 = vmatprep.subr.bf16.mxu0 0
        %7357 = vmatpush2.bf16.msra.mxu0 0
        %7358 = vmatprep.subr.bf16.mxu0 0
        %7359 = vmatpush2.bf16.msra.mxu0 0
        %7360 = vmatprep.subr.bf16.mxu0 0
        %7361 = vmatpush2.bf16.msra.mxu0 0
        %7362 = vmatprep.subr.bf16.mxu0 0
        %7363 = vmatpush2.bf16.msra.mxu0 0
        %7364 = vmatprep.mubr.bf16.mxu0 0
        %7365 = vmatmul.mubr.bf16.gmra.mxu0 %v345
        %v7366 = vpop.f32.mrf.mxu0
        %v7367 = vadd.f32 0.0, %v7366
        %v7368 = vpop.f32.mrf.mxu0
        %v7369 = vadd.f32 0.0, %v7368
        %v7370 = vpop.f32.mrf.mxu0
        %v7371 = vadd.f32 0.0, %v7370
        %v7372 = vpop.f32.mrf.mxu0
        %v7373 = vadd.f32 0.0, %v7372
        %7374 = vmatprep.mubr.bf16.mxu0 0
        %7375 = vmatmul.mubr.bf16.gmra.mxu0 %v346
        %v7376 = vpop.f32.mrf.mxu0
        %v7377 = vadd.f32 0.0, %v7376
        %v7378 = vpop.f32.mrf.mxu0
        %v7379 = vadd.f32 0.0, %v7378
        %v7380 = vpop.f32.mrf.mxu0
        %v7381 = vadd.f32 0.0, %v7380
        %v7382 = vpop.f32.mrf.mxu0
        %v7383 = vadd.f32 0.0, %v7382
        %7384 = vmatprep.mubr.bf16.mxu0 0
        %7385 = vmatmul.mubr.bf16.gmra.mxu0 %v347
        %v7386 = vpop.f32.mrf.mxu0
        %v7387 = vadd.f32 0.0, %v7386
        %v7388 = vpop.f32.mrf.mxu0
        %v7389 = vadd.f32 0.0, %v7388
        %v7390 = vpop.f32.mrf.mxu0
        %v7391 = vadd.f32 0.0, %v7390
        %v7392 = vpop.f32.mrf.mxu0
        %v7393 = vadd.f32 0.0, %v7392
        %7394 = vmatprep.mubr.bf16.mxu0 0
        %7395 = vmatmul.mubr.bf16.gmra.mxu0 %v348
        %v7396 = vpop.f32.mrf.mxu0
        %v7397 = vadd.f32 0.0, %v7396
        %v7398 = vpop.f32.mrf.mxu0
        %v7399 = vadd.f32 0.0, %v7398
        %v7400 = vpop.f32.mrf.mxu0
        %v7401 = vadd.f32 0.0, %v7400
        %v7402 = vpop.f32.mrf.mxu0
        %v7403 = vadd.f32 0.0, %v7402
        %7404 = vmatprep.mubr.bf16.mxu0 0
        %7405 = vmatmul.mubr.bf16.gmra.mxu0 %v349
        %v7406 = vpop.f32.mrf.mxu0
        %v7407 = vadd.f32 0.0, %v7406
        %v7408 = vpop.f32.mrf.mxu0
        %v7409 = vadd.f32 0.0, %v7408
        %v7410 = vpop.f32.mrf.mxu0
        %v7411 = vadd.f32 0.0, %v7410
        %v7412 = vpop.f32.mrf.mxu0
        %v7413 = vadd.f32 0.0, %v7412
        %7414 = vmatprep.mubr.bf16.mxu0 0
        %7415 = vmatmul.mubr.bf16.gmra.mxu0 %v350
        %v7416 = vpop.f32.mrf.mxu0
        %v7417 = vadd.f32 0.0, %v7416
        %v7418 = vpop.f32.mrf.mxu0
        %v7419 = vadd.f32 0.0, %v7418
        %v7420 = vpop.f32.mrf.mxu0
        %v7421 = vadd.f32 0.0, %v7420
        %v7422 = vpop.f32.mrf.mxu0
        %v7423 = vadd.f32 0.0, %v7422
        %7424 = vmatprep.mubr.bf16.mxu0 0
        %7425 = vmatmul.mubr.bf16.gmra.mxu0 %v351
        %v7426 = vpop.f32.mrf.mxu0
        %v7427 = vadd.f32 0.0, %v7426
        %v7428 = vpop.f32.mrf.mxu0
        %v7429 = vadd.f32 0.0, %v7428
        %v7430 = vpop.f32.mrf.mxu0
        %v7431 = vadd.f32 0.0, %v7430
        %v7432 = vpop.f32.mrf.mxu0
        %v7433 = vadd.f32 0.0, %v7432
        %7434 = vmatprep.mubr.bf16.mxu0 0
        %7435 = vmatmul.mubr.bf16.gmra.mxu0 %v352
        %v7436 = vpop.f32.mrf.mxu0
        %v7437 = vadd.f32 0.0, %v7436
        %v7438 = vpop.f32.mrf.mxu0
        %v7439 = vadd.f32 0.0, %v7438
        %v7440 = vpop.f32.mrf.mxu0
        %v7441 = vadd.f32 0.0, %v7440
        %v7442 = vpop.f32.mrf.mxu0
        %v7443 = vadd.f32 0.0, %v7442
        %7444 = vdwg.mxu0
        %7445 = vmatprep.subr.bf16.mxu0 %v6048
        %7446 = vmatpush1.bf16.msra.mxu0 %v6047
        %7447 = vmatprep.subr.bf16.mxu0 %v6016
        %7448 = vmatpush1.bf16.msra.mxu0 %v6015
        %7449 = vmatprep.subr.bf16.mxu0 %v5984
        %7450 = vmatpush1.bf16.msra.mxu0 %v5983
        %7451 = vmatprep.subr.bf16.mxu0 %v5952
        %7452 = vmatpush1.bf16.msra.mxu0 %v5951
        %7453 = vmatprep.subr.bf16.mxu0 %v5920
        %7454 = vmatpush1.bf16.msra.mxu0 %v5919
        %7455 = vmatprep.subr.bf16.mxu0 %v5888
        %7456 = vmatpush1.bf16.msra.mxu0 %v5887
        %7457 = vmatprep.subr.bf16.mxu0 %v5856
        %7458 = vmatpush1.bf16.msra.mxu0 %v5855
        %7459 = vmatprep.subr.bf16.mxu0 %v5824
        %7460 = vmatpush1.bf16.msra.mxu0 %v5823
        %7461 = vmatprep.subr.bf16.mxu0 0
        %7462 = vmatpush2.bf16.msra.mxu0 0
        %7463 = vmatprep.subr.bf16.mxu0 0
        %7464 = vmatpush2.bf16.msra.mxu0 0
        %7465 = vmatprep.subr.bf16.mxu0 0
        %7466 = vmatpush2.bf16.msra.mxu0 0
        %7467 = vmatprep.subr.bf16.mxu0 0
        %7468 = vmatpush2.bf16.msra.mxu0 0
        %7469 = vmatprep.subr.bf16.mxu0 0
        %7470 = vmatpush2.bf16.msra.mxu0 0
        %7471 = vmatprep.subr.bf16.mxu0 0
        %7472 = vmatpush2.bf16.msra.mxu0 0
        %7473 = vmatprep.subr.bf16.mxu0 0
        %7474 = vmatpush2.bf16.msra.mxu0 0
        %7475 = vmatprep.subr.bf16.mxu0 0
        %7476 = vmatpush2.bf16.msra.mxu0 0
        %7477 = vmatprep.mubr.bf16.mxu0 0
        %7478 = vmatmul.mubr.bf16.gmra.mxu0 %v345
        %v7479 = vpop.f32.mrf.mxu0
        %v7480 = vadd.f32 0.0, %v7479
        %v7481 = vpop.f32.mrf.mxu0
        %v7482 = vadd.f32 0.0, %v7481
        %v7483 = vpop.f32.mrf.mxu0
        %v7484 = vadd.f32 0.0, %v7483
        %v7485 = vpop.f32.mrf.mxu0
        %v7486 = vadd.f32 0.0, %v7485
        %7487 = vmatprep.mubr.bf16.mxu0 0
        %7488 = vmatmul.mubr.bf16.gmra.mxu0 %v346
        %v7489 = vpop.f32.mrf.mxu0
        %v7490 = vadd.f32 0.0, %v7489
        %v7491 = vpop.f32.mrf.mxu0
        %v7492 = vadd.f32 0.0, %v7491
        %v7493 = vpop.f32.mrf.mxu0
        %v7494 = vadd.f32 0.0, %v7493
        %v7495 = vpop.f32.mrf.mxu0
        %v7496 = vadd.f32 0.0, %v7495
        %7497 = vmatprep.mubr.bf16.mxu0 0
        %7498 = vmatmul.mubr.bf16.gmra.mxu0 %v347
        %v7499 = vpop.f32.mrf.mxu0
        %v7500 = vadd.f32 0.0, %v7499
        %v7501 = vpop.f32.mrf.mxu0
        %v7502 = vadd.f32 0.0, %v7501
        %v7503 = vpop.f32.mrf.mxu0
        %v7504 = vadd.f32 0.0, %v7503
        %v7505 = vpop.f32.mrf.mxu0
        %v7506 = vadd.f32 0.0, %v7505
        %7507 = vmatprep.mubr.bf16.mxu0 0
        %7508 = vmatmul.mubr.bf16.gmra.mxu0 %v348
        %v7509 = vpop.f32.mrf.mxu0
        %v7510 = vadd.f32 0.0, %v7509
        %v7511 = vpop.f32.mrf.mxu0
        %v7512 = vadd.f32 0.0, %v7511
        %v7513 = vpop.f32.mrf.mxu0
        %v7514 = vadd.f32 0.0, %v7513
        %v7515 = vpop.f32.mrf.mxu0
        %v7516 = vadd.f32 0.0, %v7515
        %7517 = vmatprep.mubr.bf16.mxu0 0
        %7518 = vmatmul.mubr.bf16.gmra.mxu0 %v349
        %v7519 = vpop.f32.mrf.mxu0
        %v7520 = vadd.f32 0.0, %v7519
        %v7521 = vpop.f32.mrf.mxu0
        %v7522 = vadd.f32 0.0, %v7521
        %v7523 = vpop.f32.mrf.mxu0
        %v7524 = vadd.f32 0.0, %v7523
        %v7525 = vpop.f32.mrf.mxu0
        %v7526 = vadd.f32 0.0, %v7525
        %7527 = vmatprep.mubr.bf16.mxu0 0
        %7528 = vmatmul.mubr.bf16.gmra.mxu0 %v350
        %v7529 = vpop.f32.mrf.mxu0
        %v7530 = vadd.f32 0.0, %v7529
        %v7531 = vpop.f32.mrf.mxu0
        %v7532 = vadd.f32 0.0, %v7531
        %v7533 = vpop.f32.mrf.mxu0
        %v7534 = vadd.f32 0.0, %v7533
        %v7535 = vpop.f32.mrf.mxu0
        %v7536 = vadd.f32 0.0, %v7535
        %7537 = vmatprep.mubr.bf16.mxu0 0
        %7538 = vmatmul.mubr.bf16.gmra.mxu0 %v351
        %v7539 = vpop.f32.mrf.mxu0
        %v7540 = vadd.f32 0.0, %v7539
        %v7541 = vpop.f32.mrf.mxu0
        %v7542 = vadd.f32 0.0, %v7541
        %v7543 = vpop.f32.mrf.mxu0
        %v7544 = vadd.f32 0.0, %v7543
        %v7545 = vpop.f32.mrf.mxu0
        %v7546 = vadd.f32 0.0, %v7545
        %7547 = vmatprep.mubr.bf16.mxu0 0
        %7548 = vmatmul.mubr.bf16.gmra.mxu0 %v352
        %v7549 = vpop.f32.mrf.mxu0
        %v7550 = vadd.f32 0.0, %v7549
        %v7551 = vpop.f32.mrf.mxu0
        %v7552 = vadd.f32 0.0, %v7551
        %v7553 = vpop.f32.mrf.mxu0
        %v7554 = vadd.f32 0.0, %v7553
        %v7555 = vpop.f32.mrf.mxu0
        %v7556 = vadd.f32 0.0, %v7555
        %7557 = vdwg.mxu0
        %7558 = vmatprep.subr.bf16.mxu0 %v6050
        %7559 = vmatpush1.bf16.msra.mxu0 %v6049
        %7560 = vmatprep.subr.bf16.mxu0 %v6018
        %7561 = vmatpush1.bf16.msra.mxu0 %v6017
        %7562 = vmatprep.subr.bf16.mxu0 %v5986
        %7563 = vmatpush1.bf16.msra.mxu0 %v5985
        %7564 = vmatprep.subr.bf16.mxu0 %v5954
        %7565 = vmatpush1.bf16.msra.mxu0 %v5953
        %7566 = vmatprep.subr.bf16.mxu0 %v5922
        %7567 = vmatpush1.bf16.msra.mxu0 %v5921
        %7568 = vmatprep.subr.bf16.mxu0 %v5890
        %7569 = vmatpush1.bf16.msra.mxu0 %v5889
        %7570 = vmatprep.subr.bf16.mxu0 %v5858
        %7571 = vmatpush1.bf16.msra.mxu0 %v5857
        %7572 = vmatprep.subr.bf16.mxu0 %v5826
        %7573 = vmatpush1.bf16.msra.mxu0 %v5825
        %7574 = vmatprep.subr.bf16.mxu0 0
        %7575 = vmatpush2.bf16.msra.mxu0 0
        %7576 = vmatprep.subr.bf16.mxu0 0
        %7577 = vmatpush2.bf16.msra.mxu0 0
        %7578 = vmatprep.subr.bf16.mxu0 0
        %7579 = vmatpush2.bf16.msra.mxu0 0
        %7580 = vmatprep.subr.bf16.mxu0 0
        %7581 = vmatpush2.bf16.msra.mxu0 0
        %7582 = vmatprep.subr.bf16.mxu0 0
        %7583 = vmatpush2.bf16.msra.mxu0 0
        %7584 = vmatprep.subr.bf16.mxu0 0
        %7585 = vmatpush2.bf16.msra.mxu0 0
        %7586 = vmatprep.subr.bf16.mxu0 0
        %7587 = vmatpush2.bf16.msra.mxu0 0
        %7588 = vmatprep.subr.bf16.mxu0 0
        %7589 = vmatpush2.bf16.msra.mxu0 0
        %7590 = vmatprep.mubr.bf16.mxu0 0
        %7591 = vmatmul.mubr.bf16.gmra.mxu0 %v345
        %v7592 = vpop.f32.mrf.mxu0
        %v7593 = vadd.f32 0.0, %v7592
        %v7594 = vpop.f32.mrf.mxu0
        %v7595 = vadd.f32 0.0, %v7594
        %v7596 = vpop.f32.mrf.mxu0
        %v7597 = vadd.f32 0.0, %v7596
        %v7598 = vpop.f32.mrf.mxu0
        %v7599 = vadd.f32 0.0, %v7598
        %7600 = vmatprep.mubr.bf16.mxu0 0
        %7601 = vmatmul.mubr.bf16.gmra.mxu0 %v346
        %v7602 = vpop.f32.mrf.mxu0
        %v7603 = vadd.f32 0.0, %v7602
        %v7604 = vpop.f32.mrf.mxu0
        %v7605 = vadd.f32 0.0, %v7604
        %v7606 = vpop.f32.mrf.mxu0
        %v7607 = vadd.f32 0.0, %v7606
        %v7608 = vpop.f32.mrf.mxu0
        %v7609 = vadd.f32 0.0, %v7608
        %7610 = vmatprep.mubr.bf16.mxu0 0
        %7611 = vmatmul.mubr.bf16.gmra.mxu0 %v347
        %v7612 = vpop.f32.mrf.mxu0
        %v7613 = vadd.f32 0.0, %v7612
        %v7614 = vpop.f32.mrf.mxu0
        %v7615 = vadd.f32 0.0, %v7614
        %v7616 = vpop.f32.mrf.mxu0
        %v7617 = vadd.f32 0.0, %v7616
        %v7618 = vpop.f32.mrf.mxu0
        %v7619 = vadd.f32 0.0, %v7618
        %7620 = vmatprep.mubr.bf16.mxu0 0
        %7621 = vmatmul.mubr.bf16.gmra.mxu0 %v348
        %v7622 = vpop.f32.mrf.mxu0
        %v7623 = vadd.f32 0.0, %v7622
        %v7624 = vpop.f32.mrf.mxu0
        %v7625 = vadd.f32 0.0, %v7624
        %v7626 = vpop.f32.mrf.mxu0
        %v7627 = vadd.f32 0.0, %v7626
        %v7628 = vpop.f32.mrf.mxu0
        %v7629 = vadd.f32 0.0, %v7628
        %7630 = vmatprep.mubr.bf16.mxu0 0
        %7631 = vmatmul.mubr.bf16.gmra.mxu0 %v349
        %v7632 = vpop.f32.mrf.mxu0
        %v7633 = vadd.f32 0.0, %v7632
        %v7634 = vpop.f32.mrf.mxu0
        %v7635 = vadd.f32 0.0, %v7634
        %v7636 = vpop.f32.mrf.mxu0
        %v7637 = vadd.f32 0.0, %v7636
        %v7638 = vpop.f32.mrf.mxu0
        %v7639 = vadd.f32 0.0, %v7638
        %7640 = vmatprep.mubr.bf16.mxu0 0
        %7641 = vmatmul.mubr.bf16.gmra.mxu0 %v350
        %v7642 = vpop.f32.mrf.mxu0
        %v7643 = vadd.f32 0.0, %v7642
        %v7644 = vpop.f32.mrf.mxu0
        %v7645 = vadd.f32 0.0, %v7644
        %v7646 = vpop.f32.mrf.mxu0
        %v7647 = vadd.f32 0.0, %v7646
        %v7648 = vpop.f32.mrf.mxu0
        %v7649 = vadd.f32 0.0, %v7648
        %7650 = vmatprep.mubr.bf16.mxu0 0
        %7651 = vmatmul.mubr.bf16.gmra.mxu0 %v351
        %v7652 = vpop.f32.mrf.mxu0
        %v7653 = vadd.f32 0.0, %v7652
        %v7654 = vpop.f32.mrf.mxu0
        %v7655 = vadd.f32 0.0, %v7654
        %v7656 = vpop.f32.mrf.mxu0
        %v7657 = vadd.f32 0.0, %v7656
        %v7658 = vpop.f32.mrf.mxu0
        %v7659 = vadd.f32 0.0, %v7658
        %7660 = vmatprep.mubr.bf16.mxu0 0
        %7661 = vmatmul.mubr.bf16.gmra.mxu0 %v352
        %v7662 = vpop.f32.mrf.mxu0
        %v7663 = vadd.f32 0.0, %v7662
        %v7664 = vpop.f32.mrf.mxu0
        %v7665 = vadd.f32 0.0, %v7664
        %v7666 = vpop.f32.mrf.mxu0
        %v7667 = vadd.f32 0.0, %v7666
        %v7668 = vpop.f32.mrf.mxu0
        %v7669 = vadd.f32 0.0, %v7668
        %7670 = vdwg.mxu0
        %7671 = vmatprep.subr.bf16.mxu0 %v6052
        %7672 = vmatpush1.bf16.msra.mxu0 %v6051
        %7673 = vmatprep.subr.bf16.mxu0 %v6020
        %7674 = vmatpush1.bf16.msra.mxu0 %v6019
        %7675 = vmatprep.subr.bf16.mxu0 %v5988
        %7676 = vmatpush1.bf16.msra.mxu0 %v5987
        %7677 = vmatprep.subr.bf16.mxu0 %v5956
        %7678 = vmatpush1.bf16.msra.mxu0 %v5955
        %7679 = vmatprep.subr.bf16.mxu0 %v5924
        %7680 = vmatpush1.bf16.msra.mxu0 %v5923
        %7681 = vmatprep.subr.bf16.mxu0 %v5892
        %7682 = vmatpush1.bf16.msra.mxu0 %v5891
        %7683 = vmatprep.subr.bf16.mxu0 %v5860
        %7684 = vmatpush1.bf16.msra.mxu0 %v5859
        %7685 = vmatprep.subr.bf16.mxu0 %v5828
        %7686 = vmatpush1.bf16.msra.mxu0 %v5827
        %7687 = vmatprep.subr.bf16.mxu0 0
        %7688 = vmatpush2.bf16.msra.mxu0 0
        %7689 = vmatprep.subr.bf16.mxu0 0
        %7690 = vmatpush2.bf16.msra.mxu0 0
        %7691 = vmatprep.subr.bf16.mxu0 0
        %7692 = vmatpush2.bf16.msra.mxu0 0
        %7693 = vmatprep.subr.bf16.mxu0 0
        %7694 = vmatpush2.bf16.msra.mxu0 0
        %7695 = vmatprep.subr.bf16.mxu0 0
        %7696 = vmatpush2.bf16.msra.mxu0 0
        %7697 = vmatprep.subr.bf16.mxu0 0
        %7698 = vmatpush2.bf16.msra.mxu0 0
        %7699 = vmatprep.subr.bf16.mxu0 0
        %7700 = vmatpush2.bf16.msra.mxu0 0
        %7701 = vmatprep.subr.bf16.mxu0 0
        %7702 = vmatpush2.bf16.msra.mxu0 0
        %7703 = vmatprep.mubr.bf16.mxu0 0
        %7704 = vmatmul.mubr.bf16.gmra.mxu0 %v345
        %v7705 = vpop.f32.mrf.mxu0
        %v7706 = vadd.f32 0.0, %v7705
        %v7707 = vpop.f32.mrf.mxu0
        %v7708 = vadd.f32 0.0, %v7707
        %v7709 = vpop.f32.mrf.mxu0
        %v7710 = vadd.f32 0.0, %v7709
        %v7711 = vpop.f32.mrf.mxu0
        %v7712 = vadd.f32 0.0, %v7711
        %7713 = vmatprep.mubr.bf16.mxu0 0
        %7714 = vmatmul.mubr.bf16.gmra.mxu0 %v346
        %v7715 = vpop.f32.mrf.mxu0
        %v7716 = vadd.f32 0.0, %v7715
        %v7717 = vpop.f32.mrf.mxu0
        %v7718 = vadd.f32 0.0, %v7717
        %v7719 = vpop.f32.mrf.mxu0
        %v7720 = vadd.f32 0.0, %v7719
        %v7721 = vpop.f32.mrf.mxu0
        %v7722 = vadd.f32 0.0, %v7721
        %7723 = vmatprep.mubr.bf16.mxu0 0
        %7724 = vmatmul.mubr.bf16.gmra.mxu0 %v347
        %v7725 = vpop.f32.mrf.mxu0
        %v7726 = vadd.f32 0.0, %v7725
        %v7727 = vpop.f32.mrf.mxu0
        %v7728 = vadd.f32 0.0, %v7727
        %v7729 = vpop.f32.mrf.mxu0
        %v7730 = vadd.f32 0.0, %v7729
        %v7731 = vpop.f32.mrf.mxu0
        %v7732 = vadd.f32 0.0, %v7731
        %7733 = vmatprep.mubr.bf16.mxu0 0
        %7734 = vmatmul.mubr.bf16.gmra.mxu0 %v348
        %v7735 = vpop.f32.mrf.mxu0
        %v7736 = vadd.f32 0.0, %v7735
        %v7737 = vpop.f32.mrf.mxu0
        %v7738 = vadd.f32 0.0, %v7737
        %v7739 = vpop.f32.mrf.mxu0
        %v7740 = vadd.f32 0.0, %v7739
        %v7741 = vpop.f32.mrf.mxu0
        %v7742 = vadd.f32 0.0, %v7741
        %7743 = vmatprep.mubr.bf16.mxu0 0
        %7744 = vmatmul.mubr.bf16.gmra.mxu0 %v349
        %v7745 = vpop.f32.mrf.mxu0
        %v7746 = vadd.f32 0.0, %v7745
        %v7747 = vpop.f32.mrf.mxu0
        %v7748 = vadd.f32 0.0, %v7747
        %v7749 = vpop.f32.mrf.mxu0
        %v7750 = vadd.f32 0.0, %v7749
        %v7751 = vpop.f32.mrf.mxu0
        %v7752 = vadd.f32 0.0, %v7751
        %7753 = vmatprep.mubr.bf16.mxu0 0
        %7754 = vmatmul.mubr.bf16.gmra.mxu0 %v350
        %v7755 = vpop.f32.mrf.mxu0
        %v7756 = vadd.f32 0.0, %v7755
        %v7757 = vpop.f32.mrf.mxu0
        %v7758 = vadd.f32 0.0, %v7757
        %v7759 = vpop.f32.mrf.mxu0
        %v7760 = vadd.f32 0.0, %v7759
        %v7761 = vpop.f32.mrf.mxu0
        %v7762 = vadd.f32 0.0, %v7761
        %7763 = vmatprep.mubr.bf16.mxu0 0
        %7764 = vmatmul.mubr.bf16.gmra.mxu0 %v351
        %v7765 = vpop.f32.mrf.mxu0
        %v7766 = vadd.f32 0.0, %v7765
        %v7767 = vpop.f32.mrf.mxu0
        %v7768 = vadd.f32 0.0, %v7767
        %v7769 = vpop.f32.mrf.mxu0
        %v7770 = vadd.f32 0.0, %v7769
        %v7771 = vpop.f32.mrf.mxu0
        %v7772 = vadd.f32 0.0, %v7771
        %7773 = vmatprep.mubr.bf16.mxu0 0
        %7774 = vmatmul.mubr.bf16.gmra.mxu0 %v352
        %v7775 = vpop.f32.mrf.mxu0
        %v7776 = vadd.f32 0.0, %v7775
        %v7777 = vpop.f32.mrf.mxu0
        %v7778 = vadd.f32 0.0, %v7777
        %v7779 = vpop.f32.mrf.mxu0
        %v7780 = vadd.f32 0.0, %v7779
        %v7781 = vpop.f32.mrf.mxu0
        %v7782 = vadd.f32 0.0, %v7781
        %7783 = vdwg.mxu0
        %7784 = vmatprep.subr.bf16.mxu0 %v6054
        %7785 = vmatpush1.bf16.msra.mxu0 %v6053
        %7786 = vmatprep.subr.bf16.mxu0 %v6022
        %7787 = vmatpush1.bf16.msra.mxu0 %v6021
        %7788 = vmatprep.subr.bf16.mxu0 %v5990
        %7789 = vmatpush1.bf16.msra.mxu0 %v5989
        %7790 = vmatprep.subr.bf16.mxu0 %v5958
        %7791 = vmatpush1.bf16.msra.mxu0 %v5957
        %7792 = vmatprep.subr.bf16.mxu0 %v5926
        %7793 = vmatpush1.bf16.msra.mxu0 %v5925
        %7794 = vmatprep.subr.bf16.mxu0 %v5894
        %7795 = vmatpush1.bf16.msra.mxu0 %v5893
        %7796 = vmatprep.subr.bf16.mxu0 %v5862
        %7797 = vmatpush1.bf16.msra.mxu0 %v5861
        %7798 = vmatprep.subr.bf16.mxu0 %v5830
        %7799 = vmatpush1.bf16.msra.mxu0 %v5829
        %7800 = vmatprep.subr.bf16.mxu0 0
        %7801 = vmatpush2.bf16.msra.mxu0 0
        %7802 = vmatprep.subr.bf16.mxu0 0
        %7803 = vmatpush2.bf16.msra.mxu0 0
        %7804 = vmatprep.subr.bf16.mxu0 0
        %7805 = vmatpush2.bf16.msra.mxu0 0
        %7806 = vmatprep.subr.bf16.mxu0 0
        %7807 = vmatpush2.bf16.msra.mxu0 0
        %7808 = vmatprep.subr.bf16.mxu0 0
        %7809 = vmatpush2.bf16.msra.mxu0 0
        %7810 = vmatprep.subr.bf16.mxu0 0
        %7811 = vmatpush2.bf16.msra.mxu0 0
        %7812 = vmatprep.subr.bf16.mxu0 0
        %7813 = vmatpush2.bf16.msra.mxu0 0
        %7814 = vmatprep.subr.bf16.mxu0 0
        %7815 = vmatpush2.bf16.msra.mxu0 0
        %7816 = vmatprep.mubr.bf16.mxu0 0
        %7817 = vmatmul.mubr.bf16.gmra.mxu0 %v345
        %v7818 = vpop.f32.mrf.mxu0
        %v7819 = vadd.f32 0.0, %v7818
        %v7820 = vpop.f32.mrf.mxu0
        %v7821 = vadd.f32 0.0, %v7820
        %v7822 = vpop.f32.mrf.mxu0
        %v7823 = vadd.f32 0.0, %v7822
        %v7824 = vpop.f32.mrf.mxu0
        %v7825 = vadd.f32 0.0, %v7824
        %7826 = vmatprep.mubr.bf16.mxu0 0
        %7827 = vmatmul.mubr.bf16.gmra.mxu0 %v346
        %v7828 = vpop.f32.mrf.mxu0
        %v7829 = vadd.f32 0.0, %v7828
        %v7830 = vpop.f32.mrf.mxu0
        %v7831 = vadd.f32 0.0, %v7830
        %v7832 = vpop.f32.mrf.mxu0
        %v7833 = vadd.f32 0.0, %v7832
        %v7834 = vpop.f32.mrf.mxu0
        %v7835 = vadd.f32 0.0, %v7834
        %7836 = vmatprep.mubr.bf16.mxu0 0
        %7837 = vmatmul.mubr.bf16.gmra.mxu0 %v347
        %v7838 = vpop.f32.mrf.mxu0
        %v7839 = vadd.f32 0.0, %v7838
        %v7840 = vpop.f32.mrf.mxu0
        %v7841 = vadd.f32 0.0, %v7840
        %v7842 = vpop.f32.mrf.mxu0
        %v7843 = vadd.f32 0.0, %v7842
        %v7844 = vpop.f32.mrf.mxu0
        %v7845 = vadd.f32 0.0, %v7844
        %7846 = vmatprep.mubr.bf16.mxu0 0
        %7847 = vmatmul.mubr.bf16.gmra.mxu0 %v348
        %v7848 = vpop.f32.mrf.mxu0
        %v7849 = vadd.f32 0.0, %v7848
        %v7850 = vpop.f32.mrf.mxu0
        %v7851 = vadd.f32 0.0, %v7850
        %v7852 = vpop.f32.mrf.mxu0
        %v7853 = vadd.f32 0.0, %v7852
        %v7854 = vpop.f32.mrf.mxu0
        %v7855 = vadd.f32 0.0, %v7854
        %7856 = vmatprep.mubr.bf16.mxu0 0
        %7857 = vmatmul.mubr.bf16.gmra.mxu0 %v349
        %v7858 = vpop.f32.mrf.mxu0
        %v7859 = vadd.f32 0.0, %v7858
        %v7860 = vpop.f32.mrf.mxu0
        %v7861 = vadd.f32 0.0, %v7860
        %v7862 = vpop.f32.mrf.mxu0
        %v7863 = vadd.f32 0.0, %v7862
        %v7864 = vpop.f32.mrf.mxu0
        %v7865 = vadd.f32 0.0, %v7864
        %7866 = vmatprep.mubr.bf16.mxu0 0
        %7867 = vmatmul.mubr.bf16.gmra.mxu0 %v350
        %v7868 = vpop.f32.mrf.mxu0
        %v7869 = vadd.f32 0.0, %v7868
        %v7870 = vpop.f32.mrf.mxu0
        %v7871 = vadd.f32 0.0, %v7870
        %v7872 = vpop.f32.mrf.mxu0
        %v7873 = vadd.f32 0.0, %v7872
        %v7874 = vpop.f32.mrf.mxu0
        %v7875 = vadd.f32 0.0, %v7874
        %7876 = vmatprep.mubr.bf16.mxu0 0
        %7877 = vmatmul.mubr.bf16.gmra.mxu0 %v351
        %v7878 = vpop.f32.mrf.mxu0
        %v7879 = vadd.f32 0.0, %v7878
        %v7880 = vpop.f32.mrf.mxu0
        %v7881 = vadd.f32 0.0, %v7880
        %v7882 = vpop.f32.mrf.mxu0
        %v7883 = vadd.f32 0.0, %v7882
        %v7884 = vpop.f32.mrf.mxu0
        %v7885 = vadd.f32 0.0, %v7884
        %7886 = vmatprep.mubr.bf16.mxu0 0
        %7887 = vmatmul.mubr.bf16.gmra.mxu0 %v352
        %v7888 = vpop.f32.mrf.mxu0
        %v7889 = vadd.f32 0.0, %v7888
        %v7890 = vpop.f32.mrf.mxu0
        %v7891 = vadd.f32 0.0, %v7890
        %v7892 = vpop.f32.mrf.mxu0
        %v7893 = vadd.f32 0.0, %v7892
        %v7894 = vpop.f32.mrf.mxu0
        %v7895 = vadd.f32 0.0, %v7894
        %7896 = vdwg.mxu0
        %7897 = vmatprep.subr.bf16.mxu0 %v6056
        %7898 = vmatpush1.bf16.msra.mxu0 %v6055
        %7899 = vmatprep.subr.bf16.mxu0 %v6024
        %7900 = vmatpush1.bf16.msra.mxu0 %v6023
        %7901 = vmatprep.subr.bf16.mxu0 %v5992
        %7902 = vmatpush1.bf16.msra.mxu0 %v5991
        %7903 = vmatprep.subr.bf16.mxu0 %v5960
        %7904 = vmatpush1.bf16.msra.mxu0 %v5959
        %7905 = vmatprep.subr.bf16.mxu0 %v5928
        %7906 = vmatpush1.bf16.msra.mxu0 %v5927
        %7907 = vmatprep.subr.bf16.mxu0 %v5896
        %7908 = vmatpush1.bf16.msra.mxu0 %v5895
        %7909 = vmatprep.subr.bf16.mxu0 %v5864
        %7910 = vmatpush1.bf16.msra.mxu0 %v5863
        %7911 = vmatprep.subr.bf16.mxu0 %v5832
        %7912 = vmatpush1.bf16.msra.mxu0 %v5831
        %7913 = vmatprep.subr.bf16.mxu0 0
        %7914 = vmatpush2.bf16.msra.mxu0 0
        %7915 = vmatprep.subr.bf16.mxu0 0
        %7916 = vmatpush2.bf16.msra.mxu0 0
        %7917 = vmatprep.subr.bf16.mxu0 0
        %7918 = vmatpush2.bf16.msra.mxu0 0
        %7919 = vmatprep.subr.bf16.mxu0 0
        %7920 = vmatpush2.bf16.msra.mxu0 0
        %7921 = vmatprep.subr.bf16.mxu0 0
        %7922 = vmatpush2.bf16.msra.mxu0 0
        %7923 = vmatprep.subr.bf16.mxu0 0
        %7924 = vmatpush2.bf16.msra.mxu0 0
        %7925 = vmatprep.subr.bf16.mxu0 0
        %7926 = vmatpush2.bf16.msra.mxu0 0
        %7927 = vmatprep.subr.bf16.mxu0 0
        %7928 = vmatpush2.bf16.msra.mxu0 0
        %7929 = vmatprep.mubr.bf16.mxu0 0
        %7930 = vmatmul.mubr.bf16.gmra.mxu0 %v345
        %v7931 = vpop.f32.mrf.mxu0
        %v7932 = vadd.f32 0.0, %v7931
        %v7933 = vpop.f32.mrf.mxu0
        %v7934 = vadd.f32 0.0, %v7933
        %v7935 = vpop.f32.mrf.mxu0
        %v7936 = vadd.f32 0.0, %v7935
        %v7937 = vpop.f32.mrf.mxu0
        %v7938 = vadd.f32 0.0, %v7937
        %7939 = vmatprep.mubr.bf16.mxu0 0
        %7940 = vmatmul.mubr.bf16.gmra.mxu0 %v346
        %v7941 = vpop.f32.mrf.mxu0
        %v7942 = vadd.f32 0.0, %v7941
        %v7943 = vpop.f32.mrf.mxu0
        %v7944 = vadd.f32 0.0, %v7943
        %v7945 = vpop.f32.mrf.mxu0
        %v7946 = vadd.f32 0.0, %v7945
        %v7947 = vpop.f32.mrf.mxu0
        %v7948 = vadd.f32 0.0, %v7947
        %7949 = vmatprep.mubr.bf16.mxu0 0
        %7950 = vmatmul.mubr.bf16.gmra.mxu0 %v347
        %v7951 = vpop.f32.mrf.mxu0
        %v7952 = vadd.f32 0.0, %v7951
        %v7953 = vpop.f32.mrf.mxu0
        %v7954 = vadd.f32 0.0, %v7953
        %v7955 = vpop.f32.mrf.mxu0
        %v7956 = vadd.f32 0.0, %v7955
        %v7957 = vpop.f32.mrf.mxu0
        %v7958 = vadd.f32 0.0, %v7957
        %7959 = vmatprep.mubr.bf16.mxu0 0
        %7960 = vmatmul.mubr.bf16.gmra.mxu0 %v348
        %v7961 = vpop.f32.mrf.mxu0
        %v7962 = vadd.f32 0.0, %v7961
        %v7963 = vpop.f32.mrf.mxu0
        %v7964 = vadd.f32 0.0, %v7963
        %v7965 = vpop.f32.mrf.mxu0
        %v7966 = vadd.f32 0.0, %v7965
        %v7967 = vpop.f32.mrf.mxu0
        %v7968 = vadd.f32 0.0, %v7967
        %7969 = vmatprep.mubr.bf16.mxu0 0
        %7970 = vmatmul.mubr.bf16.gmra.mxu0 %v349
        %v7971 = vpop.f32.mrf.mxu0
        %v7972 = vadd.f32 0.0, %v7971
        %v7973 = vpop.f32.mrf.mxu0
        %v7974 = vadd.f32 0.0, %v7973
        %v7975 = vpop.f32.mrf.mxu0
        %v7976 = vadd.f32 0.0, %v7975
        %v7977 = vpop.f32.mrf.mxu0
        %v7978 = vadd.f32 0.0, %v7977
        %7979 = vmatprep.mubr.bf16.mxu0 0
        %7980 = vmatmul.mubr.bf16.gmra.mxu0 %v350
        %v7981 = vpop.f32.mrf.mxu0
        %v7982 = vadd.f32 0.0, %v7981
        %v7983 = vpop.f32.mrf.mxu0
        %v7984 = vadd.f32 0.0, %v7983
        %v7985 = vpop.f32.mrf.mxu0
        %v7986 = vadd.f32 0.0, %v7985
        %v7987 = vpop.f32.mrf.mxu0
        %v7988 = vadd.f32 0.0, %v7987
        %7989 = vmatprep.mubr.bf16.mxu0 0
        %7990 = vmatmul.mubr.bf16.gmra.mxu0 %v351
        %v7991 = vpop.f32.mrf.mxu0
        %v7992 = vadd.f32 0.0, %v7991
        %v7993 = vpop.f32.mrf.mxu0
        %v7994 = vadd.f32 0.0, %v7993
        %v7995 = vpop.f32.mrf.mxu0
        %v7996 = vadd.f32 0.0, %v7995
        %v7997 = vpop.f32.mrf.mxu0
        %v7998 = vadd.f32 0.0, %v7997
        %7999 = vmatprep.mubr.bf16.mxu0 0
        %8000 = vmatmul.mubr.bf16.gmra.mxu0 %v352
        %v8001 = vpop.f32.mrf.mxu0
        %v8002 = vadd.f32 0.0, %v8001
        %v8003 = vpop.f32.mrf.mxu0
        %v8004 = vadd.f32 0.0, %v8003
        %v8005 = vpop.f32.mrf.mxu0
        %v8006 = vadd.f32 0.0, %v8005
        %v8007 = vpop.f32.mrf.mxu0
        %v8008 = vadd.f32 0.0, %v8007
        %8009 = vdwg.mxu0
        %8010 = vmatprep.subr.bf16.mxu0 %v6058
        %8011 = vmatpush1.bf16.msra.mxu0 %v6057
        %8012 = vmatprep.subr.bf16.mxu0 %v6026
        %8013 = vmatpush1.bf16.msra.mxu0 %v6025
        %8014 = vmatprep.subr.bf16.mxu0 %v5994
        %8015 = vmatpush1.bf16.msra.mxu0 %v5993
        %8016 = vmatprep.subr.bf16.mxu0 %v5962
        %8017 = vmatpush1.bf16.msra.mxu0 %v5961
        %8018 = vmatprep.subr.bf16.mxu0 %v5930
        %8019 = vmatpush1.bf16.msra.mxu0 %v5929
        %8020 = vmatprep.subr.bf16.mxu0 %v5898
        %8021 = vmatpush1.bf16.msra.mxu0 %v5897
        %8022 = vmatprep.subr.bf16.mxu0 %v5866
        %8023 = vmatpush1.bf16.msra.mxu0 %v5865
        %8024 = vmatprep.subr.bf16.mxu0 %v5834
        %8025 = vmatpush1.bf16.msra.mxu0 %v5833
        %8026 = vmatprep.subr.bf16.mxu0 0
        %8027 = vmatpush2.bf16.msra.mxu0 0
        %8028 = vmatprep.subr.bf16.mxu0 0
        %8029 = vmatpush2.bf16.msra.mxu0 0
        %8030 = vmatprep.subr.bf16.mxu0 0
        %8031 = vmatpush2.bf16.msra.mxu0 0
        %8032 = vmatprep.subr.bf16.mxu0 0
        %8033 = vmatpush2.bf16.msra.mxu0 0
        %8034 = vmatprep.subr.bf16.mxu0 0
        %8035 = vmatpush2.bf16.msra.mxu0 0
        %8036 = vmatprep.subr.bf16.mxu0 0
        %8037 = vmatpush2.bf16.msra.mxu0 0
        %8038 = vmatprep.subr.bf16.mxu0 0
        %8039 = vmatpush2.bf16.msra.mxu0 0
        %8040 = vmatprep.subr.bf16.mxu0 0
        %8041 = vmatpush2.bf16.msra.mxu0 0
        %8042 = vmatprep.mubr.bf16.mxu0 0
        %8043 = vmatmul.mubr.bf16.gmra.mxu0 %v345
        %v8044 = vpop.f32.mrf.mxu0
        %v8045 = vadd.f32 0.0, %v8044
        %v8046 = vpop.f32.mrf.mxu0
        %v8047 = vadd.f32 0.0, %v8046
        %v8048 = vpop.f32.mrf.mxu0
        %v8049 = vadd.f32 0.0, %v8048
        %v8050 = vpop.f32.mrf.mxu0
        %v8051 = vadd.f32 0.0, %v8050
        %8052 = vmatprep.mubr.bf16.mxu0 0
        %8053 = vmatmul.mubr.bf16.gmra.mxu0 %v346
        %v8054 = vpop.f32.mrf.mxu0
        %v8055 = vadd.f32 0.0, %v8054
        %v8056 = vpop.f32.mrf.mxu0
        %v8057 = vadd.f32 0.0, %v8056
        %v8058 = vpop.f32.mrf.mxu0
        %v8059 = vadd.f32 0.0, %v8058
        %v8060 = vpop.f32.mrf.mxu0
        %v8061 = vadd.f32 0.0, %v8060
        %8062 = vmatprep.mubr.bf16.mxu0 0
        %8063 = vmatmul.mubr.bf16.gmra.mxu0 %v347
        %v8064 = vpop.f32.mrf.mxu0
        %v8065 = vadd.f32 0.0, %v8064
        %v8066 = vpop.f32.mrf.mxu0
        %v8067 = vadd.f32 0.0, %v8066
        %v8068 = vpop.f32.mrf.mxu0
        %v8069 = vadd.f32 0.0, %v8068
        %v8070 = vpop.f32.mrf.mxu0
        %v8071 = vadd.f32 0.0, %v8070
        %8072 = vmatprep.mubr.bf16.mxu0 0
        %8073 = vmatmul.mubr.bf16.gmra.mxu0 %v348
        %v8074 = vpop.f32.mrf.mxu0
        %v8075 = vadd.f32 0.0, %v8074
        %v8076 = vpop.f32.mrf.mxu0
        %v8077 = vadd.f32 0.0, %v8076
        %v8078 = vpop.f32.mrf.mxu0
        %v8079 = vadd.f32 0.0, %v8078
        %v8080 = vpop.f32.mrf.mxu0
        %v8081 = vadd.f32 0.0, %v8080
        %8082 = vmatprep.mubr.bf16.mxu0 0
        %8083 = vmatmul.mubr.bf16.gmra.mxu0 %v349
        %v8084 = vpop.f32.mrf.mxu0
        %v8085 = vadd.f32 0.0, %v8084
        %v8086 = vpop.f32.mrf.mxu0
        %v8087 = vadd.f32 0.0, %v8086
        %v8088 = vpop.f32.mrf.mxu0
        %v8089 = vadd.f32 0.0, %v8088
        %v8090 = vpop.f32.mrf.mxu0
        %v8091 = vadd.f32 0.0, %v8090
        %8092 = vmatprep.mubr.bf16.mxu0 0
        %8093 = vmatmul.mubr.bf16.gmra.mxu0 %v350
        %v8094 = vpop.f32.mrf.mxu0
        %v8095 = vadd.f32 0.0, %v8094
        %v8096 = vpop.f32.mrf.mxu0
        %v8097 = vadd.f32 0.0, %v8096
        %v8098 = vpop.f32.mrf.mxu0
        %v8099 = vadd.f32 0.0, %v8098
        %v8100 = vpop.f32.mrf.mxu0
        %v8101 = vadd.f32 0.0, %v8100
        %8102 = vmatprep.mubr.bf16.mxu0 0
        %8103 = vmatmul.mubr.bf16.gmra.mxu0 %v351
        %v8104 = vpop.f32.mrf.mxu0
        %v8105 = vadd.f32 0.0, %v8104
        %v8106 = vpop.f32.mrf.mxu0
        %v8107 = vadd.f32 0.0, %v8106
        %v8108 = vpop.f32.mrf.mxu0
        %v8109 = vadd.f32 0.0, %v8108
        %v8110 = vpop.f32.mrf.mxu0
        %v8111 = vadd.f32 0.0, %v8110
        %8112 = vmatprep.mubr.bf16.mxu0 0
        %8113 = vmatmul.mubr.bf16.gmra.mxu0 %v352
        %v8114 = vpop.f32.mrf.mxu0
        %v8115 = vadd.f32 0.0, %v8114
        %v8116 = vpop.f32.mrf.mxu0
        %v8117 = vadd.f32 0.0, %v8116
        %v8118 = vpop.f32.mrf.mxu0
        %v8119 = vadd.f32 0.0, %v8118
        %v8120 = vpop.f32.mrf.mxu0
        %v8121 = vadd.f32 0.0, %v8120
        %8122 = vdwg.mxu0
        %v8123 = vmul.f32 %v3006, %v6350
        %v8124 = vmul.f32 %v3010, %v6354
        %v8125 = vmul.f32 %v3016, %v6360
        %v8126 = vmul.f32 %v3020, %v6364
        %v8127 = vmul.f32 %v3026, %v6370
        %v8128 = vmul.f32 %v3030, %v6374
        %v8129 = vmul.f32 %v3036, %v6380
        %v8130 = vmul.f32 %v3040, %v6384
        %v8131 = vmul.f32 %v3046, %v6390
        %v8132 = vmul.f32 %v3050, %v6394
        %v8133 = vmul.f32 %v3056, %v6400
        %v8134 = vmul.f32 %v3060, %v6404
        %v8135 = vmul.f32 %v3066, %v6410
        %v8136 = vmul.f32 %v3070, %v6414
        %v8137 = vmul.f32 %v3076, %v6420
        %v8138 = vmul.f32 %v3080, %v6424
        %v8139 = vmul.f32 %v3008, %v6352
        %v8140 = vmul.f32 %v3012, %v6356
        %v8141 = vmul.f32 %v3018, %v6362
        %v8142 = vmul.f32 %v3022, %v6366
        %v8143 = vmul.f32 %v3028, %v6372
        %v8144 = vmul.f32 %v3032, %v6376
        %v8145 = vmul.f32 %v3038, %v6382
        %v8146 = vmul.f32 %v3042, %v6386
        %v8147 = vmul.f32 %v3048, %v6392
        %v8148 = vmul.f32 %v3052, %v6396
        %v8149 = vmul.f32 %v3058, %v6402
        %v8150 = vmul.f32 %v3062, %v6406
        %v8151 = vmul.f32 %v3068, %v6412
        %v8152 = vmul.f32 %v3072, %v6416
        %v8153 = vmul.f32 %v3078, %v6422
        %v8154 = vmul.f32 %v3082, %v6426
        %v8155 = vmul.f32 %v3119, %v6463
        %v8156 = vmul.f32 %v3123, %v6467
        %v8157 = vmul.f32 %v3129, %v6473
        %v8158 = vmul.f32 %v3133, %v6477
        %v8159 = vmul.f32 %v3139, %v6483
        %v8160 = vmul.f32 %v3143, %v6487
        %v8161 = vmul.f32 %v3149, %v6493
        %v8162 = vmul.f32 %v3153, %v6497
        %v8163 = vmul.f32 %v3159, %v6503
        %v8164 = vmul.f32 %v3163, %v6507
        %v8165 = vmul.f32 %v3169, %v6513
        %v8166 = vmul.f32 %v3173, %v6517
        %v8167 = vmul.f32 %v3179, %v6523
        %v8168 = vmul.f32 %v3183, %v6527
        %v8169 = vmul.f32 %v3189, %v6533
        %v8170 = vmul.f32 %v3193, %v6537
        %v8171 = vmul.f32 %v3121, %v6465
        %v8172 = vmul.f32 %v3125, %v6469
        %v8173 = vmul.f32 %v3131, %v6475
        %v8174 = vmul.f32 %v3135, %v6479
        %v8175 = vmul.f32 %v3141, %v6485
        %v8176 = vmul.f32 %v3145, %v6489
        %v8177 = vmul.f32 %v3151, %v6495
        %v8178 = vmul.f32 %v3155, %v6499
        %v8179 = vmul.f32 %v3161, %v6505
        %v8180 = vmul.f32 %v3165, %v6509
        %v8181 = vmul.f32 %v3171, %v6515
        %v8182 = vmul.f32 %v3175, %v6519
        %v8183 = vmul.f32 %v3181, %v6525
        %v8184 = vmul.f32 %v3185, %v6529
        %v8185 = vmul.f32 %v3191, %v6535
        %v8186 = vmul.f32 %v3195, %v6539
        %v8187 = vmul.f32 %v3232, %v6576
        %v8188 = vmul.f32 %v3236, %v6580
        %v8189 = vmul.f32 %v3242, %v6586
        %v8190 = vmul.f32 %v3246, %v6590
        %v8191 = vmul.f32 %v3252, %v6596
        %v8192 = vmul.f32 %v3256, %v6600
        %v8193 = vmul.f32 %v3262, %v6606
        %v8194 = vmul.f32 %v3266, %v6610
        %v8195 = vmul.f32 %v3272, %v6616
        %v8196 = vmul.f32 %v3276, %v6620
        %v8197 = vmul.f32 %v3282, %v6626
        %v8198 = vmul.f32 %v3286, %v6630
        %v8199 = vmul.f32 %v3292, %v6636
        %v8200 = vmul.f32 %v3296, %v6640
        %v8201 = vmul.f32 %v3302, %v6646
        %v8202 = vmul.f32 %v3306, %v6650
        %v8203 = vmul.f32 %v3234, %v6578
        %v8204 = vmul.f32 %v3238, %v6582
        %v8205 = vmul.f32 %v3244, %v6588
        %v8206 = vmul.f32 %v3248, %v6592
        %v8207 = vmul.f32 %v3254, %v6598
        %v8208 = vmul.f32 %v3258, %v6602
        %v8209 = vmul.f32 %v3264, %v6608
        %v8210 = vmul.f32 %v3268, %v6612
        %v8211 = vmul.f32 %v3274, %v6618
        %v8212 = vmul.f32 %v3278, %v6622
        %v8213 = vmul.f32 %v3284, %v6628
        %v8214 = vmul.f32 %v3288, %v6632
        %v8215 = vmul.f32 %v3294, %v6638
        %v8216 = vmul.f32 %v3298, %v6642
        %v8217 = vmul.f32 %v3304, %v6648
        %v8218 = vmul.f32 %v3308, %v6652
        %v8219 = vmul.f32 %v3345, %v6689
        %v8220 = vmul.f32 %v3349, %v6693
        %v8221 = vmul.f32 %v3355, %v6699
        %v8222 = vmul.f32 %v3359, %v6703
        %v8223 = vmul.f32 %v3365, %v6709
        %v8224 = vmul.f32 %v3369, %v6713
        %v8225 = vmul.f32 %v3375, %v6719
        %v8226 = vmul.f32 %v3379, %v6723
        %v8227 = vmul.f32 %v3385, %v6729
        %v8228 = vmul.f32 %v3389, %v6733
        %v8229 = vmul.f32 %v3395, %v6739
        %v8230 = vmul.f32 %v3399, %v6743
        %v8231 = vmul.f32 %v3405, %v6749
        %v8232 = vmul.f32 %v3409, %v6753
        %v8233 = vmul.f32 %v3415, %v6759
        %v8234 = vmul.f32 %v3419, %v6763
        %v8235 = vmul.f32 %v3347, %v6691
        %v8236 = vmul.f32 %v3351, %v6695
        %v8237 = vmul.f32 %v3357, %v6701
        %v8238 = vmul.f32 %v3361, %v6705
        %v8239 = vmul.f32 %v3367, %v6711
        %v8240 = vmul.f32 %v3371, %v6715
        %v8241 = vmul.f32 %v3377, %v6721
        %v8242 = vmul.f32 %v3381, %v6725
        %v8243 = vmul.f32 %v3387, %v6731
        %v8244 = vmul.f32 %v3391, %v6735
        %v8245 = vmul.f32 %v3397, %v6741
        %v8246 = vmul.f32 %v3401, %v6745
        %v8247 = vmul.f32 %v3407, %v6751
        %v8248 = vmul.f32 %v3411, %v6755
        %v8249 = vmul.f32 %v3417, %v6761
        %v8250 = vmul.f32 %v3421, %v6765
        %v8251 = vmul.f32 %v3458, %v6802
        %v8252 = vmul.f32 %v3462, %v6806
        %v8253 = vmul.f32 %v3468, %v6812
        %v8254 = vmul.f32 %v3472, %v6816
        %v8255 = vmul.f32 %v3478, %v6822
        %v8256 = vmul.f32 %v3482, %v6826
        %v8257 = vmul.f32 %v3488, %v6832
        %v8258 = vmul.f32 %v3492, %v6836
        %v8259 = vmul.f32 %v3498, %v6842
        %v8260 = vmul.f32 %v3502, %v6846
        %v8261 = vmul.f32 %v3508, %v6852
        %v8262 = vmul.f32 %v3512, %v6856
        %v8263 = vmul.f32 %v3518, %v6862
        %v8264 = vmul.f32 %v3522, %v6866
        %v8265 = vmul.f32 %v3528, %v6872
        %v8266 = vmul.f32 %v3532, %v6876
        %v8267 = vmul.f32 %v3460, %v6804
        %v8268 = vmul.f32 %v3464, %v6808
        %v8269 = vmul.f32 %v3470, %v6814
        %v8270 = vmul.f32 %v3474, %v6818
        %v8271 = vmul.f32 %v3480, %v6824
        %v8272 = vmul.f32 %v3484, %v6828
        %v8273 = vmul.f32 %v3490, %v6834
        %v8274 = vmul.f32 %v3494, %v6838
        %v8275 = vmul.f32 %v3500, %v6844
        %v8276 = vmul.f32 %v3504, %v6848
        %v8277 = vmul.f32 %v3510, %v6854
        %v8278 = vmul.f32 %v3514, %v6858
        %v8279 = vmul.f32 %v3520, %v6864
        %v8280 = vmul.f32 %v3524, %v6868
        %v8281 = vmul.f32 %v3530, %v6874
        %v8282 = vmul.f32 %v3534, %v6878
        %v8283 = vmul.f32 %v3571, %v6915
        %v8284 = vmul.f32 %v3575, %v6919
        %v8285 = vmul.f32 %v3581, %v6925
        %v8286 = vmul.f32 %v3585, %v6929
        %v8287 = vmul.f32 %v3591, %v6935
        %v8288 = vmul.f32 %v3595, %v6939
        %v8289 = vmul.f32 %v3601, %v6945
        %v8290 = vmul.f32 %v3605, %v6949
        %v8291 = vmul.f32 %v3611, %v6955
        %v8292 = vmul.f32 %v3615, %v6959
        %v8293 = vmul.f32 %v3621, %v6965
        %v8294 = vmul.f32 %v3625, %v6969
        %v8295 = vmul.f32 %v3631, %v6975
        %v8296 = vmul.f32 %v3635, %v6979
        %v8297 = vmul.f32 %v3641, %v6985
        %v8298 = vmul.f32 %v3645, %v6989
        %v8299 = vmul.f32 %v3573, %v6917
        %v8300 = vmul.f32 %v3577, %v6921
        %v8301 = vmul.f32 %v3583, %v6927
        %v8302 = vmul.f32 %v3587, %v6931
        %v8303 = vmul.f32 %v3593, %v6937
        %v8304 = vmul.f32 %v3597, %v6941
        %v8305 = vmul.f32 %v3603, %v6947
        %v8306 = vmul.f32 %v3607, %v6951
        %v8307 = vmul.f32 %v3613, %v6957
        %v8308 = vmul.f32 %v3617, %v6961
        %v8309 = vmul.f32 %v3623, %v6967
        %v8310 = vmul.f32 %v3627, %v6971
        %v8311 = vmul.f32 %v3633, %v6977
        %v8312 = vmul.f32 %v3637, %v6981
        %v8313 = vmul.f32 %v3643, %v6987
        %v8314 = vmul.f32 %v3647, %v6991
        %v8315 = vmul.f32 %v3684, %v7028
        %v8316 = vmul.f32 %v3688, %v7032
        %v8317 = vmul.f32 %v3694, %v7038
        %v8318 = vmul.f32 %v3698, %v7042
        %v8319 = vmul.f32 %v3704, %v7048
        %v8320 = vmul.f32 %v3708, %v7052
        %v8321 = vmul.f32 %v3714, %v7058
        %v8322 = vmul.f32 %v3718, %v7062
        %v8323 = vmul.f32 %v3724, %v7068
        %v8324 = vmul.f32 %v3728, %v7072
        %v8325 = vmul.f32 %v3734, %v7078
        %v8326 = vmul.f32 %v3738, %v7082
        %v8327 = vmul.f32 %v3744, %v7088
        %v8328 = vmul.f32 %v3748, %v7092
        %v8329 = vmul.f32 %v3754, %v7098
        %v8330 = vmul.f32 %v3758, %v7102
        %v8331 = vmul.f32 %v3686, %v7030
        %v8332 = vmul.f32 %v3690, %v7034
        %v8333 = vmul.f32 %v3696, %v7040
        %v8334 = vmul.f32 %v3700, %v7044
        %v8335 = vmul.f32 %v3706, %v7050
        %v8336 = vmul.f32 %v3710, %v7054
        %v8337 = vmul.f32 %v3716, %v7060
        %v8338 = vmul.f32 %v3720, %v7064
        %v8339 = vmul.f32 %v3726, %v7070
        %v8340 = vmul.f32 %v3730, %v7074
        %v8341 = vmul.f32 %v3736, %v7080
        %v8342 = vmul.f32 %v3740, %v7084
        %v8343 = vmul.f32 %v3746, %v7090
        %v8344 = vmul.f32 %v3750, %v7094
        %v8345 = vmul.f32 %v3756, %v7100
        %v8346 = vmul.f32 %v3760, %v7104
        %v8347 = vmul.f32 %v3797, %v7141
        %v8348 = vmul.f32 %v3801, %v7145
        %v8349 = vmul.f32 %v3807, %v7151
        %v8350 = vmul.f32 %v3811, %v7155
        %v8351 = vmul.f32 %v3817, %v7161
        %v8352 = vmul.f32 %v3821, %v7165
        %v8353 = vmul.f32 %v3827, %v7171
        %v8354 = vmul.f32 %v3831, %v7175
        %v8355 = vmul.f32 %v3837, %v7181
        %v8356 = vmul.f32 %v3841, %v7185
        %v8357 = vmul.f32 %v3847, %v7191
        %v8358 = vmul.f32 %v3851, %v7195
        %v8359 = vmul.f32 %v3857, %v7201
        %v8360 = vmul.f32 %v3861, %v7205
        %v8361 = vmul.f32 %v3867, %v7211
        %v8362 = vmul.f32 %v3871, %v7215
        %v8363 = vmul.f32 %v3799, %v7143
        %v8364 = vmul.f32 %v3803, %v7147
        %v8365 = vmul.f32 %v3809, %v7153
        %v8366 = vmul.f32 %v3813, %v7157
        %v8367 = vmul.f32 %v3819, %v7163
        %v8368 = vmul.f32 %v3823, %v7167
        %v8369 = vmul.f32 %v3829, %v7173
        %v8370 = vmul.f32 %v3833, %v7177
        %v8371 = vmul.f32 %v3839, %v7183
        %v8372 = vmul.f32 %v3843, %v7187
        %v8373 = vmul.f32 %v3849, %v7193
        %v8374 = vmul.f32 %v3853, %v7197
        %v8375 = vmul.f32 %v3859, %v7203
        %v8376 = vmul.f32 %v3863, %v7207
        %v8377 = vmul.f32 %v3869, %v7213
        %v8378 = vmul.f32 %v3873, %v7217
        %v8379 = vmul.f32 %v3910, %v7254
        %v8380 = vmul.f32 %v3914, %v7258
        %v8381 = vmul.f32 %v3920, %v7264
        %v8382 = vmul.f32 %v3924, %v7268
        %v8383 = vmul.f32 %v3930, %v7274
        %v8384 = vmul.f32 %v3934, %v7278
        %v8385 = vmul.f32 %v3940, %v7284
        %v8386 = vmul.f32 %v3944, %v7288
        %v8387 = vmul.f32 %v3950, %v7294
        %v8388 = vmul.f32 %v3954, %v7298
        %v8389 = vmul.f32 %v3960, %v7304
        %v8390 = vmul.f32 %v3964, %v7308
        %v8391 = vmul.f32 %v3970, %v7314
        %v8392 = vmul.f32 %v3974, %v7318
        %v8393 = vmul.f32 %v3980, %v7324
        %v8394 = vmul.f32 %v3984, %v7328
        %v8395 = vmul.f32 %v3912, %v7256
        %v8396 = vmul.f32 %v3916, %v7260
        %v8397 = vmul.f32 %v3922, %v7266
        %v8398 = vmul.f32 %v3926, %v7270
        %v8399 = vmul.f32 %v3932, %v7276
        %v8400 = vmul.f32 %v3936, %v7280
        %v8401 = vmul.f32 %v3942, %v7286
        %v8402 = vmul.f32 %v3946, %v7290
        %v8403 = vmul.f32 %v3952, %v7296
        %v8404 = vmul.f32 %v3956, %v7300
        %v8405 = vmul.f32 %v3962, %v7306
        %v8406 = vmul.f32 %v3966, %v7310
        %v8407 = vmul.f32 %v3972, %v7316
        %v8408 = vmul.f32 %v3976, %v7320
        %v8409 = vmul.f32 %v3982, %v7326
        %v8410 = vmul.f32 %v3986, %v7330
        %v8411 = vmul.f32 %v4023, %v7367
        %v8412 = vmul.f32 %v4027, %v7371
        %v8413 = vmul.f32 %v4033, %v7377
        %v8414 = vmul.f32 %v4037, %v7381
        %v8415 = vmul.f32 %v4043, %v7387
        %v8416 = vmul.f32 %v4047, %v7391
        %v8417 = vmul.f32 %v4053, %v7397
        %v8418 = vmul.f32 %v4057, %v7401
        %v8419 = vmul.f32 %v4063, %v7407
        %v8420 = vmul.f32 %v4067, %v7411
        %v8421 = vmul.f32 %v4073, %v7417
        %v8422 = vmul.f32 %v4077, %v7421
        %v8423 = vmul.f32 %v4083, %v7427
        %v8424 = vmul.f32 %v4087, %v7431
        %v8425 = vmul.f32 %v4093, %v7437
        %v8426 = vmul.f32 %v4097, %v7441
        %v8427 = vmul.f32 %v4025, %v7369
        %v8428 = vmul.f32 %v4029, %v7373
        %v8429 = vmul.f32 %v4035, %v7379
        %v8430 = vmul.f32 %v4039, %v7383
        %v8431 = vmul.f32 %v4045, %v7389
        %v8432 = vmul.f32 %v4049, %v7393
        %v8433 = vmul.f32 %v4055, %v7399
        %v8434 = vmul.f32 %v4059, %v7403
        %v8435 = vmul.f32 %v4065, %v7409
        %v8436 = vmul.f32 %v4069, %v7413
        %v8437 = vmul.f32 %v4075, %v7419
        %v8438 = vmul.f32 %v4079, %v7423
        %v8439 = vmul.f32 %v4085, %v7429
        %v8440 = vmul.f32 %v4089, %v7433
        %v8441 = vmul.f32 %v4095, %v7439
        %v8442 = vmul.f32 %v4099, %v7443
        %v8443 = vmul.f32 %v4136, %v7480
        %v8444 = vmul.f32 %v4140, %v7484
        %v8445 = vmul.f32 %v4146, %v7490
        %v8446 = vmul.f32 %v4150, %v7494
        %v8447 = vmul.f32 %v4156, %v7500
        %v8448 = vmul.f32 %v4160, %v7504
        %v8449 = vmul.f32 %v4166, %v7510
        %v8450 = vmul.f32 %v4170, %v7514
        %v8451 = vmul.f32 %v4176, %v7520
        %v8452 = vmul.f32 %v4180, %v7524
        %v8453 = vmul.f32 %v4186, %v7530
        %v8454 = vmul.f32 %v4190, %v7534
        %v8455 = vmul.f32 %v4196, %v7540
        %v8456 = vmul.f32 %v4200, %v7544
        %v8457 = vmul.f32 %v4206, %v7550
        %v8458 = vmul.f32 %v4210, %v7554
        %v8459 = vmul.f32 %v4138, %v7482
        %v8460 = vmul.f32 %v4142, %v7486
        %v8461 = vmul.f32 %v4148, %v7492
        %v8462 = vmul.f32 %v4152, %v7496
        %v8463 = vmul.f32 %v4158, %v7502
        %v8464 = vmul.f32 %v4162, %v7506
        %v8465 = vmul.f32 %v4168, %v7512
        %v8466 = vmul.f32 %v4172, %v7516
        %v8467 = vmul.f32 %v4178, %v7522
        %v8468 = vmul.f32 %v4182, %v7526
        %v8469 = vmul.f32 %v4188, %v7532
        %v8470 = vmul.f32 %v4192, %v7536
        %v8471 = vmul.f32 %v4198, %v7542
        %v8472 = vmul.f32 %v4202, %v7546
        %v8473 = vmul.f32 %v4208, %v7552
        %v8474 = vmul.f32 %v4212, %v7556
        %v8475 = vmul.f32 %v4249, %v7593
        %v8476 = vmul.f32 %v4253, %v7597
        %v8477 = vmul.f32 %v4259, %v7603
        %v8478 = vmul.f32 %v4263, %v7607
        %v8479 = vmul.f32 %v4269, %v7613
        %v8480 = vmul.f32 %v4273, %v7617
        %v8481 = vmul.f32 %v4279, %v7623
        %v8482 = vmul.f32 %v4283, %v7627
        %v8483 = vmul.f32 %v4289, %v7633
        %v8484 = vmul.f32 %v4293, %v7637
        %v8485 = vmul.f32 %v4299, %v7643
        %v8486 = vmul.f32 %v4303, %v7647
        %v8487 = vmul.f32 %v4309, %v7653
        %v8488 = vmul.f32 %v4313, %v7657
        %v8489 = vmul.f32 %v4319, %v7663
        %v8490 = vmul.f32 %v4323, %v7667
        %v8491 = vmul.f32 %v4251, %v7595
        %v8492 = vmul.f32 %v4255, %v7599
        %v8493 = vmul.f32 %v4261, %v7605
        %v8494 = vmul.f32 %v4265, %v7609
        %v8495 = vmul.f32 %v4271, %v7615
        %v8496 = vmul.f32 %v4275, %v7619
        %v8497 = vmul.f32 %v4281, %v7625
        %v8498 = vmul.f32 %v4285, %v7629
        %v8499 = vmul.f32 %v4291, %v7635
        %v8500 = vmul.f32 %v4295, %v7639
        %v8501 = vmul.f32 %v4301, %v7645
        %v8502 = vmul.f32 %v4305, %v7649
        %v8503 = vmul.f32 %v4311, %v7655
        %v8504 = vmul.f32 %v4315, %v7659
        %v8505 = vmul.f32 %v4321, %v7665
        %v8506 = vmul.f32 %v4325, %v7669
        %v8507 = vmul.f32 %v4362, %v7706
        %v8508 = vmul.f32 %v4366, %v7710
        %v8509 = vmul.f32 %v4372, %v7716
        %v8510 = vmul.f32 %v4376, %v7720
        %v8511 = vmul.f32 %v4382, %v7726
        %v8512 = vmul.f32 %v4386, %v7730
        %v8513 = vmul.f32 %v4392, %v7736
        %v8514 = vmul.f32 %v4396, %v7740
        %v8515 = vmul.f32 %v4402, %v7746
        %v8516 = vmul.f32 %v4406, %v7750
        %v8517 = vmul.f32 %v4412, %v7756
        %v8518 = vmul.f32 %v4416, %v7760
        %v8519 = vmul.f32 %v4422, %v7766
        %v8520 = vmul.f32 %v4426, %v7770
        %v8521 = vmul.f32 %v4432, %v7776
        %v8522 = vmul.f32 %v4436, %v7780
        %v8523 = vmul.f32 %v4364, %v7708
        %v8524 = vmul.f32 %v4368, %v7712
        %v8525 = vmul.f32 %v4374, %v7718
        %v8526 = vmul.f32 %v4378, %v7722
        %v8527 = vmul.f32 %v4384, %v7728
        %v8528 = vmul.f32 %v4388, %v7732
        %v8529 = vmul.f32 %v4394, %v7738
        %v8530 = vmul.f32 %v4398, %v7742
        %v8531 = vmul.f32 %v4404, %v7748
        %v8532 = vmul.f32 %v4408, %v7752
        %v8533 = vmul.f32 %v4414, %v7758
        %v8534 = vmul.f32 %v4418, %v7762
        %v8535 = vmul.f32 %v4424, %v7768
        %v8536 = vmul.f32 %v4428, %v7772
        %v8537 = vmul.f32 %v4434, %v7778
        %v8538 = vmul.f32 %v4438, %v7782
        %v8539 = vmul.f32 %v4475, %v7819
        %v8540 = vmul.f32 %v4479, %v7823
        %v8541 = vmul.f32 %v4485, %v7829
        %v8542 = vmul.f32 %v4489, %v7833
        %v8543 = vmul.f32 %v4495, %v7839
        %v8544 = vmul.f32 %v4499, %v7843
        %v8545 = vmul.f32 %v4505, %v7849
        %v8546 = vmul.f32 %v4509, %v7853
        %v8547 = vmul.f32 %v4515, %v7859
        %v8548 = vmul.f32 %v4519, %v7863
        %v8549 = vmul.f32 %v4525, %v7869
        %v8550 = vmul.f32 %v4529, %v7873
        %v8551 = vmul.f32 %v4535, %v7879
        %v8552 = vmul.f32 %v4539, %v7883
        %v8553 = vmul.f32 %v4545, %v7889
        %v8554 = vmul.f32 %v4549, %v7893
        %v8555 = vmul.f32 %v4477, %v7821
        %v8556 = vmul.f32 %v4481, %v7825
        %v8557 = vmul.f32 %v4487, %v7831
        %v8558 = vmul.f32 %v4491, %v7835
        %v8559 = vmul.f32 %v4497, %v7841
        %v8560 = vmul.f32 %v4501, %v7845
        %v8561 = vmul.f32 %v4507, %v7851
        %v8562 = vmul.f32 %v4511, %v7855
        %v8563 = vmul.f32 %v4517, %v7861
        %v8564 = vmul.f32 %v4521, %v7865
        %v8565 = vmul.f32 %v4527, %v7871
        %v8566 = vmul.f32 %v4531, %v7875
        %v8567 = vmul.f32 %v4537, %v7881
        %v8568 = vmul.f32 %v4541, %v7885
        %v8569 = vmul.f32 %v4547, %v7891
        %v8570 = vmul.f32 %v4551, %v7895
        %v8571 = vmul.f32 %v4588, %v7932
        %v8572 = vmul.f32 %v4592, %v7936
        %v8573 = vmul.f32 %v4598, %v7942
        %v8574 = vmul.f32 %v4602, %v7946
        %v8575 = vmul.f32 %v4608, %v7952
        %v8576 = vmul.f32 %v4612, %v7956
        %v8577 = vmul.f32 %v4618, %v7962
        %v8578 = vmul.f32 %v4622, %v7966
        %v8579 = vmul.f32 %v4628, %v7972
        %v8580 = vmul.f32 %v4632, %v7976
        %v8581 = vmul.f32 %v4638, %v7982
        %v8582 = vmul.f32 %v4642, %v7986
        %v8583 = vmul.f32 %v4648, %v7992
        %v8584 = vmul.f32 %v4652, %v7996
        %v8585 = vmul.f32 %v4658, %v8002
        %v8586 = vmul.f32 %v4662, %v8006
        %v8587 = vmul.f32 %v4590, %v7934
        %v8588 = vmul.f32 %v4594, %v7938
        %v8589 = vmul.f32 %v4600, %v7944
        %v8590 = vmul.f32 %v4604, %v7948
        %v8591 = vmul.f32 %v4610, %v7954
        %v8592 = vmul.f32 %v4614, %v7958
        %v8593 = vmul.f32 %v4620, %v7964
        %v8594 = vmul.f32 %v4624, %v7968
        %v8595 = vmul.f32 %v4630, %v7974
        %v8596 = vmul.f32 %v4634, %v7978
        %v8597 = vmul.f32 %v4640, %v7984
        %v8598 = vmul.f32 %v4644, %v7988
        %v8599 = vmul.f32 %v4650, %v7994
        %v8600 = vmul.f32 %v4654, %v7998
        %v8601 = vmul.f32 %v4660, %v8004
        %v8602 = vmul.f32 %v4664, %v8008
        %v8603 = vmul.f32 %v4701, %v8045
        %v8604 = vmul.f32 %v4705, %v8049
        %v8605 = vmul.f32 %v4711, %v8055
        %v8606 = vmul.f32 %v4715, %v8059
        %v8607 = vmul.f32 %v4721, %v8065
        %v8608 = vmul.f32 %v4725, %v8069
        %v8609 = vmul.f32 %v4731, %v8075
        %v8610 = vmul.f32 %v4735, %v8079
        %v8611 = vmul.f32 %v4741, %v8085
        %v8612 = vmul.f32 %v4745, %v8089
        %v8613 = vmul.f32 %v4751, %v8095
        %v8614 = vmul.f32 %v4755, %v8099
        %v8615 = vmul.f32 %v4761, %v8105
        %v8616 = vmul.f32 %v4765, %v8109
        %v8617 = vmul.f32 %v4771, %v8115
        %v8618 = vmul.f32 %v4775, %v8119
        %v8619 = vmul.f32 %v4703, %v8047
        %v8620 = vmul.f32 %v4707, %v8051
        %v8621 = vmul.f32 %v4713, %v8057
        %v8622 = vmul.f32 %v4717, %v8061
        %v8623 = vmul.f32 %v4723, %v8067
        %v8624 = vmul.f32 %v4727, %v8071
        %v8625 = vmul.f32 %v4733, %v8077
        %v8626 = vmul.f32 %v4737, %v8081
        %v8627 = vmul.f32 %v4743, %v8087
        %v8628 = vmul.f32 %v4747, %v8091
        %v8629 = vmul.f32 %v4753, %v8097
        %v8630 = vmul.f32 %v4757, %v8101
        %v8631 = vmul.f32 %v4763, %v8107
        %v8632 = vmul.f32 %v4767, %v8111
        %v8633 = vmul.f32 %v4773, %v8117
        %v8634 = vmul.f32 %v4777, %v8121
        %v8635 = vadd.f32 %v8123, %v8139
        %v8636 = vadd.f32 %v8124, %v8140
        %v8637 = vadd.f32 %v8125, %v8141
        %v8638 = vadd.f32 %v8126, %v8142
        %v8639 = vadd.f32 %v8127, %v8143
        %v8640 = vadd.f32 %v8128, %v8144
        %v8641 = vadd.f32 %v8129, %v8145
        %v8642 = vadd.f32 %v8130, %v8146
        %v8643 = vadd.f32 %v8131, %v8147
        %v8644 = vadd.f32 %v8132, %v8148
        %v8645 = vadd.f32 %v8133, %v8149
        %v8646 = vadd.f32 %v8134, %v8150
        %v8647 = vadd.f32 %v8135, %v8151
        %v8648 = vadd.f32 %v8136, %v8152
        %v8649 = vadd.f32 %v8137, %v8153
        %v8650 = vadd.f32 %v8138, %v8154
        %v8651 = vadd.f32 %v8155, %v8171
        %v8652 = vadd.f32 %v8156, %v8172
        %v8653 = vadd.f32 %v8157, %v8173
        %v8654 = vadd.f32 %v8158, %v8174
        %v8655 = vadd.f32 %v8159, %v8175
        %v8656 = vadd.f32 %v8160, %v8176
        %v8657 = vadd.f32 %v8161, %v8177
        %v8658 = vadd.f32 %v8162, %v8178
        %v8659 = vadd.f32 %v8163, %v8179
        %v8660 = vadd.f32 %v8164, %v8180
        %v8661 = vadd.f32 %v8165, %v8181
        %v8662 = vadd.f32 %v8166, %v8182
        %v8663 = vadd.f32 %v8167, %v8183
        %v8664 = vadd.f32 %v8168, %v8184
        %v8665 = vadd.f32 %v8169, %v8185
        %v8666 = vadd.f32 %v8170, %v8186
        %v8667 = vadd.f32 %v8187, %v8203
        %v8668 = vadd.f32 %v8188, %v8204
        %v8669 = vadd.f32 %v8189, %v8205
        %v8670 = vadd.f32 %v8190, %v8206
        %v8671 = vadd.f32 %v8191, %v8207
        %v8672 = vadd.f32 %v8192, %v8208
        %v8673 = vadd.f32 %v8193, %v8209
        %v8674 = vadd.f32 %v8194, %v8210
        %v8675 = vadd.f32 %v8195, %v8211
        %v8676 = vadd.f32 %v8196, %v8212
        %v8677 = vadd.f32 %v8197, %v8213
        %v8678 = vadd.f32 %v8198, %v8214
        %v8679 = vadd.f32 %v8199, %v8215
        %v8680 = vadd.f32 %v8200, %v8216
        %v8681 = vadd.f32 %v8201, %v8217
        %v8682 = vadd.f32 %v8202, %v8218
        %v8683 = vadd.f32 %v8219, %v8235
        %v8684 = vadd.f32 %v8220, %v8236
        %v8685 = vadd.f32 %v8221, %v8237
        %v8686 = vadd.f32 %v8222, %v8238
        %v8687 = vadd.f32 %v8223, %v8239
        %v8688 = vadd.f32 %v8224, %v8240
        %v8689 = vadd.f32 %v8225, %v8241
        %v8690 = vadd.f32 %v8226, %v8242
        %v8691 = vadd.f32 %v8227, %v8243
        %v8692 = vadd.f32 %v8228, %v8244
        %v8693 = vadd.f32 %v8229, %v8245
        %v8694 = vadd.f32 %v8230, %v8246
        %v8695 = vadd.f32 %v8231, %v8247
        %v8696 = vadd.f32 %v8232, %v8248
        %v8697 = vadd.f32 %v8233, %v8249
        %v8698 = vadd.f32 %v8234, %v8250
        %v8699 = vadd.f32 %v8251, %v8267
        %v8700 = vadd.f32 %v8252, %v8268
        %v8701 = vadd.f32 %v8253, %v8269
        %v8702 = vadd.f32 %v8254, %v8270
        %v8703 = vadd.f32 %v8255, %v8271
        %v8704 = vadd.f32 %v8256, %v8272
        %v8705 = vadd.f32 %v8257, %v8273
        %v8706 = vadd.f32 %v8258, %v8274
        %v8707 = vadd.f32 %v8259, %v8275
        %v8708 = vadd.f32 %v8260, %v8276
        %v8709 = vadd.f32 %v8261, %v8277
        %v8710 = vadd.f32 %v8262, %v8278
        %v8711 = vadd.f32 %v8263, %v8279
        %v8712 = vadd.f32 %v8264, %v8280
        %v8713 = vadd.f32 %v8265, %v8281
        %v8714 = vadd.f32 %v8266, %v8282
        %v8715 = vadd.f32 %v8283, %v8299
        %v8716 = vadd.f32 %v8284, %v8300
        %v8717 = vadd.f32 %v8285, %v8301
        %v8718 = vadd.f32 %v8286, %v8302
        %v8719 = vadd.f32 %v8287, %v8303
        %v8720 = vadd.f32 %v8288, %v8304
        %v8721 = vadd.f32 %v8289, %v8305
        %v8722 = vadd.f32 %v8290, %v8306
        %v8723 = vadd.f32 %v8291, %v8307
        %v8724 = vadd.f32 %v8292, %v8308
        %v8725 = vadd.f32 %v8293, %v8309
        %v8726 = vadd.f32 %v8294, %v8310
        %v8727 = vadd.f32 %v8295, %v8311
        %v8728 = vadd.f32 %v8296, %v8312
        %v8729 = vadd.f32 %v8297, %v8313
        %v8730 = vadd.f32 %v8298, %v8314
        %v8731 = vadd.f32 %v8315, %v8331
        %v8732 = vadd.f32 %v8316, %v8332
        %v8733 = vadd.f32 %v8317, %v8333
        %v8734 = vadd.f32 %v8318, %v8334
        %v8735 = vadd.f32 %v8319, %v8335
        %v8736 = vadd.f32 %v8320, %v8336
        %v8737 = vadd.f32 %v8321, %v8337
        %v8738 = vadd.f32 %v8322, %v8338
        %v8739 = vadd.f32 %v8323, %v8339
        %v8740 = vadd.f32 %v8324, %v8340
        %v8741 = vadd.f32 %v8325, %v8341
        %v8742 = vadd.f32 %v8326, %v8342
        %v8743 = vadd.f32 %v8327, %v8343
        %v8744 = vadd.f32 %v8328, %v8344
        %v8745 = vadd.f32 %v8329, %v8345
        %v8746 = vadd.f32 %v8330, %v8346
        %v8747 = vadd.f32 %v8347, %v8363
        %v8748 = vadd.f32 %v8348, %v8364
        %v8749 = vadd.f32 %v8349, %v8365
        %v8750 = vadd.f32 %v8350, %v8366
        %v8751 = vadd.f32 %v8351, %v8367
        %v8752 = vadd.f32 %v8352, %v8368
        %v8753 = vadd.f32 %v8353, %v8369
        %v8754 = vadd.f32 %v8354, %v8370
        %v8755 = vadd.f32 %v8355, %v8371
        %v8756 = vadd.f32 %v8356, %v8372
        %v8757 = vadd.f32 %v8357, %v8373
        %v8758 = vadd.f32 %v8358, %v8374
        %v8759 = vadd.f32 %v8359, %v8375
        %v8760 = vadd.f32 %v8360, %v8376
        %v8761 = vadd.f32 %v8361, %v8377
        %v8762 = vadd.f32 %v8362, %v8378
        %v8763 = vadd.f32 %v8379, %v8395
        %v8764 = vadd.f32 %v8380, %v8396
        %v8765 = vadd.f32 %v8381, %v8397
        %v8766 = vadd.f32 %v8382, %v8398
        %v8767 = vadd.f32 %v8383, %v8399
        %v8768 = vadd.f32 %v8384, %v8400
        %v8769 = vadd.f32 %v8385, %v8401
        %v8770 = vadd.f32 %v8386, %v8402
        %v8771 = vadd.f32 %v8387, %v8403
        %v8772 = vadd.f32 %v8388, %v8404
        %v8773 = vadd.f32 %v8389, %v8405
        %v8774 = vadd.f32 %v8390, %v8406
        %v8775 = vadd.f32 %v8391, %v8407
        %v8776 = vadd.f32 %v8392, %v8408
        %v8777 = vadd.f32 %v8393, %v8409
        %v8778 = vadd.f32 %v8394, %v8410
        %v8779 = vadd.f32 %v8411, %v8427
        %v8780 = vadd.f32 %v8412, %v8428
        %v8781 = vadd.f32 %v8413, %v8429
        %v8782 = vadd.f32 %v8414, %v8430
        %v8783 = vadd.f32 %v8415, %v8431
        %v8784 = vadd.f32 %v8416, %v8432
        %v8785 = vadd.f32 %v8417, %v8433
        %v8786 = vadd.f32 %v8418, %v8434
        %v8787 = vadd.f32 %v8419, %v8435
        %v8788 = vadd.f32 %v8420, %v8436
        %v8789 = vadd.f32 %v8421, %v8437
        %v8790 = vadd.f32 %v8422, %v8438
        %v8791 = vadd.f32 %v8423, %v8439
        %v8792 = vadd.f32 %v8424, %v8440
        %v8793 = vadd.f32 %v8425, %v8441
        %v8794 = vadd.f32 %v8426, %v8442
        %v8795 = vadd.f32 %v8443, %v8459
        %v8796 = vadd.f32 %v8444, %v8460
        %v8797 = vadd.f32 %v8445, %v8461
        %v8798 = vadd.f32 %v8446, %v8462
        %v8799 = vadd.f32 %v8447, %v8463
        %v8800 = vadd.f32 %v8448, %v8464
        %v8801 = vadd.f32 %v8449, %v8465
        %v8802 = vadd.f32 %v8450, %v8466
        %v8803 = vadd.f32 %v8451, %v8467
        %v8804 = vadd.f32 %v8452, %v8468
        %v8805 = vadd.f32 %v8453, %v8469
        %v8806 = vadd.f32 %v8454, %v8470
        %v8807 = vadd.f32 %v8455, %v8471
        %v8808 = vadd.f32 %v8456, %v8472
        %v8809 = vadd.f32 %v8457, %v8473
        %v8810 = vadd.f32 %v8458, %v8474
        %v8811 = vadd.f32 %v8475, %v8491
        %v8812 = vadd.f32 %v8476, %v8492
        %v8813 = vadd.f32 %v8477, %v8493
        %v8814 = vadd.f32 %v8478, %v8494
        %v8815 = vadd.f32 %v8479, %v8495
        %v8816 = vadd.f32 %v8480, %v8496
        %v8817 = vadd.f32 %v8481, %v8497
        %v8818 = vadd.f32 %v8482, %v8498
        %v8819 = vadd.f32 %v8483, %v8499
        %v8820 = vadd.f32 %v8484, %v8500
        %v8821 = vadd.f32 %v8485, %v8501
        %v8822 = vadd.f32 %v8486, %v8502
        %v8823 = vadd.f32 %v8487, %v8503
        %v8824 = vadd.f32 %v8488, %v8504
        %v8825 = vadd.f32 %v8489, %v8505
        %v8826 = vadd.f32 %v8490, %v8506
        %v8827 = vadd.f32 %v8507, %v8523
        %v8828 = vadd.f32 %v8508, %v8524
        %v8829 = vadd.f32 %v8509, %v8525
        %v8830 = vadd.f32 %v8510, %v8526
        %v8831 = vadd.f32 %v8511, %v8527
        %v8832 = vadd.f32 %v8512, %v8528
        %v8833 = vadd.f32 %v8513, %v8529
        %v8834 = vadd.f32 %v8514, %v8530
        %v8835 = vadd.f32 %v8515, %v8531
        %v8836 = vadd.f32 %v8516, %v8532
        %v8837 = vadd.f32 %v8517, %v8533
        %v8838 = vadd.f32 %v8518, %v8534
        %v8839 = vadd.f32 %v8519, %v8535
        %v8840 = vadd.f32 %v8520, %v8536
        %v8841 = vadd.f32 %v8521, %v8537
        %v8842 = vadd.f32 %v8522, %v8538
        %v8843 = vadd.f32 %v8539, %v8555
        %v8844 = vadd.f32 %v8540, %v8556
        %v8845 = vadd.f32 %v8541, %v8557
        %v8846 = vadd.f32 %v8542, %v8558
        %v8847 = vadd.f32 %v8543, %v8559
        %v8848 = vadd.f32 %v8544, %v8560
        %v8849 = vadd.f32 %v8545, %v8561
        %v8850 = vadd.f32 %v8546, %v8562
        %v8851 = vadd.f32 %v8547, %v8563
        %v8852 = vadd.f32 %v8548, %v8564
        %v8853 = vadd.f32 %v8549, %v8565
        %v8854 = vadd.f32 %v8550, %v8566
        %v8855 = vadd.f32 %v8551, %v8567
        %v8856 = vadd.f32 %v8552, %v8568
        %v8857 = vadd.f32 %v8553, %v8569
        %v8858 = vadd.f32 %v8554, %v8570
        %v8859 = vadd.f32 %v8571, %v8587
        %v8860 = vadd.f32 %v8572, %v8588
        %v8861 = vadd.f32 %v8573, %v8589
        %v8862 = vadd.f32 %v8574, %v8590
        %v8863 = vadd.f32 %v8575, %v8591
        %v8864 = vadd.f32 %v8576, %v8592
        %v8865 = vadd.f32 %v8577, %v8593
        %v8866 = vadd.f32 %v8578, %v8594
        %v8867 = vadd.f32 %v8579, %v8595
        %v8868 = vadd.f32 %v8580, %v8596
        %v8869 = vadd.f32 %v8581, %v8597
        %v8870 = vadd.f32 %v8582, %v8598
        %v8871 = vadd.f32 %v8583, %v8599
        %v8872 = vadd.f32 %v8584, %v8600
        %v8873 = vadd.f32 %v8585, %v8601
        %v8874 = vadd.f32 %v8586, %v8602
        %v8875 = vadd.f32 %v8603, %v8619
        %v8876 = vadd.f32 %v8604, %v8620
        %v8877 = vadd.f32 %v8605, %v8621
        %v8878 = vadd.f32 %v8606, %v8622
        %v8879 = vadd.f32 %v8607, %v8623
        %v8880 = vadd.f32 %v8608, %v8624
        %v8881 = vadd.f32 %v8609, %v8625
        %v8882 = vadd.f32 %v8610, %v8626
        %v8883 = vadd.f32 %v8611, %v8627
        %v8884 = vadd.f32 %v8612, %v8628
        %v8885 = vadd.f32 %v8613, %v8629
        %v8886 = vadd.f32 %v8614, %v8630
        %v8887 = vadd.f32 %v8615, %v8631
        %v8888 = vadd.f32 %v8616, %v8632
        %v8889 = vadd.f32 %v8617, %v8633
        %v8890 = vadd.f32 %v8618, %v8634
        %v8891 = vadd.f32 %v8635, %v8651
        %v8892 = vadd.f32 %v8636, %v8652
        %v8893 = vadd.f32 %v8637, %v8653
        %v8894 = vadd.f32 %v8638, %v8654
        %v8895 = vadd.f32 %v8639, %v8655
        %v8896 = vadd.f32 %v8640, %v8656
        %v8897 = vadd.f32 %v8641, %v8657
        %v8898 = vadd.f32 %v8642, %v8658
        %v8899 = vadd.f32 %v8643, %v8659
        %v8900 = vadd.f32 %v8644, %v8660
        %v8901 = vadd.f32 %v8645, %v8661
        %v8902 = vadd.f32 %v8646, %v8662
        %v8903 = vadd.f32 %v8647, %v8663
        %v8904 = vadd.f32 %v8648, %v8664
        %v8905 = vadd.f32 %v8649, %v8665
        %v8906 = vadd.f32 %v8650, %v8666
        %v8907 = vadd.f32 %v8667, %v8683
        %v8908 = vadd.f32 %v8668, %v8684
        %v8909 = vadd.f32 %v8669, %v8685
        %v8910 = vadd.f32 %v8670, %v8686
        %v8911 = vadd.f32 %v8671, %v8687
        %v8912 = vadd.f32 %v8672, %v8688
        %v8913 = vadd.f32 %v8673, %v8689
        %v8914 = vadd.f32 %v8674, %v8690
        %v8915 = vadd.f32 %v8675, %v8691
        %v8916 = vadd.f32 %v8676, %v8692
        %v8917 = vadd.f32 %v8677, %v8693
        %v8918 = vadd.f32 %v8678, %v8694
        %v8919 = vadd.f32 %v8679, %v8695
        %v8920 = vadd.f32 %v8680, %v8696
        %v8921 = vadd.f32 %v8681, %v8697
        %v8922 = vadd.f32 %v8682, %v8698
        %v8923 = vadd.f32 %v8699, %v8715
        %v8924 = vadd.f32 %v8700, %v8716
        %v8925 = vadd.f32 %v8701, %v8717
        %v8926 = vadd.f32 %v8702, %v8718
        %v8927 = vadd.f32 %v8703, %v8719
        %v8928 = vadd.f32 %v8704, %v8720
        %v8929 = vadd.f32 %v8705, %v8721
        %v8930 = vadd.f32 %v8706, %v8722
        %v8931 = vadd.f32 %v8707, %v8723
        %v8932 = vadd.f32 %v8708, %v8724
        %v8933 = vadd.f32 %v8709, %v8725
        %v8934 = vadd.f32 %v8710, %v8726
        %v8935 = vadd.f32 %v8711, %v8727
        %v8936 = vadd.f32 %v8712, %v8728
        %v8937 = vadd.f32 %v8713, %v8729
        %v8938 = vadd.f32 %v8714, %v8730
        %v8939 = vadd.f32 %v8731, %v8747
        %v8940 = vadd.f32 %v8732, %v8748
        %v8941 = vadd.f32 %v8733, %v8749
        %v8942 = vadd.f32 %v8734, %v8750
        %v8943 = vadd.f32 %v8735, %v8751
        %v8944 = vadd.f32 %v8736, %v8752
        %v8945 = vadd.f32 %v8737, %v8753
        %v8946 = vadd.f32 %v8738, %v8754
        %v8947 = vadd.f32 %v8739, %v8755
        %v8948 = vadd.f32 %v8740, %v8756
        %v8949 = vadd.f32 %v8741, %v8757
        %v8950 = vadd.f32 %v8742, %v8758
        %v8951 = vadd.f32 %v8743, %v8759
        %v8952 = vadd.f32 %v8744, %v8760
        %v8953 = vadd.f32 %v8745, %v8761
        %v8954 = vadd.f32 %v8746, %v8762
        %v8955 = vadd.f32 %v8763, %v8779
        %v8956 = vadd.f32 %v8764, %v8780
        %v8957 = vadd.f32 %v8765, %v8781
        %v8958 = vadd.f32 %v8766, %v8782
        %v8959 = vadd.f32 %v8767, %v8783
        %v8960 = vadd.f32 %v8768, %v8784
        %v8961 = vadd.f32 %v8769, %v8785
        %v8962 = vadd.f32 %v8770, %v8786
        %v8963 = vadd.f32 %v8771, %v8787
        %v8964 = vadd.f32 %v8772, %v8788
        %v8965 = vadd.f32 %v8773, %v8789
        %v8966 = vadd.f32 %v8774, %v8790
        %v8967 = vadd.f32 %v8775, %v8791
        %v8968 = vadd.f32 %v8776, %v8792
        %v8969 = vadd.f32 %v8777, %v8793
        %v8970 = vadd.f32 %v8778, %v8794
        %v8971 = vadd.f32 %v8795, %v8811
        %v8972 = vadd.f32 %v8796, %v8812
        %v8973 = vadd.f32 %v8797, %v8813
        %v8974 = vadd.f32 %v8798, %v8814
        %v8975 = vadd.f32 %v8799, %v8815
        %v8976 = vadd.f32 %v8800, %v8816
        %v8977 = vadd.f32 %v8801, %v8817
        %v8978 = vadd.f32 %v8802, %v8818
        %v8979 = vadd.f32 %v8803, %v8819
        %v8980 = vadd.f32 %v8804, %v8820
        %v8981 = vadd.f32 %v8805, %v8821
        %v8982 = vadd.f32 %v8806, %v8822
        %v8983 = vadd.f32 %v8807, %v8823
        %v8984 = vadd.f32 %v8808, %v8824
        %v8985 = vadd.f32 %v8809, %v8825
        %v8986 = vadd.f32 %v8810, %v8826
        %v8987 = vadd.f32 %v8827, %v8843
        %v8988 = vadd.f32 %v8828, %v8844
        %v8989 = vadd.f32 %v8829, %v8845
        %v8990 = vadd.f32 %v8830, %v8846
        %v8991 = vadd.f32 %v8831, %v8847
        %v8992 = vadd.f32 %v8832, %v8848
        %v8993 = vadd.f32 %v8833, %v8849
        %v8994 = vadd.f32 %v8834, %v8850
        %v8995 = vadd.f32 %v8835, %v8851
        %v8996 = vadd.f32 %v8836, %v8852
        %v8997 = vadd.f32 %v8837, %v8853
        %v8998 = vadd.f32 %v8838, %v8854
        %v8999 = vadd.f32 %v8839, %v8855
        %v9000 = vadd.f32 %v8840, %v8856
        %v9001 = vadd.f32 %v8841, %v8857
        %v9002 = vadd.f32 %v8842, %v8858
        %v9003 = vadd.f32 %v8859, %v8875
        %v9004 = vadd.f32 %v8860, %v8876
        %v9005 = vadd.f32 %v8861, %v8877
        %v9006 = vadd.f32 %v8862, %v8878
        %v9007 = vadd.f32 %v8863, %v8879
        %v9008 = vadd.f32 %v8864, %v8880
        %v9009 = vadd.f32 %v8865, %v8881
        %v9010 = vadd.f32 %v8866, %v8882
        %v9011 = vadd.f32 %v8867, %v8883
        %v9012 = vadd.f32 %v8868, %v8884
        %v9013 = vadd.f32 %v8869, %v8885
        %v9014 = vadd.f32 %v8870, %v8886
        %v9015 = vadd.f32 %v8871, %v8887
        %v9016 = vadd.f32 %v8872, %v8888
        %v9017 = vadd.f32 %v8873, %v8889
        %v9018 = vadd.f32 %v8874, %v8890
        %v9019 = vadd.f32 %v8891, %v8907
        %v9020 = vadd.f32 %v8892, %v8908
        %v9021 = vadd.f32 %v8893, %v8909
        %v9022 = vadd.f32 %v8894, %v8910
        %v9023 = vadd.f32 %v8895, %v8911
        %v9024 = vadd.f32 %v8896, %v8912
        %v9025 = vadd.f32 %v8897, %v8913
        %v9026 = vadd.f32 %v8898, %v8914
        %v9027 = vadd.f32 %v8899, %v8915
        %v9028 = vadd.f32 %v8900, %v8916
        %v9029 = vadd.f32 %v8901, %v8917
        %v9030 = vadd.f32 %v8902, %v8918
        %v9031 = vadd.f32 %v8903, %v8919
        %v9032 = vadd.f32 %v8904, %v8920
        %v9033 = vadd.f32 %v8905, %v8921
        %v9034 = vadd.f32 %v8906, %v8922
        %v9035 = vadd.f32 %v8923, %v8939
        %v9036 = vadd.f32 %v8924, %v8940
        %v9037 = vadd.f32 %v8925, %v8941
        %v9038 = vadd.f32 %v8926, %v8942
        %v9039 = vadd.f32 %v8927, %v8943
        %v9040 = vadd.f32 %v8928, %v8944
        %v9041 = vadd.f32 %v8929, %v8945
        %v9042 = vadd.f32 %v8930, %v8946
        %v9043 = vadd.f32 %v8931, %v8947
        %v9044 = vadd.f32 %v8932, %v8948
        %v9045 = vadd.f32 %v8933, %v8949
        %v9046 = vadd.f32 %v8934, %v8950
        %v9047 = vadd.f32 %v8935, %v8951
        %v9048 = vadd.f32 %v8936, %v8952
        %v9049 = vadd.f32 %v8937, %v8953
        %v9050 = vadd.f32 %v8938, %v8954
        %v9051 = vadd.f32 %v8955, %v8971
        %v9052 = vadd.f32 %v8956, %v8972
        %v9053 = vadd.f32 %v8957, %v8973
        %v9054 = vadd.f32 %v8958, %v8974
        %v9055 = vadd.f32 %v8959, %v8975
        %v9056 = vadd.f32 %v8960, %v8976
        %v9057 = vadd.f32 %v8961, %v8977
        %v9058 = vadd.f32 %v8962, %v8978
        %v9059 = vadd.f32 %v8963, %v8979
        %v9060 = vadd.f32 %v8964, %v8980
        %v9061 = vadd.f32 %v8965, %v8981
        %v9062 = vadd.f32 %v8966, %v8982
        %v9063 = vadd.f32 %v8967, %v8983
        %v9064 = vadd.f32 %v8968, %v8984
        %v9065 = vadd.f32 %v8969, %v8985
        %v9066 = vadd.f32 %v8970, %v8986
        %v9067 = vadd.f32 %v8987, %v9003
        %v9068 = vadd.f32 %v8988, %v9004
        %v9069 = vadd.f32 %v8989, %v9005
        %v9070 = vadd.f32 %v8990, %v9006
        %v9071 = vadd.f32 %v8991, %v9007
        %v9072 = vadd.f32 %v8992, %v9008
        %v9073 = vadd.f32 %v8993, %v9009
        %v9074 = vadd.f32 %v8994, %v9010
        %v9075 = vadd.f32 %v8995, %v9011
        %v9076 = vadd.f32 %v8996, %v9012
        %v9077 = vadd.f32 %v8997, %v9013
        %v9078 = vadd.f32 %v8998, %v9014
        %v9079 = vadd.f32 %v8999, %v9015
        %v9080 = vadd.f32 %v9000, %v9016
        %v9081 = vadd.f32 %v9001, %v9017
        %v9082 = vadd.f32 %v9002, %v9018
        %v9083 = vadd.f32 %v9019, %v9035
        %v9084 = vadd.f32 %v9020, %v9036
        %v9085 = vadd.f32 %v9021, %v9037
        %v9086 = vadd.f32 %v9022, %v9038
        %v9087 = vadd.f32 %v9023, %v9039
        %v9088 = vadd.f32 %v9024, %v9040
        %v9089 = vadd.f32 %v9025, %v9041
        %v9090 = vadd.f32 %v9026, %v9042
        %v9091 = vadd.f32 %v9027, %v9043
        %v9092 = vadd.f32 %v9028, %v9044
        %v9093 = vadd.f32 %v9029, %v9045
        %v9094 = vadd.f32 %v9030, %v9046
        %v9095 = vadd.f32 %v9031, %v9047
        %v9096 = vadd.f32 %v9032, %v9048
        %v9097 = vadd.f32 %v9033, %v9049
        %v9098 = vadd.f32 %v9034, %v9050
        %v9099 = vadd.f32 %v9051, %v9067
        %v9100 = vadd.f32 %v9052, %v9068
        %v9101 = vadd.f32 %v9053, %v9069
        %v9102 = vadd.f32 %v9054, %v9070
        %v9103 = vadd.f32 %v9055, %v9071
        %v9104 = vadd.f32 %v9056, %v9072
        %v9105 = vadd.f32 %v9057, %v9073
        %v9106 = vadd.f32 %v9058, %v9074
        %v9107 = vadd.f32 %v9059, %v9075
        %v9108 = vadd.f32 %v9060, %v9076
        %v9109 = vadd.f32 %v9061, %v9077
        %v9110 = vadd.f32 %v9062, %v9078
        %v9111 = vadd.f32 %v9063, %v9079
        %v9112 = vadd.f32 %v9064, %v9080
        %v9113 = vadd.f32 %v9065, %v9081
        %v9114 = vadd.f32 %v9066, %v9082
        %v9115 = vadd.f32 %v9083, %v9099
        %v9116 = vadd.f32 %v9084, %v9100
        %v9117 = vadd.f32 %v9085, %v9101
        %v9118 = vadd.f32 %v9086, %v9102
        %v9119 = vadd.f32 %v9087, %v9103
        %v9120 = vadd.f32 %v9088, %v9104
        %v9121 = vadd.f32 %v9089, %v9105
        %v9122 = vadd.f32 %v9090, %v9106
        %v9123 = vadd.f32 %v9091, %v9107
        %v9124 = vadd.f32 %v9092, %v9108
        %v9125 = vadd.f32 %v9093, %v9109
        %v9126 = vadd.f32 %v9094, %v9110
        %v9127 = vadd.f32 %v9095, %v9111
        %v9128 = vadd.f32 %v9096, %v9112
        %v9129 = vadd.f32 %v9097, %v9113
        %v9130 = vadd.f32 %v9098, %v9114
        %v9131 = vadd.f32 %v329, %v9115
        %v9132 = vadd.f32 %v330, %v9116
        %v9133 = vadd.f32 %v331, %v9117
        %v9134 = vadd.f32 %v332, %v9118
        %v9135 = vadd.f32 %v333, %v9119
        %v9136 = vadd.f32 %v334, %v9120
        %v9137 = vadd.f32 %v335, %v9121
        %v9138 = vadd.f32 %v336, %v9122
        %v9139 = vadd.f32 %v337, %v9123
        %v9140 = vadd.f32 %v338, %v9124
        %v9141 = vadd.f32 %v339, %v9125
        %v9142 = vadd.f32 %v340, %v9126
        %v9143 = vadd.f32 %v341, %v9127
        %v9144 = vadd.f32 %v342, %v9128
        %v9145 = vadd.f32 %v343, %v9129
        %v9146 = vadd.f32 %v344, %v9130
        %9147 = vst [vmem:[%s325] sm:$0xff] %v9131
        %9148 = vst [vmem:[%s325 + $0x8] sm:$0xff] %v9132
        %9149 = vst [vmem:[%s325 + $0x10] sm:$0xff] %v9133
        %9150 = vst [vmem:[%s325 + $0x18] sm:$0xff] %v9134
        %9151 = vst [vmem:[%s325 + $0x20] sm:$0xff] %v9135
        %9152 = vst [vmem:[%s325 + $0x28] sm:$0xff] %v9136
        %9153 = vst [vmem:[%s325 + $0x30] sm:$0xff] %v9137
        %9154 = vst [vmem:[%s325 + $0x38] sm:$0xff] %v9138
        %9155 = vst [vmem:[%s325 + $0x40] sm:$0xff] %v9139
        %9156 = vst [vmem:[%s325 + $0x48] sm:$0xff] %v9140
        %9157 = vst [vmem:[%s325 + $0x50] sm:$0xff] %v9141
        %9158 = vst [vmem:[%s325 + $0x58] sm:$0xff] %v9142
        %9159 = vst [vmem:[%s325 + $0x60] sm:$0xff] %v9143
        %9160 = vst [vmem:[%s325 + $0x68] sm:$0xff] %v9144
        %9161 = vst [vmem:[%s325 + $0x70] sm:$0xff] %v9145
        %9162 = vst [vmem:[%s325 + $0x78] sm:$0xff] %v9146
        %s9163 = sand.u32 %s185, 1
        %s9164 = scalar_lea.sflag [#allocation4], %s9163
        %s9165 = sand.u32 %s185, 1
        %s9166 = smul.addr %s9165, 128
        %s9167 = scalar_lea.vmem [#allocation8], %s9166
        // Predicated region
        $region61: #{tpu_custom_call.1} parent=47 // pred_check
          %p9168 = pneg %p195
        $region62: #{tpu_custom_call.1} parent=47 // pred_check_branch
          %9170 = sbr.rel (%p9168) target = $region64
        $region63: #{tpu_custom_call.1} parent=47 // pred_region
          %s9171 = smul.u32 16, %s25
          %s9173 = ssub.s32 2048, 2048
          %9174 = vsyncadd %s9164, %s9173
          %s9175 = smul.addr %s9171, 128
          %s9176 = scalar_lea.hbm %s7, %s9175
          %s9177 = sshll.u32 %s9167, 4
          %s9178 = int_to_ptr.vmem [resolvable:$true] %s9177
          %9183 = dma.vmem_to_hbm [thread:$0]  %s9178, 2048, %s9176, %s9164, 128, 128, 8
        $region64: #{tpu_custom_call.1} parent=47 // pred_fallthru
          _
      $region48: #{tpu_custom_call.1} parent=5 // pred_fallthru
        _
      %p9184 = scmp.le.s32.totalorder 2, %s20
      // Predicated region
      $region65: #{tpu_custom_call.1} parent=5 // pred_check
        %p9185 = pneg %p9184
      $region66: #{tpu_custom_call.1} parent=5 // pred_check_branch
        %9187 = sbr.rel (%p9185) target = $region68
      $region67: #{tpu_custom_call.1} parent=5 // pred_region
        %s9188 = ssub.s32 %s20, 2
        // Predicated region
        $region69: #{tpu_custom_call.1} parent=67 // pred_check
          %p9189 = pneg %p201
        $region70: #{tpu_custom_call.1} parent=67 // pred_check_branch
          %9191 = sbr.rel (%p9189) target = $region72
        $region71: #{tpu_custom_call.1} parent=67 // pred_region
          %s9192 = sand.u32 %s186, 1
          %s9193 = scalar_lea.sflag [#allocation4], %s9192
          %s9194 = sand.u32 %s186, 1
          %s9195 = smul.addr %s9194, 128
          %s9196 = scalar_lea.vmem [#allocation8], %s9195
          %9197 = dma.done %s9193, 2048
        $region72: #{tpu_custom_call.1} parent=67 // pred_fallthru
          _
      $region68: #{tpu_custom_call.1} parent=5 // pred_fallthru
        _
    $region6: #{tpu_custom_call.1} parent=1 // loop_footer
      %s24 = sadd.s32 1, %s20
    $region7: #{tpu_custom_call.1} parent=1 // loop_footer_branch
      %19 = sbr.rel target = $region3
    $region8: #{tpu_custom_call.1} parent=1 // loop_exit
      _
    %9198 = vsyncpa [#allocation3], 1
    %s9199 = scalar_lea.sflag [#allocation3], 1
    %9200 = vsyncpa %s9199, 1
    %9201 = vsyncpa [#allocation6], 1
    %9202 = vsyncpa [#allocation4], 1
    %s9203 = scalar_lea.sflag [#allocation4], 1
    %9204 = vsyncpa %s9203, 1

</llo_original>
